<compile_context>
chip_gen: v6e
topology: v6e:2x2x1
jax: 0.10.0
libtpu: 0.0.40
codegen_flags: <defaults>
</compile_context>

<pallas_src>
import functools

import jax
import jax.numpy as jnp
from jax.experimental import pallas as pl

# ----------------------------- config --------------------------------------
IMG_C = 3
PATCH = 8
C_BACKBONE = 64        # main backbone output channels
C_CLS_BACKBONE = 48    # classification-highway backbone channels
C_REG_BACKBONE = 48    # regression-highway backbone channels
D_MODEL = 32           # transformer.d_model
D_CLS = 16             # classification_highway_transformer.d_model
D_REG = 16             # regression_highway_transformer.d_model
FFN_DIM = 64
HEAD_HIDDEN = 32
LN_EPS = 1e-5

D_ALL = D_MODEL + D_CLS + D_REG            # 64
C_ALL = C_BACKBONE + C_CLS_BACKBONE + C_REG_BACKBONE   # 160
PATCH_IN = PATCH * PATCH * IMG_C           # 192


# ------------------------- Pallas kernels ----------------------------------
def _features_kernel(zt_ref, xt_ref, wb_ref, bb_ref, wp_ref, bp_ref,
                     zo_ref, xo_ref):
    """Fused: combined backbone matmul + ReLU + block-diag input-proj matmul."""
    wb = wb_ref[...]
    bb = bb_ref[...]
    wp = wp_ref[...]
    bp = bp_ref[...]

    def proj(tok):
        feat = jnp.maximum(
            jnp.dot(tok, wb, preferred_element_type=jnp.float32) + bb, 0.0)
        return jnp.dot(feat, wp, preferred_element_type=jnp.float32) + bp

    zo_ref[...] = proj(zt_ref[...])
    xo_ref[...] = proj(xt_ref[...])


def _layernorm(h, g, b):
    mu = jnp.mean(h, axis=-1, keepdims=True)
    var = jnp.mean(jnp.square(h - mu), axis=-1, keepdims=True)
    return (h - mu) * jax.lax.rsqrt(var + LN_EPS) * g + b


def _one_fusion(zf, xf, zp, xp, nz, nx,
                wqkvo, bqkvo, wff1, bff1, wff2, bff2, ln):
    """TransT-style fusion block on 2D [B*N, D] activations (one highway)."""
    d = zf.shape[-1]
    scale = 1.0 / float(d) ** 0.5
    wq, wk, wv, wo = (wqkvo[:, j * d:(j + 1) * d] for j in range(4))
    bq, bk, bv, bo = (bqkvo[:, j * d:(j + 1) * d] for j in range(4))

    q = jnp.dot(xf + xp, wq, preferred_element_type=jnp.float32) + bq   # [B*nx, d]
    k = jnp.dot(zf + zp, wk, preferred_element_type=jnp.float32) + bk   # [B*nz, d]
    v = jnp.dot(zf, wv, preferred_element_type=jnp.float32) + bv        # [B*nz, d]

    nb = q.shape[0] // nx          # static batch count
    att = []
    for b in range(nb):
        qb = q[b * nx:(b + 1) * nx]
        kb = k[b * nz:(b + 1) * nz]
        vb = v[b * nz:(b + 1) * nz]
        # q @ k^T via dot_general (no explicit transpose on the XLU path).
        s = jax.lax.dot_general(qb, kb, (((1,), (1,)), ((), ())),
                                preferred_element_type=jnp.float32) * scale
        m = jnp.max(s, axis=-1, keepdims=True)
        p = jnp.exp(s - m)
        p = p * pl.reciprocal(jnp.sum(p, axis=-1, keepdims=True), approx=True)
        att.append(jnp.dot(p, vb, preferred_element_type=jnp.float32))
    attn = jnp.concatenate(att, axis=0)                                 # [B*nx, d]

    o = jnp.dot(attn, wo, preferred_element_type=jnp.float32) + bo
    h = _layernorm(xf + o, ln[0:1], ln[1:2])
    ff = jnp.maximum(
        jnp.dot(h, wff1, preferred_element_type=jnp.float32) + bff1, 0.0)
    ff = jnp.dot(ff, wff2, preferred_element_type=jnp.float32) + bff2
    return _layernorm(h + ff, ln[2:3], ln[3:4])


def _fusion3_kernel(*refs, nz, nx, dims):
    """All three highway fusion transformers fused in one kernel.

    refs = (z_all, x_all, z_pos, x_pos, 7 weight refs x 3 highways, out_ref).
    """
    z_all = refs[0][...]
    x_all = refs[1][...]
    z_pos = refs[2][...]
    x_pos = refs[3][...]
    o_ref = refs[-1]

    outs = []
    off = 0
    for i, d in enumerate(dims):
        w = [r[...] for r in refs[4 + 7 * i: 4 + 7 * (i + 1)]]
        lo, hi = off, off + d
        off = hi
        outs.append(_one_fusion(
            z_all[:, lo:hi], x_all[:, lo:hi],
            z_pos[:, lo:hi], x_pos[:, lo:hi],
            nz, nx, *w))
    o_ref[...] = jnp.concatenate(outs, axis=-1)


def _head_kernel(h_ref, wh1_ref, bh1_ref, wc2_ref, bc2_ref, wr2_ref, br2_ref,
                 cls_ref, reg_ref):
    """Fused head: the torch.cat is folded into zero-padded packed weights."""
    hid = jnp.maximum(
        jnp.dot(h_ref[...], wh1_ref[...],
                preferred_element_type=jnp.float32) + bh1_ref[...], 0.0)
    cls_ref[...] = (jnp.dot(hid, wc2_ref[...],
                            preferred_element_type=jnp.float32) + bc2_ref[...])
    reg_ref[...] = jax.nn.sigmoid(
        jnp.dot(hid, wr2_ref[...],
                preferred_element_type=jnp.float32) + br2_ref[...])


# ------------------------- pallas_call wrappers ------------------------------
def features_call(z_tok, x_tok, p):
    d_all = p["wp_bd"].shape[1]
    return pl.pallas_call(
        _features_kernel,
        out_shape=(jax.ShapeDtypeStruct((z_tok.shape[0], d_all), jnp.float32),
                   jax.ShapeDtypeStruct((x_tok.shape[0], d_all), jnp.float32)),
    )(z_tok, x_tok, p["wb_all"], p["bb_all"], p["wp_bd"], p["bp_all"])


def fusion3_call(z_all, x_all, z_pos, x_pos, tr_params, nz, nx):
    m_x, d_all = x_all.shape
    w_args = []
    for t in tr_params:
        w_args += [t["wqkvo"], t["bqkvo"], t["wff1"], t["bff1"],
                   t["wff2"], t["bff2"], t["ln"]]
    kernel = functools.partial(_fusion3_kernel, nz=nz, nx=nx,
                               dims=(D_MODEL, D_CLS, D_REG))
    return pl.pallas_call(
        kernel,
        out_shape=jax.ShapeDtypeStruct((m_x, d_all), jnp.float32),
    )(z_all, x_all, z_pos, x_pos, *w_args)


def head_call(hs_all, p):
    m = hs_all.shape[0]
    return pl.pallas_call(
        _head_kernel,
        out_shape=(jax.ShapeDtypeStruct((m, 2), jnp.float32),
                   jax.ShapeDtypeStruct((m, 4), jnp.float32)),
    )(hs_all, p["wh1"], p["bh1"], p["wc2"], p["bc2"], p["wr2"], p["br2"])


# --------------------------- glue (plain JAX) -------------------------------
def patchify(img_nchw, patch):
    """NCHW image -> tokens [B*(H/p)*(W/p), p*p*C] (2D, token-major)."""
    B, C, H, W = img_nchw.shape
    x = jnp.transpose(img_nchw, (0, 2, 3, 1))                # NHWC
    hp, wp_ = H // patch, W // patch
    x = x.reshape(B, hp, patch, wp_, patch, C)
    x = jnp.transpose(x, (0, 1, 3, 2, 4, 5)).reshape(
        B * hp * wp_, patch * patch * C)
    return x, hp, wp_


def sine_pos_encoding(H, W, d_model):
    """DETR-style 2D sine encoding, returns [H*W, d_model]."""
    num_pos_feats = d_model // 2
    y = jnp.arange(H, dtype=jnp.float32)[:, None, None]       # H,1,1
    x = jnp.arange(W, dtype=jnp.float32)[None, :, None]       # 1,W,1
    dim_t = jnp.arange(num_pos_feats, dtype=jnp.float32)
    dim_t = 10000.0 ** (2.0 * jnp.floor(dim_t / 2.0) / num_pos_feats)
    pos_x = x / dim_t                                          # 1,W,F
    pos_y = y / dim_t                                          # H,1,F
    pos_x = jnp.concatenate(
        [jnp.sin(pos_x[..., 0::2]), jnp.cos(pos_x[..., 1::2])], axis=-1)
    pos_y = jnp.concatenate(
        [jnp.sin(pos_y[..., 0::2]), jnp.cos(pos_y[..., 1::2])], axis=-1)
    pos_x = jnp.broadcast_to(pos_x, (H, W, num_pos_feats))
    pos_y = jnp.broadcast_to(pos_y, (H, W, num_pos_feats))
    pos = jnp.concatenate([pos_y, pos_x], axis=-1)             # H,W,d_model
    return pos.reshape(H * W, d_model)


# -------------------------- parameter init ----------------------------------
def _dense(key, fan_in, fan_out):
    w = 0.02 * jax.random.normal(key, (fan_in, fan_out), jnp.float32)
    b = jnp.zeros((fan_out,), jnp.float32)
    return {"w": w, "b": b}


def _transformer_params(key, d_model, ffn):
    ks = jax.random.split(key, 6)
    return {
        "q": _dense(ks[0], d_model, d_model),
        "k": _dense(ks[1], d_model, d_model),
        "v": _dense(ks[2], d_model, d_model),
        "o": _dense(ks[3], d_model, d_model),
        "ff1": _dense(ks[4], d_model, ffn),
        "ff2": _dense(ks[5], ffn, d_model),
        "ln1_g": jnp.ones((d_model,), jnp.float32),
        "ln1_b": jnp.zeros((d_model,), jnp.float32),
        "ln2_g": jnp.ones((d_model,), jnp.float32),
        "ln2_b": jnp.zeros((d_model,), jnp.float32),
    }


def init_raw_params(key):
    ks = jax.random.split(key, 12)
    return {
        # backbones (patch-embed linear)
        "backbone": _dense(ks[0], PATCH_IN, C_BACKBONE),
        "cls_backbone": _dense(ks[1], PATCH_IN, C_CLS_BACKBONE),
        "reg_backbone": _dense(ks[2], PATCH_IN, C_REG_BACKBONE),
        # input projections (1x1 convs)
        "input_proj": _dense(ks[3], C_BACKBONE, D_MODEL),
        "cls_input_proj": _dense(ks[4], C_CLS_BACKBONE, D_CLS),
        "reg_input_proj": _dense(ks[5], C_REG_BACKBONE, D_REG),
        # transformers
        "transformer": _transformer_params(ks[6], D_MODEL, FFN_DIM),
        "cls_transformer": _transformer_params(ks[7], D_CLS, FFN_DIM),
        "reg_transformer": _transformer_params(ks[8], D_REG, FFN_DIM),
        # head
        "cls_head1": _dense(ks[9], D_MODEL + D_CLS, HEAD_HIDDEN),
        "cls_head2": _dense(ks[10], HEAD_HIDDEN, 2),
        "reg_head1": _dense(ks[11], D_MODEL + D_REG, HEAD_HIDDEN),
        "reg_head2": _dense(jax.random.fold_in(key, 99), HEAD_HIDDEN, 4),
    }


def pack_params(raw, batch, z_hw, x_hw):
    """Pack raw per-module params into the fused / zero-padded kernel layout."""
    # --- feature stage: combined backbones + block-diagonal input projections
    wb_all = jnp.concatenate(
        [raw["backbone"]["w"], raw["cls_backbone"]["w"], raw["reg_backbone"]["w"]],
        axis=1)                                                    # [192, 160]
    bb_all = jnp.concatenate(
        [raw["backbone"]["b"], raw["cls_backbone"]["b"],
         raw["reg_backbone"]["b"]])[None, :]                       # [1, 160]

    wp_bd = jnp.zeros((C_ALL, D_ALL), jnp.float32)
    wp_bd = wp_bd.at[:C_BACKBONE, :D_MODEL].set(raw["input_proj"]["w"])
    wp_bd = wp_bd.at[C_BACKBONE:C_BACKBONE + C_CLS_BACKBONE,
                     D_MODEL:D_MODEL + D_CLS].set(raw["cls_input_proj"]["w"])
    wp_bd = wp_bd.at[C_BACKBONE + C_CLS_BACKBONE:,
                     D_MODEL + D_CLS:].set(raw["reg_input_proj"]["w"])
    bp_all = jnp.concatenate(
        [raw["input_proj"]["b"], raw["cls_input_proj"]["b"],
         raw["reg_input_proj"]["b"]])[None, :]                     # [1, 64]

    # --- per-highway transformer packing
    def pack_tr(t):
        return {
            "wqkvo": jnp.concatenate(
                [t["q"]["w"], t["k"]["w"], t["v"]["w"], t["o"]["w"]], axis=1),
            "bqkvo": jnp.concatenate(
                [t["q"]["b"], t["k"]["b"], t["v"]["b"], t["o"]["b"]])[None, :],
            "wff1": t["ff1"]["w"], "bff1": t["ff1"]["b"][None, :],
            "wff2": t["ff2"]["w"], "bff2": t["ff2"]["b"][None, :],
            "ln": jnp.stack(
                [t["ln1_g"], t["ln1_b"], t["ln2_g"], t["ln2_b"]], axis=0),
        }

    # --- position-encoding tables, precomputed and batch-tiled once
    def pos_table(hw):
        hp, wp_ = hw
        pos = jnp.concatenate([sine_pos_encoding(hp, wp_, D_MODEL),
                               sine_pos_encoding(hp, wp_, D_CLS),
                               sine_pos_encoding(hp, wp_, D_REG)], axis=-1)
        return jnp.tile(pos, (batch, 1))                           # [B*N, 64]

    # --- head: fold the torch.cat into zero-padded weights
    H = HEAD_HIDDEN
    wc1_full = jnp.zeros((D_ALL, H), jnp.float32).at[
        :D_MODEL + D_CLS].set(raw["cls_head1"]["w"])
    wr1_full = (jnp.zeros((D_ALL, H), jnp.float32)
                .at[:D_MODEL].set(raw["reg_head1"]["w"][:D_MODEL])
                .at[D_MODEL + D_CLS:].set(raw["reg_head1"]["w"][D_MODEL:]))
    wh1 = jnp.concatenate([wc1_full, wr1_full], axis=1)            # [64, 2H]
    bh1 = jnp.concatenate(
        [raw["cls_head1"]["b"], raw["reg_head1"]["b"]])[None, :]   # [1, 2H]
    wc2 = jnp.zeros((2 * H, 2), jnp.float32).at[:H].set(raw["cls_head2"]["w"])
    wr2 = jnp.zeros((2 * H, 4), jnp.float32).at[H:].set(raw["reg_head2"]["w"])

    return {
        "wb_all": wb_all, "bb_all": bb_all, "wp_bd": wp_bd, "bp_all": bp_all,
        "z_pos": pos_table(z_hw), "x_pos": pos_table(x_hw),
        "tr": [pack_tr(raw["transformer"]),
               pack_tr(raw["cls_transformer"]),
               pack_tr(raw["reg_transformer"])],
        "wh1": wh1, "bh1": bh1,
        "wc2": wc2, "bc2": raw["cls_head2"]["b"][None, :],
        "wr2": wr2, "br2": raw["reg_head2"]["b"][None, :],
    }


# ------------------------------ forward -------------------------------------
def transt_trask_highway_forward(packed, z, x):
    """z, x: NCHW images (template / search).  Returns (logits, boxes)."""
    b = z.shape[0]
    z_tok, hz, wz = patchify(z, PATCH)
    x_tok, hx, wx = patchify(x, PATCH)
    nz, nx = hz * wz, hx * wx

    # 1) fused backbones + input projections for template and search.
    z_all, x_all = features_call(z_tok, x_tok, packed)
    # 2) all three highway fusion transformers fused into one kernel.
    hs_all = fusion3_call(z_all, x_all, packed["z_pos"], packed["x_pos"],
                          packed["tr"], nz, nx)
    # 3) fused head (cat folded into packed weights, ReLU/sigmoid in-kernel).
    logits2d, boxes2d = head_call(hs_all, packed)
    return logits2d.reshape(b, nx, 2), boxes2d.reshape(b, nx, 4)


# ------------------------------- main ---------------------------------------
if __name__ == "__main__":
    key = jax.random.PRNGKey(0)
    kp, kz, kx = jax.random.split(key, 3)
    raw_params = init_raw_params(kp)

    B = 2
    # NCHW inputs (PyTorch convention): template 32x32, search 64x64.
    z = jax.random.normal(kz, (B, IMG_C, 32, 32), jnp.float32)
    x = jax.random.normal(kx, (B, IMG_C, 64, 64), jnp.float32)

    packed = pack_params(raw_params, B,
                         z_hw=(32 // PATCH, 32 // PATCH),
                         x_hw=(64 // PATCH, 64 // PATCH))

    fwd = jax.jit(transt_trask_highway_forward)
    logits, boxes = fwd(packed, z, x)
    jax.block_until_ready((logits, boxes))

    assert logits.shape == (B, 64, 2), logits.shape
    assert boxes.shape == (B, 64, 4), boxes.shape
    assert bool(jnp.isfinite(logits).all()) and bool(jnp.isfinite(boxes).all())
    print("KERNEL_OK")
</pallas_src>

<mosaic_0001>
module attributes {stable_mosaic.version = 11 : i64} {
  func.func @_features_kernel(%arg0: memref<32x192xf32, #tpu.memory_space<vmem>>, %arg1: memref<128x192xf32, #tpu.memory_space<vmem>>, %arg2: memref<192x160xf32, #tpu.memory_space<vmem>>, %arg3: memref<1x160xf32, #tpu.memory_space<vmem>>, %arg4: memref<160x64xf32, #tpu.memory_space<vmem>>, %arg5: memref<1x64xf32, #tpu.memory_space<vmem>>, %arg6: memref<32x64xf32, #tpu.memory_space<vmem>>, %arg7: memref<128x64xf32, #tpu.memory_space<vmem>>) attributes {dimension_semantics = [], scalar_prefetch = 0 : i64, scratch_operands = 0 : i64, tpu.core_type = #tpu.core_type<tc>} {
    %c0 = arith.constant 0 : index
    %c0_0 = arith.constant 0 : index
    %0 = vector.load %arg2[%c0, %c0_0] : memref<192x160xf32, #tpu.memory_space<vmem>>, vector<192x160xf32>
    %c0_1 = arith.constant 0 : index
    %c0_2 = arith.constant 0 : index
    %1 = vector.load %arg3[%c0_1, %c0_2] : memref<1x160xf32, #tpu.memory_space<vmem>>, vector<1x160xf32>
    %c0_3 = arith.constant 0 : index
    %c0_4 = arith.constant 0 : index
    %2 = vector.load %arg4[%c0_3, %c0_4] : memref<160x64xf32, #tpu.memory_space<vmem>>, vector<160x64xf32>
    %c0_5 = arith.constant 0 : index
    %c0_6 = arith.constant 0 : index
    %3 = vector.load %arg5[%c0_5, %c0_6] : memref<1x64xf32, #tpu.memory_space<vmem>>, vector<1x64xf32>
    %c0_7 = arith.constant 0 : index
    %c0_8 = arith.constant 0 : index
    %4 = vector.load %arg0[%c0_7, %c0_8] : memref<32x192xf32, #tpu.memory_space<vmem>>, vector<32x192xf32>
    %cst = arith.constant dense<0.000000e+00> : vector<32x160xf32>
    %5 = tpu.matmul %4, %0, %cst {dimension_numbers = #tpu.dot_dimension_numbers<[1], [0], [0], [1], [0, 0, 1, 1], [], []>} : vector<32x192xf32>, vector<192x160xf32>, vector<32x160xf32> -> vector<32x160xf32>
    %6 = vector.broadcast %1 : vector<1x160xf32> to vector<32x160xf32>
    %7 = arith.addf %5, %6 : vector<32x160xf32>
    %cst_9 = arith.constant 0.000000e+00 : f32
    %8 = vector.broadcast %cst_9 : f32 to vector<32x160xf32>
    %9 = arith.maximumf %7, %8 : vector<32x160xf32>
    %cst_10 = arith.constant dense<0.000000e+00> : vector<32x64xf32>
    %10 = tpu.matmul %9, %2, %cst_10 {dimension_numbers = #tpu.dot_dimension_numbers<[1], [0], [0], [1], [0, 0, 1, 1], [], []>} : vector<32x160xf32>, vector<160x64xf32>, vector<32x64xf32> -> vector<32x64xf32>
    %11 = vector.broadcast %3 : vector<1x64xf32> to vector<32x64xf32>
    %12 = arith.addf %10, %11 : vector<32x64xf32>
    %c0_11 = arith.constant 0 : index
    %c0_12 = arith.constant 0 : index
    %13 = vector.load %arg6[%c0_11, %c0_12] : memref<32x64xf32, #tpu.memory_space<vmem>>, vector<32x64xf32>
    tpu.vector_store %arg6[%c0_11, %c0_12], %12 {strides = array<i32>} : memref<32x64xf32, #tpu.memory_space<vmem>>, vector<32x64xf32>,
    %c0_13 = arith.constant 0 : index
    %c0_14 = arith.constant 0 : index
    %14 = vector.load %arg1[%c0_13, %c0_14] : memref<128x192xf32, #tpu.memory_space<vmem>>, vector<128x192xf32>
    %cst_15 = arith.constant dense<0.000000e+00> : vector<128x160xf32>
    %15 = tpu.matmul %14, %0, %cst_15 {dimension_numbers = #tpu.dot_dimension_numbers<[1], [0], [0], [1], [0, 0, 1, 1], [], []>} : vector<128x192xf32>, vector<192x160xf32>, vector<128x160xf32> -> vector<128x160xf32>
    %16 = vector.broadcast %1 : vector<1x160xf32> to vector<128x160xf32>
    %17 = arith.addf %15, %16 : vector<128x160xf32>
    %cst_16 = arith.constant 0.000000e+00 : f32
    %18 = vector.broadcast %cst_16 : f32 to vector<128x160xf32>
    %19 = arith.maximumf %17, %18 : vector<128x160xf32>
    %cst_17 = arith.constant dense<0.000000e+00> : vector<128x64xf32>
    %20 = tpu.matmul %19, %2, %cst_17 {dimension_numbers = #tpu.dot_dimension_numbers<[1], [0], [0], [1], [0, 0, 1, 1], [], []>} : vector<128x160xf32>, vector<160x64xf32>, vector<128x64xf32> -> vector<128x64xf32>
    %21 = vector.broadcast %3 : vector<1x64xf32> to vector<128x64xf32>
    %22 = arith.addf %20, %21 : vector<128x64xf32>
    %c0_18 = arith.constant 0 : index
    %c0_19 = arith.constant 0 : index
    %23 = vector.load %arg7[%c0_18, %c0_19] : memref<128x64xf32, #tpu.memory_space<vmem>>, vector<128x64xf32>
    tpu.vector_store %arg7[%c0_18, %c0_19], %22 {strides = array<i32>} : memref<128x64xf32, #tpu.memory_space<vmem>>, vector<128x64xf32>,
    return
  }
}

module attributes {stable_mosaic.version = 11 : i64} {
  func.func @_fusion3_kernel(%arg0: memref<32x64xf32, #tpu.memory_space<vmem>>, %arg1: memref<128x64xf32, #tpu.memory_space<vmem>>, %arg2: memref<32x64xf32, #tpu.memory_space<vmem>>, %arg3: memref<128x64xf32, #tpu.memory_space<vmem>>, %arg4: memref<32x128xf32, #tpu.memory_space<vmem>>, %arg5: memref<1x128xf32, #tpu.memory_space<vmem>>, %arg6: memref<32x64xf32, #tpu.memory_space<vmem>>, %arg7: memref<1x64xf32, #tpu.memory_space<vmem>>, %arg8: memref<64x32xf32, #tpu.memory_space<vmem>>, %arg9: memref<1x32xf32, #tpu.memory_space<vmem>>, %arg10: memref<4x32xf32, #tpu.memory_space<vmem>>, %arg11: memref<16x64xf32, #tpu.memory_space<vmem>>, %arg12: memref<1x64xf32, #tpu.memory_space<vmem>>, %arg13: memref<16x64xf32, #tpu.memory_space<vmem>>, %arg14: memref<1x64xf32, #tpu.memory_space<vmem>>, %arg15: memref<64x16xf32, #tpu.memory_space<vmem>>, %arg16: memref<1x16xf32, #tpu.memory_space<vmem>>, %arg17: memref<4x16xf32, #tpu.memory_space<vmem>>, %arg18: memref<16x64xf32, #tpu.memory_space<vmem>>, %arg19: memref<1x64xf32, #tpu.memory_space<vmem>>, %arg20: memref<16x64xf32, #tpu.memory_space<vmem>>, %arg21: memref<1x64xf32, #tpu.memory_space<vmem>>, %arg22: memref<64x16xf32, #tpu.memory_space<vmem>>, %arg23: memref<1x16xf32, #tpu.memory_space<vmem>>, %arg24: memref<4x16xf32, #tpu.memory_space<vmem>>, %arg25: memref<128x64xf32, #tpu.memory_space<vmem>>) attributes {dimension_semantics = [], scalar_prefetch = 0 : i64, scratch_operands = 0 : i64, tpu.core_type = #tpu.core_type<tc>} {
    %c0 = arith.constant 0 : index
    %c0_0 = arith.constant 0 : index
    %0 = vector.load %arg0[%c0, %c0_0] : memref<32x64xf32, #tpu.memory_space<vmem>>, vector<32x64xf32>
    %c0_1 = arith.constant 0 : index
    %c0_2 = arith.constant 0 : index
    %1 = vector.load %arg1[%c0_1, %c0_2] : memref<128x64xf32, #tpu.memory_space<vmem>>, vector<128x64xf32>
    %c0_3 = arith.constant 0 : index
    %c0_4 = arith.constant 0 : index
    %2 = vector.load %arg2[%c0_3, %c0_4] : memref<32x64xf32, #tpu.memory_space<vmem>>, vector<32x64xf32>
    %c0_5 = arith.constant 0 : index
    %c0_6 = arith.constant 0 : index
    %3 = vector.load %arg3[%c0_5, %c0_6] : memref<128x64xf32, #tpu.memory_space<vmem>>, vector<128x64xf32>
    %c0_7 = arith.constant 0 : index
    %c0_8 = arith.constant 0 : index
    %4 = vector.load %arg4[%c0_7, %c0_8] : memref<32x128xf32, #tpu.memory_space<vmem>>, vector<32x128xf32>
    %c0_9 = arith.constant 0 : index
    %c0_10 = arith.constant 0 : index
    %5 = vector.load %arg5[%c0_9, %c0_10] : memref<1x128xf32, #tpu.memory_space<vmem>>, vector<1x128xf32>
    %c0_11 = arith.constant 0 : index
    %c0_12 = arith.constant 0 : index
    %6 = vector.load %arg6[%c0_11, %c0_12] : memref<32x64xf32, #tpu.memory_space<vmem>>, vector<32x64xf32>
    %c0_13 = arith.constant 0 : index
    %c0_14 = arith.constant 0 : index
    %7 = vector.load %arg7[%c0_13, %c0_14] : memref<1x64xf32, #tpu.memory_space<vmem>>, vector<1x64xf32>
    %c0_15 = arith.constant 0 : index
    %c0_16 = arith.constant 0 : index
    %8 = vector.load %arg8[%c0_15, %c0_16] : memref<64x32xf32, #tpu.memory_space<vmem>>, vector<64x32xf32>
    %c0_17 = arith.constant 0 : index
    %c0_18 = arith.constant 0 : index
    %9 = vector.load %arg9[%c0_17, %c0_18] : memref<1x32xf32, #tpu.memory_space<vmem>>, vector<1x32xf32>
    %c0_19 = arith.constant 0 : index
    %c0_20 = arith.constant 0 : index
    %10 = vector.load %arg10[%c0_19, %c0_20] : memref<4x32xf32, #tpu.memory_space<vmem>>, vector<4x32xf32>
    %11 = vector.extract_strided_slice %0 {offsets = [0, 0], sizes = [32, 32], strides = [1, 1]} : vector<32x64xf32> to vector<32x32xf32>
    %12 = vector.extract_strided_slice %1 {offsets = [0, 0], sizes = [128, 32], strides = [1, 1]} : vector<128x64xf32> to vector<128x32xf32>
    %13 = vector.extract_strided_slice %2 {offsets = [0, 0], sizes = [32, 32], strides = [1, 1]} : vector<32x64xf32> to vector<32x32xf32>
    %14 = vector.extract_strided_slice %3 {offsets = [0, 0], sizes = [128, 32], strides = [1, 1]} : vector<128x64xf32> to vector<128x32xf32>
    %15 = vector.extract_strided_slice %4 {offsets = [0, 0], sizes = [32, 32], strides = [1, 1]} : vector<32x128xf32> to vector<32x32xf32>
    %16 = vector.extract_strided_slice %4 {offsets = [0, 32], sizes = [32, 32], strides = [1, 1]} : vector<32x128xf32> to vector<32x32xf32>
    %17 = vector.extract_strided_slice %4 {offsets = [0, 64], sizes = [32, 32], strides = [1, 1]} : vector<32x128xf32> to vector<32x32xf32>
    %18 = vector.extract_strided_slice %4 {offsets = [0, 96], sizes = [32, 32], strides = [1, 1]} : vector<32x128xf32> to vector<32x32xf32>
    %19 = vector.extract_strided_slice %5 {offsets = [0, 0], sizes = [1, 32], strides = [1, 1]} : vector<1x128xf32> to vector<1x32xf32>
    %20 = vector.extract_strided_slice %5 {offsets = [0, 32], sizes = [1, 32], strides = [1, 1]} : vector<1x128xf32> to vector<1x32xf32>
    %21 = vector.extract_strided_slice %5 {offsets = [0, 64], sizes = [1, 32], strides = [1, 1]} : vector<1x128xf32> to vector<1x32xf32>
    %22 = vector.extract_strided_slice %5 {offsets = [0, 96], sizes = [1, 32], strides = [1, 1]} : vector<1x128xf32> to vector<1x32xf32>
    %23 = arith.addf %12, %14 : vector<128x32xf32>
    %cst = arith.constant dense<0.000000e+00> : vector<128x32xf32>
    %24 = tpu.matmul %23, %15, %cst {dimension_numbers = #tpu.dot_dimension_numbers<[1], [0], [0], [1], [0, 0, 1, 1], [], []>} : vector<128x32xf32>, vector<32x32xf32>, vector<128x32xf32> -> vector<128x32xf32>
    %25 = vector.broadcast %19 : vector<1x32xf32> to vector<128x32xf32>
    %26 = arith.addf %24, %25 : vector<128x32xf32>
    %27 = arith.addf %11, %13 : vector<32x32xf32>
    %cst_21 = arith.constant dense<0.000000e+00> : vector<32x32xf32>
    %28 = tpu.matmul %27, %16, %cst_21 {dimension_numbers = #tpu.dot_dimension_numbers<[1], [0], [0], [1], [0, 0, 1, 1], [], []>} : vector<32x32xf32>, vector<32x32xf32>, vector<32x32xf32> -> vector<32x32xf32>
    %29 = vector.broadcast %20 : vector<1x32xf32> to vector<32x32xf32>
    %30 = arith.addf %28, %29 : vector<32x32xf32>
    %cst_22 = arith.constant dense<0.000000e+00> : vector<32x32xf32>
    %31 = tpu.matmul %11, %17, %cst_22 {dimension_numbers = #tpu.dot_dimension_numbers<[1], [0], [0], [1], [0, 0, 1, 1], [], []>} : vector<32x32xf32>, vector<32x32xf32>, vector<32x32xf32> -> vector<32x32xf32>
    %32 = vector.broadcast %21 : vector<1x32xf32> to vector<32x32xf32>
    %33 = arith.addf %31, %32 : vector<32x32xf32>
    %34 = vector.extract_strided_slice %26 {offsets = [0, 0], sizes = [64, 32], strides = [1, 1]} : vector<128x32xf32> to vector<64x32xf32>
    %35 = vector.extract_strided_slice %30 {offsets = [0, 0], sizes = [16, 32], strides = [1, 1]} : vector<32x32xf32> to vector<16x32xf32>
    %36 = vector.extract_strided_slice %33 {offsets = [0, 0], sizes = [16, 32], strides = [1, 1]} : vector<32x32xf32> to vector<16x32xf32>
    %cst_23 = arith.constant dense<0.000000e+00> : vector<64x16xf32>
    %37 = tpu.matmul %34, %35, %cst_23 {dimension_numbers = #tpu.dot_dimension_numbers<[1], [1], [0], [0], [0, 0, 1, 0], [], []>} : vector<64x32xf32>, vector<16x32xf32>, vector<64x16xf32> -> vector<64x16xf32>
    %cst_24 = arith.constant 0.176776692 : f32
    %38 = vector.broadcast %cst_24 : f32 to vector<64x16xf32>
    %39 = arith.mulf %37, %38 : vector<64x16xf32>
    %cst_25 = arith.constant dense<0xFF800000> : vector<64xf32>
    %40 = vector.multi_reduction <maximumf>, %39, %cst_25 [1] : vector<64x16xf32> to vector<64xf32>
    %41 = vector.shape_cast %40 : vector<64xf32> to vector<64x1xf32>
    %42 = vector.broadcast %41 : vector<64x1xf32> to vector<64x16xf32>
    %43 = arith.subf %39, %42 : vector<64x16xf32>
    %44 = math.exp %43 : vector<64x16xf32>
    %cst_26 = arith.constant dense<0.000000e+00> : vector<64xf32>
    %45 = vector.multi_reduction <add>, %44, %cst_26 [1] : vector<64x16xf32> to vector<64xf32>
    %46 = vector.shape_cast %45 : vector<64xf32> to vector<64x1xf32>
    %47 = tpu.reciprocal %46 {approx = true} : vector<64x1xf32> -> vector<64x1xf32>
    %48 = vector.broadcast %47 : vector<64x1xf32> to vector<64x16xf32>
    %49 = arith.mulf %44, %48 : vector<64x16xf32>
    %cst_27 = arith.constant dense<0.000000e+00> : vector<64x32xf32>
    %50 = tpu.matmul %49, %36, %cst_27 {dimension_numbers = #tpu.dot_dimension_numbers<[1], [0], [0], [1], [0, 0, 1, 1], [], []>} : vector<64x16xf32>, vector<16x32xf32>, vector<64x32xf32> -> vector<64x32xf32>
    %51 = vector.extract_strided_slice %26 {offsets = [64, 0], sizes = [64, 32], strides = [1, 1]} : vector<128x32xf32> to vector<64x32xf32>
    %52 = vector.extract_strided_slice %30 {offsets = [16, 0], sizes = [16, 32], strides = [1, 1]} : vector<32x32xf32> to vector<16x32xf32>
    %53 = vector.extract_strided_slice %33 {offsets = [16, 0], sizes = [16, 32], strides = [1, 1]} : vector<32x32xf32> to vector<16x32xf32>
    %cst_28 = arith.constant dense<0.000000e+00> : vector<64x16xf32>
    %54 = tpu.matmul %51, %52, %cst_28 {dimension_numbers = #tpu.dot_dimension_numbers<[1], [1], [0], [0], [0, 0, 1, 0], [], []>} : vector<64x32xf32>, vector<16x32xf32>, vector<64x16xf32> -> vector<64x16xf32>
    %cst_29 = arith.constant 0.176776692 : f32
    %55 = vector.broadcast %cst_29 : f32 to vector<64x16xf32>
    %56 = arith.mulf %54, %55 : vector<64x16xf32>
    %cst_30 = arith.constant dense<0xFF800000> : vector<64xf32>
    %57 = vector.multi_reduction <maximumf>, %56, %cst_30 [1] : vector<64x16xf32> to vector<64xf32>
    %58 = vector.shape_cast %57 : vector<64xf32> to vector<64x1xf32>
    %59 = vector.broadcast %58 : vector<64x1xf32> to vector<64x16xf32>
    %60 = arith.subf %56, %59 : vector<64x16xf32>
    %61 = math.exp %60 : vector<64x16xf32>
    %cst_31 = arith.constant dense<0.000000e+00> : vector<64xf32>
    %62 = vector.multi_reduction <add>, %61, %cst_31 [1] : vector<64x16xf32> to vector<64xf32>
    %63 = vector.shape_cast %62 : vector<64xf32> to vector<64x1xf32>
    %64 = tpu.reciprocal %63 {approx = true} : vector<64x1xf32> -> vector<64x1xf32>
    %65 = vector.broadcast %64 : vector<64x1xf32> to vector<64x16xf32>
    %66 = arith.mulf %61, %65 : vector<64x16xf32>
    %cst_32 = arith.constant dense<0.000000e+00> : vector<64x32xf32>
    %67 = tpu.matmul %66, %53, %cst_32 {dimension_numbers = #tpu.dot_dimension_numbers<[1], [0], [0], [1], [0, 0, 1, 1], [], []>} : vector<64x16xf32>, vector<16x32xf32>, vector<64x32xf32> -> vector<64x32xf32>
    %68 = tpu.concatenate %50, %67 in 0 : vector<64x32xf32>, vector<64x32xf32> -> vector<128x32xf32>
    %cst_33 = arith.constant dense<0.000000e+00> : vector<128x32xf32>
    %69 = tpu.matmul %68, %18, %cst_33 {dimension_numbers = #tpu.dot_dimension_numbers<[1], [0], [0], [1], [0, 0, 1, 1], [], []>} : vector<128x32xf32>, vector<32x32xf32>, vector<128x32xf32> -> vector<128x32xf32>
    %70 = vector.broadcast %22 : vector<1x32xf32> to vector<128x32xf32>
    %71 = arith.addf %69, %70 : vector<128x32xf32>
    %72 = arith.addf %12, %71 : vector<128x32xf32>
    %73 = vector.extract_strided_slice %10 {offsets = [0, 0], sizes = [1, 32], strides = [1, 1]} : vector<4x32xf32> to vector<1x32xf32>
    %74 = vector.extract_strided_slice %10 {offsets = [1, 0], sizes = [1, 32], strides = [1, 1]} : vector<4x32xf32> to vector<1x32xf32>
    %cst_34 = arith.constant dense<0.000000e+00> : vector<128xf32>
    %75 = vector.multi_reduction <add>, %72, %cst_34 [1] : vector<128x32xf32> to vector<128xf32>
    %76 = vector.shape_cast %75 : vector<128xf32> to vector<128x1xf32>
    %cst_35 = arith.constant 3.200000e+01 : f32
    %77 = vector.broadcast %cst_35 : f32 to vector<128x1xf32>
    %78 = arith.divf %76, %77 : vector<128x1xf32>
    %79 = vector.broadcast %78 : vector<128x1xf32> to vector<128x32xf32>
    %80 = arith.subf %72, %79 : vector<128x32xf32>
    %81 = arith.mulf %80, %80 : vector<128x32xf32>
    %cst_36 = arith.constant dense<0.000000e+00> : vector<128xf32>
    %82 = vector.multi_reduction <add>, %81, %cst_36 [1] : vector<128x32xf32> to vector<128xf32>
    %83 = vector.shape_cast %82 : vector<128xf32> to vector<128x1xf32>
    %cst_37 = arith.constant 3.200000e+01 : f32
    %84 = vector.broadcast %cst_37 : f32 to vector<128x1xf32>
    %85 = arith.divf %83, %84 : vector<128x1xf32>
    %86 = vector.broadcast %78 : vector<128x1xf32> to vector<128x32xf32>
    %87 = arith.subf %72, %86 : vector<128x32xf32>
    %cst_38 = arith.constant 9.99999974E-6 : f32
    %88 = vector.broadcast %cst_38 : f32 to vector<128x1xf32>
    %89 = arith.addf %85, %88 : vector<128x1xf32>
    %90 = math.rsqrt %89 : vector<128x1xf32>
    %91 = vector.broadcast %90 : vector<128x1xf32> to vector<128x32xf32>
    %92 = arith.mulf %87, %91 : vector<128x32xf32>
    %93 = vector.broadcast %73 : vector<1x32xf32> to vector<128x32xf32>
    %94 = arith.mulf %92, %93 : vector<128x32xf32>
    %95 = vector.broadcast %74 : vector<1x32xf32> to vector<128x32xf32>
    %96 = arith.addf %94, %95 : vector<128x32xf32>
    %cst_39 = arith.constant dense<0.000000e+00> : vector<128x64xf32>
    %97 = tpu.matmul %96, %6, %cst_39 {dimension_numbers = #tpu.dot_dimension_numbers<[1], [0], [0], [1], [0, 0, 1, 1], [], []>} : vector<128x32xf32>, vector<32x64xf32>, vector<128x64xf32> -> vector<128x64xf32>
    %98 = vector.broadcast %7 : vector<1x64xf32> to vector<128x64xf32>
    %99 = arith.addf %97, %98 : vector<128x64xf32>
    %cst_40 = arith.constant 0.000000e+00 : f32
    %100 = vector.broadcast %cst_40 : f32 to vector<128x64xf32>
    %101 = arith.maximumf %99, %100 : vector<128x64xf32>
    %cst_41 = arith.constant dense<0.000000e+00> : vector<128x32xf32>
    %102 = tpu.matmul %101, %8, %cst_41 {dimension_numbers = #tpu.dot_dimension_numbers<[1], [0], [0], [1], [0, 0, 1, 1], [], []>} : vector<128x64xf32>, vector<64x32xf32>, vector<128x32xf32> -> vector<128x32xf32>
    %103 = vector.broadcast %9 : vector<1x32xf32> to vector<128x32xf32>
    %104 = arith.addf %102, %103 : vector<128x32xf32>
    %105 = arith.addf %96, %104 : vector<128x32xf32>
    %106 = vector.extract_strided_slice %10 {offsets = [2, 0], sizes = [1, 32], strides = [1, 1]} : vector<4x32xf32> to vector<1x32xf32>
    %107 = vector.extract_strided_slice %10 {offsets = [3, 0], sizes = [1, 32], strides = [1, 1]} : vector<4x32xf32> to vector<1x32xf32>
    %cst_42 = arith.constant dense<0.000000e+00> : vector<128xf32>
    %108 = vector.multi_reduction <add>, %105, %cst_42 [1] : vector<128x32xf32> to vector<128xf32>
    %109 = vector.shape_cast %108 : vector<128xf32> to vector<128x1xf32>
    %cst_43 = arith.constant 3.200000e+01 : f32
    %110 = vector.broadcast %cst_43 : f32 to vector<128x1xf32>
    %111 = arith.divf %109, %110 : vector<128x1xf32>
    %112 = vector.broadcast %111 : vector<128x1xf32> to vector<128x32xf32>
    %113 = arith.subf %105, %112 : vector<128x32xf32>
    %114 = arith.mulf %113, %113 : vector<128x32xf32>
    %cst_44 = arith.constant dense<0.000000e+00> : vector<128xf32>
    %115 = vector.multi_reduction <add>, %114, %cst_44 [1] : vector<128x32xf32> to vector<128xf32>
    %116 = vector.shape_cast %115 : vector<128xf32> to vector<128x1xf32>
    %cst_45 = arith.constant 3.200000e+01 : f32
    %117 = vector.broadcast %cst_45 : f32 to vector<128x1xf32>
    %118 = arith.divf %116, %117 : vector<128x1xf32>
    %119 = vector.broadcast %111 : vector<128x1xf32> to vector<128x32xf32>
    %120 = arith.subf %105, %119 : vector<128x32xf32>
    %cst_46 = arith.constant 9.99999974E-6 : f32
    %121 = vector.broadcast %cst_46 : f32 to vector<128x1xf32>
    %122 = arith.addf %118, %121 : vector<128x1xf32>
    %123 = math.rsqrt %122 : vector<128x1xf32>
    %124 = vector.broadcast %123 : vector<128x1xf32> to vector<128x32xf32>
    %125 = arith.mulf %120, %124 : vector<128x32xf32>
    %126 = vector.broadcast %106 : vector<1x32xf32> to vector<128x32xf32>
    %127 = arith.mulf %125, %126 : vector<128x32xf32>
    %128 = vector.broadcast %107 : vector<1x32xf32> to vector<128x32xf32>
    %129 = arith.addf %127, %128 : vector<128x32xf32>
    %c0_47 = arith.constant 0 : index
    %c0_48 = arith.constant 0 : index
    %130 = vector.load %arg11[%c0_47, %c0_48] : memref<16x64xf32, #tpu.memory_space<vmem>>, vector<16x64xf32>
    %c0_49 = arith.constant 0 : index
    %c0_50 = arith.constant 0 : index
    %131 = vector.load %arg12[%c0_49, %c0_50] : memref<1x64xf32, #tpu.memory_space<vmem>>, vector<1x64xf32>
    %c0_51 = arith.constant 0 : index
    %c0_52 = arith.constant 0 : index
    %132 = vector.load %arg13[%c0_51, %c0_52] : memref<16x64xf32, #tpu.memory_space<vmem>>, vector<16x64xf32>
    %c0_53 = arith.constant 0 : index
    %c0_54 = arith.constant 0 : index
    %133 = vector.load %arg14[%c0_53, %c0_54] : memref<1x64xf32, #tpu.memory_space<vmem>>, vector<1x64xf32>
    %c0_55 = arith.constant 0 : index
    %c0_56 = arith.constant 0 : index
    %134 = vector.load %arg15[%c0_55, %c0_56] : memref<64x16xf32, #tpu.memory_space<vmem>>, vector<64x16xf32>
    %c0_57 = arith.constant 0 : index
    %c0_58 = arith.constant 0 : index
    %135 = vector.load %arg16[%c0_57, %c0_58] : memref<1x16xf32, #tpu.memory_space<vmem>>, vector<1x16xf32>
    %c0_59 = arith.constant 0 : index
    %c0_60 = arith.constant 0 : index
    %136 = vector.load %arg17[%c0_59, %c0_60] : memref<4x16xf32, #tpu.memory_space<vmem>>, vector<4x16xf32>
    %137 = vector.extract_strided_slice %0 {offsets = [0, 32], sizes = [32, 16], strides = [1, 1]} : vector<32x64xf32> to vector<32x16xf32>
    %138 = vector.extract_strided_slice %1 {offsets = [0, 32], sizes = [128, 16], strides = [1, 1]} : vector<128x64xf32> to vector<128x16xf32>
    %139 = vector.extract_strided_slice %2 {offsets = [0, 32], sizes = [32, 16], strides = [1, 1]} : vector<32x64xf32> to vector<32x16xf32>
    %140 = vector.extract_strided_slice %3 {offsets = [0, 32], sizes = [128, 16], strides = [1, 1]} : vector<128x64xf32> to vector<128x16xf32>
    %141 = vector.extract_strided_slice %130 {offsets = [0, 0], sizes = [16, 16], strides = [1, 1]} : vector<16x64xf32> to vector<16x16xf32>
    %142 = vector.extract_strided_slice %130 {offsets = [0, 16], sizes = [16, 16], strides = [1, 1]} : vector<16x64xf32> to vector<16x16xf32>
    %143 = vector.extract_strided_slice %130 {offsets = [0, 32], sizes = [16, 16], strides = [1, 1]} : vector<16x64xf32> to vector<16x16xf32>
    %144 = vector.extract_strided_slice %130 {offsets = [0, 48], sizes = [16, 16], strides = [1, 1]} : vector<16x64xf32> to vector<16x16xf32>
    %145 = vector.extract_strided_slice %131 {offsets = [0, 0], sizes = [1, 16], strides = [1, 1]} : vector<1x64xf32> to vector<1x16xf32>
    %146 = vector.extract_strided_slice %131 {offsets = [0, 16], sizes = [1, 16], strides = [1, 1]} : vector<1x64xf32> to vector<1x16xf32>
    %147 = vector.extract_strided_slice %131 {offsets = [0, 32], sizes = [1, 16], strides = [1, 1]} : vector<1x64xf32> to vector<1x16xf32>
    %148 = vector.extract_strided_slice %131 {offsets = [0, 48], sizes = [1, 16], strides = [1, 1]} : vector<1x64xf32> to vector<1x16xf32>
    %149 = arith.addf %138, %140 : vector<128x16xf32>
    %cst_61 = arith.constant dense<0.000000e+00> : vector<128x16xf32>
    %150 = tpu.matmul %149, %141, %cst_61 {dimension_numbers = #tpu.dot_dimension_numbers<[1], [0], [0], [1], [0, 0, 1, 1], [], []>} : vector<128x16xf32>, vector<16x16xf32>, vector<128x16xf32> -> vector<128x16xf32>
    %151 = vector.broadcast %145 : vector<1x16xf32> to vector<128x16xf32>
    %152 = arith.addf %150, %151 : vector<128x16xf32>
    %153 = arith.addf %137, %139 : vector<32x16xf32>
    %cst_62 = arith.constant dense<0.000000e+00> : vector<32x16xf32>
    %154 = tpu.matmul %153, %142, %cst_62 {dimension_numbers = #tpu.dot_dimension_numbers<[1], [0], [0], [1], [0, 0, 1, 1], [], []>} : vector<32x16xf32>, vector<16x16xf32>, vector<32x16xf32> -> vector<32x16xf32>
    %155 = vector.broadcast %146 : vector<1x16xf32> to vector<32x16xf32>
    %156 = arith.addf %154, %155 : vector<32x16xf32>
    %cst_63 = arith.constant dense<0.000000e+00> : vector<32x16xf32>
    %157 = tpu.matmul %137, %143, %cst_63 {dimension_numbers = #tpu.dot_dimension_numbers<[1], [0], [0], [1], [0, 0, 1, 1], [], []>} : vector<32x16xf32>, vector<16x16xf32>, vector<32x16xf32> -> vector<32x16xf32>
    %158 = vector.broadcast %147 : vector<1x16xf32> to vector<32x16xf32>
    %159 = arith.addf %157, %158 : vector<32x16xf32>
    %160 = vector.extract_strided_slice %152 {offsets = [0, 0], sizes = [64, 16], strides = [1, 1]} : vector<128x16xf32> to vector<64x16xf32>
    %161 = vector.extract_strided_slice %156 {offsets = [0, 0], sizes = [16, 16], strides = [1, 1]} : vector<32x16xf32> to vector<16x16xf32>
    %162 = vector.extract_strided_slice %159 {offsets = [0, 0], sizes = [16, 16], strides = [1, 1]} : vector<32x16xf32> to vector<16x16xf32>
    %cst_64 = arith.constant dense<0.000000e+00> : vector<64x16xf32>
    %163 = tpu.matmul %160, %161, %cst_64 {dimension_numbers = #tpu.dot_dimension_numbers<[1], [1], [0], [0], [0, 0, 1, 0], [], []>} : vector<64x16xf32>, vector<16x16xf32>, vector<64x16xf32> -> vector<64x16xf32>
    %cst_65 = arith.constant 2.500000e-01 : f32
    %164 = vector.broadcast %cst_65 : f32 to vector<64x16xf32>
    %165 = arith.mulf %163, %164 : vector<64x16xf32>
    %cst_66 = arith.constant dense<0xFF800000> : vector<64xf32>
    %166 = vector.multi_reduction <maximumf>, %165, %cst_66 [1] : vector<64x16xf32> to vector<64xf32>
    %167 = vector.shape_cast %166 : vector<64xf32> to vector<64x1xf32>
    %168 = vector.broadcast %167 : vector<64x1xf32> to vector<64x16xf32>
    %169 = arith.subf %165, %168 : vector<64x16xf32>
    %170 = math.exp %169 : vector<64x16xf32>
    %cst_67 = arith.constant dense<0.000000e+00> : vector<64xf32>
    %171 = vector.multi_reduction <add>, %170, %cst_67 [1] : vector<64x16xf32> to vector<64xf32>
    %172 = vector.shape_cast %171 : vector<64xf32> to vector<64x1xf32>
    %173 = tpu.reciprocal %172 {approx = true} : vector<64x1xf32> -> vector<64x1xf32>
    %174 = vector.broadcast %173 : vector<64x1xf32> to vector<64x16xf32>
    %175 = arith.mulf %170, %174 : vector<64x16xf32>
    %cst_68 = arith.constant dense<0.000000e+00> : vector<64x16xf32>
    %176 = tpu.matmul %175, %162, %cst_68 {dimension_numbers = #tpu.dot_dimension_numbers<[1], [0], [0], [1], [0, 0, 1, 1], [], []>} : vector<64x16xf32>, vector<16x16xf32>, vector<64x16xf32> -> vector<64x16xf32>
    %177 = vector.extract_strided_slice %152 {offsets = [64, 0], sizes = [64, 16], strides = [1, 1]} : vector<128x16xf32> to vector<64x16xf32>
    %178 = vector.extract_strided_slice %156 {offsets = [16, 0], sizes = [16, 16], strides = [1, 1]} : vector<32x16xf32> to vector<16x16xf32>
    %179 = vector.extract_strided_slice %159 {offsets = [16, 0], sizes = [16, 16], strides = [1, 1]} : vector<32x16xf32> to vector<16x16xf32>
    %cst_69 = arith.constant dense<0.000000e+00> : vector<64x16xf32>
    %180 = tpu.matmul %177, %178, %cst_69 {dimension_numbers = #tpu.dot_dimension_numbers<[1], [1], [0], [0], [0, 0, 1, 0], [], []>} : vector<64x16xf32>, vector<16x16xf32>, vector<64x16xf32> -> vector<64x16xf32>
    %cst_70 = arith.constant 2.500000e-01 : f32
    %181 = vector.broadcast %cst_70 : f32 to vector<64x16xf32>
    %182 = arith.mulf %180, %181 : vector<64x16xf32>
    %cst_71 = arith.constant dense<0xFF800000> : vector<64xf32>
    %183 = vector.multi_reduction <maximumf>, %182, %cst_71 [1] : vector<64x16xf32> to vector<64xf32>
    %184 = vector.shape_cast %183 : vector<64xf32> to vector<64x1xf32>
    %185 = vector.broadcast %184 : vector<64x1xf32> to vector<64x16xf32>
    %186 = arith.subf %182, %185 : vector<64x16xf32>
    %187 = math.exp %186 : vector<64x16xf32>
    %cst_72 = arith.constant dense<0.000000e+00> : vector<64xf32>
    %188 = vector.multi_reduction <add>, %187, %cst_72 [1] : vector<64x16xf32> to vector<64xf32>
    %189 = vector.shape_cast %188 : vector<64xf32> to vector<64x1xf32>
    %190 = tpu.reciprocal %189 {approx = true} : vector<64x1xf32> -> vector<64x1xf32>
    %191 = vector.broadcast %190 : vector<64x1xf32> to vector<64x16xf32>
    %192 = arith.mulf %187, %191 : vector<64x16xf32>
    %cst_73 = arith.constant dense<0.000000e+00> : vector<64x16xf32>
    %193 = tpu.matmul %192, %179, %cst_73 {dimension_numbers = #tpu.dot_dimension_numbers<[1], [0], [0], [1], [0, 0, 1, 1], [], []>} : vector<64x16xf32>, vector<16x16xf32>, vector<64x16xf32> -> vector<64x16xf32>
    %194 = tpu.concatenate %176, %193 in 0 : vector<64x16xf32>, vector<64x16xf32> -> vector<128x16xf32>
    %cst_74 = arith.constant dense<0.000000e+00> : vector<128x16xf32>
    %195 = tpu.matmul %194, %144, %cst_74 {dimension_numbers = #tpu.dot_dimension_numbers<[1], [0], [0], [1], [0, 0, 1, 1], [], []>} : vector<128x16xf32>, vector<16x16xf32>, vector<128x16xf32> -> vector<128x16xf32>
    %196 = vector.broadcast %148 : vector<1x16xf32> to vector<128x16xf32>
    %197 = arith.addf %195, %196 : vector<128x16xf32>
    %198 = arith.addf %138, %197 : vector<128x16xf32>
    %199 = vector.extract_strided_slice %136 {offsets = [0, 0], sizes = [1, 16], strides = [1, 1]} : vector<4x16xf32> to vector<1x16xf32>
    %200 = vector.extract_strided_slice %136 {offsets = [1, 0], sizes = [1, 16], strides = [1, 1]} : vector<4x16xf32> to vector<1x16xf32>
    %cst_75 = arith.constant dense<0.000000e+00> : vector<128xf32>
    %201 = vector.multi_reduction <add>, %198, %cst_75 [1] : vector<128x16xf32> to vector<128xf32>
    %202 = vector.shape_cast %201 : vector<128xf32> to vector<128x1xf32>
    %cst_76 = arith.constant 1.600000e+01 : f32
    %203 = vector.broadcast %cst_76 : f32 to vector<128x1xf32>
    %204 = arith.divf %202, %203 : vector<128x1xf32>
    %205 = vector.broadcast %204 : vector<128x1xf32> to vector<128x16xf32>
    %206 = arith.subf %198, %205 : vector<128x16xf32>
    %207 = arith.mulf %206, %206 : vector<128x16xf32>
    %cst_77 = arith.constant dense<0.000000e+00> : vector<128xf32>
    %208 = vector.multi_reduction <add>, %207, %cst_77 [1] : vector<128x16xf32> to vector<128xf32>
    %209 = vector.shape_cast %208 : vector<128xf32> to vector<128x1xf32>
    %cst_78 = arith.constant 1.600000e+01 : f32
    %210 = vector.broadcast %cst_78 : f32 to vector<128x1xf32>
    %211 = arith.divf %209, %210 : vector<128x1xf32>
    %212 = vector.broadcast %204 : vector<128x1xf32> to vector<128x16xf32>
    %213 = arith.subf %198, %212 : vector<128x16xf32>
    %cst_79 = arith.constant 9.99999974E-6 : f32
    %214 = vector.broadcast %cst_79 : f32 to vector<128x1xf32>
    %215 = arith.addf %211, %214 : vector<128x1xf32>
    %216 = math.rsqrt %215 : vector<128x1xf32>
    %217 = vector.broadcast %216 : vector<128x1xf32> to vector<128x16xf32>
    %218 = arith.mulf %213, %217 : vector<128x16xf32>
    %219 = vector.broadcast %199 : vector<1x16xf32> to vector<128x16xf32>
    %220 = arith.mulf %218, %219 : vector<128x16xf32>
    %221 = vector.broadcast %200 : vector<1x16xf32> to vector<128x16xf32>
    %222 = arith.addf %220, %221 : vector<128x16xf32>
    %cst_80 = arith.constant dense<0.000000e+00> : vector<128x64xf32>
    %223 = tpu.matmul %222, %132, %cst_80 {dimension_numbers = #tpu.dot_dimension_numbers<[1], [0], [0], [1], [0, 0, 1, 1], [], []>} : vector<128x16xf32>, vector<16x64xf32>, vector<128x64xf32> -> vector<128x64xf32>
    %224 = vector.broadcast %133 : vector<1x64xf32> to vector<128x64xf32>
    %225 = arith.addf %223, %224 : vector<128x64xf32>
    %cst_81 = arith.constant 0.000000e+00 : f32
    %226 = vector.broadcast %cst_81 : f32 to vector<128x64xf32>
    %227 = arith.maximumf %225, %226 : vector<128x64xf32>
    %cst_82 = arith.constant dense<0.000000e+00> : vector<128x16xf32>
    %228 = tpu.matmul %227, %134, %cst_82 {dimension_numbers = #tpu.dot_dimension_numbers<[1], [0], [0], [1], [0, 0, 1, 1], [], []>} : vector<128x64xf32>, vector<64x16xf32>, vector<128x16xf32> -> vector<128x16xf32>
    %229 = vector.broadcast %135 : vector<1x16xf32> to vector<128x16xf32>
    %230 = arith.addf %228, %229 : vector<128x16xf32>
    %231 = arith.addf %222, %230 : vector<128x16xf32>
    %232 = vector.extract_strided_slice %136 {offsets = [2, 0], sizes = [1, 16], strides = [1, 1]} : vector<4x16xf32> to vector<1x16xf32>
    %233 = vector.extract_strided_slice %136 {offsets = [3, 0], sizes = [1, 16], strides = [1, 1]} : vector<4x16xf32> to vector<1x16xf32>
    %cst_83 = arith.constant dense<0.000000e+00> : vector<128xf32>
    %234 = vector.multi_reduction <add>, %231, %cst_83 [1] : vector<128x16xf32> to vector<128xf32>
    %235 = vector.shape_cast %234 : vector<128xf32> to vector<128x1xf32>
    %cst_84 = arith.constant 1.600000e+01 : f32
    %236 = vector.broadcast %cst_84 : f32 to vector<128x1xf32>
    %237 = arith.divf %235, %236 : vector<128x1xf32>
    %238 = vector.broadcast %237 : vector<128x1xf32> to vector<128x16xf32>
    %239 = arith.subf %231, %238 : vector<128x16xf32>
    %240 = arith.mulf %239, %239 : vector<128x16xf32>
    %cst_85 = arith.constant dense<0.000000e+00> : vector<128xf32>
    %241 = vector.multi_reduction <add>, %240, %cst_85 [1] : vector<128x16xf32> to vector<128xf32>
    %242 = vector.shape_cast %241 : vector<128xf32> to vector<128x1xf32>
    %cst_86 = arith.constant 1.600000e+01 : f32
    %243 = vector.broadcast %cst_86 : f32 to vector<128x1xf32>
    %244 = arith.divf %242, %243 : vector<128x1xf32>
    %245 = vector.broadcast %237 : vector<128x1xf32> to vector<128x16xf32>
    %246 = arith.subf %231, %245 : vector<128x16xf32>
    %cst_87 = arith.constant 9.99999974E-6 : f32
    %247 = vector.broadcast %cst_87 : f32 to vector<128x1xf32>
    %248 = arith.addf %244, %247 : vector<128x1xf32>
    %249 = math.rsqrt %248 : vector<128x1xf32>
    %250 = vector.broadcast %249 : vector<128x1xf32> to vector<128x16xf32>
    %251 = arith.mulf %246, %250 : vector<128x16xf32>
    %252 = vector.broadcast %232 : vector<1x16xf32> to vector<128x16xf32>
    %253 = arith.mulf %251, %252 : vector<128x16xf32>
    %254 = vector.broadcast %233 : vector<1x16xf32> to vector<128x16xf32>
    %255 = arith.addf %253, %254 : vector<128x16xf32>
    %c0_88 = arith.constant 0 : index
    %c0_89 = arith.constant 0 : index
    %256 = vector.load %arg18[%c0_88, %c0_89] : memref<16x64xf32, #tpu.memory_space<vmem>>, vector<16x64xf32>
    %c0_90 = arith.constant 0 : index
    %c0_91 = arith.constant 0 : index
    %257 = vector.load %arg19[%c0_90, %c0_91] : memref<1x64xf32, #tpu.memory_space<vmem>>, vector<1x64xf32>
    %c0_92 = arith.constant 0 : index
    %c0_93 = arith.constant 0 : index
    %258 = vector.load %arg20[%c0_92, %c0_93] : memref<16x64xf32, #tpu.memory_space<vmem>>, vector<16x64xf32>
    %c0_94 = arith.constant 0 : index
    %c0_95 = arith.constant 0 : index
    %259 = vector.load %arg21[%c0_94, %c0_95] : memref<1x64xf32, #tpu.memory_space<vmem>>, vector<1x64xf32>
    %c0_96 = arith.constant 0 : index
    %c0_97 = arith.constant 0 : index
    %260 = vector.load %arg22[%c0_96, %c0_97] : memref<64x16xf32, #tpu.memory_space<vmem>>, vector<64x16xf32>
    %c0_98 = arith.constant 0 : index
    %c0_99 = arith.constant 0 : index
    %261 = vector.load %arg23[%c0_98, %c0_99] : memref<1x16xf32, #tpu.memory_space<vmem>>, vector<1x16xf32>
    %c0_100 = arith.constant 0 : index
    %c0_101 = arith.constant 0 : index
    %262 = vector.load %arg24[%c0_100, %c0_101] : memref<4x16xf32, #tpu.memory_space<vmem>>, vector<4x16xf32>
    %263 = vector.extract_strided_slice %0 {offsets = [0, 48], sizes = [32, 16], strides = [1, 1]} : vector<32x64xf32> to vector<32x16xf32>
    %264 = vector.extract_strided_slice %1 {offsets = [0, 48], sizes = [128, 16], strides = [1, 1]} : vector<128x64xf32> to vector<128x16xf32>
    %265 = vector.extract_strided_slice %2 {offsets = [0, 48], sizes = [32, 16], strides = [1, 1]} : vector<32x64xf32> to vector<32x16xf32>
    %266 = vector.extract_strided_slice %3 {offsets = [0, 48], sizes = [128, 16], strides = [1, 1]} : vector<128x64xf32> to vector<128x16xf32>
    %267 = vector.extract_strided_slice %256 {offsets = [0, 0], sizes = [16, 16], strides = [1, 1]} : vector<16x64xf32> to vector<16x16xf32>
    %268 = vector.extract_strided_slice %256 {offsets = [0, 16], sizes = [16, 16], strides = [1, 1]} : vector<16x64xf32> to vector<16x16xf32>
    %269 = vector.extract_strided_slice %256 {offsets = [0, 32], sizes = [16, 16], strides = [1, 1]} : vector<16x64xf32> to vector<16x16xf32>
    %270 = vector.extract_strided_slice %256 {offsets = [0, 48], sizes = [16, 16], strides = [1, 1]} : vector<16x64xf32> to vector<16x16xf32>
    %271 = vector.extract_strided_slice %257 {offsets = [0, 0], sizes = [1, 16], strides = [1, 1]} : vector<1x64xf32> to vector<1x16xf32>
    %272 = vector.extract_strided_slice %257 {offsets = [0, 16], sizes = [1, 16], strides = [1, 1]} : vector<1x64xf32> to vector<1x16xf32>
    %273 = vector.extract_strided_slice %257 {offsets = [0, 32], sizes = [1, 16], strides = [1, 1]} : vector<1x64xf32> to vector<1x16xf32>
    %274 = vector.extract_strided_slice %257 {offsets = [0, 48], sizes = [1, 16], strides = [1, 1]} : vector<1x64xf32> to vector<1x16xf32>
    %275 = arith.addf %264, %266 : vector<128x16xf32>
    %cst_102 = arith.constant dense<0.000000e+00> : vector<128x16xf32>
    %276 = tpu.matmul %275, %267, %cst_102 {dimension_numbers = #tpu.dot_dimension_numbers<[1], [0], [0], [1], [0, 0, 1, 1], [], []>} : vector<128x16xf32>, vector<16x16xf32>, vector<128x16xf32> -> vector<128x16xf32>
    %277 = vector.broadcast %271 : vector<1x16xf32> to vector<128x16xf32>
    %278 = arith.addf %276, %277 : vector<128x16xf32>
    %279 = arith.addf %263, %265 : vector<32x16xf32>
    %cst_103 = arith.constant dense<0.000000e+00> : vector<32x16xf32>
    %280 = tpu.matmul %279, %268, %cst_103 {dimension_numbers = #tpu.dot_dimension_numbers<[1], [0], [0], [1], [0, 0, 1, 1], [], []>} : vector<32x16xf32>, vector<16x16xf32>, vector<32x16xf32> -> vector<32x16xf32>
    %281 = vector.broadcast %272 : vector<1x16xf32> to vector<32x16xf32>
    %282 = arith.addf %280, %281 : vector<32x16xf32>
    %cst_104 = arith.constant dense<0.000000e+00> : vector<32x16xf32>
    %283 = tpu.matmul %263, %269, %cst_104 {dimension_numbers = #tpu.dot_dimension_numbers<[1], [0], [0], [1], [0, 0, 1, 1], [], []>} : vector<32x16xf32>, vector<16x16xf32>, vector<32x16xf32> -> vector<32x16xf32>
    %284 = vector.broadcast %273 : vector<1x16xf32> to vector<32x16xf32>
    %285 = arith.addf %283, %284 : vector<32x16xf32>
    %286 = vector.extract_strided_slice %278 {offsets = [0, 0], sizes = [64, 16], strides = [1, 1]} : vector<128x16xf32> to vector<64x16xf32>
    %287 = vector.extract_strided_slice %282 {offsets = [0, 0], sizes = [16, 16], strides = [1, 1]} : vector<32x16xf32> to vector<16x16xf32>
    %288 = vector.extract_strided_slice %285 {offsets = [0, 0], sizes = [16, 16], strides = [1, 1]} : vector<32x16xf32> to vector<16x16xf32>
    %cst_105 = arith.constant dense<0.000000e+00> : vector<64x16xf32>
    %289 = tpu.matmul %286, %287, %cst_105 {dimension_numbers = #tpu.dot_dimension_numbers<[1], [1], [0], [0], [0, 0, 1, 0], [], []>} : vector<64x16xf32>, vector<16x16xf32>, vector<64x16xf32> -> vector<64x16xf32>
    %cst_106 = arith.constant 2.500000e-01 : f32
    %290 = vector.broadcast %cst_106 : f32 to vector<64x16xf32>
    %291 = arith.mulf %289, %290 : vector<64x16xf32>
    %cst_107 = arith.constant dense<0xFF800000> : vector<64xf32>
    %292 = vector.multi_reduction <maximumf>, %291, %cst_107 [1] : vector<64x16xf32> to vector<64xf32>
    %293 = vector.shape_cast %292 : vector<64xf32> to vector<64x1xf32>
    %294 = vector.broadcast %293 : vector<64x1xf32> to vector<64x16xf32>
    %295 = arith.subf %291, %294 : vector<64x16xf32>
    %296 = math.exp %295 : vector<64x16xf32>
    %cst_108 = arith.constant dense<0.000000e+00> : vector<64xf32>
    %297 = vector.multi_reduction <add>, %296, %cst_108 [1] : vector<64x16xf32> to vector<64xf32>
    %298 = vector.shape_cast %297 : vector<64xf32> to vector<64x1xf32>
    %299 = tpu.reciprocal %298 {approx = true} : vector<64x1xf32> -> vector<64x1xf32>
    %300 = vector.broadcast %299 : vector<64x1xf32> to vector<64x16xf32>
    %301 = arith.mulf %296, %300 : vector<64x16xf32>
    %cst_109 = arith.constant dense<0.000000e+00> : vector<64x16xf32>
    %302 = tpu.matmul %301, %288, %cst_109 {dimension_numbers = #tpu.dot_dimension_numbers<[1], [0], [0], [1], [0, 0, 1, 1], [], []>} : vector<64x16xf32>, vector<16x16xf32>, vector<64x16xf32> -> vector<64x16xf32>
    %303 = vector.extract_strided_slice %278 {offsets = [64, 0], sizes = [64, 16], strides = [1, 1]} : vector<128x16xf32> to vector<64x16xf32>
    %304 = vector.extract_strided_slice %282 {offsets = [16, 0], sizes = [16, 16], strides = [1, 1]} : vector<32x16xf32> to vector<16x16xf32>
    %305 = vector.extract_strided_slice %285 {offsets = [16, 0], sizes = [16, 16], strides = [1, 1]} : vector<32x16xf32> to vector<16x16xf32>
    %cst_110 = arith.constant dense<0.000000e+00> : vector<64x16xf32>
    %306 = tpu.matmul %303, %304, %cst_110 {dimension_numbers = #tpu.dot_dimension_numbers<[1], [1], [0], [0], [0, 0, 1, 0], [], []>} : vector<64x16xf32>, vector<16x16xf32>, vector<64x16xf32> -> vector<64x16xf32>
    %cst_111 = arith.constant 2.500000e-01 : f32
    %307 = vector.broadcast %cst_111 : f32 to vector<64x16xf32>
    %308 = arith.mulf %306, %307 : vector<64x16xf32>
    %cst_112 = arith.constant dense<0xFF800000> : vector<64xf32>
    %309 = vector.multi_reduction <maximumf>, %308, %cst_112 [1] : vector<64x16xf32> to vector<64xf32>
    %310 = vector.shape_cast %309 : vector<64xf32> to vector<64x1xf32>
    %311 = vector.broadcast %310 : vector<64x1xf32> to vector<64x16xf32>
    %312 = arith.subf %308, %311 : vector<64x16xf32>
    %313 = math.exp %312 : vector<64x16xf32>
    %cst_113 = arith.constant dense<0.000000e+00> : vector<64xf32>
    %314 = vector.multi_reduction <add>, %313, %cst_113 [1] : vector<64x16xf32> to vector<64xf32>
    %315 = vector.shape_cast %314 : vector<64xf32> to vector<64x1xf32>
    %316 = tpu.reciprocal %315 {approx = true} : vector<64x1xf32> -> vector<64x1xf32>
    %317 = vector.broadcast %316 : vector<64x1xf32> to vector<64x16xf32>
    %318 = arith.mulf %313, %317 : vector<64x16xf32>
    %cst_114 = arith.constant dense<0.000000e+00> : vector<64x16xf32>
    %319 = tpu.matmul %318, %305, %cst_114 {dimension_numbers = #tpu.dot_dimension_numbers<[1], [0], [0], [1], [0, 0, 1, 1], [], []>} : vector<64x16xf32>, vector<16x16xf32>, vector<64x16xf32> -> vector<64x16xf32>
    %320 = tpu.concatenate %302, %319 in 0 : vector<64x16xf32>, vector<64x16xf32> -> vector<128x16xf32>
    %cst_115 = arith.constant dense<0.000000e+00> : vector<128x16xf32>
    %321 = tpu.matmul %320, %270, %cst_115 {dimension_numbers = #tpu.dot_dimension_numbers<[1], [0], [0], [1], [0, 0, 1, 1], [], []>} : vector<128x16xf32>, vector<16x16xf32>, vector<128x16xf32> -> vector<128x16xf32>
    %322 = vector.broadcast %274 : vector<1x16xf32> to vector<128x16xf32>
    %323 = arith.addf %321, %322 : vector<128x16xf32>
    %324 = arith.addf %264, %323 : vector<128x16xf32>
    %325 = vector.extract_strided_slice %262 {offsets = [0, 0], sizes = [1, 16], strides = [1, 1]} : vector<4x16xf32> to vector<1x16xf32>
    %326 = vector.extract_strided_slice %262 {offsets = [1, 0], sizes = [1, 16], strides = [1, 1]} : vector<4x16xf32> to vector<1x16xf32>
    %cst_116 = arith.constant dense<0.000000e+00> : vector<128xf32>
    %327 = vector.multi_reduction <add>, %324, %cst_116 [1] : vector<128x16xf32> to vector<128xf32>
    %328 = vector.shape_cast %327 : vector<128xf32> to vector<128x1xf32>
    %cst_117 = arith.constant 1.600000e+01 : f32
    %329 = vector.broadcast %cst_117 : f32 to vector<128x1xf32>
    %330 = arith.divf %328, %329 : vector<128x1xf32>
    %331 = vector.broadcast %330 : vector<128x1xf32> to vector<128x16xf32>
    %332 = arith.subf %324, %331 : vector<128x16xf32>
    %333 = arith.mulf %332, %332 : vector<128x16xf32>
    %cst_118 = arith.constant dense<0.000000e+00> : vector<128xf32>
    %334 = vector.multi_reduction <add>, %333, %cst_118 [1] : vector<128x16xf32> to vector<128xf32>
    %335 = vector.shape_cast %334 : vector<128xf32> to vector<128x1xf32>
    %cst_119 = arith.constant 1.600000e+01 : f32
    %336 = vector.broadcast %cst_119 : f32 to vector<128x1xf32>
    %337 = arith.divf %335, %336 : vector<128x1xf32>
    %338 = vector.broadcast %330 : vector<128x1xf32> to vector<128x16xf32>
    %339 = arith.subf %324, %338 : vector<128x16xf32>
    %cst_120 = arith.constant 9.99999974E-6 : f32
    %340 = vector.broadcast %cst_120 : f32 to vector<128x1xf32>
    %341 = arith.addf %337, %340 : vector<128x1xf32>
    %342 = math.rsqrt %341 : vector<128x1xf32>
    %343 = vector.broadcast %342 : vector<128x1xf32> to vector<128x16xf32>
    %344 = arith.mulf %339, %343 : vector<128x16xf32>
    %345 = vector.broadcast %325 : vector<1x16xf32> to vector<128x16xf32>
    %346 = arith.mulf %344, %345 : vector<128x16xf32>
    %347 = vector.broadcast %326 : vector<1x16xf32> to vector<128x16xf32>
    %348 = arith.addf %346, %347 : vector<128x16xf32>
    %cst_121 = arith.constant dense<0.000000e+00> : vector<128x64xf32>
    %349 = tpu.matmul %348, %258, %cst_121 {dimension_numbers = #tpu.dot_dimension_numbers<[1], [0], [0], [1], [0, 0, 1, 1], [], []>} : vector<128x16xf32>, vector<16x64xf32>, vector<128x64xf32> -> vector<128x64xf32>
    %350 = vector.broadcast %259 : vector<1x64xf32> to vector<128x64xf32>
    %351 = arith.addf %349, %350 : vector<128x64xf32>
    %cst_122 = arith.constant 0.000000e+00 : f32
    %352 = vector.broadcast %cst_122 : f32 to vector<128x64xf32>
    %353 = arith.maximumf %351, %352 : vector<128x64xf32>
    %cst_123 = arith.constant dense<0.000000e+00> : vector<128x16xf32>
    %354 = tpu.matmul %353, %260, %cst_123 {dimension_numbers = #tpu.dot_dimension_numbers<[1], [0], [0], [1], [0, 0, 1, 1], [], []>} : vector<128x64xf32>, vector<64x16xf32>, vector<128x16xf32> -> vector<128x16xf32>
    %355 = vector.broadcast %261 : vector<1x16xf32> to vector<128x16xf32>
    %356 = arith.addf %354, %355 : vector<128x16xf32>
    %357 = arith.addf %348, %356 : vector<128x16xf32>
    %358 = vector.extract_strided_slice %262 {offsets = [2, 0], sizes = [1, 16], strides = [1, 1]} : vector<4x16xf32> to vector<1x16xf32>
    %359 = vector.extract_strided_slice %262 {offsets = [3, 0], sizes = [1, 16], strides = [1, 1]} : vector<4x16xf32> to vector<1x16xf32>
    %cst_124 = arith.constant dense<0.000000e+00> : vector<128xf32>
    %360 = vector.multi_reduction <add>, %357, %cst_124 [1] : vector<128x16xf32> to vector<128xf32>
    %361 = vector.shape_cast %360 : vector<128xf32> to vector<128x1xf32>
    %cst_125 = arith.constant 1.600000e+01 : f32
    %362 = vector.broadcast %cst_125 : f32 to vector<128x1xf32>
    %363 = arith.divf %361, %362 : vector<128x1xf32>
    %364 = vector.broadcast %363 : vector<128x1xf32> to vector<128x16xf32>
    %365 = arith.subf %357, %364 : vector<128x16xf32>
    %366 = arith.mulf %365, %365 : vector<128x16xf32>
    %cst_126 = arith.constant dense<0.000000e+00> : vector<128xf32>
    %367 = vector.multi_reduction <add>, %366, %cst_126 [1] : vector<128x16xf32> to vector<128xf32>
    %368 = vector.shape_cast %367 : vector<128xf32> to vector<128x1xf32>
    %cst_127 = arith.constant 1.600000e+01 : f32
    %369 = vector.broadcast %cst_127 : f32 to vector<128x1xf32>
    %370 = arith.divf %368, %369 : vector<128x1xf32>
    %371 = vector.broadcast %363 : vector<128x1xf32> to vector<128x16xf32>
    %372 = arith.subf %357, %371 : vector<128x16xf32>
    %cst_128 = arith.constant 9.99999974E-6 : f32
    %373 = vector.broadcast %cst_128 : f32 to vector<128x1xf32>
    %374 = arith.addf %370, %373 : vector<128x1xf32>
    %375 = math.rsqrt %374 : vector<128x1xf32>
    %376 = vector.broadcast %375 : vector<128x1xf32> to vector<128x16xf32>
    %377 = arith.mulf %372, %376 : vector<128x16xf32>
    %378 = vector.broadcast %358 : vector<1x16xf32> to vector<128x16xf32>
    %379 = arith.mulf %377, %378 : vector<128x16xf32>
    %380 = vector.broadcast %359 : vector<1x16xf32> to vector<128x16xf32>
    %381 = arith.addf %379, %380 : vector<128x16xf32>
    %382 = tpu.concatenate %129, %255, %381 in 1 : vector<128x32xf32>, vector<128x16xf32>, vector<128x16xf32> -> vector<128x64xf32>
    %c0_129 = arith.constant 0 : index
    %c0_130 = arith.constant 0 : index
    %383 = vector.load %arg25[%c0_129, %c0_130] : memref<128x64xf32, #tpu.memory_space<vmem>>, vector<128x64xf32>
    tpu.vector_store %arg25[%c0_129, %c0_130], %382 {strides = array<i32>} : memref<128x64xf32, #tpu.memory_space<vmem>>, vector<128x64xf32>,
    return
  }
}

module attributes {stable_mosaic.version = 11 : i64} {
  func.func @_head_kernel(%arg0: memref<128x64xf32, #tpu.memory_space<vmem>>, %arg1: memref<64x64xf32, #tpu.memory_space<vmem>>, %arg2: memref<1x64xf32, #tpu.memory_space<vmem>>, %arg3: memref<64x2xf32, #tpu.memory_space<vmem>>, %arg4: memref<1x2xf32, #tpu.memory_space<vmem>>, %arg5: memref<64x4xf32, #tpu.memory_space<vmem>>, %arg6: memref<1x4xf32, #tpu.memory_space<vmem>>, %arg7: memref<128x2xf32, #tpu.memory_space<vmem>>, %arg8: memref<128x4xf32, #tpu.memory_space<vmem>>) attributes {dimension_semantics = [], scalar_prefetch = 0 : i64, scratch_operands = 0 : i64, tpu.core_type = #tpu.core_type<tc>} {
    %c0 = arith.constant 0 : index
    %c0_0 = arith.constant 0 : index
    %0 = vector.load %arg0[%c0, %c0_0] : memref<128x64xf32, #tpu.memory_space<vmem>>, vector<128x64xf32>
    %c0_1 = arith.constant 0 : index
    %c0_2 = arith.constant 0 : index
    %1 = vector.load %arg1[%c0_1, %c0_2] : memref<64x64xf32, #tpu.memory_space<vmem>>, vector<64x64xf32>
    %cst = arith.constant dense<0.000000e+00> : vector<128x64xf32>
    %2 = tpu.matmul %0, %1, %cst {dimension_numbers = #tpu.dot_dimension_numbers<[1], [0], [0], [1], [0, 0, 1, 1], [], []>} : vector<128x64xf32>, vector<64x64xf32>, vector<128x64xf32> -> vector<128x64xf32>
    %c0_3 = arith.constant 0 : index
    %c0_4 = arith.constant 0 : index
    %3 = vector.load %arg2[%c0_3, %c0_4] : memref<1x64xf32, #tpu.memory_space<vmem>>, vector<1x64xf32>
    %4 = vector.broadcast %3 : vector<1x64xf32> to vector<128x64xf32>
    %5 = arith.addf %2, %4 : vector<128x64xf32>
    %cst_5 = arith.constant 0.000000e+00 : f32
    %6 = vector.broadcast %cst_5 : f32 to vector<128x64xf32>
    %7 = arith.maximumf %5, %6 : vector<128x64xf32>
    %c0_6 = arith.constant 0 : index
    %c0_7 = arith.constant 0 : index
    %8 = vector.load %arg3[%c0_6, %c0_7] : memref<64x2xf32, #tpu.memory_space<vmem>>, vector<64x2xf32>
    %cst_8 = arith.constant dense<0.000000e+00> : vector<128x2xf32>
    %9 = tpu.matmul %7, %8, %cst_8 {dimension_numbers = #tpu.dot_dimension_numbers<[1], [0], [0], [1], [0, 0, 1, 1], [], []>} : vector<128x64xf32>, vector<64x2xf32>, vector<128x2xf32> -> vector<128x2xf32>
    %c0_9 = arith.constant 0 : index
    %c0_10 = arith.constant 0 : index
    %10 = vector.load %arg4[%c0_9, %c0_10] : memref<1x2xf32, #tpu.memory_space<vmem>>, vector<1x2xf32>
    %11 = vector.broadcast %10 : vector<1x2xf32> to vector<128x2xf32>
    %12 = arith.addf %9, %11 : vector<128x2xf32>
    %c0_11 = arith.constant 0 : index
    %c0_12 = arith.constant 0 : index
    %13 = vector.load %arg7[%c0_11, %c0_12] : memref<128x2xf32, #tpu.memory_space<vmem>>, vector<128x2xf32>
    tpu.vector_store %arg7[%c0_11, %c0_12], %12 {strides = array<i32>} : memref<128x2xf32, #tpu.memory_space<vmem>>, vector<128x2xf32>,
    %c0_13 = arith.constant 0 : index
    %c0_14 = arith.constant 0 : index
    %14 = vector.load %arg5[%c0_13, %c0_14] : memref<64x4xf32, #tpu.memory_space<vmem>>, vector<64x4xf32>
    %cst_15 = arith.constant dense<0.000000e+00> : vector<128x4xf32>
    %15 = tpu.matmul %7, %14, %cst_15 {dimension_numbers = #tpu.dot_dimension_numbers<[1], [0], [0], [1], [0, 0, 1, 1], [], []>} : vector<128x64xf32>, vector<64x4xf32>, vector<128x4xf32> -> vector<128x4xf32>
    %c0_16 = arith.constant 0 : index
    %c0_17 = arith.constant 0 : index
    %16 = vector.load %arg6[%c0_16, %c0_17] : memref<1x4xf32, #tpu.memory_space<vmem>>, vector<1x4xf32>
    %17 = vector.broadcast %16 : vector<1x4xf32> to vector<128x4xf32>
    %18 = arith.addf %15, %17 : vector<128x4xf32>
    %19 = arith.negf %18 : vector<128x4xf32>
    %20 = math.exp %19 : vector<128x4xf32>
    %cst_18 = arith.constant 1.000000e+00 : f32
    %21 = vector.broadcast %cst_18 : f32 to vector<128x4xf32>
    %22 = arith.addf %21, %20 : vector<128x4xf32>
    %23 = arith.divf %21, %22 : vector<128x4xf32>
    %c0_19 = arith.constant 0 : index
    %c0_20 = arith.constant 0 : index
    %24 = vector.load %arg8[%c0_19, %c0_20] : memref<128x4xf32, #tpu.memory_space<vmem>>, vector<128x4xf32>
    tpu.vector_store %arg8[%c0_19, %c0_20], %23 {strides = array<i32>} : memref<128x4xf32, #tpu.memory_space<vmem>>, vector<128x4xf32>,
    return
  }
}

</mosaic_0001>

<llo_original>
// kernel: transt_trask_highway_forward.3
$region0: #{transt_trask_highway_forward.3}
  #allocation0 [shape = 'u32[]', space=smem, size = 0x4, offset = 0x4, fixed_abs, tag = 'smem constant byte address 0x4 - core index']
  #allocation1 [shape = 'u32[144,128]{1,0:T(1,128)}', space=vmem, size = 0x12000, scoped, tag = 'internal scratch']
  %s0 = inlined_call_operand.vmem [shape: f32[32,192], index: 0, kind: input, shape index: {}]
  %s1 = inlined_call_operand.vmem [shape: f32[128,192], index: 1, kind: input, shape index: {}]
  %s2 = inlined_call_operand.vmem [shape: f32[192,160], index: 2, kind: input, shape index: {}]
  %s3 = inlined_call_operand.vmem [shape: f32[1,160], index: 3, kind: input, shape index: {}]
  %s4 = inlined_call_operand.vmem [shape: f32[160,64], index: 4, kind: input, shape index: {}]
  %s5 = inlined_call_operand.vmem [shape: f32[1,64], index: 5, kind: input, shape index: {}]
  %s6 = inlined_call_operand.vmem [shape: f32[32,64], index: 6, kind: output, shape index: {0}]
  %s7 = inlined_call_operand.vmem [shape: f32[128,64], index: 7, kind: output, shape index: {1}]
  %8 = xla_tuple %s6, %s7
  %s9 = sld [smem:[#allocation0]]
  $region42: #{transt_trask_highway_forward.3} parent=0
    _
  %s11 = ssub.s32 1, %s9
  %s12 = scalar_select 0, %s11, %s9
  // Predicated region
  $region2: #{transt_trask_highway_forward.3} parent=0 // pred_check
    _
  $region3: #{transt_trask_highway_forward.3} parent=0 // pred_check_branch
    %14 = sbr.rel (0) target = $region5
  $region4: #{transt_trask_highway_forward.3} parent=0 // pred_region
    _
  $region5: #{transt_trask_highway_forward.3} parent=0 // pred_fallthru
    _
  // Predicated region
  $region6: #{transt_trask_highway_forward.3} parent=0 // pred_check
    _
  $region7: #{transt_trask_highway_forward.3} parent=0 // pred_check_branch
    %16 = sbr.rel (0) target = $region9
  $region8: #{transt_trask_highway_forward.3} parent=0 // pred_region
    _
  $region9: #{transt_trask_highway_forward.3} parent=0 // pred_fallthru
    _
  // Predicated region
  $region10: #{transt_trask_highway_forward.3} parent=0 // pred_check
    _
  $region11: #{transt_trask_highway_forward.3} parent=0 // pred_check_branch
    %18 = sbr.rel (0) target = $region13
  $region12: #{transt_trask_highway_forward.3} parent=0 // pred_region
    _
  $region13: #{transt_trask_highway_forward.3} parent=0 // pred_fallthru
    _
  // Predicated region
  $region14: #{transt_trask_highway_forward.3} parent=0 // pred_check
    _
  $region15: #{transt_trask_highway_forward.3} parent=0 // pred_check_branch
    %20 = sbr.rel (0) target = $region17
  $region16: #{transt_trask_highway_forward.3} parent=0 // pred_region
    _
  $region17: #{transt_trask_highway_forward.3} parent=0 // pred_fallthru
    _
  // Predicated region
  $region18: #{transt_trask_highway_forward.3} parent=0 // pred_check
    _
  $region19: #{transt_trask_highway_forward.3} parent=0 // pred_check_branch
    %22 = sbr.rel (0) target = $region21
  $region20: #{transt_trask_highway_forward.3} parent=0 // pred_region
    _
  $region21: #{transt_trask_highway_forward.3} parent=0 // pred_fallthru
    _
  // Predicated region
  $region22: #{transt_trask_highway_forward.3} parent=0 // pred_check
    _
  $region23: #{transt_trask_highway_forward.3} parent=0 // pred_check_branch
    %24 = sbr.rel (0) target = $region25
  $region24: #{transt_trask_highway_forward.3} parent=0 // pred_region
    _
  $region25: #{transt_trask_highway_forward.3} parent=0 // pred_fallthru
    _
  %v25 = vld [vmem:[%s2] sm:$0xff]
  %v26 = vld [vmem:[%s2 + $0x8] sm:$0xff]
  %v27 = vld [vmem:[%s2 + $0x10] sm:$0xff]
  %v28 = vld [vmem:[%s2 + $0x18] sm:$0xff]
  %v29 = vld [vmem:[%s2 + $0x20] sm:$0xff]
  %v30 = vld [vmem:[%s2 + $0x28] sm:$0xff]
  %v31 = vld [vmem:[%s2 + $0x30] sm:$0xff]
  %v32 = vld [vmem:[%s2 + $0x38] sm:$0xff]
  %v33 = vld [vmem:[%s2 + $0x40] sm:$0xff]
  %v34 = vld [vmem:[%s2 + $0x48] sm:$0xff]
  %v35 = vld [vmem:[%s2 + $0x50] sm:$0xff]
  %v36 = vld [vmem:[%s2 + $0x58] sm:$0xff]
  %v37 = vld [vmem:[%s2 + $0x60] sm:$0xff]
  %v38 = vld [vmem:[%s2 + $0x68] sm:$0xff]
  %v39 = vld [vmem:[%s2 + $0x70] sm:$0xff]
  %v40 = vld [vmem:[%s2 + $0x78] sm:$0xff]
  %v41 = vld [vmem:[%s2 + $0x80] sm:$0xff]
  %v42 = vld [vmem:[%s2 + $0x88] sm:$0xff]
  %v43 = vld [vmem:[%s2 + $0x90] sm:$0xff]
  %v44 = vld [vmem:[%s2 + $0x98] sm:$0xff]
  %v45 = vld [vmem:[%s2 + $0xa0] sm:$0xff]
  %v46 = vld [vmem:[%s2 + $0xa8] sm:$0xff]
  %v47 = vld [vmem:[%s2 + $0xb0] sm:$0xff]
  %v48 = vld [vmem:[%s2 + $0xb8] sm:$0xff]
  %v49 = vld [vmem:[%s2 + $0xc0] sm:$0xff]
  %v50 = vld [vmem:[%s2 + $0xc8] sm:$0xff]
  %v51 = vld [vmem:[%s2 + $0xd0] sm:$0xff]
  %v52 = vld [vmem:[%s2 + $0xd8] sm:$0xff]
  %v53 = vld [vmem:[%s2 + $0xe0] sm:$0xff]
  %v54 = vld [vmem:[%s2 + $0xe8] sm:$0xff]
  %v55 = vld [vmem:[%s2 + $0xf0] sm:$0xff]
  %v56 = vld [vmem:[%s2 + $0xf8] sm:$0xff]
  %v57 = vld [vmem:[%s2 + $0x100] sm:$0xff]
  %v58 = vld [vmem:[%s2 + $0x108] sm:$0xff]
  %v59 = vld [vmem:[%s2 + $0x110] sm:$0xff]
  %v60 = vld [vmem:[%s2 + $0x118] sm:$0xff]
  %v61 = vld [vmem:[%s2 + $0x120] sm:$0xff]
  %v62 = vld [vmem:[%s2 + $0x128] sm:$0xff]
  %v63 = vld [vmem:[%s2 + $0x130] sm:$0xff]
  %v64 = vld [vmem:[%s2 + $0x138] sm:$0xff]
  %v65 = vld [vmem:[%s2 + $0x140] sm:$0xff]
  %v66 = vld [vmem:[%s2 + $0x148] sm:$0xff]
  %v67 = vld [vmem:[%s2 + $0x150] sm:$0xff]
  %v68 = vld [vmem:[%s2 + $0x158] sm:$0xff]
  %v69 = vld [vmem:[%s2 + $0x160] sm:$0xff]
  %v70 = vld [vmem:[%s2 + $0x168] sm:$0xff]
  %v71 = vld [vmem:[%s2 + $0x170] sm:$0xff]
  %v72 = vld [vmem:[%s2 + $0x178] sm:$0xff]
  %v73 = vld [vmem:[%s3] sm:$0x3]
  %v74 = vld [vmem:[%s4] sm:$0xff]
  %v75 = vld [vmem:[%s4 + $0x8] sm:$0xff]
  %v76 = vld [vmem:[%s4 + $0x10] sm:$0xff]
  %v77 = vld [vmem:[%s4 + $0x18] sm:$0xff]
  %v78 = vld [vmem:[%s4 + $0x20] sm:$0xff]
  %v79 = vld [vmem:[%s4 + $0x28] sm:$0xff]
  %v80 = vld [vmem:[%s4 + $0x30] sm:$0xff]
  %v81 = vld [vmem:[%s4 + $0x38] sm:$0xff]
  %v82 = vld [vmem:[%s4 + $0x40] sm:$0xff]
  %v83 = vld [vmem:[%s4 + $0x48] sm:$0xff]
  %v84 = vld [vmem:[%s4 + $0x50] sm:$0xff]
  %v85 = vld [vmem:[%s4 + $0x58] sm:$0xff]
  %v86 = vld [vmem:[%s4 + $0x60] sm:$0xff]
  %v87 = vld [vmem:[%s4 + $0x68] sm:$0xff]
  %v88 = vld [vmem:[%s4 + $0x70] sm:$0xff]
  %v89 = vld [vmem:[%s4 + $0x78] sm:$0xff]
  %v90 = vld [vmem:[%s4 + $0x80] sm:$0xff]
  %v91 = vld [vmem:[%s4 + $0x88] sm:$0xff]
  %v92 = vld [vmem:[%s4 + $0x90] sm:$0xff]
  %v93 = vld [vmem:[%s4 + $0x98] sm:$0xff]
  %v94 = vld [vmem:[%s5] sm:$0x1]
  %v95 = vld [vmem:[%s0] sm:$0xff]
  %v96 = vld [vmem:[%s0 + $0x8] sm:$0xff]
  %v97 = vld [vmem:[%s0 + $0x10] sm:$0xff]
  %v98 = vld [vmem:[%s0 + $0x18] sm:$0xff]
  %v99 = vld [vmem:[%s0 + $0x20] sm:$0xff]
  %v100 = vld [vmem:[%s0 + $0x28] sm:$0xff]
  %v101 = vld [vmem:[%s0 + $0x30] sm:$0xff]
  %v102 = vld [vmem:[%s0 + $0x38] sm:$0xff]
  %v104 = vlaneseq
  %v105 = vshrl.u32 %v104, 7
  %v106 = vsub.s32 0, %v105
  %v107 = vrot.slane %v73, %v106
  %v108 = vlaneseq
  %v109 = vshrl.u32 %v108, 7
  %v110 = vsub.s32 1, %v109
  %v111 = vrot.slane %v73, %v110
  %vm114 = vcmask 523264
  %v116 = vsel %vm114, %v96, 0
  %v119 = vsel %vm114, %v98, 0
  %v122 = vsel %vm114, %v100, 0
  %v125 = vsel %vm114, %v102, 0
  %127 = vmatprep.subr.mxu0 %v56
  %128 = vmatpush1.msra.mxu0 %v55
  %129 = vmatprep.subr.mxu0 %v54
  %130 = vmatpush1.msra.mxu0 %v53
  %131 = vmatprep.subr.mxu0 %v52
  %132 = vmatpush1.msra.mxu0 %v51
  %133 = vmatprep.subr.mxu0 %v50
  %134 = vmatpush1.msra.mxu0 %v49
  %135 = vmatprep.subr.mxu0 %v48
  %136 = vmatpush1.msra.mxu0 %v47
  %137 = vmatprep.subr.mxu0 %v46
  %138 = vmatpush1.msra.mxu0 %v45
  %139 = vmatprep.subr.mxu0 %v44
  %140 = vmatpush1.msra.mxu0 %v43
  %141 = vmatprep.subr.mxu0 %v42
  %142 = vmatpush1.msra.mxu0 %v41
  %143 = vmatprep.subr.mxu0 %v40
  %144 = vmatpush1.msra.mxu0 %v39
  %145 = vmatprep.subr.mxu0 %v38
  %146 = vmatpush1.msra.mxu0 %v37
  %147 = vmatprep.subr.mxu0 %v36
  %148 = vmatpush1.msra.mxu0 %v35
  %149 = vmatprep.subr.mxu0 %v34
  %150 = vmatpush1.msra.mxu0 %v33
  %151 = vmatprep.subr.mxu0 %v32
  %152 = vmatpush1.msra.mxu0 %v31
  %153 = vmatprep.subr.mxu0 %v30
  %154 = vmatpush1.msra.mxu0 %v29
  %155 = vmatprep.subr.mxu0 %v28
  %156 = vmatpush1.msra.mxu0 %v27
  %157 = vmatprep.subr.mxu0 %v26
  %158 = vmatpush1.msra.mxu0 %v25
  %159 = vmatprep.subr.mxu0 0.0
  %160 = vmatpush2.msra.mxu0 0.0
  %161 = vmatprep.subr.mxu0 0.0
  %162 = vmatpush2.msra.mxu0 0.0
  %163 = vmatprep.subr.mxu0 0.0
  %164 = vmatpush2.msra.mxu0 0.0
  %165 = vmatprep.subr.mxu0 0.0
  %166 = vmatpush2.msra.mxu0 0.0
  %167 = vmatprep.subr.mxu0 0.0
  %168 = vmatpush2.msra.mxu0 0.0
  %169 = vmatprep.subr.mxu0 0.0
  %170 = vmatpush2.msra.mxu0 0.0
  %171 = vmatprep.subr.mxu0 0.0
  %172 = vmatpush2.msra.mxu0 0.0
  %173 = vmatprep.subr.mxu0 0.0
  %174 = vmatpush2.msra.mxu0 0.0
  %175 = vmatprep.subr.mxu0 %v72
  %176 = vmatpush2.msra.mxu0 %v71
  %177 = vmatprep.subr.mxu0 %v70
  %178 = vmatpush2.msra.mxu0 %v69
  %179 = vmatprep.subr.mxu0 %v68
  %180 = vmatpush2.msra.mxu0 %v67
  %181 = vmatprep.subr.mxu0 %v66
  %182 = vmatpush2.msra.mxu0 %v65
  %183 = vmatprep.subr.mxu0 %v64
  %184 = vmatpush2.msra.mxu0 %v63
  %185 = vmatprep.subr.mxu0 %v62
  %186 = vmatpush2.msra.mxu0 %v61
  %187 = vmatprep.subr.mxu0 %v60
  %188 = vmatpush2.msra.mxu0 %v59
  %189 = vmatprep.subr.mxu0 %v58
  %190 = vmatpush2.msra.mxu0 %v57
  %191 = vmatprep.mubr.f32.mxu0 %v116
  %192 = vmatmul.mubr.f32.gmra.mxu0 %v95
  %v193 = vpop.f32.mrf.mxu0
  %v194 = vadd.f32 %v107, %v193
  %v195 = vpop.f32.mrf.mxu0
  %v196 = vadd.f32 %v111, %v195
  %197 = vmatprep.mubr.f32.mxu0 %v119
  %198 = vmatmul.mubr.f32.gmra.mxu0 %v97
  %v199 = vpop.f32.mrf.mxu0
  %v200 = vadd.f32 %v107, %v199
  %v201 = vpop.f32.mrf.mxu0
  %v202 = vadd.f32 %v111, %v201
  %203 = vmatprep.mubr.f32.mxu0 %v122
  %204 = vmatmul.mubr.f32.gmra.mxu0 %v99
  %v205 = vpop.f32.mrf.mxu0
  %v206 = vadd.f32 %v107, %v205
  %v207 = vpop.f32.mrf.mxu0
  %v208 = vadd.f32 %v111, %v207
  %209 = vmatprep.mubr.f32.mxu0 %v125
  %210 = vmatmul.mubr.f32.gmra.mxu0 %v101
  %v211 = vpop.f32.mrf.mxu0
  %v212 = vadd.f32 %v107, %v211
  %v213 = vpop.f32.mrf.mxu0
  %v214 = vadd.f32 %v111, %v213
  %215 = vdwg.mxu0
  %v216 = vmax.f32 %v194, 0.0
  %v217 = vmax.f32 %v196, 0.0
  %v218 = vmax.f32 %v200, 0.0
  %v219 = vmax.f32 %v202, 0.0
  %v220 = vmax.f32 %v206, 0.0
  %v221 = vmax.f32 %v208, 0.0
  %v222 = vmax.f32 %v212, 0.0
  %v223 = vmax.f32 %v214, 0.0
  %v225 = vlaneseq
  %v226 = vshrl.u32 %v225, 7
  %v227 = vsub.s32 0, %v226
  %v228 = vrot.slane %v94, %v227
  %vm230 = vcmask 261120
  %v232 = vsel %vm230, %v217, 0
  %v235 = vsel %vm230, %v219, 0
  %v238 = vsel %vm230, %v221, 0
  %v241 = vsel %vm230, %v223, 0
  %243 = vmatprep.subr.mxu0 0.0
  %244 = vmatpush1.msra.mxu0 %v89
  %245 = vmatprep.subr.mxu0 0.0
  %246 = vmatpush1.msra.mxu0 %v88
  %247 = vmatprep.subr.mxu0 0.0
  %248 = vmatpush1.msra.mxu0 %v87
  %249 = vmatprep.subr.mxu0 0.0
  %250 = vmatpush1.msra.mxu0 %v86
  %251 = vmatprep.subr.mxu0 0.0
  %252 = vmatpush1.msra.mxu0 %v85
  %253 = vmatprep.subr.mxu0 0.0
  %254 = vmatpush1.msra.mxu0 %v84
  %255 = vmatprep.subr.mxu0 0.0
  %256 = vmatpush1.msra.mxu0 %v83
  %257 = vmatprep.subr.mxu0 0.0
  %258 = vmatpush1.msra.mxu0 %v82
  %259 = vmatprep.subr.mxu0 0.0
  %260 = vmatpush1.msra.mxu0 %v81
  %261 = vmatprep.subr.mxu0 0.0
  %262 = vmatpush1.msra.mxu0 %v80
  %263 = vmatprep.subr.mxu0 0.0
  %264 = vmatpush1.msra.mxu0 %v79
  %265 = vmatprep.subr.mxu0 0.0
  %266 = vmatpush1.msra.mxu0 %v78
  %267 = vmatprep.subr.mxu0 0.0
  %268 = vmatpush1.msra.mxu0 %v77
  %269 = vmatprep.subr.mxu0 0.0
  %270 = vmatpush1.msra.mxu0 %v76
  %271 = vmatprep.subr.mxu0 0.0
  %272 = vmatpush1.msra.mxu0 %v75
  %273 = vmatprep.subr.mxu0 0.0
  %274 = vmatpush1.msra.mxu0 %v74
  %275 = vmatprep.subr.mxu0 0.0
  %276 = vmatpush2.msra.mxu0 0.0
  %277 = vmatprep.subr.mxu0 0.0
  %278 = vmatpush2.msra.mxu0 0.0
  %279 = vmatprep.subr.mxu0 0.0
  %280 = vmatpush2.msra.mxu0 0.0
  %281 = vmatprep.subr.mxu0 0.0
  %282 = vmatpush2.msra.mxu0 0.0
  %283 = vmatprep.subr.mxu0 0.0
  %284 = vmatpush2.msra.mxu0 0.0
  %285 = vmatprep.subr.mxu0 0.0
  %286 = vmatpush2.msra.mxu0 0.0
  %287 = vmatprep.subr.mxu0 0.0
  %288 = vmatpush2.msra.mxu0 0.0
  %289 = vmatprep.subr.mxu0 0.0
  %290 = vmatpush2.msra.mxu0 0.0
  %291 = vmatprep.subr.mxu0 0.0
  %292 = vmatpush2.msra.mxu0 0.0
  %293 = vmatprep.subr.mxu0 0.0
  %294 = vmatpush2.msra.mxu0 0.0
  %295 = vmatprep.subr.mxu0 0.0
  %296 = vmatpush2.msra.mxu0 0.0
  %297 = vmatprep.subr.mxu0 0.0
  %298 = vmatpush2.msra.mxu0 0.0
  %299 = vmatprep.subr.mxu0 0.0
  %300 = vmatpush2.msra.mxu0 %v93
  %301 = vmatprep.subr.mxu0 0.0
  %302 = vmatpush2.msra.mxu0 %v92
  %303 = vmatprep.subr.mxu0 0.0
  %304 = vmatpush2.msra.mxu0 %v91
  %305 = vmatprep.subr.mxu0 0.0
  %306 = vmatpush2.msra.mxu0 %v90
  %307 = vmatprep.mubr.f32.mxu0 %v232
  %308 = vmatmul.mubr.f32.gmra.mxu0 %v216
  %v309 = vpop.f32.mrf.mxu0
  %v310 = vadd.f32 %v228, %v309
  %v311 = vpop.f32.mrf.mxu0
  %312 = vmatprep.mubr.f32.mxu0 %v235
  %313 = vmatmul.mubr.f32.gmra.mxu0 %v218
  %v314 = vpop.f32.mrf.mxu0
  %v315 = vadd.f32 %v228, %v314
  %v316 = vpop.f32.mrf.mxu0
  %317 = vmatprep.mubr.f32.mxu0 %v238
  %318 = vmatmul.mubr.f32.gmra.mxu0 %v220
  %v319 = vpop.f32.mrf.mxu0
  %v320 = vadd.f32 %v228, %v319
  %v321 = vpop.f32.mrf.mxu0
  %322 = vmatprep.mubr.f32.mxu0 %v241
  %323 = vmatmul.mubr.f32.gmra.mxu0 %v222
  %v324 = vpop.f32.mrf.mxu0
  %v325 = vadd.f32 %v228, %v324
  %v326 = vpop.f32.mrf.mxu0
  %327 = vdwg.mxu0
  %328 = vst.msk [vmem:[%s6] sm:$0xff] %vm114, %v310
  %329 = vst.msk [vmem:[%s6 + $0x8] sm:$0xff] %vm114, %v315
  %330 = vst.msk [vmem:[%s6 + $0x10] sm:$0xff] %vm114, %v320
  %331 = vst.msk [vmem:[%s6 + $0x18] sm:$0xff] %vm114, %v325
  %v332 = vld [vmem:[%s1] sm:$0xff]
  %v333 = vld [vmem:[%s1 + $0x8] sm:$0xff]
  %v334 = vld [vmem:[%s1 + $0x10] sm:$0xff]
  %v335 = vld [vmem:[%s1 + $0x18] sm:$0xff]
  %v336 = vld [vmem:[%s1 + $0x20] sm:$0xff]
  %v337 = vld [vmem:[%s1 + $0x28] sm:$0xff]
  %v338 = vld [vmem:[%s1 + $0x30] sm:$0xff]
  %v339 = vld [vmem:[%s1 + $0x38] sm:$0xff]
  %v340 = vld [vmem:[%s1 + $0x40] sm:$0xff]
  %v341 = vld [vmem:[%s1 + $0x48] sm:$0xff]
  %v342 = vld [vmem:[%s1 + $0x50] sm:$0xff]
  %v343 = vld [vmem:[%s1 + $0x58] sm:$0xff]
  %v344 = vld [vmem:[%s1 + $0x60] sm:$0xff]
  %v345 = vld [vmem:[%s1 + $0x68] sm:$0xff]
  %v346 = vld [vmem:[%s1 + $0x70] sm:$0xff]
  %v347 = vld [vmem:[%s1 + $0x78] sm:$0xff]
  %v348 = vld [vmem:[%s1 + $0x80] sm:$0xff]
  %v349 = vld [vmem:[%s1 + $0x88] sm:$0xff]
  %v350 = vld [vmem:[%s1 + $0x90] sm:$0xff]
  %v351 = vld [vmem:[%s1 + $0x98] sm:$0xff]
  %v352 = vld [vmem:[%s1 + $0xa0] sm:$0xff]
  %v353 = vld [vmem:[%s1 + $0xa8] sm:$0xff]
  %v354 = vld [vmem:[%s1 + $0xb0] sm:$0xff]
  %v355 = vld [vmem:[%s1 + $0xb8] sm:$0xff]
  %v356 = vld [vmem:[%s1 + $0xc0] sm:$0xff]
  %v357 = vld [vmem:[%s1 + $0xc8] sm:$0xff]
  %v358 = vld [vmem:[%s1 + $0xd0] sm:$0xff]
  %v359 = vld [vmem:[%s1 + $0xd8] sm:$0xff]
  %v360 = vld [vmem:[%s1 + $0xe0] sm:$0xff]
  %v361 = vld [vmem:[%s1 + $0xe8] sm:$0xff]
  %v362 = vld [vmem:[%s1 + $0xf0] sm:$0xff]
  %v363 = vld [vmem:[%s1 + $0xf8] sm:$0xff]
  %v365 = vsel %vm114, %v333, 0
  %v368 = vsel %vm114, %v335, 0
  %v371 = vsel %vm114, %v337, 0
  %v374 = vsel %vm114, %v339, 0
  %v377 = vsel %vm114, %v341, 0
  %v380 = vsel %vm114, %v343, 0
  %v383 = vsel %vm114, %v345, 0
  %v386 = vsel %vm114, %v347, 0
  %v389 = vsel %vm114, %v349, 0
  %v392 = vsel %vm114, %v351, 0
  %v395 = vsel %vm114, %v353, 0
  %v398 = vsel %vm114, %v355, 0
  %v401 = vsel %vm114, %v357, 0
  %v404 = vsel %vm114, %v359, 0
  %v407 = vsel %vm114, %v361, 0
  %v410 = vsel %vm114, %v363, 0
  %412 = vmatprep.subr.mxu0 %v56
  %413 = vmatpush1.msra.mxu0 %v55
  %414 = vmatprep.subr.mxu0 %v54
  %415 = vmatpush1.msra.mxu0 %v53
  %416 = vmatprep.subr.mxu0 %v52
  %417 = vmatpush1.msra.mxu0 %v51
  %418 = vmatprep.subr.mxu0 %v50
  %419 = vmatpush1.msra.mxu0 %v49
  %420 = vmatprep.subr.mxu0 %v48
  %421 = vmatpush1.msra.mxu0 %v47
  %422 = vmatprep.subr.mxu0 %v46
  %423 = vmatpush1.msra.mxu0 %v45
  %424 = vmatprep.subr.mxu0 %v44
  %425 = vmatpush1.msra.mxu0 %v43
  %426 = vmatprep.subr.mxu0 %v42
  %427 = vmatpush1.msra.mxu0 %v41
  %428 = vmatprep.subr.mxu0 %v40
  %429 = vmatpush1.msra.mxu0 %v39
  %430 = vmatprep.subr.mxu0 %v38
  %431 = vmatpush1.msra.mxu0 %v37
  %432 = vmatprep.subr.mxu0 %v36
  %433 = vmatpush1.msra.mxu0 %v35
  %434 = vmatprep.subr.mxu0 %v34
  %435 = vmatpush1.msra.mxu0 %v33
  %436 = vmatprep.subr.mxu0 %v32
  %437 = vmatpush1.msra.mxu0 %v31
  %438 = vmatprep.subr.mxu0 %v30
  %439 = vmatpush1.msra.mxu0 %v29
  %440 = vmatprep.subr.mxu0 %v28
  %441 = vmatpush1.msra.mxu0 %v27
  %442 = vmatprep.subr.mxu0 %v26
  %443 = vmatpush1.msra.mxu0 %v25
  %444 = vmatprep.subr.mxu0 0.0
  %445 = vmatpush2.msra.mxu0 0.0
  %446 = vmatprep.subr.mxu0 0.0
  %447 = vmatpush2.msra.mxu0 0.0
  %448 = vmatprep.subr.mxu0 0.0
  %449 = vmatpush2.msra.mxu0 0.0
  %450 = vmatprep.subr.mxu0 0.0
  %451 = vmatpush2.msra.mxu0 0.0
  %452 = vmatprep.subr.mxu0 0.0
  %453 = vmatpush2.msra.mxu0 0.0
  %454 = vmatprep.subr.mxu0 0.0
  %455 = vmatpush2.msra.mxu0 0.0
  %456 = vmatprep.subr.mxu0 0.0
  %457 = vmatpush2.msra.mxu0 0.0
  %458 = vmatprep.subr.mxu0 0.0
  %459 = vmatpush2.msra.mxu0 0.0
  %460 = vmatprep.subr.mxu0 %v72
  %461 = vmatpush2.msra.mxu0 %v71
  %462 = vmatprep.subr.mxu0 %v70
  %463 = vmatpush2.msra.mxu0 %v69
  %464 = vmatprep.subr.mxu0 %v68
  %465 = vmatpush2.msra.mxu0 %v67
  %466 = vmatprep.subr.mxu0 %v66
  %467 = vmatpush2.msra.mxu0 %v65
  %468 = vmatprep.subr.mxu0 %v64
  %469 = vmatpush2.msra.mxu0 %v63
  %470 = vmatprep.subr.mxu0 %v62
  %471 = vmatpush2.msra.mxu0 %v61
  %472 = vmatprep.subr.mxu0 %v60
  %473 = vmatpush2.msra.mxu0 %v59
  %474 = vmatprep.subr.mxu0 %v58
  %475 = vmatpush2.msra.mxu0 %v57
  %476 = vmatprep.mubr.f32.mxu0 %v365
  %477 = vmatmul.mubr.f32.gmra.mxu0 %v332
  %v478 = vpop.f32.mrf.mxu0
  %v479 = vadd.f32 %v107, %v478
  %v480 = vpop.f32.mrf.mxu0
  %v481 = vadd.f32 %v111, %v480
  %482 = vmatprep.mubr.f32.mxu0 %v368
  %483 = vmatmul.mubr.f32.gmra.mxu0 %v334
  %v484 = vpop.f32.mrf.mxu0
  %v485 = vadd.f32 %v107, %v484
  %v486 = vpop.f32.mrf.mxu0
  %v487 = vadd.f32 %v111, %v486
  %488 = vmatprep.mubr.f32.mxu0 %v371
  %489 = vmatmul.mubr.f32.gmra.mxu0 %v336
  %v490 = vpop.f32.mrf.mxu0
  %v491 = vadd.f32 %v107, %v490
  %v492 = vpop.f32.mrf.mxu0
  %v493 = vadd.f32 %v111, %v492
  %494 = vmatprep.mubr.f32.mxu0 %v374
  %495 = vmatmul.mubr.f32.gmra.mxu0 %v338
  %v496 = vpop.f32.mrf.mxu0
  %v497 = vadd.f32 %v107, %v496
  %v498 = vpop.f32.mrf.mxu0
  %v499 = vadd.f32 %v111, %v498
  %500 = vmatprep.mubr.f32.mxu0 %v377
  %501 = vmatmul.mubr.f32.gmra.mxu0 %v340
  %v502 = vpop.f32.mrf.mxu0
  %v503 = vadd.f32 %v107, %v502
  %v504 = vpop.f32.mrf.mxu0
  %v505 = vadd.f32 %v111, %v504
  %506 = vmatprep.mubr.f32.mxu0 %v380
  %507 = vmatmul.mubr.f32.gmra.mxu0 %v342
  %v508 = vpop.f32.mrf.mxu0
  %v509 = vadd.f32 %v107, %v508
  %v510 = vpop.f32.mrf.mxu0
  %v511 = vadd.f32 %v111, %v510
  %512 = vmatprep.mubr.f32.mxu0 %v383
  %513 = vmatmul.mubr.f32.gmra.mxu0 %v344
  %v514 = vpop.f32.mrf.mxu0
  %v515 = vadd.f32 %v107, %v514
  %v516 = vpop.f32.mrf.mxu0
  %v517 = vadd.f32 %v111, %v516
  %518 = vmatprep.mubr.f32.mxu0 %v386
  %519 = vmatmul.mubr.f32.gmra.mxu0 %v346
  %v520 = vpop.f32.mrf.mxu0
  %v521 = vadd.f32 %v107, %v520
  %v522 = vpop.f32.mrf.mxu0
  %v523 = vadd.f32 %v111, %v522
  %524 = vmatprep.mubr.f32.mxu0 %v389
  %525 = vmatmul.mubr.f32.gmra.mxu0 %v348
  %v526 = vpop.f32.mrf.mxu0
  %v527 = vadd.f32 %v107, %v526
  %v528 = vpop.f32.mrf.mxu0
  %v529 = vadd.f32 %v111, %v528
  %530 = vmatprep.mubr.f32.mxu0 %v392
  %531 = vmatmul.mubr.f32.gmra.mxu0 %v350
  %v532 = vpop.f32.mrf.mxu0
  %v533 = vadd.f32 %v107, %v532
  %v534 = vpop.f32.mrf.mxu0
  %v535 = vadd.f32 %v111, %v534
  %536 = vmatprep.mubr.f32.mxu0 %v395
  %537 = vmatmul.mubr.f32.gmra.mxu0 %v352
  %v538 = vpop.f32.mrf.mxu0
  %v539 = vadd.f32 %v107, %v538
  %v540 = vpop.f32.mrf.mxu0
  %v541 = vadd.f32 %v111, %v540
  %542 = vmatprep.mubr.f32.mxu0 %v398
  %543 = vmatmul.mubr.f32.gmra.mxu0 %v354
  %v544 = vpop.f32.mrf.mxu0
  %v545 = vadd.f32 %v107, %v544
  %v546 = vpop.f32.mrf.mxu0
  %v547 = vadd.f32 %v111, %v546
  %548 = vmatprep.mubr.f32.mxu0 %v401
  %549 = vmatmul.mubr.f32.gmra.mxu0 %v356
  %v550 = vpop.f32.mrf.mxu0
  %v551 = vadd.f32 %v107, %v550
  %v552 = vpop.f32.mrf.mxu0
  %v553 = vadd.f32 %v111, %v552
  %554 = vmatprep.mubr.f32.mxu0 %v404
  %555 = vmatmul.mubr.f32.gmra.mxu0 %v358
  %v556 = vpop.f32.mrf.mxu0
  %v557 = vadd.f32 %v107, %v556
  %v558 = vpop.f32.mrf.mxu0
  %v559 = vadd.f32 %v111, %v558
  %560 = vmatprep.mubr.f32.mxu0 %v407
  %561 = vmatmul.mubr.f32.gmra.mxu0 %v360
  %v562 = vpop.f32.mrf.mxu0
  %v563 = vadd.f32 %v107, %v562
  %v564 = vpop.f32.mrf.mxu0
  %v565 = vadd.f32 %v111, %v564
  %566 = vmatprep.mubr.f32.mxu0 %v410
  %567 = vmatmul.mubr.f32.gmra.mxu0 %v362
  %v568 = vpop.f32.mrf.mxu0
  %v569 = vadd.f32 %v107, %v568
  %v570 = vpop.f32.mrf.mxu0
  %v571 = vadd.f32 %v111, %v570
  %572 = vdwg.mxu0
  %v573 = vmax.f32 %v479, 0.0
  %v574 = vmax.f32 %v481, 0.0
  %v575 = vmax.f32 %v485, 0.0
  %v576 = vmax.f32 %v487, 0.0
  %v577 = vmax.f32 %v491, 0.0
  %v578 = vmax.f32 %v493, 0.0
  %v579 = vmax.f32 %v497, 0.0
  %v580 = vmax.f32 %v499, 0.0
  %v581 = vmax.f32 %v503, 0.0
  %v582 = vmax.f32 %v505, 0.0
  %v583 = vmax.f32 %v509, 0.0
  %v584 = vmax.f32 %v511, 0.0
  %v585 = vmax.f32 %v515, 0.0
  %v586 = vmax.f32 %v517, 0.0
  %v587 = vmax.f32 %v521, 0.0
  %v588 = vmax.f32 %v523, 0.0
  %v589 = vmax.f32 %v527, 0.0
  %v590 = vmax.f32 %v529, 0.0
  %v591 = vmax.f32 %v533, 0.0
  %v592 = vmax.f32 %v535, 0.0
  %v593 = vmax.f32 %v539, 0.0
  %v594 = vmax.f32 %v541, 0.0
  %v595 = vmax.f32 %v545, 0.0
  %v596 = vmax.f32 %v547, 0.0
  %v597 = vmax.f32 %v551, 0.0
  %v598 = vmax.f32 %v553, 0.0
  %v599 = vmax.f32 %v557, 0.0
  %v600 = vmax.f32 %v559, 0.0
  %v601 = vmax.f32 %v563, 0.0
  %v602 = vmax.f32 %v565, 0.0
  %v603 = vmax.f32 %v569, 0.0
  %v604 = vmax.f32 %v571, 0.0
  %v606 = vsel %vm230, %v574, 0
  %v609 = vsel %vm230, %v576, 0
  %v612 = vsel %vm230, %v578, 0
  %v615 = vsel %vm230, %v580, 0
  %v618 = vsel %vm230, %v582, 0
  %v621 = vsel %vm230, %v584, 0
  %v624 = vsel %vm230, %v586, 0
  %v627 = vsel %vm230, %v588, 0
  %v630 = vsel %vm230, %v590, 0
  %v633 = vsel %vm230, %v592, 0
  %v636 = vsel %vm230, %v594, 0
  %v639 = vsel %vm230, %v596, 0
  %v642 = vsel %vm230, %v598, 0
  %v645 = vsel %vm230, %v600, 0
  %v648 = vsel %vm230, %v602, 0
  %v651 = vsel %vm230, %v604, 0
  %653 = vmatprep.subr.mxu0 0.0
  %654 = vmatpush1.msra.mxu0 %v89
  %655 = vmatprep.subr.mxu0 0.0
  %656 = vmatpush1.msra.mxu0 %v88
  %657 = vmatprep.subr.mxu0 0.0
  %658 = vmatpush1.msra.mxu0 %v87
  %659 = vmatprep.subr.mxu0 0.0
  %660 = vmatpush1.msra.mxu0 %v86
  %661 = vmatprep.subr.mxu0 0.0
  %662 = vmatpush1.msra.mxu0 %v85
  %663 = vmatprep.subr.mxu0 0.0
  %664 = vmatpush1.msra.mxu0 %v84
  %665 = vmatprep.subr.mxu0 0.0
  %666 = vmatpush1.msra.mxu0 %v83
  %667 = vmatprep.subr.mxu0 0.0
  %668 = vmatpush1.msra.mxu0 %v82
  %669 = vmatprep.subr.mxu0 0.0
  %670 = vmatpush1.msra.mxu0 %v81
  %671 = vmatprep.subr.mxu0 0.0
  %672 = vmatpush1.msra.mxu0 %v80
  %673 = vmatprep.subr.mxu0 0.0
  %674 = vmatpush1.msra.mxu0 %v79
  %675 = vmatprep.subr.mxu0 0.0
  %676 = vmatpush1.msra.mxu0 %v78
  %677 = vmatprep.subr.mxu0 0.0
  %678 = vmatpush1.msra.mxu0 %v77
  %679 = vmatprep.subr.mxu0 0.0
  %680 = vmatpush1.msra.mxu0 %v76
  %681 = vmatprep.subr.mxu0 0.0
  %682 = vmatpush1.msra.mxu0 %v75
  %683 = vmatprep.subr.mxu0 0.0
  %684 = vmatpush1.msra.mxu0 %v74
  %685 = vmatprep.subr.mxu0 0.0
  %686 = vmatpush2.msra.mxu0 0.0
  %687 = vmatprep.subr.mxu0 0.0
  %688 = vmatpush2.msra.mxu0 0.0
  %689 = vmatprep.subr.mxu0 0.0
  %690 = vmatpush2.msra.mxu0 0.0
  %691 = vmatprep.subr.mxu0 0.0
  %692 = vmatpush2.msra.mxu0 0.0
  %693 = vmatprep.subr.mxu0 0.0
  %694 = vmatpush2.msra.mxu0 0.0
  %695 = vmatprep.subr.mxu0 0.0
  %696 = vmatpush2.msra.mxu0 0.0
  %697 = vmatprep.subr.mxu0 0.0
  %698 = vmatpush2.msra.mxu0 0.0
  %699 = vmatprep.subr.mxu0 0.0
  %700 = vmatpush2.msra.mxu0 0.0
  %701 = vmatprep.subr.mxu0 0.0
  %702 = vmatpush2.msra.mxu0 0.0
  %703 = vmatprep.subr.mxu0 0.0
  %704 = vmatpush2.msra.mxu0 0.0
  %705 = vmatprep.subr.mxu0 0.0
  %706 = vmatpush2.msra.mxu0 0.0
  %707 = vmatprep.subr.mxu0 0.0
  %708 = vmatpush2.msra.mxu0 0.0
  %709 = vmatprep.subr.mxu0 0.0
  %710 = vmatpush2.msra.mxu0 %v93
  %711 = vmatprep.subr.mxu0 0.0
  %712 = vmatpush2.msra.mxu0 %v92
  %713 = vmatprep.subr.mxu0 0.0
  %714 = vmatpush2.msra.mxu0 %v91
  %715 = vmatprep.subr.mxu0 0.0
  %716 = vmatpush2.msra.mxu0 %v90
  %717 = vmatprep.mubr.f32.mxu0 %v606
  %718 = vmatmul.mubr.f32.gmra.mxu0 %v573
  %v719 = vpop.f32.mrf.mxu0
  %v720 = vadd.f32 %v228, %v719
  %v721 = vpop.f32.mrf.mxu0
  %722 = vmatprep.mubr.f32.mxu0 %v609
  %723 = vmatmul.mubr.f32.gmra.mxu0 %v575
  %v724 = vpop.f32.mrf.mxu0
  %v725 = vadd.f32 %v228, %v724
  %v726 = vpop.f32.mrf.mxu0
  %727 = vmatprep.mubr.f32.mxu0 %v612
  %728 = vmatmul.mubr.f32.gmra.mxu0 %v577
  %v729 = vpop.f32.mrf.mxu0
  %v730 = vadd.f32 %v228, %v729
  %v731 = vpop.f32.mrf.mxu0
  %732 = vmatprep.mubr.f32.mxu0 %v615
  %733 = vmatmul.mubr.f32.gmra.mxu0 %v579
  %v734 = vpop.f32.mrf.mxu0
  %v735 = vadd.f32 %v228, %v734
  %v736 = vpop.f32.mrf.mxu0
  %737 = vmatprep.mubr.f32.mxu0 %v618
  %738 = vmatmul.mubr.f32.gmra.mxu0 %v581
  %v739 = vpop.f32.mrf.mxu0
  %v740 = vadd.f32 %v228, %v739
  %v741 = vpop.f32.mrf.mxu0
  %742 = vmatprep.mubr.f32.mxu0 %v621
  %743 = vmatmul.mubr.f32.gmra.mxu0 %v583
  %v744 = vpop.f32.mrf.mxu0
  %v745 = vadd.f32 %v228, %v744
  %v746 = vpop.f32.mrf.mxu0
  %747 = vmatprep.mubr.f32.mxu0 %v624
  %748 = vmatmul.mubr.f32.gmra.mxu0 %v585
  %v749 = vpop.f32.mrf.mxu0
  %v750 = vadd.f32 %v228, %v749
  %v751 = vpop.f32.mrf.mxu0
  %752 = vmatprep.mubr.f32.mxu0 %v627
  %753 = vmatmul.mubr.f32.gmra.mxu0 %v587
  %v754 = vpop.f32.mrf.mxu0
  %v755 = vadd.f32 %v228, %v754
  %v756 = vpop.f32.mrf.mxu0
  %757 = vmatprep.mubr.f32.mxu0 %v630
  %758 = vmatmul.mubr.f32.gmra.mxu0 %v589
  %v759 = vpop.f32.mrf.mxu0
  %v760 = vadd.f32 %v228, %v759
  %v761 = vpop.f32.mrf.mxu0
  %762 = vmatprep.mubr.f32.mxu0 %v633
  %763 = vmatmul.mubr.f32.gmra.mxu0 %v591
  %v764 = vpop.f32.mrf.mxu0
  %v765 = vadd.f32 %v228, %v764
  %v766 = vpop.f32.mrf.mxu0
  %767 = vmatprep.mubr.f32.mxu0 %v636
  %768 = vmatmul.mubr.f32.gmra.mxu0 %v593
  %v769 = vpop.f32.mrf.mxu0
  %v770 = vadd.f32 %v228, %v769
  %v771 = vpop.f32.mrf.mxu0
  %772 = vmatprep.mubr.f32.mxu0 %v639
  %773 = vmatmul.mubr.f32.gmra.mxu0 %v595
  %v774 = vpop.f32.mrf.mxu0
  %v775 = vadd.f32 %v228, %v774
  %v776 = vpop.f32.mrf.mxu0
  %777 = vmatprep.mubr.f32.mxu0 %v642
  %778 = vmatmul.mubr.f32.gmra.mxu0 %v597
  %v779 = vpop.f32.mrf.mxu0
  %v780 = vadd.f32 %v228, %v779
  %v781 = vpop.f32.mrf.mxu0
  %782 = vmatprep.mubr.f32.mxu0 %v645
  %783 = vmatmul.mubr.f32.gmra.mxu0 %v599
  %v784 = vpop.f32.mrf.mxu0
  %v785 = vadd.f32 %v228, %v784
  %v786 = vpop.f32.mrf.mxu0
  %787 = vmatprep.mubr.f32.mxu0 %v648
  %788 = vmatmul.mubr.f32.gmra.mxu0 %v601
  %v789 = vpop.f32.mrf.mxu0
  %v790 = vadd.f32 %v228, %v789
  %v791 = vpop.f32.mrf.mxu0
  %792 = vmatprep.mubr.f32.mxu0 %v651
  %793 = vmatmul.mubr.f32.gmra.mxu0 %v603
  %v794 = vpop.f32.mrf.mxu0
  %v795 = vadd.f32 %v228, %v794
  %v796 = vpop.f32.mrf.mxu0
  %797 = vdwg.mxu0
  %798 = vst.msk [vmem:[%s7] sm:$0xff] %vm114, %v720
  %799 = vst.msk [vmem:[%s7 + $0x8] sm:$0xff] %vm114, %v725
  %800 = vst.msk [vmem:[%s7 + $0x10] sm:$0xff] %vm114, %v730
  %801 = vst.msk [vmem:[%s7 + $0x18] sm:$0xff] %vm114, %v735
  %802 = vst.msk [vmem:[%s7 + $0x20] sm:$0xff] %vm114, %v740
  %803 = vst.msk [vmem:[%s7 + $0x28] sm:$0xff] %vm114, %v745
  %804 = vst.msk [vmem:[%s7 + $0x30] sm:$0xff] %vm114, %v750
  %805 = vst.msk [vmem:[%s7 + $0x38] sm:$0xff] %vm114, %v755
  %806 = vst.msk [vmem:[%s7 + $0x40] sm:$0xff] %vm114, %v760
  %807 = vst.msk [vmem:[%s7 + $0x48] sm:$0xff] %vm114, %v765
  %808 = vst.msk [vmem:[%s7 + $0x50] sm:$0xff] %vm114, %v770
  %809 = vst.msk [vmem:[%s7 + $0x58] sm:$0xff] %vm114, %v775
  %810 = vst.msk [vmem:[%s7 + $0x60] sm:$0xff] %vm114, %v780
  %811 = vst.msk [vmem:[%s7 + $0x68] sm:$0xff] %vm114, %v785
  %812 = vst.msk [vmem:[%s7 + $0x70] sm:$0xff] %vm114, %v790
  %813 = vst.msk [vmem:[%s7 + $0x78] sm:$0xff] %vm114, %v795
  // Predicated region
  $region26: #{transt_trask_highway_forward.3} parent=0 // pred_check
    _
  $region27: #{transt_trask_highway_forward.3} parent=0 // pred_check_branch
    %815 = sbr.rel (0) target = $region29
  $region28: #{transt_trask_highway_forward.3} parent=0 // pred_region
    _
  $region29: #{transt_trask_highway_forward.3} parent=0 // pred_fallthru
    _
  // Predicated region
  $region30: #{transt_trask_highway_forward.3} parent=0 // pred_check
    _
  $region31: #{transt_trask_highway_forward.3} parent=0 // pred_check_branch
    %817 = sbr.rel (0) target = $region33
  $region32: #{transt_trask_highway_forward.3} parent=0 // pred_region
    _
  $region33: #{transt_trask_highway_forward.3} parent=0 // pred_fallthru
    _
  // Predicated region
  $region34: #{transt_trask_highway_forward.3} parent=0 // pred_check
    _
  $region35: #{transt_trask_highway_forward.3} parent=0 // pred_check_branch
    %819 = sbr.rel (0) target = $region37
  $region36: #{transt_trask_highway_forward.3} parent=0 // pred_region
    _
  $region37: #{transt_trask_highway_forward.3} parent=0 // pred_fallthru
    _
  // Predicated region
  $region38: #{transt_trask_highway_forward.3} parent=0 // pred_check
    _
  $region39: #{transt_trask_highway_forward.3} parent=0 // pred_check_branch
    %821 = sbr.rel (0) target = $region41
  $region40: #{transt_trask_highway_forward.3} parent=0 // pred_region
    _
  $region41: #{transt_trask_highway_forward.3} parent=0 // pred_fallthru
    _

// kernel: transt_trask_highway_forward.5
$region0: #{transt_trask_highway_forward.5}
  #allocation0 [shape = 'u32[]', space=smem, size = 0x4, offset = 0x4, fixed_abs, tag = 'smem constant byte address 0x4 - core index']
  #allocation1 [shape = 'u32[144,128]{1,0:T(1,128)}', space=vmem, size = 0x12000, scoped, tag = 'internal scratch']
  %s0 = inlined_call_operand.vmem [shape: f32[128,64], index: 0, kind: input, shape index: {}]
  %s1 = inlined_call_operand.vmem [shape: f32[64,64], index: 1, kind: input, shape index: {}]
  %s2 = inlined_call_operand.vmem [shape: f32[1,64], index: 2, kind: input, shape index: {}]
  %s3 = inlined_call_operand.vmem [shape: f32[64,2], index: 3, kind: input, shape index: {}]
  %s4 = inlined_call_operand.vmem [shape: f32[1,2], index: 4, kind: input, shape index: {}]
  %s5 = inlined_call_operand.vmem [shape: f32[64,4], index: 5, kind: input, shape index: {}]
  %s6 = inlined_call_operand.vmem [shape: f32[1,4], index: 6, kind: input, shape index: {}]
  %s7 = inlined_call_operand.vmem [shape: f32[128,2], index: 7, kind: output, shape index: {0}]
  %s8 = inlined_call_operand.vmem [shape: f32[128,4], index: 8, kind: output, shape index: {1}]
  %9 = xla_tuple %s7, %s8
  %s10 = sld [smem:[#allocation0]]
  $region46: #{transt_trask_highway_forward.5} parent=0
    _
  %s12 = ssub.s32 1, %s10
  %s13 = scalar_select 0, %s12, %s10
  // Predicated region
  $region2: #{transt_trask_highway_forward.5} parent=0 // pred_check
    _
  $region3: #{transt_trask_highway_forward.5} parent=0 // pred_check_branch
    %15 = sbr.rel (0) target = $region5
  $region4: #{transt_trask_highway_forward.5} parent=0 // pred_region
    _
  $region5: #{transt_trask_highway_forward.5} parent=0 // pred_fallthru
    _
  // Predicated region
  $region6: #{transt_trask_highway_forward.5} parent=0 // pred_check
    _
  $region7: #{transt_trask_highway_forward.5} parent=0 // pred_check_branch
    %17 = sbr.rel (0) target = $region9
  $region8: #{transt_trask_highway_forward.5} parent=0 // pred_region
    _
  $region9: #{transt_trask_highway_forward.5} parent=0 // pred_fallthru
    _
  // Predicated region
  $region10: #{transt_trask_highway_forward.5} parent=0 // pred_check
    _
  $region11: #{transt_trask_highway_forward.5} parent=0 // pred_check_branch
    %19 = sbr.rel (0) target = $region13
  $region12: #{transt_trask_highway_forward.5} parent=0 // pred_region
    _
  $region13: #{transt_trask_highway_forward.5} parent=0 // pred_fallthru
    _
  // Predicated region
  $region14: #{transt_trask_highway_forward.5} parent=0 // pred_check
    _
  $region15: #{transt_trask_highway_forward.5} parent=0 // pred_check_branch
    %21 = sbr.rel (0) target = $region17
  $region16: #{transt_trask_highway_forward.5} parent=0 // pred_region
    _
  $region17: #{transt_trask_highway_forward.5} parent=0 // pred_fallthru
    _
  // Predicated region
  $region18: #{transt_trask_highway_forward.5} parent=0 // pred_check
    _
  $region19: #{transt_trask_highway_forward.5} parent=0 // pred_check_branch
    %23 = sbr.rel (0) target = $region21
  $region20: #{transt_trask_highway_forward.5} parent=0 // pred_region
    _
  $region21: #{transt_trask_highway_forward.5} parent=0 // pred_fallthru
    _
  // Predicated region
  $region22: #{transt_trask_highway_forward.5} parent=0 // pred_check
    _
  $region23: #{transt_trask_highway_forward.5} parent=0 // pred_check_branch
    %25 = sbr.rel (0) target = $region25
  $region24: #{transt_trask_highway_forward.5} parent=0 // pred_region
    _
  $region25: #{transt_trask_highway_forward.5} parent=0 // pred_fallthru
    _
  // Predicated region
  $region26: #{transt_trask_highway_forward.5} parent=0 // pred_check
    _
  $region27: #{transt_trask_highway_forward.5} parent=0 // pred_check_branch
    %27 = sbr.rel (0) target = $region29
  $region28: #{transt_trask_highway_forward.5} parent=0 // pred_region
    _
  $region29: #{transt_trask_highway_forward.5} parent=0 // pred_fallthru
    _
  %v28 = vld [vmem:[%s0] sm:$0xff]
  %v29 = vld [vmem:[%s0 + $0x8] sm:$0xff]
  %v30 = vld [vmem:[%s0 + $0x10] sm:$0xff]
  %v31 = vld [vmem:[%s0 + $0x18] sm:$0xff]
  %v32 = vld [vmem:[%s0 + $0x20] sm:$0xff]
  %v33 = vld [vmem:[%s0 + $0x28] sm:$0xff]
  %v34 = vld [vmem:[%s0 + $0x30] sm:$0xff]
  %v35 = vld [vmem:[%s0 + $0x38] sm:$0xff]
  %v36 = vld [vmem:[%s0 + $0x40] sm:$0xff]
  %v37 = vld [vmem:[%s0 + $0x48] sm:$0xff]
  %v38 = vld [vmem:[%s0 + $0x50] sm:$0xff]
  %v39 = vld [vmem:[%s0 + $0x58] sm:$0xff]
  %v40 = vld [vmem:[%s0 + $0x60] sm:$0xff]
  %v41 = vld [vmem:[%s0 + $0x68] sm:$0xff]
  %v42 = vld [vmem:[%s0 + $0x70] sm:$0xff]
  %v43 = vld [vmem:[%s0 + $0x78] sm:$0xff]
  %v44 = vld [vmem:[%s1] sm:$0xff]
  %v45 = vld [vmem:[%s1 + $0x8] sm:$0xff]
  %v46 = vld [vmem:[%s1 + $0x10] sm:$0xff]
  %v47 = vld [vmem:[%s1 + $0x18] sm:$0xff]
  %v48 = vld [vmem:[%s1 + $0x20] sm:$0xff]
  %v49 = vld [vmem:[%s1 + $0x28] sm:$0xff]
  %v50 = vld [vmem:[%s1 + $0x30] sm:$0xff]
  %v51 = vld [vmem:[%s1 + $0x38] sm:$0xff]
  %v52 = vld [vmem:[%s2] sm:$0x1]
  %v54 = vlaneseq
  %v55 = vshrl.u32 %v54, 7
  %v56 = vsub.s32 0, %v55
  %v57 = vrot.slane %v52, %v56
  %vm59 = vcmask 523264
  %v61 = vsel %vm59, %v28, 0
  %v64 = vsel %vm59, %v29, 0
  %v67 = vsel %vm59, %v30, 0
  %v70 = vsel %vm59, %v31, 0
  %v73 = vsel %vm59, %v32, 0
  %v76 = vsel %vm59, %v33, 0
  %v79 = vsel %vm59, %v34, 0
  %v82 = vsel %vm59, %v35, 0
  %v85 = vsel %vm59, %v36, 0
  %v88 = vsel %vm59, %v37, 0
  %v91 = vsel %vm59, %v38, 0
  %v94 = vsel %vm59, %v39, 0
  %v97 = vsel %vm59, %v40, 0
  %v100 = vsel %vm59, %v41, 0
  %v103 = vsel %vm59, %v42, 0
  %v106 = vsel %vm59, %v43, 0
  %108 = vmatprep.subr.mxu0 0.0
  %109 = vmatpush1.msra.mxu0 0.0
  %110 = vmatprep.subr.mxu0 0.0
  %111 = vmatpush1.msra.mxu0 0.0
  %112 = vmatprep.subr.mxu0 0.0
  %113 = vmatpush1.msra.mxu0 0.0
  %114 = vmatprep.subr.mxu0 0.0
  %115 = vmatpush1.msra.mxu0 0.0
  %116 = vmatprep.subr.mxu0 0.0
  %117 = vmatpush1.msra.mxu0 0.0
  %118 = vmatprep.subr.mxu0 0.0
  %119 = vmatpush1.msra.mxu0 0.0
  %120 = vmatprep.subr.mxu0 0.0
  %121 = vmatpush1.msra.mxu0 0.0
  %122 = vmatprep.subr.mxu0 0.0
  %123 = vmatpush1.msra.mxu0 0.0
  %124 = vmatprep.subr.mxu0 0.0
  %125 = vmatpush1.msra.mxu0 %v51
  %126 = vmatprep.subr.mxu0 0.0
  %127 = vmatpush1.msra.mxu0 %v50
  %128 = vmatprep.subr.mxu0 0.0
  %129 = vmatpush1.msra.mxu0 %v49
  %130 = vmatprep.subr.mxu0 0.0
  %131 = vmatpush1.msra.mxu0 %v48
  %132 = vmatprep.subr.mxu0 0.0
  %133 = vmatpush1.msra.mxu0 %v47
  %134 = vmatprep.subr.mxu0 0.0
  %135 = vmatpush1.msra.mxu0 %v46
  %136 = vmatprep.subr.mxu0 0.0
  %137 = vmatpush1.msra.mxu0 %v45
  %138 = vmatprep.subr.mxu0 0.0
  %139 = vmatpush1.msra.mxu0 %v44
  %140 = vmatprep.subr.mxu0 0.0
  %141 = vmatpush2.msra.mxu0 0.0
  %142 = vmatprep.subr.mxu0 0.0
  %143 = vmatpush2.msra.mxu0 0.0
  %144 = vmatprep.subr.mxu0 0.0
  %145 = vmatpush2.msra.mxu0 0.0
  %146 = vmatprep.subr.mxu0 0.0
  %147 = vmatpush2.msra.mxu0 0.0
  %148 = vmatprep.subr.mxu0 0.0
  %149 = vmatpush2.msra.mxu0 0.0
  %150 = vmatprep.subr.mxu0 0.0
  %151 = vmatpush2.msra.mxu0 0.0
  %152 = vmatprep.subr.mxu0 0.0
  %153 = vmatpush2.msra.mxu0 0.0
  %154 = vmatprep.subr.mxu0 0.0
  %155 = vmatpush2.msra.mxu0 0.0
  %156 = vmatprep.subr.mxu0 0.0
  %157 = vmatpush2.msra.mxu0 0.0
  %158 = vmatprep.subr.mxu0 0.0
  %159 = vmatpush2.msra.mxu0 0.0
  %160 = vmatprep.subr.mxu0 0.0
  %161 = vmatpush2.msra.mxu0 0.0
  %162 = vmatprep.subr.mxu0 0.0
  %163 = vmatpush2.msra.mxu0 0.0
  %164 = vmatprep.subr.mxu0 0.0
  %165 = vmatpush2.msra.mxu0 0.0
  %166 = vmatprep.subr.mxu0 0.0
  %167 = vmatpush2.msra.mxu0 0.0
  %168 = vmatprep.subr.mxu0 0.0
  %169 = vmatpush2.msra.mxu0 0.0
  %170 = vmatprep.subr.mxu0 0.0
  %171 = vmatpush2.msra.mxu0 0.0
  %172 = vmatprep.mubr.f32.mxu0 0.0
  %173 = vmatmul.mubr.f32.gmra.mxu0 %v61
  %v174 = vpop.f32.mrf.mxu0
  %v175 = vadd.f32 %v57, %v174
  %v176 = vpop.f32.mrf.mxu0
  %177 = vmatprep.mubr.f32.mxu0 0.0
  %178 = vmatmul.mubr.f32.gmra.mxu0 %v64
  %v179 = vpop.f32.mrf.mxu0
  %v180 = vadd.f32 %v57, %v179
  %v181 = vpop.f32.mrf.mxu0
  %182 = vmatprep.mubr.f32.mxu0 0.0
  %183 = vmatmul.mubr.f32.gmra.mxu0 %v67
  %v184 = vpop.f32.mrf.mxu0
  %v185 = vadd.f32 %v57, %v184
  %v186 = vpop.f32.mrf.mxu0
  %187 = vmatprep.mubr.f32.mxu0 0.0
  %188 = vmatmul.mubr.f32.gmra.mxu0 %v70
  %v189 = vpop.f32.mrf.mxu0
  %v190 = vadd.f32 %v57, %v189
  %v191 = vpop.f32.mrf.mxu0
  %192 = vmatprep.mubr.f32.mxu0 0.0
  %193 = vmatmul.mubr.f32.gmra.mxu0 %v73
  %v194 = vpop.f32.mrf.mxu0
  %v195 = vadd.f32 %v57, %v194
  %v196 = vpop.f32.mrf.mxu0
  %197 = vmatprep.mubr.f32.mxu0 0.0
  %198 = vmatmul.mubr.f32.gmra.mxu0 %v76
  %v199 = vpop.f32.mrf.mxu0
  %v200 = vadd.f32 %v57, %v199
  %v201 = vpop.f32.mrf.mxu0
  %202 = vmatprep.mubr.f32.mxu0 0.0
  %203 = vmatmul.mubr.f32.gmra.mxu0 %v79
  %v204 = vpop.f32.mrf.mxu0
  %v205 = vadd.f32 %v57, %v204
  %v206 = vpop.f32.mrf.mxu0
  %207 = vmatprep.mubr.f32.mxu0 0.0
  %208 = vmatmul.mubr.f32.gmra.mxu0 %v82
  %v209 = vpop.f32.mrf.mxu0
  %v210 = vadd.f32 %v57, %v209
  %v211 = vpop.f32.mrf.mxu0
  %212 = vmatprep.mubr.f32.mxu0 0.0
  %213 = vmatmul.mubr.f32.gmra.mxu0 %v85
  %v214 = vpop.f32.mrf.mxu0
  %v215 = vadd.f32 %v57, %v214
  %v216 = vpop.f32.mrf.mxu0
  %217 = vmatprep.mubr.f32.mxu0 0.0
  %218 = vmatmul.mubr.f32.gmra.mxu0 %v88
  %v219 = vpop.f32.mrf.mxu0
  %v220 = vadd.f32 %v57, %v219
  %v221 = vpop.f32.mrf.mxu0
  %222 = vmatprep.mubr.f32.mxu0 0.0
  %223 = vmatmul.mubr.f32.gmra.mxu0 %v91
  %v224 = vpop.f32.mrf.mxu0
  %v225 = vadd.f32 %v57, %v224
  %v226 = vpop.f32.mrf.mxu0
  %227 = vmatprep.mubr.f32.mxu0 0.0
  %228 = vmatmul.mubr.f32.gmra.mxu0 %v94
  %v229 = vpop.f32.mrf.mxu0
  %v230 = vadd.f32 %v57, %v229
  %v231 = vpop.f32.mrf.mxu0
  %232 = vmatprep.mubr.f32.mxu0 0.0
  %233 = vmatmul.mubr.f32.gmra.mxu0 %v97
  %v234 = vpop.f32.mrf.mxu0
  %v235 = vadd.f32 %v57, %v234
  %v236 = vpop.f32.mrf.mxu0
  %237 = vmatprep.mubr.f32.mxu0 0.0
  %238 = vmatmul.mubr.f32.gmra.mxu0 %v100
  %v239 = vpop.f32.mrf.mxu0
  %v240 = vadd.f32 %v57, %v239
  %v241 = vpop.f32.mrf.mxu0
  %242 = vmatprep.mubr.f32.mxu0 0.0
  %243 = vmatmul.mubr.f32.gmra.mxu0 %v103
  %v244 = vpop.f32.mrf.mxu0
  %v245 = vadd.f32 %v57, %v244
  %v246 = vpop.f32.mrf.mxu0
  %247 = vmatprep.mubr.f32.mxu0 0.0
  %248 = vmatmul.mubr.f32.gmra.mxu0 %v106
  %v249 = vpop.f32.mrf.mxu0
  %v250 = vadd.f32 %v57, %v249
  %v251 = vpop.f32.mrf.mxu0
  %252 = vdwg.mxu0
  %v253 = vmax.f32 %v175, 0.0
  %v254 = vmax.f32 %v180, 0.0
  %v255 = vmax.f32 %v185, 0.0
  %v256 = vmax.f32 %v190, 0.0
  %v257 = vmax.f32 %v195, 0.0
  %v258 = vmax.f32 %v200, 0.0
  %v259 = vmax.f32 %v205, 0.0
  %v260 = vmax.f32 %v210, 0.0
  %v261 = vmax.f32 %v215, 0.0
  %v262 = vmax.f32 %v220, 0.0
  %v263 = vmax.f32 %v225, 0.0
  %v264 = vmax.f32 %v230, 0.0
  %v265 = vmax.f32 %v235, 0.0
  %v266 = vmax.f32 %v240, 0.0
  %v267 = vmax.f32 %v245, 0.0
  %v268 = vmax.f32 %v250, 0.0
  %v269 = vld [vmem:[%s3] sm:$0xff]
  %v270 = vld [vmem:[%s3 + $0x8] sm:$0xff]
  %v271 = vld [vmem:[%s3 + $0x10] sm:$0xff]
  %v272 = vld [vmem:[%s3 + $0x18] sm:$0xff]
  %v273 = vld [vmem:[%s3 + $0x20] sm:$0xff]
  %v274 = vld [vmem:[%s3 + $0x28] sm:$0xff]
  %v275 = vld [vmem:[%s3 + $0x30] sm:$0xff]
  %v276 = vld [vmem:[%s3 + $0x38] sm:$0xff]
  %v277 = vld [vmem:[%s4] sm:$0x1]
  %v279 = vlaneseq
  %v280 = vshrl.u32 %v279, 7
  %v281 = vsub.s32 0, %v280
  %v282 = vrot.slane %v277, %v281
  %v285 = vsel %vm59, %v253, 0
  %v288 = vsel %vm59, %v254, 0
  %v291 = vsel %vm59, %v255, 0
  %v294 = vsel %vm59, %v256, 0
  %v297 = vsel %vm59, %v257, 0
  %v300 = vsel %vm59, %v258, 0
  %v303 = vsel %vm59, %v259, 0
  %v306 = vsel %vm59, %v260, 0
  %v309 = vsel %vm59, %v261, 0
  %v312 = vsel %vm59, %v262, 0
  %v315 = vsel %vm59, %v263, 0
  %v318 = vsel %vm59, %v264, 0
  %v321 = vsel %vm59, %v265, 0
  %v324 = vsel %vm59, %v266, 0
  %v327 = vsel %vm59, %v267, 0
  %v330 = vsel %vm59, %v268, 0
  %332 = vmatprep.subr.mxu0 0.0
  %333 = vmatpush1.msra.mxu0 0.0
  %334 = vmatprep.subr.mxu0 0.0
  %335 = vmatpush1.msra.mxu0 0.0
  %336 = vmatprep.subr.mxu0 0.0
  %337 = vmatpush1.msra.mxu0 0.0
  %338 = vmatprep.subr.mxu0 0.0
  %339 = vmatpush1.msra.mxu0 0.0
  %340 = vmatprep.subr.mxu0 0.0
  %341 = vmatpush1.msra.mxu0 0.0
  %342 = vmatprep.subr.mxu0 0.0
  %343 = vmatpush1.msra.mxu0 0.0
  %344 = vmatprep.subr.mxu0 0.0
  %345 = vmatpush1.msra.mxu0 0.0
  %346 = vmatprep.subr.mxu0 0.0
  %347 = vmatpush1.msra.mxu0 0.0
  %348 = vmatprep.subr.mxu0 0.0
  %349 = vmatpush1.msra.mxu0 %v276
  %350 = vmatprep.subr.mxu0 0.0
  %351 = vmatpush1.msra.mxu0 %v275
  %352 = vmatprep.subr.mxu0 0.0
  %353 = vmatpush1.msra.mxu0 %v274
  %354 = vmatprep.subr.mxu0 0.0
  %355 = vmatpush1.msra.mxu0 %v273
  %356 = vmatprep.subr.mxu0 0.0
  %357 = vmatpush1.msra.mxu0 %v272
  %358 = vmatprep.subr.mxu0 0.0
  %359 = vmatpush1.msra.mxu0 %v271
  %360 = vmatprep.subr.mxu0 0.0
  %361 = vmatpush1.msra.mxu0 %v270
  %362 = vmatprep.subr.mxu0 0.0
  %363 = vmatpush1.msra.mxu0 %v269
  %364 = vmatprep.subr.mxu0 0.0
  %365 = vmatpush2.msra.mxu0 0.0
  %366 = vmatprep.subr.mxu0 0.0
  %367 = vmatpush2.msra.mxu0 0.0
  %368 = vmatprep.subr.mxu0 0.0
  %369 = vmatpush2.msra.mxu0 0.0
  %370 = vmatprep.subr.mxu0 0.0
  %371 = vmatpush2.msra.mxu0 0.0
  %372 = vmatprep.subr.mxu0 0.0
  %373 = vmatpush2.msra.mxu0 0.0
  %374 = vmatprep.subr.mxu0 0.0
  %375 = vmatpush2.msra.mxu0 0.0
  %376 = vmatprep.subr.mxu0 0.0
  %377 = vmatpush2.msra.mxu0 0.0
  %378 = vmatprep.subr.mxu0 0.0
  %379 = vmatpush2.msra.mxu0 0.0
  %380 = vmatprep.subr.mxu0 0.0
  %381 = vmatpush2.msra.mxu0 0.0
  %382 = vmatprep.subr.mxu0 0.0
  %383 = vmatpush2.msra.mxu0 0.0
  %384 = vmatprep.subr.mxu0 0.0
  %385 = vmatpush2.msra.mxu0 0.0
  %386 = vmatprep.subr.mxu0 0.0
  %387 = vmatpush2.msra.mxu0 0.0
  %388 = vmatprep.subr.mxu0 0.0
  %389 = vmatpush2.msra.mxu0 0.0
  %390 = vmatprep.subr.mxu0 0.0
  %391 = vmatpush2.msra.mxu0 0.0
  %392 = vmatprep.subr.mxu0 0.0
  %393 = vmatpush2.msra.mxu0 0.0
  %394 = vmatprep.subr.mxu0 0.0
  %395 = vmatpush2.msra.mxu0 0.0
  %396 = vmatprep.mubr.f32.mxu0 0.0
  %397 = vmatmul.mubr.f32.gmra.mxu0 %v285
  %v398 = vpop.f32.mrf.mxu0
  %v399 = vadd.f32 %v282, %v398
  %v400 = vpop.f32.mrf.mxu0
  %401 = vmatprep.mubr.f32.mxu0 0.0
  %402 = vmatmul.mubr.f32.gmra.mxu0 %v288
  %v403 = vpop.f32.mrf.mxu0
  %v404 = vadd.f32 %v282, %v403
  %v405 = vpop.f32.mrf.mxu0
  %406 = vmatprep.mubr.f32.mxu0 0.0
  %407 = vmatmul.mubr.f32.gmra.mxu0 %v291
  %v408 = vpop.f32.mrf.mxu0
  %v409 = vadd.f32 %v282, %v408
  %v410 = vpop.f32.mrf.mxu0
  %411 = vmatprep.mubr.f32.mxu0 0.0
  %412 = vmatmul.mubr.f32.gmra.mxu0 %v294
  %v413 = vpop.f32.mrf.mxu0
  %v414 = vadd.f32 %v282, %v413
  %v415 = vpop.f32.mrf.mxu0
  %416 = vmatprep.mubr.f32.mxu0 0.0
  %417 = vmatmul.mubr.f32.gmra.mxu0 %v297
  %v418 = vpop.f32.mrf.mxu0
  %v419 = vadd.f32 %v282, %v418
  %v420 = vpop.f32.mrf.mxu0
  %421 = vmatprep.mubr.f32.mxu0 0.0
  %422 = vmatmul.mubr.f32.gmra.mxu0 %v300
  %v423 = vpop.f32.mrf.mxu0
  %v424 = vadd.f32 %v282, %v423
  %v425 = vpop.f32.mrf.mxu0
  %426 = vmatprep.mubr.f32.mxu0 0.0
  %427 = vmatmul.mubr.f32.gmra.mxu0 %v303
  %v428 = vpop.f32.mrf.mxu0
  %v429 = vadd.f32 %v282, %v428
  %v430 = vpop.f32.mrf.mxu0
  %431 = vmatprep.mubr.f32.mxu0 0.0
  %432 = vmatmul.mubr.f32.gmra.mxu0 %v306
  %v433 = vpop.f32.mrf.mxu0
  %v434 = vadd.f32 %v282, %v433
  %v435 = vpop.f32.mrf.mxu0
  %436 = vmatprep.mubr.f32.mxu0 0.0
  %437 = vmatmul.mubr.f32.gmra.mxu0 %v309
  %v438 = vpop.f32.mrf.mxu0
  %v439 = vadd.f32 %v282, %v438
  %v440 = vpop.f32.mrf.mxu0
  %441 = vmatprep.mubr.f32.mxu0 0.0
  %442 = vmatmul.mubr.f32.gmra.mxu0 %v312
  %v443 = vpop.f32.mrf.mxu0
  %v444 = vadd.f32 %v282, %v443
  %v445 = vpop.f32.mrf.mxu0
  %446 = vmatprep.mubr.f32.mxu0 0.0
  %447 = vmatmul.mubr.f32.gmra.mxu0 %v315
  %v448 = vpop.f32.mrf.mxu0
  %v449 = vadd.f32 %v282, %v448
  %v450 = vpop.f32.mrf.mxu0
  %451 = vmatprep.mubr.f32.mxu0 0.0
  %452 = vmatmul.mubr.f32.gmra.mxu0 %v318
  %v453 = vpop.f32.mrf.mxu0
  %v454 = vadd.f32 %v282, %v453
  %v455 = vpop.f32.mrf.mxu0
  %456 = vmatprep.mubr.f32.mxu0 0.0
  %457 = vmatmul.mubr.f32.gmra.mxu0 %v321
  %v458 = vpop.f32.mrf.mxu0
  %v459 = vadd.f32 %v282, %v458
  %v460 = vpop.f32.mrf.mxu0
  %461 = vmatprep.mubr.f32.mxu0 0.0
  %462 = vmatmul.mubr.f32.gmra.mxu0 %v324
  %v463 = vpop.f32.mrf.mxu0
  %v464 = vadd.f32 %v282, %v463
  %v465 = vpop.f32.mrf.mxu0
  %466 = vmatprep.mubr.f32.mxu0 0.0
  %467 = vmatmul.mubr.f32.gmra.mxu0 %v327
  %v468 = vpop.f32.mrf.mxu0
  %v469 = vadd.f32 %v282, %v468
  %v470 = vpop.f32.mrf.mxu0
  %471 = vmatprep.mubr.f32.mxu0 0.0
  %472 = vmatmul.mubr.f32.gmra.mxu0 %v330
  %v473 = vpop.f32.mrf.mxu0
  %v474 = vadd.f32 %v282, %v473
  %v475 = vpop.f32.mrf.mxu0
  %476 = vdwg.mxu0
  %vm477 = vcmask 15360
  %478 = vst.msk [vmem:[%s7] sm:$0xff] %vm477, %v399
  %479 = vst.msk [vmem:[%s7 + $0x8] sm:$0xff] %vm477, %v404
  %480 = vst.msk [vmem:[%s7 + $0x10] sm:$0xff] %vm477, %v409
  %481 = vst.msk [vmem:[%s7 + $0x18] sm:$0xff] %vm477, %v414
  %482 = vst.msk [vmem:[%s7 + $0x20] sm:$0xff] %vm477, %v419
  %483 = vst.msk [vmem:[%s7 + $0x28] sm:$0xff] %vm477, %v424
  %484 = vst.msk [vmem:[%s7 + $0x30] sm:$0xff] %vm477, %v429
  %485 = vst.msk [vmem:[%s7 + $0x38] sm:$0xff] %vm477, %v434
  %486 = vst.msk [vmem:[%s7 + $0x40] sm:$0xff] %vm477, %v439
  %487 = vst.msk [vmem:[%s7 + $0x48] sm:$0xff] %vm477, %v444
  %488 = vst.msk [vmem:[%s7 + $0x50] sm:$0xff] %vm477, %v449
  %489 = vst.msk [vmem:[%s7 + $0x58] sm:$0xff] %vm477, %v454
  %490 = vst.msk [vmem:[%s7 + $0x60] sm:$0xff] %vm477, %v459
  %491 = vst.msk [vmem:[%s7 + $0x68] sm:$0xff] %vm477, %v464
  %492 = vst.msk [vmem:[%s7 + $0x70] sm:$0xff] %vm477, %v469
  %493 = vst.msk [vmem:[%s7 + $0x78] sm:$0xff] %vm477, %v474
  %v494 = vld [vmem:[%s5] sm:$0xff]
  %v495 = vld [vmem:[%s5 + $0x8] sm:$0xff]
  %v496 = vld [vmem:[%s5 + $0x10] sm:$0xff]
  %v497 = vld [vmem:[%s5 + $0x18] sm:$0xff]
  %v498 = vld [vmem:[%s5 + $0x20] sm:$0xff]
  %v499 = vld [vmem:[%s5 + $0x28] sm:$0xff]
  %v500 = vld [vmem:[%s5 + $0x30] sm:$0xff]
  %v501 = vld [vmem:[%s5 + $0x38] sm:$0xff]
  %v502 = vld [vmem:[%s6] sm:$0x1]
  %v504 = vlaneseq
  %v505 = vshrl.u32 %v504, 7
  %v506 = vsub.s32 0, %v505
  %v507 = vrot.slane %v502, %v506
  %509 = vmatprep.subr.mxu0 0.0
  %510 = vmatpush1.msra.mxu0 0.0
  %511 = vmatprep.subr.mxu0 0.0
  %512 = vmatpush1.msra.mxu0 0.0
  %513 = vmatprep.subr.mxu0 0.0
  %514 = vmatpush1.msra.mxu0 0.0
  %515 = vmatprep.subr.mxu0 0.0
  %516 = vmatpush1.msra.mxu0 0.0
  %517 = vmatprep.subr.mxu0 0.0
  %518 = vmatpush1.msra.mxu0 0.0
  %519 = vmatprep.subr.mxu0 0.0
  %520 = vmatpush1.msra.mxu0 0.0
  %521 = vmatprep.subr.mxu0 0.0
  %522 = vmatpush1.msra.mxu0 0.0
  %523 = vmatprep.subr.mxu0 0.0
  %524 = vmatpush1.msra.mxu0 0.0
  %525 = vmatprep.subr.mxu0 0.0
  %526 = vmatpush1.msra.mxu0 %v501
  %527 = vmatprep.subr.mxu0 0.0
  %528 = vmatpush1.msra.mxu0 %v500
  %529 = vmatprep.subr.mxu0 0.0
  %530 = vmatpush1.msra.mxu0 %v499
  %531 = vmatprep.subr.mxu0 0.0
  %532 = vmatpush1.msra.mxu0 %v498
  %533 = vmatprep.subr.mxu0 0.0
  %534 = vmatpush1.msra.mxu0 %v497
  %535 = vmatprep.subr.mxu0 0.0
  %536 = vmatpush1.msra.mxu0 %v496
  %537 = vmatprep.subr.mxu0 0.0
  %538 = vmatpush1.msra.mxu0 %v495
  %539 = vmatprep.subr.mxu0 0.0
  %540 = vmatpush1.msra.mxu0 %v494
  %541 = vmatprep.subr.mxu0 0.0
  %542 = vmatpush2.msra.mxu0 0.0
  %543 = vmatprep.subr.mxu0 0.0
  %544 = vmatpush2.msra.mxu0 0.0
  %545 = vmatprep.subr.mxu0 0.0
  %546 = vmatpush2.msra.mxu0 0.0
  %547 = vmatprep.subr.mxu0 0.0
  %548 = vmatpush2.msra.mxu0 0.0
  %549 = vmatprep.subr.mxu0 0.0
  %550 = vmatpush2.msra.mxu0 0.0
  %551 = vmatprep.subr.mxu0 0.0
  %552 = vmatpush2.msra.mxu0 0.0
  %553 = vmatprep.subr.mxu0 0.0
  %554 = vmatpush2.msra.mxu0 0.0
  %555 = vmatprep.subr.mxu0 0.0
  %556 = vmatpush2.msra.mxu0 0.0
  %557 = vmatprep.subr.mxu0 0.0
  %558 = vmatpush2.msra.mxu0 0.0
  %559 = vmatprep.subr.mxu0 0.0
  %560 = vmatpush2.msra.mxu0 0.0
  %561 = vmatprep.subr.mxu0 0.0
  %562 = vmatpush2.msra.mxu0 0.0
  %563 = vmatprep.subr.mxu0 0.0
  %564 = vmatpush2.msra.mxu0 0.0
  %565 = vmatprep.subr.mxu0 0.0
  %566 = vmatpush2.msra.mxu0 0.0
  %567 = vmatprep.subr.mxu0 0.0
  %568 = vmatpush2.msra.mxu0 0.0
  %569 = vmatprep.subr.mxu0 0.0
  %570 = vmatpush2.msra.mxu0 0.0
  %571 = vmatprep.subr.mxu0 0.0
  %572 = vmatpush2.msra.mxu0 0.0
  %573 = vmatprep.mubr.f32.mxu0 0.0
  %574 = vmatmul.mubr.f32.gmra.mxu0 %v285
  %v575 = vpop.f32.mrf.mxu0
  %v576 = vadd.f32 %v507, %v575
  %v577 = vpop.f32.mrf.mxu0
  %578 = vmatprep.mubr.f32.mxu0 0.0
  %579 = vmatmul.mubr.f32.gmra.mxu0 %v288
  %v580 = vpop.f32.mrf.mxu0
  %v581 = vadd.f32 %v507, %v580
  %v582 = vpop.f32.mrf.mxu0
  %583 = vmatprep.mubr.f32.mxu0 0.0
  %584 = vmatmul.mubr.f32.gmra.mxu0 %v291
  %v585 = vpop.f32.mrf.mxu0
  %v586 = vadd.f32 %v507, %v585
  %v587 = vpop.f32.mrf.mxu0
  %588 = vmatprep.mubr.f32.mxu0 0.0
  %589 = vmatmul.mubr.f32.gmra.mxu0 %v294
  %v590 = vpop.f32.mrf.mxu0
  %v591 = vadd.f32 %v507, %v590
  %v592 = vpop.f32.mrf.mxu0
  %593 = vmatprep.mubr.f32.mxu0 0.0
  %594 = vmatmul.mubr.f32.gmra.mxu0 %v297
  %v595 = vpop.f32.mrf.mxu0
  %v596 = vadd.f32 %v507, %v595
  %v597 = vpop.f32.mrf.mxu0
  %598 = vmatprep.mubr.f32.mxu0 0.0
  %599 = vmatmul.mubr.f32.gmra.mxu0 %v300
  %v600 = vpop.f32.mrf.mxu0
  %v601 = vadd.f32 %v507, %v600
  %v602 = vpop.f32.mrf.mxu0
  %603 = vmatprep.mubr.f32.mxu0 0.0
  %604 = vmatmul.mubr.f32.gmra.mxu0 %v303
  %v605 = vpop.f32.mrf.mxu0
  %v606 = vadd.f32 %v507, %v605
  %v607 = vpop.f32.mrf.mxu0
  %608 = vmatprep.mubr.f32.mxu0 0.0
  %609 = vmatmul.mubr.f32.gmra.mxu0 %v306
  %v610 = vpop.f32.mrf.mxu0
  %v611 = vadd.f32 %v507, %v610
  %v612 = vpop.f32.mrf.mxu0
  %613 = vmatprep.mubr.f32.mxu0 0.0
  %614 = vmatmul.mubr.f32.gmra.mxu0 %v309
  %v615 = vpop.f32.mrf.mxu0
  %v616 = vadd.f32 %v507, %v615
  %v617 = vpop.f32.mrf.mxu0
  %618 = vmatprep.mubr.f32.mxu0 0.0
  %619 = vmatmul.mubr.f32.gmra.mxu0 %v312
  %v620 = vpop.f32.mrf.mxu0
  %v621 = vadd.f32 %v507, %v620
  %v622 = vpop.f32.mrf.mxu0
  %623 = vmatprep.mubr.f32.mxu0 0.0
  %624 = vmatmul.mubr.f32.gmra.mxu0 %v315
  %v625 = vpop.f32.mrf.mxu0
  %v626 = vadd.f32 %v507, %v625
  %v627 = vpop.f32.mrf.mxu0
  %628 = vmatprep.mubr.f32.mxu0 0.0
  %629 = vmatmul.mubr.f32.gmra.mxu0 %v318
  %v630 = vpop.f32.mrf.mxu0
  %v631 = vadd.f32 %v507, %v630
  %v632 = vpop.f32.mrf.mxu0
  %633 = vmatprep.mubr.f32.mxu0 0.0
  %634 = vmatmul.mubr.f32.gmra.mxu0 %v321
  %v635 = vpop.f32.mrf.mxu0
  %v636 = vadd.f32 %v507, %v635
  %v637 = vpop.f32.mrf.mxu0
  %638 = vmatprep.mubr.f32.mxu0 0.0
  %639 = vmatmul.mubr.f32.gmra.mxu0 %v324
  %v640 = vpop.f32.mrf.mxu0
  %v641 = vadd.f32 %v507, %v640
  %v642 = vpop.f32.mrf.mxu0
  %643 = vmatprep.mubr.f32.mxu0 0.0
  %644 = vmatmul.mubr.f32.gmra.mxu0 %v327
  %v645 = vpop.f32.mrf.mxu0
  %v646 = vadd.f32 %v507, %v645
  %v647 = vpop.f32.mrf.mxu0
  %648 = vmatprep.mubr.f32.mxu0 0.0
  %649 = vmatmul.mubr.f32.gmra.mxu0 %v330
  %v650 = vpop.f32.mrf.mxu0
  %v651 = vadd.f32 %v507, %v650
  %v652 = vpop.f32.mrf.mxu0
  %653 = vdwg.mxu0
  %v654 = vxor.u32 %v576, 2147483648
  %v655 = vxor.u32 %v581, 2147483648
  %v656 = vxor.u32 %v586, 2147483648
  %v657 = vxor.u32 %v591, 2147483648
  %v658 = vxor.u32 %v596, 2147483648
  %v659 = vxor.u32 %v601, 2147483648
  %v660 = vxor.u32 %v606, 2147483648
  %v661 = vxor.u32 %v611, 2147483648
  %v662 = vxor.u32 %v616, 2147483648
  %v663 = vxor.u32 %v621, 2147483648
  %v664 = vxor.u32 %v626, 2147483648
  %v665 = vxor.u32 %v631, 2147483648
  %v666 = vxor.u32 %v636, 2147483648
  %v667 = vxor.u32 %v641, 2147483648
  %v668 = vxor.u32 %v646, 2147483648
  %v669 = vxor.u32 %v651, 2147483648
  %v670 = vmul.f32 %v654, 1.442695
  %v671 = vpow.pop %v670
  %v672 = vmul.f32 %v655, 1.442695
  %v673 = vpow.pop %v672
  %v674 = vmul.f32 %v656, 1.442695
  %v675 = vpow.pop %v674
  %v676 = vmul.f32 %v657, 1.442695
  %v677 = vpow.pop %v676
  %v678 = vmul.f32 %v658, 1.442695
  %v679 = vpow.pop %v678
  %v680 = vmul.f32 %v659, 1.442695
  %v681 = vpow.pop %v680
  %v682 = vmul.f32 %v660, 1.442695
  %v683 = vpow.pop %v682
  %v684 = vmul.f32 %v661, 1.442695
  %v685 = vpow.pop %v684
  %v686 = vmul.f32 %v662, 1.442695
  %v687 = vpow.pop %v686
  %v688 = vmul.f32 %v663, 1.442695
  %v689 = vpow.pop %v688
  %v690 = vmul.f32 %v664, 1.442695
  %v691 = vpow.pop %v690
  %v692 = vmul.f32 %v665, 1.442695
  %v693 = vpow.pop %v692
  %v694 = vmul.f32 %v666, 1.442695
  %v695 = vpow.pop %v694
  %v696 = vmul.f32 %v667, 1.442695
  %v697 = vpow.pop %v696
  %v698 = vmul.f32 %v668, 1.442695
  %v699 = vpow.pop %v698
  %v700 = vmul.f32 %v669, 1.442695
  %v701 = vpow.pop %v700
  %v702 = vadd.f32 %v671, 1.0
  %v703 = vadd.f32 %v673, 1.0
  %v704 = vadd.f32 %v675, 1.0
  %v705 = vadd.f32 %v677, 1.0
  %v706 = vadd.f32 %v679, 1.0
  %v707 = vadd.f32 %v681, 1.0
  %v708 = vadd.f32 %v683, 1.0
  %v709 = vadd.f32 %v685, 1.0
  %v710 = vadd.f32 %v687, 1.0
  %v711 = vadd.f32 %v689, 1.0
  %v712 = vadd.f32 %v691, 1.0
  %v713 = vadd.f32 %v693, 1.0
  %v714 = vadd.f32 %v695, 1.0
  %v715 = vadd.f32 %v697, 1.0
  %v716 = vadd.f32 %v699, 1.0
  %v717 = vadd.f32 %v701, 1.0
  %v718 = vrcp.pop %v702
  %v719 = vmul.f32 1.0, %v718
  %v720 = vrcp.pop %v703
  %v721 = vmul.f32 1.0, %v720
  %v722 = vrcp.pop %v704
  %v723 = vmul.f32 1.0, %v722
  %v724 = vrcp.pop %v705
  %v725 = vmul.f32 1.0, %v724
  %v726 = vrcp.pop %v706
  %v727 = vmul.f32 1.0, %v726
  %v728 = vrcp.pop %v707
  %v729 = vmul.f32 1.0, %v728
  %v730 = vrcp.pop %v708
  %v731 = vmul.f32 1.0, %v730
  %v732 = vrcp.pop %v709
  %v733 = vmul.f32 1.0, %v732
  %v734 = vrcp.pop %v710
  %v735 = vmul.f32 1.0, %v734
  %v736 = vrcp.pop %v711
  %v737 = vmul.f32 1.0, %v736
  %v738 = vrcp.pop %v712
  %v739 = vmul.f32 1.0, %v738
  %v740 = vrcp.pop %v713
  %v741 = vmul.f32 1.0, %v740
  %v742 = vrcp.pop %v714
  %v743 = vmul.f32 1.0, %v742
  %v744 = vrcp.pop %v715
  %v745 = vmul.f32 1.0, %v744
  %v746 = vrcp.pop %v716
  %v747 = vmul.f32 1.0, %v746
  %v748 = vrcp.pop %v717
  %v749 = vmul.f32 1.0, %v748
  %vm750 = vcmask 31744
  %751 = vst.msk [vmem:[%s8] sm:$0xff] %vm750, %v719
  %752 = vst.msk [vmem:[%s8 + $0x8] sm:$0xff] %vm750, %v721
  %753 = vst.msk [vmem:[%s8 + $0x10] sm:$0xff] %vm750, %v723
  %754 = vst.msk [vmem:[%s8 + $0x18] sm:$0xff] %vm750, %v725
  %755 = vst.msk [vmem:[%s8 + $0x20] sm:$0xff] %vm750, %v727
  %756 = vst.msk [vmem:[%s8 + $0x28] sm:$0xff] %vm750, %v729
  %757 = vst.msk [vmem:[%s8 + $0x30] sm:$0xff] %vm750, %v731
  %758 = vst.msk [vmem:[%s8 + $0x38] sm:$0xff] %vm750, %v733
  %759 = vst.msk [vmem:[%s8 + $0x40] sm:$0xff] %vm750, %v735
  %760 = vst.msk [vmem:[%s8 + $0x48] sm:$0xff] %vm750, %v737
  %761 = vst.msk [vmem:[%s8 + $0x50] sm:$0xff] %vm750, %v739
  %762 = vst.msk [vmem:[%s8 + $0x58] sm:$0xff] %vm750, %v741
  %763 = vst.msk [vmem:[%s8 + $0x60] sm:$0xff] %vm750, %v743
  %764 = vst.msk [vmem:[%s8 + $0x68] sm:$0xff] %vm750, %v745
  %765 = vst.msk [vmem:[%s8 + $0x70] sm:$0xff] %vm750, %v747
  %766 = vst.msk [vmem:[%s8 + $0x78] sm:$0xff] %vm750, %v749
  // Predicated region
  $region30: #{transt_trask_highway_forward.5} parent=0 // pred_check
    _
  $region31: #{transt_trask_highway_forward.5} parent=0 // pred_check_branch
    %768 = sbr.rel (0) target = $region33
  $region32: #{transt_trask_highway_forward.5} parent=0 // pred_region
    _
  $region33: #{transt_trask_highway_forward.5} parent=0 // pred_fallthru
    _
  // Predicated region
  $region34: #{transt_trask_highway_forward.5} parent=0 // pred_check
    _
  $region35: #{transt_trask_highway_forward.5} parent=0 // pred_check_branch
    %770 = sbr.rel (0) target = $region37
  $region36: #{transt_trask_highway_forward.5} parent=0 // pred_region
    _
  $region37: #{transt_trask_highway_forward.5} parent=0 // pred_fallthru
    _
  // Predicated region
  $region38: #{transt_trask_highway_forward.5} parent=0 // pred_check
    _
  $region39: #{transt_trask_highway_forward.5} parent=0 // pred_check_branch
    %772 = sbr.rel (0) target = $region41
  $region40: #{transt_trask_highway_forward.5} parent=0 // pred_region
    _
  $region41: #{transt_trask_highway_forward.5} parent=0 // pred_fallthru
    _
  // Predicated region
  $region42: #{transt_trask_highway_forward.5} parent=0 // pred_check
    _
  $region43: #{transt_trask_highway_forward.5} parent=0 // pred_check_branch
    %774 = sbr.rel (0) target = $region45
  $region44: #{transt_trask_highway_forward.5} parent=0 // pred_region
    _
  $region45: #{transt_trask_highway_forward.5} parent=0 // pred_fallthru
    _

// kernel: transt_trask_highway_forward.4
$region0: #{transt_trask_highway_forward.4}
  #allocation0 [shape = 'u32[]', space=smem, size = 0x4, offset = 0x4, fixed_abs, tag = 'smem constant byte address 0x4 - core index']
  #allocation1 [shape = 'u32[144,128]{1,0:T(1,128)}', space=vmem, size = 0x12000, scoped, tag = 'internal scratch']
  %s0 = inlined_call_operand.vmem [shape: f32[32,64], index: 0, kind: input, shape index: {}]
  %s1 = inlined_call_operand.vmem [shape: f32[128,64], index: 1, kind: input, shape index: {}]
  %s2 = inlined_call_operand.vmem [shape: f32[32,64], index: 2, kind: input, shape index: {}]
  %s3 = inlined_call_operand.vmem [shape: f32[128,64], index: 3, kind: input, shape index: {}]
  %s4 = inlined_call_operand.vmem [shape: f32[32,128], index: 4, kind: input, shape index: {}]
  %s5 = inlined_call_operand.vmem [shape: f32[1,128], index: 5, kind: input, shape index: {}]
  %s6 = inlined_call_operand.vmem [shape: f32[32,64], index: 6, kind: input, shape index: {}]
  %s7 = inlined_call_operand.vmem [shape: f32[1,64], index: 7, kind: input, shape index: {}]
  %s8 = inlined_call_operand.vmem [shape: f32[64,32], index: 8, kind: input, shape index: {}]
  %s9 = inlined_call_operand.vmem [shape: f32[1,32], index: 9, kind: input, shape index: {}]
  %s10 = inlined_call_operand.vmem [shape: f32[4,32], index: 10, kind: input, shape index: {}]
  %s11 = inlined_call_operand.vmem [shape: f32[16,64], index: 11, kind: input, shape index: {}]
  %s12 = inlined_call_operand.vmem [shape: f32[1,64], index: 12, kind: input, shape index: {}]
  %s13 = inlined_call_operand.vmem [shape: f32[16,64], index: 13, kind: input, shape index: {}]
  %s14 = inlined_call_operand.vmem [shape: f32[1,64], index: 14, kind: input, shape index: {}]
  %s15 = inlined_call_operand.vmem [shape: f32[64,16], index: 15, kind: input, shape index: {}]
  %s16 = inlined_call_operand.vmem [shape: f32[1,16], index: 16, kind: input, shape index: {}]
  %s17 = inlined_call_operand.vmem [shape: f32[4,16], index: 17, kind: input, shape index: {}]
  %s18 = inlined_call_operand.vmem [shape: f32[16,64], index: 18, kind: input, shape index: {}]
  %s19 = inlined_call_operand.vmem [shape: f32[1,64], index: 19, kind: input, shape index: {}]
  %s20 = inlined_call_operand.vmem [shape: f32[16,64], index: 20, kind: input, shape index: {}]
  %s21 = inlined_call_operand.vmem [shape: f32[1,64], index: 21, kind: input, shape index: {}]
  %s22 = inlined_call_operand.vmem [shape: f32[64,16], index: 22, kind: input, shape index: {}]
  %s23 = inlined_call_operand.vmem [shape: f32[1,16], index: 23, kind: input, shape index: {}]
  %s24 = inlined_call_operand.vmem [shape: f32[4,16], index: 24, kind: input, shape index: {}]
  %s25 = inlined_call_operand.vmem [shape: f32[128,64], index: 25, kind: output, shape index: {}]
  %s26 = sld [smem:[#allocation0]]
  $region110: #{transt_trask_highway_forward.4} parent=0
    _
  %s28 = ssub.s32 1, %s26
  %s29 = scalar_select 0, %s28, %s26
  // Predicated region
  $region2: #{transt_trask_highway_forward.4} parent=0 // pred_check
    _
  $region3: #{transt_trask_highway_forward.4} parent=0 // pred_check_branch
    %31 = sbr.rel (0) target = $region5
  $region4: #{transt_trask_highway_forward.4} parent=0 // pred_region
    _
  $region5: #{transt_trask_highway_forward.4} parent=0 // pred_fallthru
    _
  // Predicated region
  $region6: #{transt_trask_highway_forward.4} parent=0 // pred_check
    _
  $region7: #{transt_trask_highway_forward.4} parent=0 // pred_check_branch
    %33 = sbr.rel (0) target = $region9
  $region8: #{transt_trask_highway_forward.4} parent=0 // pred_region
    _
  $region9: #{transt_trask_highway_forward.4} parent=0 // pred_fallthru
    _
  // Predicated region
  $region10: #{transt_trask_highway_forward.4} parent=0 // pred_check
    _
  $region11: #{transt_trask_highway_forward.4} parent=0 // pred_check_branch
    %35 = sbr.rel (0) target = $region13
  $region12: #{transt_trask_highway_forward.4} parent=0 // pred_region
    _
  $region13: #{transt_trask_highway_forward.4} parent=0 // pred_fallthru
    _
  // Predicated region
  $region14: #{transt_trask_highway_forward.4} parent=0 // pred_check
    _
  $region15: #{transt_trask_highway_forward.4} parent=0 // pred_check_branch
    %37 = sbr.rel (0) target = $region17
  $region16: #{transt_trask_highway_forward.4} parent=0 // pred_region
    _
  $region17: #{transt_trask_highway_forward.4} parent=0 // pred_fallthru
    _
  // Predicated region
  $region18: #{transt_trask_highway_forward.4} parent=0 // pred_check
    _
  $region19: #{transt_trask_highway_forward.4} parent=0 // pred_check_branch
    %39 = sbr.rel (0) target = $region21
  $region20: #{transt_trask_highway_forward.4} parent=0 // pred_region
    _
  $region21: #{transt_trask_highway_forward.4} parent=0 // pred_fallthru
    _
  // Predicated region
  $region22: #{transt_trask_highway_forward.4} parent=0 // pred_check
    _
  $region23: #{transt_trask_highway_forward.4} parent=0 // pred_check_branch
    %41 = sbr.rel (0) target = $region25
  $region24: #{transt_trask_highway_forward.4} parent=0 // pred_region
    _
  $region25: #{transt_trask_highway_forward.4} parent=0 // pred_fallthru
    _
  // Predicated region
  $region26: #{transt_trask_highway_forward.4} parent=0 // pred_check
    _
  $region27: #{transt_trask_highway_forward.4} parent=0 // pred_check_branch
    %43 = sbr.rel (0) target = $region29
  $region28: #{transt_trask_highway_forward.4} parent=0 // pred_region
    _
  $region29: #{transt_trask_highway_forward.4} parent=0 // pred_fallthru
    _
  // Predicated region
  $region30: #{transt_trask_highway_forward.4} parent=0 // pred_check
    _
  $region31: #{transt_trask_highway_forward.4} parent=0 // pred_check_branch
    %45 = sbr.rel (0) target = $region33
  $region32: #{transt_trask_highway_forward.4} parent=0 // pred_region
    _
  $region33: #{transt_trask_highway_forward.4} parent=0 // pred_fallthru
    _
  // Predicated region
  $region34: #{transt_trask_highway_forward.4} parent=0 // pred_check
    _
  $region35: #{transt_trask_highway_forward.4} parent=0 // pred_check_branch
    %47 = sbr.rel (0) target = $region37
  $region36: #{transt_trask_highway_forward.4} parent=0 // pred_region
    _
  $region37: #{transt_trask_highway_forward.4} parent=0 // pred_fallthru
    _
  // Predicated region
  $region38: #{transt_trask_highway_forward.4} parent=0 // pred_check
    _
  $region39: #{transt_trask_highway_forward.4} parent=0 // pred_check_branch
    %49 = sbr.rel (0) target = $region41
  $region40: #{transt_trask_highway_forward.4} parent=0 // pred_region
    _
  $region41: #{transt_trask_highway_forward.4} parent=0 // pred_fallthru
    _
  // Predicated region
  $region42: #{transt_trask_highway_forward.4} parent=0 // pred_check
    _
  $region43: #{transt_trask_highway_forward.4} parent=0 // pred_check_branch
    %51 = sbr.rel (0) target = $region45
  $region44: #{transt_trask_highway_forward.4} parent=0 // pred_region
    _
  $region45: #{transt_trask_highway_forward.4} parent=0 // pred_fallthru
    _
  // Predicated region
  $region46: #{transt_trask_highway_forward.4} parent=0 // pred_check
    _
  $region47: #{transt_trask_highway_forward.4} parent=0 // pred_check_branch
    %53 = sbr.rel (0) target = $region49
  $region48: #{transt_trask_highway_forward.4} parent=0 // pred_region
    _
  $region49: #{transt_trask_highway_forward.4} parent=0 // pred_fallthru
    _
  // Predicated region
  $region50: #{transt_trask_highway_forward.4} parent=0 // pred_check
    _
  $region51: #{transt_trask_highway_forward.4} parent=0 // pred_check_branch
    %55 = sbr.rel (0) target = $region53
  $region52: #{transt_trask_highway_forward.4} parent=0 // pred_region
    _
  $region53: #{transt_trask_highway_forward.4} parent=0 // pred_fallthru
    _
  // Predicated region
  $region54: #{transt_trask_highway_forward.4} parent=0 // pred_check
    _
  $region55: #{transt_trask_highway_forward.4} parent=0 // pred_check_branch
    %57 = sbr.rel (0) target = $region57
  $region56: #{transt_trask_highway_forward.4} parent=0 // pred_region
    _
  $region57: #{transt_trask_highway_forward.4} parent=0 // pred_fallthru
    _
  // Predicated region
  $region58: #{transt_trask_highway_forward.4} parent=0 // pred_check
    _
  $region59: #{transt_trask_highway_forward.4} parent=0 // pred_check_branch
    %59 = sbr.rel (0) target = $region61
  $region60: #{transt_trask_highway_forward.4} parent=0 // pred_region
    _
  $region61: #{transt_trask_highway_forward.4} parent=0 // pred_fallthru
    _
  // Predicated region
  $region62: #{transt_trask_highway_forward.4} parent=0 // pred_check
    _
  $region63: #{transt_trask_highway_forward.4} parent=0 // pred_check_branch
    %61 = sbr.rel (0) target = $region65
  $region64: #{transt_trask_highway_forward.4} parent=0 // pred_region
    _
  $region65: #{transt_trask_highway_forward.4} parent=0 // pred_fallthru
    _
  // Predicated region
  $region66: #{transt_trask_highway_forward.4} parent=0 // pred_check
    _
  $region67: #{transt_trask_highway_forward.4} parent=0 // pred_check_branch
    %63 = sbr.rel (0) target = $region69
  $region68: #{transt_trask_highway_forward.4} parent=0 // pred_region
    _
  $region69: #{transt_trask_highway_forward.4} parent=0 // pred_fallthru
    _
  // Predicated region
  $region70: #{transt_trask_highway_forward.4} parent=0 // pred_check
    _
  $region71: #{transt_trask_highway_forward.4} parent=0 // pred_check_branch
    %65 = sbr.rel (0) target = $region73
  $region72: #{transt_trask_highway_forward.4} parent=0 // pred_region
    _
  $region73: #{transt_trask_highway_forward.4} parent=0 // pred_fallthru
    _
  // Predicated region
  $region74: #{transt_trask_highway_forward.4} parent=0 // pred_check
    _
  $region75: #{transt_trask_highway_forward.4} parent=0 // pred_check_branch
    %67 = sbr.rel (0) target = $region77
  $region76: #{transt_trask_highway_forward.4} parent=0 // pred_region
    _
  $region77: #{transt_trask_highway_forward.4} parent=0 // pred_fallthru
    _
  // Predicated region
  $region78: #{transt_trask_highway_forward.4} parent=0 // pred_check
    _
  $region79: #{transt_trask_highway_forward.4} parent=0 // pred_check_branch
    %69 = sbr.rel (0) target = $region81
  $region80: #{transt_trask_highway_forward.4} parent=0 // pred_region
    _
  $region81: #{transt_trask_highway_forward.4} parent=0 // pred_fallthru
    _
  // Predicated region
  $region82: #{transt_trask_highway_forward.4} parent=0 // pred_check
    _
  $region83: #{transt_trask_highway_forward.4} parent=0 // pred_check_branch
    %71 = sbr.rel (0) target = $region85
  $region84: #{transt_trask_highway_forward.4} parent=0 // pred_region
    _
  $region85: #{transt_trask_highway_forward.4} parent=0 // pred_fallthru
    _
  // Predicated region
  $region86: #{transt_trask_highway_forward.4} parent=0 // pred_check
    _
  $region87: #{transt_trask_highway_forward.4} parent=0 // pred_check_branch
    %73 = sbr.rel (0) target = $region89
  $region88: #{transt_trask_highway_forward.4} parent=0 // pred_region
    _
  $region89: #{transt_trask_highway_forward.4} parent=0 // pred_fallthru
    _
  // Predicated region
  $region90: #{transt_trask_highway_forward.4} parent=0 // pred_check
    _
  $region91: #{transt_trask_highway_forward.4} parent=0 // pred_check_branch
    %75 = sbr.rel (0) target = $region93
  $region92: #{transt_trask_highway_forward.4} parent=0 // pred_region
    _
  $region93: #{transt_trask_highway_forward.4} parent=0 // pred_fallthru
    _
  // Predicated region
  $region94: #{transt_trask_highway_forward.4} parent=0 // pred_check
    _
  $region95: #{transt_trask_highway_forward.4} parent=0 // pred_check_branch
    %77 = sbr.rel (0) target = $region97
  $region96: #{transt_trask_highway_forward.4} parent=0 // pred_region
    _
  $region97: #{transt_trask_highway_forward.4} parent=0 // pred_fallthru
    _
  // Predicated region
  $region98: #{transt_trask_highway_forward.4} parent=0 // pred_check
    _
  $region99: #{transt_trask_highway_forward.4} parent=0 // pred_check_branch
    %79 = sbr.rel (0) target = $region101
  $region100: #{transt_trask_highway_forward.4} parent=0 // pred_region
    _
  $region101: #{transt_trask_highway_forward.4} parent=0 // pred_fallthru
    _
  %v80 = vld [vmem:[%s0] sm:$0xff]
  %v81 = vld [vmem:[%s0 + $0x8] sm:$0xff]
  %v82 = vld [vmem:[%s0 + $0x10] sm:$0xff]
  %v83 = vld [vmem:[%s0 + $0x18] sm:$0xff]
  %v84 = vld [vmem:[%s1] sm:$0xff]
  %v85 = vld [vmem:[%s1 + $0x8] sm:$0xff]
  %v86 = vld [vmem:[%s1 + $0x10] sm:$0xff]
  %v87 = vld [vmem:[%s1 + $0x18] sm:$0xff]
  %v88 = vld [vmem:[%s1 + $0x20] sm:$0xff]
  %v89 = vld [vmem:[%s1 + $0x28] sm:$0xff]
  %v90 = vld [vmem:[%s1 + $0x30] sm:$0xff]
  %v91 = vld [vmem:[%s1 + $0x38] sm:$0xff]
  %v92 = vld [vmem:[%s1 + $0x40] sm:$0xff]
  %v93 = vld [vmem:[%s1 + $0x48] sm:$0xff]
  %v94 = vld [vmem:[%s1 + $0x50] sm:$0xff]
  %v95 = vld [vmem:[%s1 + $0x58] sm:$0xff]
  %v96 = vld [vmem:[%s1 + $0x60] sm:$0xff]
  %v97 = vld [vmem:[%s1 + $0x68] sm:$0xff]
  %v98 = vld [vmem:[%s1 + $0x70] sm:$0xff]
  %v99 = vld [vmem:[%s1 + $0x78] sm:$0xff]
  %v100 = vld [vmem:[%s2] sm:$0xff]
  %v101 = vld [vmem:[%s2 + $0x8] sm:$0xff]
  %v102 = vld [vmem:[%s2 + $0x10] sm:$0xff]
  %v103 = vld [vmem:[%s2 + $0x18] sm:$0xff]
  %v104 = vld [vmem:[%s3] sm:$0xff]
  %v105 = vld [vmem:[%s3 + $0x8] sm:$0xff]
  %v106 = vld [vmem:[%s3 + $0x10] sm:$0xff]
  %v107 = vld [vmem:[%s3 + $0x18] sm:$0xff]
  %v108 = vld [vmem:[%s3 + $0x20] sm:$0xff]
  %v109 = vld [vmem:[%s3 + $0x28] sm:$0xff]
  %v110 = vld [vmem:[%s3 + $0x30] sm:$0xff]
  %v111 = vld [vmem:[%s3 + $0x38] sm:$0xff]
  %v112 = vld [vmem:[%s3 + $0x40] sm:$0xff]
  %v113 = vld [vmem:[%s3 + $0x48] sm:$0xff]
  %v114 = vld [vmem:[%s3 + $0x50] sm:$0xff]
  %v115 = vld [vmem:[%s3 + $0x58] sm:$0xff]
  %v116 = vld [vmem:[%s3 + $0x60] sm:$0xff]
  %v117 = vld [vmem:[%s3 + $0x68] sm:$0xff]
  %v118 = vld [vmem:[%s3 + $0x70] sm:$0xff]
  %v119 = vld [vmem:[%s3 + $0x78] sm:$0xff]
  %v120 = vld [vmem:[%s4] sm:$0xff]
  %v121 = vld [vmem:[%s4 + $0x8] sm:$0xff]
  %v122 = vld [vmem:[%s4 + $0x10] sm:$0xff]
  %v123 = vld [vmem:[%s4 + $0x18] sm:$0xff]
  %v124 = vld [vmem:[%s5] sm:$0x1]
  %v125 = vld [vmem:[%s6] sm:$0xff]
  %v126 = vld [vmem:[%s6 + $0x8] sm:$0xff]
  %v127 = vld [vmem:[%s6 + $0x10] sm:$0xff]
  %v128 = vld [vmem:[%s6 + $0x18] sm:$0xff]
  %v129 = vld [vmem:[%s7] sm:$0x1]
  %v130 = vld [vmem:[%s8] sm:$0xff]
  %v131 = vld [vmem:[%s8 + $0x8] sm:$0xff]
  %v132 = vld [vmem:[%s8 + $0x10] sm:$0xff]
  %v133 = vld [vmem:[%s8 + $0x18] sm:$0xff]
  %v134 = vld [vmem:[%s8 + $0x20] sm:$0xff]
  %v135 = vld [vmem:[%s8 + $0x28] sm:$0xff]
  %v136 = vld [vmem:[%s8 + $0x30] sm:$0xff]
  %v137 = vld [vmem:[%s8 + $0x38] sm:$0xff]
  %v138 = vld [vmem:[%s9] sm:$0x1]
  %v139 = vld [vmem:[%s10] sm:$0xf]
  %v140 = vadd.f32 %v84, %v104
  %v141 = vadd.f32 %v85, %v105
  %v142 = vadd.f32 %v86, %v106
  %v143 = vadd.f32 %v87, %v107
  %v144 = vadd.f32 %v88, %v108
  %v145 = vadd.f32 %v89, %v109
  %v146 = vadd.f32 %v90, %v110
  %v147 = vadd.f32 %v91, %v111
  %v148 = vadd.f32 %v92, %v112
  %v149 = vadd.f32 %v93, %v113
  %v150 = vadd.f32 %v94, %v114
  %v151 = vadd.f32 %v95, %v115
  %v152 = vadd.f32 %v96, %v116
  %v153 = vadd.f32 %v97, %v117
  %v154 = vadd.f32 %v98, %v118
  %v155 = vadd.f32 %v99, %v119
  %v157 = vlaneseq
  %v158 = vshrl.u32 %v157, 7
  %v159 = vsub.s32 0, %v158
  %v160 = vrot.slane %v124, %v159
  %vm162 = vcmask 261120
  %v164 = vsel %vm162, %v140, 0
  %v167 = vsel %vm162, %v141, 0
  %v170 = vsel %vm162, %v142, 0
  %v173 = vsel %vm162, %v143, 0
  %v176 = vsel %vm162, %v144, 0
  %v179 = vsel %vm162, %v145, 0
  %v182 = vsel %vm162, %v146, 0
  %v185 = vsel %vm162, %v147, 0
  %v188 = vsel %vm162, %v148, 0
  %v191 = vsel %vm162, %v149, 0
  %v194 = vsel %vm162, %v150, 0
  %v197 = vsel %vm162, %v151, 0
  %v200 = vsel %vm162, %v152, 0
  %v203 = vsel %vm162, %v153, 0
  %v206 = vsel %vm162, %v154, 0
  %v209 = vsel %vm162, %v155, 0
  %211 = vmatprep.subr.mxu0 0.0
  %212 = vmatpush1.msra.mxu0 0.0
  %213 = vmatprep.subr.mxu0 0.0
  %214 = vmatpush1.msra.mxu0 0.0
  %215 = vmatprep.subr.mxu0 0.0
  %216 = vmatpush1.msra.mxu0 0.0
  %217 = vmatprep.subr.mxu0 0.0
  %218 = vmatpush1.msra.mxu0 0.0
  %219 = vmatprep.subr.mxu0 0.0
  %220 = vmatpush1.msra.mxu0 0.0
  %221 = vmatprep.subr.mxu0 0.0
  %222 = vmatpush1.msra.mxu0 0.0
  %223 = vmatprep.subr.mxu0 0.0
  %224 = vmatpush1.msra.mxu0 0.0
  %225 = vmatprep.subr.mxu0 0.0
  %226 = vmatpush1.msra.mxu0 0.0
  %227 = vmatprep.subr.mxu0 0.0
  %228 = vmatpush1.msra.mxu0 0.0
  %229 = vmatprep.subr.mxu0 0.0
  %230 = vmatpush1.msra.mxu0 0.0
  %231 = vmatprep.subr.mxu0 0.0
  %232 = vmatpush1.msra.mxu0 0.0
  %233 = vmatprep.subr.mxu0 0.0
  %234 = vmatpush1.msra.mxu0 0.0
  %235 = vmatprep.subr.mxu0 0.0
  %236 = vmatpush1.msra.mxu0 %v123
  %237 = vmatprep.subr.mxu0 0.0
  %238 = vmatpush1.msra.mxu0 %v122
  %239 = vmatprep.subr.mxu0 0.0
  %240 = vmatpush1.msra.mxu0 %v121
  %241 = vmatprep.subr.mxu0 0.0
  %242 = vmatpush1.msra.mxu0 %v120
  %243 = vmatprep.subr.mxu0 0.0
  %244 = vmatpush2.msra.mxu0 0.0
  %245 = vmatprep.subr.mxu0 0.0
  %246 = vmatpush2.msra.mxu0 0.0
  %247 = vmatprep.subr.mxu0 0.0
  %248 = vmatpush2.msra.mxu0 0.0
  %249 = vmatprep.subr.mxu0 0.0
  %250 = vmatpush2.msra.mxu0 0.0
  %251 = vmatprep.subr.mxu0 0.0
  %252 = vmatpush2.msra.mxu0 0.0
  %253 = vmatprep.subr.mxu0 0.0
  %254 = vmatpush2.msra.mxu0 0.0
  %255 = vmatprep.subr.mxu0 0.0
  %256 = vmatpush2.msra.mxu0 0.0
  %257 = vmatprep.subr.mxu0 0.0
  %258 = vmatpush2.msra.mxu0 0.0
  %259 = vmatprep.subr.mxu0 0.0
  %260 = vmatpush2.msra.mxu0 0.0
  %261 = vmatprep.subr.mxu0 0.0
  %262 = vmatpush2.msra.mxu0 0.0
  %263 = vmatprep.subr.mxu0 0.0
  %264 = vmatpush2.msra.mxu0 0.0
  %265 = vmatprep.subr.mxu0 0.0
  %266 = vmatpush2.msra.mxu0 0.0
  %267 = vmatprep.subr.mxu0 0.0
  %268 = vmatpush2.msra.mxu0 0.0
  %269 = vmatprep.subr.mxu0 0.0
  %270 = vmatpush2.msra.mxu0 0.0
  %271 = vmatprep.subr.mxu0 0.0
  %272 = vmatpush2.msra.mxu0 0.0
  %273 = vmatprep.subr.mxu0 0.0
  %274 = vmatpush2.msra.mxu0 0.0
  %275 = vmatprep.mubr.f32.mxu0 0.0
  %276 = vmatmul.mubr.f32.gmra.mxu0 %v164
  %v277 = vpop.f32.mrf.mxu0
  %v278 = vadd.f32 %v160, %v277
  %v279 = vpop.f32.mrf.mxu0
  %280 = vmatprep.mubr.f32.mxu0 0.0
  %281 = vmatmul.mubr.f32.gmra.mxu0 %v167
  %v282 = vpop.f32.mrf.mxu0
  %v283 = vadd.f32 %v160, %v282
  %v284 = vpop.f32.mrf.mxu0
  %285 = vmatprep.mubr.f32.mxu0 0.0
  %286 = vmatmul.mubr.f32.gmra.mxu0 %v170
  %v287 = vpop.f32.mrf.mxu0
  %v288 = vadd.f32 %v160, %v287
  %v289 = vpop.f32.mrf.mxu0
  %290 = vmatprep.mubr.f32.mxu0 0.0
  %291 = vmatmul.mubr.f32.gmra.mxu0 %v173
  %v292 = vpop.f32.mrf.mxu0
  %v293 = vadd.f32 %v160, %v292
  %v294 = vpop.f32.mrf.mxu0
  %295 = vmatprep.mubr.f32.mxu0 0.0
  %296 = vmatmul.mubr.f32.gmra.mxu0 %v176
  %v297 = vpop.f32.mrf.mxu0
  %v298 = vadd.f32 %v160, %v297
  %v299 = vpop.f32.mrf.mxu0
  %300 = vmatprep.mubr.f32.mxu0 0.0
  %301 = vmatmul.mubr.f32.gmra.mxu0 %v179
  %v302 = vpop.f32.mrf.mxu0
  %v303 = vadd.f32 %v160, %v302
  %v304 = vpop.f32.mrf.mxu0
  %305 = vmatprep.mubr.f32.mxu0 0.0
  %306 = vmatmul.mubr.f32.gmra.mxu0 %v182
  %v307 = vpop.f32.mrf.mxu0
  %v308 = vadd.f32 %v160, %v307
  %v309 = vpop.f32.mrf.mxu0
  %310 = vmatprep.mubr.f32.mxu0 0.0
  %311 = vmatmul.mubr.f32.gmra.mxu0 %v185
  %v312 = vpop.f32.mrf.mxu0
  %v313 = vadd.f32 %v160, %v312
  %v314 = vpop.f32.mrf.mxu0
  %315 = vmatprep.mubr.f32.mxu0 0.0
  %316 = vmatmul.mubr.f32.gmra.mxu0 %v188
  %v317 = vpop.f32.mrf.mxu0
  %v318 = vadd.f32 %v160, %v317
  %v319 = vpop.f32.mrf.mxu0
  %320 = vmatprep.mubr.f32.mxu0 0.0
  %321 = vmatmul.mubr.f32.gmra.mxu0 %v191
  %v322 = vpop.f32.mrf.mxu0
  %v323 = vadd.f32 %v160, %v322
  %v324 = vpop.f32.mrf.mxu0
  %325 = vmatprep.mubr.f32.mxu0 0.0
  %326 = vmatmul.mubr.f32.gmra.mxu0 %v194
  %v327 = vpop.f32.mrf.mxu0
  %v328 = vadd.f32 %v160, %v327
  %v329 = vpop.f32.mrf.mxu0
  %330 = vmatprep.mubr.f32.mxu0 0.0
  %331 = vmatmul.mubr.f32.gmra.mxu0 %v197
  %v332 = vpop.f32.mrf.mxu0
  %v333 = vadd.f32 %v160, %v332
  %v334 = vpop.f32.mrf.mxu0
  %335 = vmatprep.mubr.f32.mxu0 0.0
  %336 = vmatmul.mubr.f32.gmra.mxu0 %v200
  %v337 = vpop.f32.mrf.mxu0
  %v338 = vadd.f32 %v160, %v337
  %v339 = vpop.f32.mrf.mxu0
  %340 = vmatprep.mubr.f32.mxu0 0.0
  %341 = vmatmul.mubr.f32.gmra.mxu0 %v203
  %v342 = vpop.f32.mrf.mxu0
  %v343 = vadd.f32 %v160, %v342
  %v344 = vpop.f32.mrf.mxu0
  %345 = vmatprep.mubr.f32.mxu0 0.0
  %346 = vmatmul.mubr.f32.gmra.mxu0 %v206
  %v347 = vpop.f32.mrf.mxu0
  %v348 = vadd.f32 %v160, %v347
  %v349 = vpop.f32.mrf.mxu0
  %350 = vmatprep.mubr.f32.mxu0 0.0
  %351 = vmatmul.mubr.f32.gmra.mxu0 %v209
  %v352 = vpop.f32.mrf.mxu0
  %v353 = vadd.f32 %v160, %v352
  %v354 = vpop.f32.mrf.mxu0
  %355 = vdwg.mxu0
  %v356 = vadd.f32 %v80, %v100
  %v357 = vadd.f32 %v81, %v101
  %v358 = vadd.f32 %v82, %v102
  %v359 = vadd.f32 %v83, %v103
  %364 = vrot.lane.b32.xlu0 %v120, 96
  %v365 = vpop.permute.xlu0 %364
  %366 = vrot.lane.b32.xlu0 %v121, 96
  %v367 = vpop.permute.xlu0 %366
  %368 = vrot.lane.b32.xlu0 %v122, 96
  %v369 = vpop.permute.xlu0 %368
  %370 = vrot.lane.b32.xlu0 %v123, 96
  %v371 = vpop.permute.xlu0 %370
  %376 = vrot.lane.b32.xlu0 %v160, 96
  %v377 = vpop.permute.xlu0 %376
  %v380 = vsel %vm162, %v356, 0
  %v383 = vsel %vm162, %v357, 0
  %v386 = vsel %vm162, %v358, 0
  %v389 = vsel %vm162, %v359, 0
  %391 = vmatprep.subr.mxu0 0.0
  %392 = vmatpush1.msra.mxu0 0.0
  %393 = vmatprep.subr.mxu0 0.0
  %394 = vmatpush1.msra.mxu0 0.0
  %395 = vmatprep.subr.mxu0 0.0
  %396 = vmatpush1.msra.mxu0 0.0
  %397 = vmatprep.subr.mxu0 0.0
  %398 = vmatpush1.msra.mxu0 0.0
  %399 = vmatprep.subr.mxu0 0.0
  %400 = vmatpush1.msra.mxu0 0.0
  %401 = vmatprep.subr.mxu0 0.0
  %402 = vmatpush1.msra.mxu0 0.0
  %403 = vmatprep.subr.mxu0 0.0
  %404 = vmatpush1.msra.mxu0 0.0
  %405 = vmatprep.subr.mxu0 0.0
  %406 = vmatpush1.msra.mxu0 0.0
  %407 = vmatprep.subr.mxu0 0.0
  %408 = vmatpush1.msra.mxu0 0.0
  %409 = vmatprep.subr.mxu0 0.0
  %410 = vmatpush1.msra.mxu0 0.0
  %411 = vmatprep.subr.mxu0 0.0
  %412 = vmatpush1.msra.mxu0 0.0
  %413 = vmatprep.subr.mxu0 0.0
  %414 = vmatpush1.msra.mxu0 0.0
  %415 = vmatprep.subr.mxu0 0.0
  %416 = vmatpush1.msra.mxu0 %v371
  %417 = vmatprep.subr.mxu0 0.0
  %418 = vmatpush1.msra.mxu0 %v369
  %419 = vmatprep.subr.mxu0 0.0
  %420 = vmatpush1.msra.mxu0 %v367
  %421 = vmatprep.subr.mxu0 0.0
  %422 = vmatpush1.msra.mxu0 %v365
  %423 = vmatprep.subr.mxu0 0.0
  %424 = vmatpush2.msra.mxu0 0.0
  %425 = vmatprep.subr.mxu0 0.0
  %426 = vmatpush2.msra.mxu0 0.0
  %427 = vmatprep.subr.mxu0 0.0
  %428 = vmatpush2.msra.mxu0 0.0
  %429 = vmatprep.subr.mxu0 0.0
  %430 = vmatpush2.msra.mxu0 0.0
  %431 = vmatprep.subr.mxu0 0.0
  %432 = vmatpush2.msra.mxu0 0.0
  %433 = vmatprep.subr.mxu0 0.0
  %434 = vmatpush2.msra.mxu0 0.0
  %435 = vmatprep.subr.mxu0 0.0
  %436 = vmatpush2.msra.mxu0 0.0
  %437 = vmatprep.subr.mxu0 0.0
  %438 = vmatpush2.msra.mxu0 0.0
  %439 = vmatprep.subr.mxu0 0.0
  %440 = vmatpush2.msra.mxu0 0.0
  %441 = vmatprep.subr.mxu0 0.0
  %442 = vmatpush2.msra.mxu0 0.0
  %443 = vmatprep.subr.mxu0 0.0
  %444 = vmatpush2.msra.mxu0 0.0
  %445 = vmatprep.subr.mxu0 0.0
  %446 = vmatpush2.msra.mxu0 0.0
  %447 = vmatprep.subr.mxu0 0.0
  %448 = vmatpush2.msra.mxu0 0.0
  %449 = vmatprep.subr.mxu0 0.0
  %450 = vmatpush2.msra.mxu0 0.0
  %451 = vmatprep.subr.mxu0 0.0
  %452 = vmatpush2.msra.mxu0 0.0
  %453 = vmatprep.subr.mxu0 0.0
  %454 = vmatpush2.msra.mxu0 0.0
  %455 = vmatprep.mubr.f32.mxu0 0.0
  %456 = vmatmul.mubr.f32.gmra.mxu0 %v380
  %v457 = vpop.f32.mrf.mxu0
  %v458 = vadd.f32 %v377, %v457
  %v459 = vpop.f32.mrf.mxu0
  %460 = vmatprep.mubr.f32.mxu0 0.0
  %461 = vmatmul.mubr.f32.gmra.mxu0 %v383
  %v462 = vpop.f32.mrf.mxu0
  %v463 = vadd.f32 %v377, %v462
  %v464 = vpop.f32.mrf.mxu0
  %465 = vmatprep.mubr.f32.mxu0 0.0
  %466 = vmatmul.mubr.f32.gmra.mxu0 %v386
  %v467 = vpop.f32.mrf.mxu0
  %v468 = vadd.f32 %v377, %v467
  %v469 = vpop.f32.mrf.mxu0
  %470 = vmatprep.mubr.f32.mxu0 0.0
  %471 = vmatmul.mubr.f32.gmra.mxu0 %v389
  %v472 = vpop.f32.mrf.mxu0
  %v473 = vadd.f32 %v377, %v472
  %v474 = vpop.f32.mrf.mxu0
  %475 = vdwg.mxu0
  %476 = vrot.lane.b32.xlu0 %v120, 64
  %v477 = vpop.permute.xlu0 %476
  %478 = vrot.lane.b32.xlu0 %v121, 64
  %v479 = vpop.permute.xlu0 %478
  %480 = vrot.lane.b32.xlu0 %v122, 64
  %v481 = vpop.permute.xlu0 %480
  %482 = vrot.lane.b32.xlu0 %v123, 64
  %v483 = vpop.permute.xlu0 %482
  %488 = vrot.lane.b32.xlu0 %v160, 64
  %v489 = vpop.permute.xlu0 %488
  %v492 = vsel %vm162, %v80, 0
  %v495 = vsel %vm162, %v81, 0
  %v498 = vsel %vm162, %v82, 0
  %v501 = vsel %vm162, %v83, 0
  %503 = vmatprep.subr.mxu0 0.0
  %504 = vmatpush1.msra.mxu0 0.0
  %505 = vmatprep.subr.mxu0 0.0
  %506 = vmatpush1.msra.mxu0 0.0
  %507 = vmatprep.subr.mxu0 0.0
  %508 = vmatpush1.msra.mxu0 0.0
  %509 = vmatprep.subr.mxu0 0.0
  %510 = vmatpush1.msra.mxu0 0.0
  %511 = vmatprep.subr.mxu0 0.0
  %512 = vmatpush1.msra.mxu0 0.0
  %513 = vmatprep.subr.mxu0 0.0
  %514 = vmatpush1.msra.mxu0 0.0
  %515 = vmatprep.subr.mxu0 0.0
  %516 = vmatpush1.msra.mxu0 0.0
  %517 = vmatprep.subr.mxu0 0.0
  %518 = vmatpush1.msra.mxu0 0.0
  %519 = vmatprep.subr.mxu0 0.0
  %520 = vmatpush1.msra.mxu0 0.0
  %521 = vmatprep.subr.mxu0 0.0
  %522 = vmatpush1.msra.mxu0 0.0
  %523 = vmatprep.subr.mxu0 0.0
  %524 = vmatpush1.msra.mxu0 0.0
  %525 = vmatprep.subr.mxu0 0.0
  %526 = vmatpush1.msra.mxu0 0.0
  %527 = vmatprep.subr.mxu0 0.0
  %528 = vmatpush1.msra.mxu0 %v483
  %529 = vmatprep.subr.mxu0 0.0
  %530 = vmatpush1.msra.mxu0 %v481
  %531 = vmatprep.subr.mxu0 0.0
  %532 = vmatpush1.msra.mxu0 %v479
  %533 = vmatprep.subr.mxu0 0.0
  %534 = vmatpush1.msra.mxu0 %v477
  %535 = vmatprep.subr.mxu0 0.0
  %536 = vmatpush2.msra.mxu0 0.0
  %537 = vmatprep.subr.mxu0 0.0
  %538 = vmatpush2.msra.mxu0 0.0
  %539 = vmatprep.subr.mxu0 0.0
  %540 = vmatpush2.msra.mxu0 0.0
  %541 = vmatprep.subr.mxu0 0.0
  %542 = vmatpush2.msra.mxu0 0.0
  %543 = vmatprep.subr.mxu0 0.0
  %544 = vmatpush2.msra.mxu0 0.0
  %545 = vmatprep.subr.mxu0 0.0
  %546 = vmatpush2.msra.mxu0 0.0
  %547 = vmatprep.subr.mxu0 0.0
  %548 = vmatpush2.msra.mxu0 0.0
  %549 = vmatprep.subr.mxu0 0.0
  %550 = vmatpush2.msra.mxu0 0.0
  %551 = vmatprep.subr.mxu0 0.0
  %552 = vmatpush2.msra.mxu0 0.0
  %553 = vmatprep.subr.mxu0 0.0
  %554 = vmatpush2.msra.mxu0 0.0
  %555 = vmatprep.subr.mxu0 0.0
  %556 = vmatpush2.msra.mxu0 0.0
  %557 = vmatprep.subr.mxu0 0.0
  %558 = vmatpush2.msra.mxu0 0.0
  %559 = vmatprep.subr.mxu0 0.0
  %560 = vmatpush2.msra.mxu0 0.0
  %561 = vmatprep.subr.mxu0 0.0
  %562 = vmatpush2.msra.mxu0 0.0
  %563 = vmatprep.subr.mxu0 0.0
  %564 = vmatpush2.msra.mxu0 0.0
  %565 = vmatprep.subr.mxu0 0.0
  %566 = vmatpush2.msra.mxu0 0.0
  %567 = vmatprep.mubr.f32.mxu0 0.0
  %568 = vmatmul.mubr.f32.gmra.mxu0 %v492
  %v569 = vpop.f32.mrf.mxu0
  %v570 = vadd.f32 %v489, %v569
  %v571 = vpop.f32.mrf.mxu0
  %572 = vmatprep.mubr.f32.mxu0 0.0
  %573 = vmatmul.mubr.f32.gmra.mxu0 %v495
  %v574 = vpop.f32.mrf.mxu0
  %v575 = vadd.f32 %v489, %v574
  %v576 = vpop.f32.mrf.mxu0
  %577 = vmatprep.mubr.f32.mxu0 0.0
  %578 = vmatmul.mubr.f32.gmra.mxu0 %v498
  %v579 = vpop.f32.mrf.mxu0
  %v580 = vadd.f32 %v489, %v579
  %v581 = vpop.f32.mrf.mxu0
  %582 = vmatprep.mubr.f32.mxu0 0.0
  %583 = vmatmul.mubr.f32.gmra.mxu0 %v501
  %v584 = vpop.f32.mrf.mxu0
  %v585 = vadd.f32 %v489, %v584
  %v586 = vpop.f32.mrf.mxu0
  %587 = vdwg.mxu0
  %v589 = vsel %vm162, %v278, 0
  %v592 = vsel %vm162, %v283, 0
  %v595 = vsel %vm162, %v288, 0
  %v598 = vsel %vm162, %v293, 0
  %v601 = vsel %vm162, %v298, 0
  %v604 = vsel %vm162, %v303, 0
  %v607 = vsel %vm162, %v308, 0
  %v610 = vsel %vm162, %v313, 0
  %v613 = vsel %vm162, %v458, 0
  %v616 = vsel %vm162, %v463, 0
  %618 = vmatprep.subr.mxu0 0.0
  %619 = vmatpush1.xpose.msra.mxu0 0.0
  %620 = vmatprep.subr.mxu0 0.0
  %621 = vmatpush1.xpose.msra.mxu0 0.0
  %622 = vmatprep.subr.mxu0 0.0
  %623 = vmatpush1.xpose.msra.mxu0 0.0
  %624 = vmatprep.subr.mxu0 0.0
  %625 = vmatpush1.xpose.msra.mxu0 0.0
  %626 = vmatprep.subr.mxu0 0.0
  %627 = vmatpush1.xpose.msra.mxu0 0.0
  %628 = vmatprep.subr.mxu0 0.0
  %629 = vmatpush1.xpose.msra.mxu0 0.0
  %630 = vmatprep.subr.mxu0 0.0
  %631 = vmatpush1.xpose.msra.mxu0 0.0
  %632 = vmatprep.subr.mxu0 0.0
  %633 = vmatpush1.xpose.msra.mxu0 0.0
  %634 = vmatprep.subr.mxu0 0.0
  %635 = vmatpush1.xpose.msra.mxu0 0.0
  %636 = vmatprep.subr.mxu0 0.0
  %637 = vmatpush1.xpose.msra.mxu0 0.0
  %638 = vmatprep.subr.mxu0 0.0
  %639 = vmatpush1.xpose.msra.mxu0 0.0
  %640 = vmatprep.subr.mxu0 0.0
  %641 = vmatpush1.xpose.msra.mxu0 0.0
  %642 = vmatprep.subr.mxu0 0.0
  %643 = vmatpush1.xpose.msra.mxu0 0.0
  %644 = vmatprep.subr.mxu0 0.0
  %645 = vmatpush1.xpose.msra.mxu0 0.0
  %646 = vmatprep.subr.mxu0 0.0
  %647 = vmatpush1.xpose.msra.mxu0 %v616
  %648 = vmatprep.subr.mxu0 0.0
  %649 = vmatpush1.xpose.msra.mxu0 %v613
  %650 = vmatprep.subr.mxu0 0.0
  %651 = vmatpush2.xpose.msra.mxu0 0.0
  %652 = vmatprep.subr.mxu0 0.0
  %653 = vmatpush2.xpose.msra.mxu0 0.0
  %654 = vmatprep.subr.mxu0 0.0
  %655 = vmatpush2.xpose.msra.mxu0 0.0
  %656 = vmatprep.subr.mxu0 0.0
  %657 = vmatpush2.xpose.msra.mxu0 0.0
  %658 = vmatprep.subr.mxu0 0.0
  %659 = vmatpush2.xpose.msra.mxu0 0.0
  %660 = vmatprep.subr.mxu0 0.0
  %661 = vmatpush2.xpose.msra.mxu0 0.0
  %662 = vmatprep.subr.mxu0 0.0
  %663 = vmatpush2.xpose.msra.mxu0 0.0
  %664 = vmatprep.subr.mxu0 0.0
  %665 = vmatpush2.xpose.msra.mxu0 0.0
  %666 = vmatprep.subr.mxu0 0.0
  %667 = vmatpush2.xpose.msra.mxu0 0.0
  %668 = vmatprep.subr.mxu0 0.0
  %669 = vmatpush2.xpose.msra.mxu0 0.0
  %670 = vmatprep.subr.mxu0 0.0
  %671 = vmatpush2.xpose.msra.mxu0 0.0
  %672 = vmatprep.subr.mxu0 0.0
  %673 = vmatpush2.xpose.msra.mxu0 0.0
  %674 = vmatprep.subr.mxu0 0.0
  %675 = vmatpush2.xpose.msra.mxu0 0.0
  %676 = vmatprep.subr.mxu0 0.0
  %677 = vmatpush2.xpose.msra.mxu0 0.0
  %678 = vmatprep.subr.mxu0 0.0
  %679 = vmatpush2.xpose.msra.mxu0 0.0
  %680 = vmatprep.subr.mxu0 0.0
  %681 = vmatpush2.xpose.msra.mxu0 0.0
  %682 = vmatprep.mubr.f32.mxu0 0.0
  %683 = vmatmul.mubr.f32.gmra.mxu0 %v589
  %v684 = vpop.f32.mrf.mxu0
  %v685 = vadd.f32 0.0, %v684
  %v686 = vpop.f32.mrf.mxu0
  %687 = vmatprep.mubr.f32.mxu0 0.0
  %688 = vmatmul.mubr.f32.gmra.mxu0 %v592
  %v689 = vpop.f32.mrf.mxu0
  %v690 = vadd.f32 0.0, %v689
  %v691 = vpop.f32.mrf.mxu0
  %692 = vmatprep.mubr.f32.mxu0 0.0
  %693 = vmatmul.mubr.f32.gmra.mxu0 %v595
  %v694 = vpop.f32.mrf.mxu0
  %v695 = vadd.f32 0.0, %v694
  %v696 = vpop.f32.mrf.mxu0
  %697 = vmatprep.mubr.f32.mxu0 0.0
  %698 = vmatmul.mubr.f32.gmra.mxu0 %v598
  %v699 = vpop.f32.mrf.mxu0
  %v700 = vadd.f32 0.0, %v699
  %v701 = vpop.f32.mrf.mxu0
  %702 = vmatprep.mubr.f32.mxu0 0.0
  %703 = vmatmul.mubr.f32.gmra.mxu0 %v601
  %v704 = vpop.f32.mrf.mxu0
  %v705 = vadd.f32 0.0, %v704
  %v706 = vpop.f32.mrf.mxu0
  %707 = vmatprep.mubr.f32.mxu0 0.0
  %708 = vmatmul.mubr.f32.gmra.mxu0 %v604
  %v709 = vpop.f32.mrf.mxu0
  %v710 = vadd.f32 0.0, %v709
  %v711 = vpop.f32.mrf.mxu0
  %712 = vmatprep.mubr.f32.mxu0 0.0
  %713 = vmatmul.mubr.f32.gmra.mxu0 %v607
  %v714 = vpop.f32.mrf.mxu0
  %v715 = vadd.f32 0.0, %v714
  %v716 = vpop.f32.mrf.mxu0
  %717 = vmatprep.mubr.f32.mxu0 0.0
  %718 = vmatmul.mubr.f32.gmra.mxu0 %v610
  %v719 = vpop.f32.mrf.mxu0
  %v720 = vadd.f32 0.0, %v719
  %v721 = vpop.f32.mrf.mxu0
  %722 = vdwg.mxu0
  %v723 = vmul.f32 %v685, 0.17677669
  %v724 = vmul.f32 %v690, 0.17677669
  %v725 = vmul.f32 %v695, 0.17677669
  %v726 = vmul.f32 %v700, 0.17677669
  %v727 = vmul.f32 %v705, 0.17677669
  %v728 = vmul.f32 %v710, 0.17677669
  %v729 = vmul.f32 %v715, 0.17677669
  %v730 = vmul.f32 %v720, 0.17677669
  %vm731 = vcmask 130048
  %v732 = vsel %vm731, %v723, -inf
  %733 = vmax.xlane.f32.xlu0 %v732
  %v734 = vpop.xlane.xlu0 %733
  %v735 = vsel %vm731, %v724, -inf
  %736 = vmax.xlane.f32.xlu0 %v735
  %v737 = vpop.xlane.xlu0 %736
  %v738 = vsel %vm731, %v725, -inf
  %739 = vmax.xlane.f32.xlu0 %v738
  %v740 = vpop.xlane.xlu0 %739
  %v741 = vsel %vm731, %v726, -inf
  %742 = vmax.xlane.f32.xlu0 %v741
  %v743 = vpop.xlane.xlu0 %742
  %v744 = vsel %vm731, %v727, -inf
  %745 = vmax.xlane.f32.xlu0 %v744
  %v746 = vpop.xlane.xlu0 %745
  %v747 = vsel %vm731, %v728, -inf
  %748 = vmax.xlane.f32.xlu0 %v747
  %v749 = vpop.xlane.xlu0 %748
  %v750 = vsel %vm731, %v729, -inf
  %751 = vmax.xlane.f32.xlu0 %v750
  %v752 = vpop.xlane.xlu0 %751
  %v753 = vsel %vm731, %v730, -inf
  %754 = vmax.xlane.f32.xlu0 %v753
  %v755 = vpop.xlane.xlu0 %754
  %v756 = vsub.f32 %v723, %v734
  %v757 = vsub.f32 %v724, %v737
  %v758 = vsub.f32 %v725, %v740
  %v759 = vsub.f32 %v726, %v743
  %v760 = vsub.f32 %v727, %v746
  %v761 = vsub.f32 %v728, %v749
  %v762 = vsub.f32 %v729, %v752
  %v763 = vsub.f32 %v730, %v755
  %v764 = vmul.f32 %v756, 1.442695
  %v765 = vpow.pop %v764
  %v766 = vmul.f32 %v757, 1.442695
  %v767 = vpow.pop %v766
  %v768 = vmul.f32 %v758, 1.442695
  %v769 = vpow.pop %v768
  %v770 = vmul.f32 %v759, 1.442695
  %v771 = vpow.pop %v770
  %v772 = vmul.f32 %v760, 1.442695
  %v773 = vpow.pop %v772
  %v774 = vmul.f32 %v761, 1.442695
  %v775 = vpow.pop %v774
  %v776 = vmul.f32 %v762, 1.442695
  %v777 = vpow.pop %v776
  %v778 = vmul.f32 %v763, 1.442695
  %v779 = vpow.pop %v778
  %v780 = vsel %vm731, %v765, 0.0
  %781 = vadd.xlane.f32.xlu0 %v780
  %v782 = vpop.xlane.xlu0 %781
  %v783 = vsel %vm731, %v767, 0.0
  %784 = vadd.xlane.f32.xlu0 %v783
  %v785 = vpop.xlane.xlu0 %784
  %v786 = vsel %vm731, %v769, 0.0
  %787 = vadd.xlane.f32.xlu0 %v786
  %v788 = vpop.xlane.xlu0 %787
  %v789 = vsel %vm731, %v771, 0.0
  %790 = vadd.xlane.f32.xlu0 %v789
  %v791 = vpop.xlane.xlu0 %790
  %v792 = vsel %vm731, %v773, 0.0
  %793 = vadd.xlane.f32.xlu0 %v792
  %v794 = vpop.xlane.xlu0 %793
  %v795 = vsel %vm731, %v775, 0.0
  %796 = vadd.xlane.f32.xlu0 %v795
  %v797 = vpop.xlane.xlu0 %796
  %v798 = vsel %vm731, %v777, 0.0
  %799 = vadd.xlane.f32.xlu0 %v798
  %v800 = vpop.xlane.xlu0 %799
  %v801 = vsel %vm731, %v779, 0.0
  %802 = vadd.xlane.f32.xlu0 %v801
  %v803 = vpop.xlane.xlu0 %802
  %v804 = vrcp.pop %v782
  %v805 = vrcp.pop %v785
  %v806 = vrcp.pop %v788
  %v807 = vrcp.pop %v791
  %v808 = vrcp.pop %v794
  %v809 = vrcp.pop %v797
  %v810 = vrcp.pop %v800
  %v811 = vrcp.pop %v803
  %v812 = vmul.f32 %v765, %v804
  %v813 = vmul.f32 %v767, %v805
  %v814 = vmul.f32 %v769, %v806
  %v815 = vmul.f32 %v771, %v807
  %v816 = vmul.f32 %v773, %v808
  %v817 = vmul.f32 %v775, %v809
  %v818 = vmul.f32 %v777, %v810
  %v819 = vmul.f32 %v779, %v811
  %v821 = vsel %vm731, %v812, 0
  %v824 = vsel %vm731, %v813, 0
  %v827 = vsel %vm731, %v814, 0
  %v830 = vsel %vm731, %v815, 0
  %v833 = vsel %vm731, %v816, 0
  %v836 = vsel %vm731, %v817, 0
  %v839 = vsel %vm731, %v818, 0
  %v842 = vsel %vm731, %v819, 0
  %844 = vmatprep.subr.mxu0 0.0
  %845 = vmatpush1.msra.mxu0 0.0
  %846 = vmatprep.subr.mxu0 0.0
  %847 = vmatpush1.msra.mxu0 0.0
  %848 = vmatprep.subr.mxu0 0.0
  %849 = vmatpush1.msra.mxu0 0.0
  %850 = vmatprep.subr.mxu0 0.0
  %851 = vmatpush1.msra.mxu0 0.0
  %852 = vmatprep.subr.mxu0 0.0
  %853 = vmatpush1.msra.mxu0 0.0
  %854 = vmatprep.subr.mxu0 0.0
  %855 = vmatpush1.msra.mxu0 0.0
  %856 = vmatprep.subr.mxu0 0.0
  %857 = vmatpush1.msra.mxu0 0.0
  %858 = vmatprep.subr.mxu0 0.0
  %859 = vmatpush1.msra.mxu0 0.0
  %860 = vmatprep.subr.mxu0 0.0
  %861 = vmatpush1.msra.mxu0 0.0
  %862 = vmatprep.subr.mxu0 0.0
  %863 = vmatpush1.msra.mxu0 0.0
  %864 = vmatprep.subr.mxu0 0.0
  %865 = vmatpush1.msra.mxu0 0.0
  %866 = vmatprep.subr.mxu0 0.0
  %867 = vmatpush1.msra.mxu0 0.0
  %868 = vmatprep.subr.mxu0 0.0
  %869 = vmatpush1.msra.mxu0 0.0
  %870 = vmatprep.subr.mxu0 0.0
  %871 = vmatpush1.msra.mxu0 0.0
  %872 = vmatprep.subr.mxu0 0.0
  %873 = vmatpush1.msra.mxu0 %v575
  %874 = vmatprep.subr.mxu0 0.0
  %875 = vmatpush1.msra.mxu0 %v570
  %876 = vmatprep.subr.mxu0 0.0
  %877 = vmatpush2.msra.mxu0 0.0
  %878 = vmatprep.subr.mxu0 0.0
  %879 = vmatpush2.msra.mxu0 0.0
  %880 = vmatprep.subr.mxu0 0.0
  %881 = vmatpush2.msra.mxu0 0.0
  %882 = vmatprep.subr.mxu0 0.0
  %883 = vmatpush2.msra.mxu0 0.0
  %884 = vmatprep.subr.mxu0 0.0
  %885 = vmatpush2.msra.mxu0 0.0
  %886 = vmatprep.subr.mxu0 0.0
  %887 = vmatpush2.msra.mxu0 0.0
  %888 = vmatprep.subr.mxu0 0.0
  %889 = vmatpush2.msra.mxu0 0.0
  %890 = vmatprep.subr.mxu0 0.0
  %891 = vmatpush2.msra.mxu0 0.0
  %892 = vmatprep.subr.mxu0 0.0
  %893 = vmatpush2.msra.mxu0 0.0
  %894 = vmatprep.subr.mxu0 0.0
  %895 = vmatpush2.msra.mxu0 0.0
  %896 = vmatprep.subr.mxu0 0.0
  %897 = vmatpush2.msra.mxu0 0.0
  %898 = vmatprep.subr.mxu0 0.0
  %899 = vmatpush2.msra.mxu0 0.0
  %900 = vmatprep.subr.mxu0 0.0
  %901 = vmatpush2.msra.mxu0 0.0
  %902 = vmatprep.subr.mxu0 0.0
  %903 = vmatpush2.msra.mxu0 0.0
  %904 = vmatprep.subr.mxu0 0.0
  %905 = vmatpush2.msra.mxu0 0.0
  %906 = vmatprep.subr.mxu0 0.0
  %907 = vmatpush2.msra.mxu0 0.0
  %908 = vmatprep.mubr.f32.mxu0 0.0
  %909 = vmatmul.mubr.f32.gmra.mxu0 %v821
  %v910 = vpop.f32.mrf.mxu0
  %v911 = vadd.f32 0.0, %v910
  %v912 = vpop.f32.mrf.mxu0
  %913 = vmatprep.mubr.f32.mxu0 0.0
  %914 = vmatmul.mubr.f32.gmra.mxu0 %v824
  %v915 = vpop.f32.mrf.mxu0
  %v916 = vadd.f32 0.0, %v915
  %v917 = vpop.f32.mrf.mxu0
  %918 = vmatprep.mubr.f32.mxu0 0.0
  %919 = vmatmul.mubr.f32.gmra.mxu0 %v827
  %v920 = vpop.f32.mrf.mxu0
  %v921 = vadd.f32 0.0, %v920
  %v922 = vpop.f32.mrf.mxu0
  %923 = vmatprep.mubr.f32.mxu0 0.0
  %924 = vmatmul.mubr.f32.gmra.mxu0 %v830
  %v925 = vpop.f32.mrf.mxu0
  %v926 = vadd.f32 0.0, %v925
  %v927 = vpop.f32.mrf.mxu0
  %928 = vmatprep.mubr.f32.mxu0 0.0
  %929 = vmatmul.mubr.f32.gmra.mxu0 %v833
  %v930 = vpop.f32.mrf.mxu0
  %v931 = vadd.f32 0.0, %v930
  %v932 = vpop.f32.mrf.mxu0
  %933 = vmatprep.mubr.f32.mxu0 0.0
  %934 = vmatmul.mubr.f32.gmra.mxu0 %v836
  %v935 = vpop.f32.mrf.mxu0
  %v936 = vadd.f32 0.0, %v935
  %v937 = vpop.f32.mrf.mxu0
  %938 = vmatprep.mubr.f32.mxu0 0.0
  %939 = vmatmul.mubr.f32.gmra.mxu0 %v839
  %v940 = vpop.f32.mrf.mxu0
  %v941 = vadd.f32 0.0, %v940
  %v942 = vpop.f32.mrf.mxu0
  %943 = vmatprep.mubr.f32.mxu0 0.0
  %944 = vmatmul.mubr.f32.gmra.mxu0 %v842
  %v945 = vpop.f32.mrf.mxu0
  %v946 = vadd.f32 0.0, %v945
  %v947 = vpop.f32.mrf.mxu0
  %948 = vdwg.mxu0
  %v950 = vsel %vm162, %v318, 0
  %v953 = vsel %vm162, %v323, 0
  %v956 = vsel %vm162, %v328, 0
  %v959 = vsel %vm162, %v333, 0
  %v962 = vsel %vm162, %v338, 0
  %v965 = vsel %vm162, %v343, 0
  %v968 = vsel %vm162, %v348, 0
  %v971 = vsel %vm162, %v353, 0
  %v974 = vsel %vm162, %v468, 0
  %v977 = vsel %vm162, %v473, 0
  %979 = vmatprep.subr.mxu0 0.0
  %980 = vmatpush1.xpose.msra.mxu0 0.0
  %981 = vmatprep.subr.mxu0 0.0
  %982 = vmatpush1.xpose.msra.mxu0 0.0
  %983 = vmatprep.subr.mxu0 0.0
  %984 = vmatpush1.xpose.msra.mxu0 0.0
  %985 = vmatprep.subr.mxu0 0.0
  %986 = vmatpush1.xpose.msra.mxu0 0.0
  %987 = vmatprep.subr.mxu0 0.0
  %988 = vmatpush1.xpose.msra.mxu0 0.0
  %989 = vmatprep.subr.mxu0 0.0
  %990 = vmatpush1.xpose.msra.mxu0 0.0
  %991 = vmatprep.subr.mxu0 0.0
  %992 = vmatpush1.xpose.msra.mxu0 0.0
  %993 = vmatprep.subr.mxu0 0.0
  %994 = vmatpush1.xpose.msra.mxu0 0.0
  %995 = vmatprep.subr.mxu0 0.0
  %996 = vmatpush1.xpose.msra.mxu0 0.0
  %997 = vmatprep.subr.mxu0 0.0
  %998 = vmatpush1.xpose.msra.mxu0 0.0
  %999 = vmatprep.subr.mxu0 0.0
  %1000 = vmatpush1.xpose.msra.mxu0 0.0
  %1001 = vmatprep.subr.mxu0 0.0
  %1002 = vmatpush1.xpose.msra.mxu0 0.0
  %1003 = vmatprep.subr.mxu0 0.0
  %1004 = vmatpush1.xpose.msra.mxu0 0.0
  %1005 = vmatprep.subr.mxu0 0.0
  %1006 = vmatpush1.xpose.msra.mxu0 0.0
  %1007 = vmatprep.subr.mxu0 0.0
  %1008 = vmatpush1.xpose.msra.mxu0 %v977
  %1009 = vmatprep.subr.mxu0 0.0
  %1010 = vmatpush1.xpose.msra.mxu0 %v974
  %1011 = vmatprep.subr.mxu0 0.0
  %1012 = vmatpush2.xpose.msra.mxu0 0.0
  %1013 = vmatprep.subr.mxu0 0.0
  %1014 = vmatpush2.xpose.msra.mxu0 0.0
  %1015 = vmatprep.subr.mxu0 0.0
  %1016 = vmatpush2.xpose.msra.mxu0 0.0
  %1017 = vmatprep.subr.mxu0 0.0
  %1018 = vmatpush2.xpose.msra.mxu0 0.0
  %1019 = vmatprep.subr.mxu0 0.0
  %1020 = vmatpush2.xpose.msra.mxu0 0.0
  %1021 = vmatprep.subr.mxu0 0.0
  %1022 = vmatpush2.xpose.msra.mxu0 0.0
  %1023 = vmatprep.subr.mxu0 0.0
  %1024 = vmatpush2.xpose.msra.mxu0 0.0
  %1025 = vmatprep.subr.mxu0 0.0
  %1026 = vmatpush2.xpose.msra.mxu0 0.0
  %1027 = vmatprep.subr.mxu0 0.0
  %1028 = vmatpush2.xpose.msra.mxu0 0.0
  %1029 = vmatprep.subr.mxu0 0.0
  %1030 = vmatpush2.xpose.msra.mxu0 0.0
  %1031 = vmatprep.subr.mxu0 0.0
  %1032 = vmatpush2.xpose.msra.mxu0 0.0
  %1033 = vmatprep.subr.mxu0 0.0
  %1034 = vmatpush2.xpose.msra.mxu0 0.0
  %1035 = vmatprep.subr.mxu0 0.0
  %1036 = vmatpush2.xpose.msra.mxu0 0.0
  %1037 = vmatprep.subr.mxu0 0.0
  %1038 = vmatpush2.xpose.msra.mxu0 0.0
  %1039 = vmatprep.subr.mxu0 0.0
  %1040 = vmatpush2.xpose.msra.mxu0 0.0
  %1041 = vmatprep.subr.mxu0 0.0
  %1042 = vmatpush2.xpose.msra.mxu0 0.0
  %1043 = vmatprep.mubr.f32.mxu0 0.0
  %1044 = vmatmul.mubr.f32.gmra.mxu0 %v950
  %v1045 = vpop.f32.mrf.mxu0
  %v1046 = vadd.f32 0.0, %v1045
  %v1047 = vpop.f32.mrf.mxu0
  %1048 = vmatprep.mubr.f32.mxu0 0.0
  %1049 = vmatmul.mubr.f32.gmra.mxu0 %v953
  %v1050 = vpop.f32.mrf.mxu0
  %v1051 = vadd.f32 0.0, %v1050
  %v1052 = vpop.f32.mrf.mxu0
  %1053 = vmatprep.mubr.f32.mxu0 0.0
  %1054 = vmatmul.mubr.f32.gmra.mxu0 %v956
  %v1055 = vpop.f32.mrf.mxu0
  %v1056 = vadd.f32 0.0, %v1055
  %v1057 = vpop.f32.mrf.mxu0
  %1058 = vmatprep.mubr.f32.mxu0 0.0
  %1059 = vmatmul.mubr.f32.gmra.mxu0 %v959
  %v1060 = vpop.f32.mrf.mxu0
  %v1061 = vadd.f32 0.0, %v1060
  %v1062 = vpop.f32.mrf.mxu0
  %1063 = vmatprep.mubr.f32.mxu0 0.0
  %1064 = vmatmul.mubr.f32.gmra.mxu0 %v962
  %v1065 = vpop.f32.mrf.mxu0
  %v1066 = vadd.f32 0.0, %v1065
  %v1067 = vpop.f32.mrf.mxu0
  %1068 = vmatprep.mubr.f32.mxu0 0.0
  %1069 = vmatmul.mubr.f32.gmra.mxu0 %v965
  %v1070 = vpop.f32.mrf.mxu0
  %v1071 = vadd.f32 0.0, %v1070
  %v1072 = vpop.f32.mrf.mxu0
  %1073 = vmatprep.mubr.f32.mxu0 0.0
  %1074 = vmatmul.mubr.f32.gmra.mxu0 %v968
  %v1075 = vpop.f32.mrf.mxu0
  %v1076 = vadd.f32 0.0, %v1075
  %v1077 = vpop.f32.mrf.mxu0
  %1078 = vmatprep.mubr.f32.mxu0 0.0
  %1079 = vmatmul.mubr.f32.gmra.mxu0 %v971
  %v1080 = vpop.f32.mrf.mxu0
  %v1081 = vadd.f32 0.0, %v1080
  %v1082 = vpop.f32.mrf.mxu0
  %1083 = vdwg.mxu0
  %v1084 = vmul.f32 %v1046, 0.17677669
  %v1085 = vmul.f32 %v1051, 0.17677669
  %v1086 = vmul.f32 %v1056, 0.17677669
  %v1087 = vmul.f32 %v1061, 0.17677669
  %v1088 = vmul.f32 %v1066, 0.17677669
  %v1089 = vmul.f32 %v1071, 0.17677669
  %v1090 = vmul.f32 %v1076, 0.17677669
  %v1091 = vmul.f32 %v1081, 0.17677669
  %v1092 = vsel %vm731, %v1084, -inf
  %1093 = vmax.xlane.f32.xlu0 %v1092
  %v1094 = vpop.xlane.xlu0 %1093
  %v1095 = vsel %vm731, %v1085, -inf
  %1096 = vmax.xlane.f32.xlu0 %v1095
  %v1097 = vpop.xlane.xlu0 %1096
  %v1098 = vsel %vm731, %v1086, -inf
  %1099 = vmax.xlane.f32.xlu0 %v1098
  %v1100 = vpop.xlane.xlu0 %1099
  %v1101 = vsel %vm731, %v1087, -inf
  %1102 = vmax.xlane.f32.xlu0 %v1101
  %v1103 = vpop.xlane.xlu0 %1102
  %v1104 = vsel %vm731, %v1088, -inf
  %1105 = vmax.xlane.f32.xlu0 %v1104
  %v1106 = vpop.xlane.xlu0 %1105
  %v1107 = vsel %vm731, %v1089, -inf
  %1108 = vmax.xlane.f32.xlu0 %v1107
  %v1109 = vpop.xlane.xlu0 %1108
  %v1110 = vsel %vm731, %v1090, -inf
  %1111 = vmax.xlane.f32.xlu0 %v1110
  %v1112 = vpop.xlane.xlu0 %1111
  %v1113 = vsel %vm731, %v1091, -inf
  %1114 = vmax.xlane.f32.xlu0 %v1113
  %v1115 = vpop.xlane.xlu0 %1114
  %v1116 = vsub.f32 %v1084, %v1094
  %v1117 = vsub.f32 %v1085, %v1097
  %v1118 = vsub.f32 %v1086, %v1100
  %v1119 = vsub.f32 %v1087, %v1103
  %v1120 = vsub.f32 %v1088, %v1106
  %v1121 = vsub.f32 %v1089, %v1109
  %v1122 = vsub.f32 %v1090, %v1112
  %v1123 = vsub.f32 %v1091, %v1115
  %v1124 = vmul.f32 %v1116, 1.442695
  %v1125 = vpow.pop %v1124
  %v1126 = vmul.f32 %v1117, 1.442695
  %v1127 = vpow.pop %v1126
  %v1128 = vmul.f32 %v1118, 1.442695
  %v1129 = vpow.pop %v1128
  %v1130 = vmul.f32 %v1119, 1.442695
  %v1131 = vpow.pop %v1130
  %v1132 = vmul.f32 %v1120, 1.442695
  %v1133 = vpow.pop %v1132
  %v1134 = vmul.f32 %v1121, 1.442695
  %v1135 = vpow.pop %v1134
  %v1136 = vmul.f32 %v1122, 1.442695
  %v1137 = vpow.pop %v1136
  %v1138 = vmul.f32 %v1123, 1.442695
  %v1139 = vpow.pop %v1138
  %v1140 = vsel %vm731, %v1125, 0.0
  %1141 = vadd.xlane.f32.xlu0 %v1140
  %v1142 = vpop.xlane.xlu0 %1141
  %v1143 = vsel %vm731, %v1127, 0.0
  %1144 = vadd.xlane.f32.xlu0 %v1143
  %v1145 = vpop.xlane.xlu0 %1144
  %v1146 = vsel %vm731, %v1129, 0.0
  %1147 = vadd.xlane.f32.xlu0 %v1146
  %v1148 = vpop.xlane.xlu0 %1147
  %v1149 = vsel %vm731, %v1131, 0.0
  %1150 = vadd.xlane.f32.xlu0 %v1149
  %v1151 = vpop.xlane.xlu0 %1150
  %v1152 = vsel %vm731, %v1133, 0.0
  %1153 = vadd.xlane.f32.xlu0 %v1152
  %v1154 = vpop.xlane.xlu0 %1153
  %v1155 = vsel %vm731, %v1135, 0.0
  %1156 = vadd.xlane.f32.xlu0 %v1155
  %v1157 = vpop.xlane.xlu0 %1156
  %v1158 = vsel %vm731, %v1137, 0.0
  %1159 = vadd.xlane.f32.xlu0 %v1158
  %v1160 = vpop.xlane.xlu0 %1159
  %v1161 = vsel %vm731, %v1139, 0.0
  %1162 = vadd.xlane.f32.xlu0 %v1161
  %v1163 = vpop.xlane.xlu0 %1162
  %v1164 = vrcp.pop %v1142
  %v1165 = vrcp.pop %v1145
  %v1166 = vrcp.pop %v1148
  %v1167 = vrcp.pop %v1151
  %v1168 = vrcp.pop %v1154
  %v1169 = vrcp.pop %v1157
  %v1170 = vrcp.pop %v1160
  %v1171 = vrcp.pop %v1163
  %v1172 = vmul.f32 %v1125, %v1164
  %v1173 = vmul.f32 %v1127, %v1165
  %v1174 = vmul.f32 %v1129, %v1166
  %v1175 = vmul.f32 %v1131, %v1167
  %v1176 = vmul.f32 %v1133, %v1168
  %v1177 = vmul.f32 %v1135, %v1169
  %v1178 = vmul.f32 %v1137, %v1170
  %v1179 = vmul.f32 %v1139, %v1171
  %v1181 = vsel %vm731, %v1172, 0
  %v1184 = vsel %vm731, %v1173, 0
  %v1187 = vsel %vm731, %v1174, 0
  %v1190 = vsel %vm731, %v1175, 0
  %v1193 = vsel %vm731, %v1176, 0
  %v1196 = vsel %vm731, %v1177, 0
  %v1199 = vsel %vm731, %v1178, 0
  %v1202 = vsel %vm731, %v1179, 0
  %1204 = vmatprep.subr.mxu0 0.0
  %1205 = vmatpush1.msra.mxu0 0.0
  %1206 = vmatprep.subr.mxu0 0.0
  %1207 = vmatpush1.msra.mxu0 0.0
  %1208 = vmatprep.subr.mxu0 0.0
  %1209 = vmatpush1.msra.mxu0 0.0
  %1210 = vmatprep.subr.mxu0 0.0
  %1211 = vmatpush1.msra.mxu0 0.0
  %1212 = vmatprep.subr.mxu0 0.0
  %1213 = vmatpush1.msra.mxu0 0.0
  %1214 = vmatprep.subr.mxu0 0.0
  %1215 = vmatpush1.msra.mxu0 0.0
  %1216 = vmatprep.subr.mxu0 0.0
  %1217 = vmatpush1.msra.mxu0 0.0
  %1218 = vmatprep.subr.mxu0 0.0
  %1219 = vmatpush1.msra.mxu0 0.0
  %1220 = vmatprep.subr.mxu0 0.0
  %1221 = vmatpush1.msra.mxu0 0.0
  %1222 = vmatprep.subr.mxu0 0.0
  %1223 = vmatpush1.msra.mxu0 0.0
  %1224 = vmatprep.subr.mxu0 0.0
  %1225 = vmatpush1.msra.mxu0 0.0
  %1226 = vmatprep.subr.mxu0 0.0
  %1227 = vmatpush1.msra.mxu0 0.0
  %1228 = vmatprep.subr.mxu0 0.0
  %1229 = vmatpush1.msra.mxu0 0.0
  %1230 = vmatprep.subr.mxu0 0.0
  %1231 = vmatpush1.msra.mxu0 0.0
  %1232 = vmatprep.subr.mxu0 0.0
  %1233 = vmatpush1.msra.mxu0 %v585
  %1234 = vmatprep.subr.mxu0 0.0
  %1235 = vmatpush1.msra.mxu0 %v580
  %1236 = vmatprep.subr.mxu0 0.0
  %1237 = vmatpush2.msra.mxu0 0.0
  %1238 = vmatprep.subr.mxu0 0.0
  %1239 = vmatpush2.msra.mxu0 0.0
  %1240 = vmatprep.subr.mxu0 0.0
  %1241 = vmatpush2.msra.mxu0 0.0
  %1242 = vmatprep.subr.mxu0 0.0
  %1243 = vmatpush2.msra.mxu0 0.0
  %1244 = vmatprep.subr.mxu0 0.0
  %1245 = vmatpush2.msra.mxu0 0.0
  %1246 = vmatprep.subr.mxu0 0.0
  %1247 = vmatpush2.msra.mxu0 0.0
  %1248 = vmatprep.subr.mxu0 0.0
  %1249 = vmatpush2.msra.mxu0 0.0
  %1250 = vmatprep.subr.mxu0 0.0
  %1251 = vmatpush2.msra.mxu0 0.0
  %1252 = vmatprep.subr.mxu0 0.0
  %1253 = vmatpush2.msra.mxu0 0.0
  %1254 = vmatprep.subr.mxu0 0.0
  %1255 = vmatpush2.msra.mxu0 0.0
  %1256 = vmatprep.subr.mxu0 0.0
  %1257 = vmatpush2.msra.mxu0 0.0
  %1258 = vmatprep.subr.mxu0 0.0
  %1259 = vmatpush2.msra.mxu0 0.0
  %1260 = vmatprep.subr.mxu0 0.0
  %1261 = vmatpush2.msra.mxu0 0.0
  %1262 = vmatprep.subr.mxu0 0.0
  %1263 = vmatpush2.msra.mxu0 0.0
  %1264 = vmatprep.subr.mxu0 0.0
  %1265 = vmatpush2.msra.mxu0 0.0
  %1266 = vmatprep.subr.mxu0 0.0
  %1267 = vmatpush2.msra.mxu0 0.0
  %1268 = vmatprep.mubr.f32.mxu0 0.0
  %1269 = vmatmul.mubr.f32.gmra.mxu0 %v1181
  %v1270 = vpop.f32.mrf.mxu0
  %v1271 = vadd.f32 0.0, %v1270
  %v1272 = vpop.f32.mrf.mxu0
  %1273 = vmatprep.mubr.f32.mxu0 0.0
  %1274 = vmatmul.mubr.f32.gmra.mxu0 %v1184
  %v1275 = vpop.f32.mrf.mxu0
  %v1276 = vadd.f32 0.0, %v1275
  %v1277 = vpop.f32.mrf.mxu0
  %1278 = vmatprep.mubr.f32.mxu0 0.0
  %1279 = vmatmul.mubr.f32.gmra.mxu0 %v1187
  %v1280 = vpop.f32.mrf.mxu0
  %v1281 = vadd.f32 0.0, %v1280
  %v1282 = vpop.f32.mrf.mxu0
  %1283 = vmatprep.mubr.f32.mxu0 0.0
  %1284 = vmatmul.mubr.f32.gmra.mxu0 %v1190
  %v1285 = vpop.f32.mrf.mxu0
  %v1286 = vadd.f32 0.0, %v1285
  %v1287 = vpop.f32.mrf.mxu0
  %1288 = vmatprep.mubr.f32.mxu0 0.0
  %1289 = vmatmul.mubr.f32.gmra.mxu0 %v1193
  %v1290 = vpop.f32.mrf.mxu0
  %v1291 = vadd.f32 0.0, %v1290
  %v1292 = vpop.f32.mrf.mxu0
  %1293 = vmatprep.mubr.f32.mxu0 0.0
  %1294 = vmatmul.mubr.f32.gmra.mxu0 %v1196
  %v1295 = vpop.f32.mrf.mxu0
  %v1296 = vadd.f32 0.0, %v1295
  %v1297 = vpop.f32.mrf.mxu0
  %1298 = vmatprep.mubr.f32.mxu0 0.0
  %1299 = vmatmul.mubr.f32.gmra.mxu0 %v1199
  %v1300 = vpop.f32.mrf.mxu0
  %v1301 = vadd.f32 0.0, %v1300
  %v1302 = vpop.f32.mrf.mxu0
  %1303 = vmatprep.mubr.f32.mxu0 0.0
  %1304 = vmatmul.mubr.f32.gmra.mxu0 %v1202
  %v1305 = vpop.f32.mrf.mxu0
  %v1306 = vadd.f32 0.0, %v1305
  %v1307 = vpop.f32.mrf.mxu0
  %1308 = vdwg.mxu0
  %1309 = vrot.lane.b32.xlu0 %v120, 32
  %v1310 = vpop.permute.xlu0 %1309
  %1311 = vrot.lane.b32.xlu0 %v121, 32
  %v1312 = vpop.permute.xlu0 %1311
  %1313 = vrot.lane.b32.xlu0 %v122, 32
  %v1314 = vpop.permute.xlu0 %1313
  %1315 = vrot.lane.b32.xlu0 %v123, 32
  %v1316 = vpop.permute.xlu0 %1315
  %1321 = vrot.lane.b32.xlu0 %v160, 32
  %v1322 = vpop.permute.xlu0 %1321
  %v1325 = vsel %vm162, %v911, 0
  %v1328 = vsel %vm162, %v916, 0
  %v1331 = vsel %vm162, %v921, 0
  %v1334 = vsel %vm162, %v926, 0
  %v1337 = vsel %vm162, %v931, 0
  %v1340 = vsel %vm162, %v936, 0
  %v1343 = vsel %vm162, %v941, 0
  %v1346 = vsel %vm162, %v946, 0
  %v1349 = vsel %vm162, %v1271, 0
  %v1352 = vsel %vm162, %v1276, 0
  %v1355 = vsel %vm162, %v1281, 0
  %v1358 = vsel %vm162, %v1286, 0
  %v1361 = vsel %vm162, %v1291, 0
  %v1364 = vsel %vm162, %v1296, 0
  %v1367 = vsel %vm162, %v1301, 0
  %v1370 = vsel %vm162, %v1306, 0
  %1372 = vmatprep.subr.mxu0 0.0
  %1373 = vmatpush1.msra.mxu0 0.0
  %1374 = vmatprep.subr.mxu0 0.0
  %1375 = vmatpush1.msra.mxu0 0.0
  %1376 = vmatprep.subr.mxu0 0.0
  %1377 = vmatpush1.msra.mxu0 0.0
  %1378 = vmatprep.subr.mxu0 0.0
  %1379 = vmatpush1.msra.mxu0 0.0
  %1380 = vmatprep.subr.mxu0 0.0
  %1381 = vmatpush1.msra.mxu0 0.0
  %1382 = vmatprep.subr.mxu0 0.0
  %1383 = vmatpush1.msra.mxu0 0.0
  %1384 = vmatprep.subr.mxu0 0.0
  %1385 = vmatpush1.msra.mxu0 0.0
  %1386 = vmatprep.subr.mxu0 0.0
  %1387 = vmatpush1.msra.mxu0 0.0
  %1388 = vmatprep.subr.mxu0 0.0
  %1389 = vmatpush1.msra.mxu0 0.0
  %1390 = vmatprep.subr.mxu0 0.0
  %1391 = vmatpush1.msra.mxu0 0.0
  %1392 = vmatprep.subr.mxu0 0.0
  %1393 = vmatpush1.msra.mxu0 0.0
  %1394 = vmatprep.subr.mxu0 0.0
  %1395 = vmatpush1.msra.mxu0 0.0
  %1396 = vmatprep.subr.mxu0 0.0
  %1397 = vmatpush1.msra.mxu0 %v1316
  %1398 = vmatprep.subr.mxu0 0.0
  %1399 = vmatpush1.msra.mxu0 %v1314
  %1400 = vmatprep.subr.mxu0 0.0
  %1401 = vmatpush1.msra.mxu0 %v1312
  %1402 = vmatprep.subr.mxu0 0.0
  %1403 = vmatpush1.msra.mxu0 %v1310
  %1404 = vmatprep.subr.mxu0 0.0
  %1405 = vmatpush2.msra.mxu0 0.0
  %1406 = vmatprep.subr.mxu0 0.0
  %1407 = vmatpush2.msra.mxu0 0.0
  %1408 = vmatprep.subr.mxu0 0.0
  %1409 = vmatpush2.msra.mxu0 0.0
  %1410 = vmatprep.subr.mxu0 0.0
  %1411 = vmatpush2.msra.mxu0 0.0
  %1412 = vmatprep.subr.mxu0 0.0
  %1413 = vmatpush2.msra.mxu0 0.0
  %1414 = vmatprep.subr.mxu0 0.0
  %1415 = vmatpush2.msra.mxu0 0.0
  %1416 = vmatprep.subr.mxu0 0.0
  %1417 = vmatpush2.msra.mxu0 0.0
  %1418 = vmatprep.subr.mxu0 0.0
  %1419 = vmatpush2.msra.mxu0 0.0
  %1420 = vmatprep.subr.mxu0 0.0
  %1421 = vmatpush2.msra.mxu0 0.0
  %1422 = vmatprep.subr.mxu0 0.0
  %1423 = vmatpush2.msra.mxu0 0.0
  %1424 = vmatprep.subr.mxu0 0.0
  %1425 = vmatpush2.msra.mxu0 0.0
  %1426 = vmatprep.subr.mxu0 0.0
  %1427 = vmatpush2.msra.mxu0 0.0
  %1428 = vmatprep.subr.mxu0 0.0
  %1429 = vmatpush2.msra.mxu0 0.0
  %1430 = vmatprep.subr.mxu0 0.0
  %1431 = vmatpush2.msra.mxu0 0.0
  %1432 = vmatprep.subr.mxu0 0.0
  %1433 = vmatpush2.msra.mxu0 0.0
  %1434 = vmatprep.subr.mxu0 0.0
  %1435 = vmatpush2.msra.mxu0 0.0
  %1436 = vmatprep.mubr.f32.mxu0 0.0
  %1437 = vmatmul.mubr.f32.gmra.mxu0 %v1325
  %v1438 = vpop.f32.mrf.mxu0
  %v1439 = vadd.f32 %v1322, %v1438
  %v1440 = vpop.f32.mrf.mxu0
  %1441 = vmatprep.mubr.f32.mxu0 0.0
  %1442 = vmatmul.mubr.f32.gmra.mxu0 %v1328
  %v1443 = vpop.f32.mrf.mxu0
  %v1444 = vadd.f32 %v1322, %v1443
  %v1445 = vpop.f32.mrf.mxu0
  %1446 = vmatprep.mubr.f32.mxu0 0.0
  %1447 = vmatmul.mubr.f32.gmra.mxu0 %v1331
  %v1448 = vpop.f32.mrf.mxu0
  %v1449 = vadd.f32 %v1322, %v1448
  %v1450 = vpop.f32.mrf.mxu0
  %1451 = vmatprep.mubr.f32.mxu0 0.0
  %1452 = vmatmul.mubr.f32.gmra.mxu0 %v1334
  %v1453 = vpop.f32.mrf.mxu0
  %v1454 = vadd.f32 %v1322, %v1453
  %v1455 = vpop.f32.mrf.mxu0
  %1456 = vmatprep.mubr.f32.mxu0 0.0
  %1457 = vmatmul.mubr.f32.gmra.mxu0 %v1337
  %v1458 = vpop.f32.mrf.mxu0
  %v1459 = vadd.f32 %v1322, %v1458
  %v1460 = vpop.f32.mrf.mxu0
  %1461 = vmatprep.mubr.f32.mxu0 0.0
  %1462 = vmatmul.mubr.f32.gmra.mxu0 %v1340
  %v1463 = vpop.f32.mrf.mxu0
  %v1464 = vadd.f32 %v1322, %v1463
  %v1465 = vpop.f32.mrf.mxu0
  %1466 = vmatprep.mubr.f32.mxu0 0.0
  %1467 = vmatmul.mubr.f32.gmra.mxu0 %v1343
  %v1468 = vpop.f32.mrf.mxu0
  %v1469 = vadd.f32 %v1322, %v1468
  %v1470 = vpop.f32.mrf.mxu0
  %1471 = vmatprep.mubr.f32.mxu0 0.0
  %1472 = vmatmul.mubr.f32.gmra.mxu0 %v1346
  %v1473 = vpop.f32.mrf.mxu0
  %v1474 = vadd.f32 %v1322, %v1473
  %v1475 = vpop.f32.mrf.mxu0
  %1476 = vmatprep.mubr.f32.mxu0 0.0
  %1477 = vmatmul.mubr.f32.gmra.mxu0 %v1349
  %v1478 = vpop.f32.mrf.mxu0
  %v1479 = vadd.f32 %v1322, %v1478
  %v1480 = vpop.f32.mrf.mxu0
  %1481 = vmatprep.mubr.f32.mxu0 0.0
  %1482 = vmatmul.mubr.f32.gmra.mxu0 %v1352
  %v1483 = vpop.f32.mrf.mxu0
  %v1484 = vadd.f32 %v1322, %v1483
  %v1485 = vpop.f32.mrf.mxu0
  %1486 = vmatprep.mubr.f32.mxu0 0.0
  %1487 = vmatmul.mubr.f32.gmra.mxu0 %v1355
  %v1488 = vpop.f32.mrf.mxu0
  %v1489 = vadd.f32 %v1322, %v1488
  %v1490 = vpop.f32.mrf.mxu0
  %1491 = vmatprep.mubr.f32.mxu0 0.0
  %1492 = vmatmul.mubr.f32.gmra.mxu0 %v1358
  %v1493 = vpop.f32.mrf.mxu0
  %v1494 = vadd.f32 %v1322, %v1493
  %v1495 = vpop.f32.mrf.mxu0
  %1496 = vmatprep.mubr.f32.mxu0 0.0
  %1497 = vmatmul.mubr.f32.gmra.mxu0 %v1361
  %v1498 = vpop.f32.mrf.mxu0
  %v1499 = vadd.f32 %v1322, %v1498
  %v1500 = vpop.f32.mrf.mxu0
  %1501 = vmatprep.mubr.f32.mxu0 0.0
  %1502 = vmatmul.mubr.f32.gmra.mxu0 %v1364
  %v1503 = vpop.f32.mrf.mxu0
  %v1504 = vadd.f32 %v1322, %v1503
  %v1505 = vpop.f32.mrf.mxu0
  %1506 = vmatprep.mubr.f32.mxu0 0.0
  %1507 = vmatmul.mubr.f32.gmra.mxu0 %v1367
  %v1508 = vpop.f32.mrf.mxu0
  %v1509 = vadd.f32 %v1322, %v1508
  %v1510 = vpop.f32.mrf.mxu0
  %1511 = vmatprep.mubr.f32.mxu0 0.0
  %1512 = vmatmul.mubr.f32.gmra.mxu0 %v1370
  %v1513 = vpop.f32.mrf.mxu0
  %v1514 = vadd.f32 %v1322, %v1513
  %v1515 = vpop.f32.mrf.mxu0
  %1516 = vdwg.mxu0
  %v1517 = vadd.f32 %v84, %v1439
  %v1518 = vadd.f32 %v85, %v1444
  %v1519 = vadd.f32 %v86, %v1449
  %v1520 = vadd.f32 %v87, %v1454
  %v1521 = vadd.f32 %v88, %v1459
  %v1522 = vadd.f32 %v89, %v1464
  %v1523 = vadd.f32 %v90, %v1469
  %v1524 = vadd.f32 %v91, %v1474
  %v1525 = vadd.f32 %v92, %v1479
  %v1526 = vadd.f32 %v93, %v1484
  %v1527 = vadd.f32 %v94, %v1489
  %v1528 = vadd.f32 %v95, %v1494
  %v1529 = vadd.f32 %v96, %v1499
  %v1530 = vadd.f32 %v97, %v1504
  %v1531 = vadd.f32 %v98, %v1509
  %v1532 = vadd.f32 %v99, %v1514
  %v1533 = vsel %vm162, %v1517, 0.0
  %1534 = vadd.xlane.f32.xlu0 %v1533
  %v1535 = vpop.xlane.xlu0 %1534
  %v1536 = vsel %vm162, %v1518, 0.0
  %1537 = vadd.xlane.f32.xlu0 %v1536
  %v1538 = vpop.xlane.xlu0 %1537
  %v1539 = vsel %vm162, %v1519, 0.0
  %1540 = vadd.xlane.f32.xlu0 %v1539
  %v1541 = vpop.xlane.xlu0 %1540
  %v1542 = vsel %vm162, %v1520, 0.0
  %1543 = vadd.xlane.f32.xlu0 %v1542
  %v1544 = vpop.xlane.xlu0 %1543
  %v1545 = vsel %vm162, %v1521, 0.0
  %1546 = vadd.xlane.f32.xlu0 %v1545
  %v1547 = vpop.xlane.xlu0 %1546
  %v1548 = vsel %vm162, %v1522, 0.0
  %1549 = vadd.xlane.f32.xlu0 %v1548
  %v1550 = vpop.xlane.xlu0 %1549
  %v1551 = vsel %vm162, %v1523, 0.0
  %1552 = vadd.xlane.f32.xlu0 %v1551
  %v1553 = vpop.xlane.xlu0 %1552
  %v1554 = vsel %vm162, %v1524, 0.0
  %1555 = vadd.xlane.f32.xlu0 %v1554
  %v1556 = vpop.xlane.xlu0 %1555
  %v1557 = vsel %vm162, %v1525, 0.0
  %1558 = vadd.xlane.f32.xlu0 %v1557
  %v1559 = vpop.xlane.xlu0 %1558
  %v1560 = vsel %vm162, %v1526, 0.0
  %1561 = vadd.xlane.f32.xlu0 %v1560
  %v1562 = vpop.xlane.xlu0 %1561
  %v1563 = vsel %vm162, %v1527, 0.0
  %1564 = vadd.xlane.f32.xlu0 %v1563
  %v1565 = vpop.xlane.xlu0 %1564
  %v1566 = vsel %vm162, %v1528, 0.0
  %1567 = vadd.xlane.f32.xlu0 %v1566
  %v1568 = vpop.xlane.xlu0 %1567
  %v1569 = vsel %vm162, %v1529, 0.0
  %1570 = vadd.xlane.f32.xlu0 %v1569
  %v1571 = vpop.xlane.xlu0 %1570
  %v1572 = vsel %vm162, %v1530, 0.0
  %1573 = vadd.xlane.f32.xlu0 %v1572
  %v1574 = vpop.xlane.xlu0 %1573
  %v1575 = vsel %vm162, %v1531, 0.0
  %1576 = vadd.xlane.f32.xlu0 %v1575
  %v1577 = vpop.xlane.xlu0 %1576
  %v1578 = vsel %vm162, %v1532, 0.0
  %1579 = vadd.xlane.f32.xlu0 %v1578
  %v1580 = vpop.xlane.xlu0 %1579
  %v1581 = vrcp.pop 32.0
  %v1582 = vmul.f32 %v1535, %v1581
  %v1583 = vmul.f32 %v1538, %v1581
  %v1584 = vmul.f32 %v1541, %v1581
  %v1585 = vmul.f32 %v1544, %v1581
  %v1586 = vmul.f32 %v1547, %v1581
  %v1587 = vmul.f32 %v1550, %v1581
  %v1588 = vmul.f32 %v1553, %v1581
  %v1589 = vmul.f32 %v1556, %v1581
  %v1590 = vmul.f32 %v1559, %v1581
  %v1591 = vmul.f32 %v1562, %v1581
  %v1592 = vmul.f32 %v1565, %v1581
  %v1593 = vmul.f32 %v1568, %v1581
  %v1594 = vmul.f32 %v1571, %v1581
  %v1595 = vmul.f32 %v1574, %v1581
  %v1596 = vmul.f32 %v1577, %v1581
  %v1597 = vmul.f32 %v1580, %v1581
  %v1598 = vsub.f32 %v1517, %v1582
  %v1599 = vsub.f32 %v1518, %v1583
  %v1600 = vsub.f32 %v1519, %v1584
  %v1601 = vsub.f32 %v1520, %v1585
  %v1602 = vsub.f32 %v1521, %v1586
  %v1603 = vsub.f32 %v1522, %v1587
  %v1604 = vsub.f32 %v1523, %v1588
  %v1605 = vsub.f32 %v1524, %v1589
  %v1606 = vsub.f32 %v1525, %v1590
  %v1607 = vsub.f32 %v1526, %v1591
  %v1608 = vsub.f32 %v1527, %v1592
  %v1609 = vsub.f32 %v1528, %v1593
  %v1610 = vsub.f32 %v1529, %v1594
  %v1611 = vsub.f32 %v1530, %v1595
  %v1612 = vsub.f32 %v1531, %v1596
  %v1613 = vsub.f32 %v1532, %v1597
  %v1614 = vmul.f32 %v1598, %v1598
  %v1615 = vmul.f32 %v1599, %v1599
  %v1616 = vmul.f32 %v1600, %v1600
  %v1617 = vmul.f32 %v1601, %v1601
  %v1618 = vmul.f32 %v1602, %v1602
  %v1619 = vmul.f32 %v1603, %v1603
  %v1620 = vmul.f32 %v1604, %v1604
  %v1621 = vmul.f32 %v1605, %v1605
  %v1622 = vmul.f32 %v1606, %v1606
  %v1623 = vmul.f32 %v1607, %v1607
  %v1624 = vmul.f32 %v1608, %v1608
  %v1625 = vmul.f32 %v1609, %v1609
  %v1626 = vmul.f32 %v1610, %v1610
  %v1627 = vmul.f32 %v1611, %v1611
  %v1628 = vmul.f32 %v1612, %v1612
  %v1629 = vmul.f32 %v1613, %v1613
  %v1630 = vsel %vm162, %v1614, 0.0
  %1631 = vadd.xlane.f32.xlu0 %v1630
  %v1632 = vpop.xlane.xlu0 %1631
  %v1633 = vsel %vm162, %v1615, 0.0
  %1634 = vadd.xlane.f32.xlu0 %v1633
  %v1635 = vpop.xlane.xlu0 %1634
  %v1636 = vsel %vm162, %v1616, 0.0
  %1637 = vadd.xlane.f32.xlu0 %v1636
  %v1638 = vpop.xlane.xlu0 %1637
  %v1639 = vsel %vm162, %v1617, 0.0
  %1640 = vadd.xlane.f32.xlu0 %v1639
  %v1641 = vpop.xlane.xlu0 %1640
  %v1642 = vsel %vm162, %v1618, 0.0
  %1643 = vadd.xlane.f32.xlu0 %v1642
  %v1644 = vpop.xlane.xlu0 %1643
  %v1645 = vsel %vm162, %v1619, 0.0
  %1646 = vadd.xlane.f32.xlu0 %v1645
  %v1647 = vpop.xlane.xlu0 %1646
  %v1648 = vsel %vm162, %v1620, 0.0
  %1649 = vadd.xlane.f32.xlu0 %v1648
  %v1650 = vpop.xlane.xlu0 %1649
  %v1651 = vsel %vm162, %v1621, 0.0
  %1652 = vadd.xlane.f32.xlu0 %v1651
  %v1653 = vpop.xlane.xlu0 %1652
  %v1654 = vsel %vm162, %v1622, 0.0
  %1655 = vadd.xlane.f32.xlu0 %v1654
  %v1656 = vpop.xlane.xlu0 %1655
  %v1657 = vsel %vm162, %v1623, 0.0
  %1658 = vadd.xlane.f32.xlu0 %v1657
  %v1659 = vpop.xlane.xlu0 %1658
  %v1660 = vsel %vm162, %v1624, 0.0
  %1661 = vadd.xlane.f32.xlu0 %v1660
  %v1662 = vpop.xlane.xlu0 %1661
  %v1663 = vsel %vm162, %v1625, 0.0
  %1664 = vadd.xlane.f32.xlu0 %v1663
  %v1665 = vpop.xlane.xlu0 %1664
  %v1666 = vsel %vm162, %v1626, 0.0
  %1667 = vadd.xlane.f32.xlu0 %v1666
  %v1668 = vpop.xlane.xlu0 %1667
  %v1669 = vsel %vm162, %v1627, 0.0
  %1670 = vadd.xlane.f32.xlu0 %v1669
  %v1671 = vpop.xlane.xlu0 %1670
  %v1672 = vsel %vm162, %v1628, 0.0
  %1673 = vadd.xlane.f32.xlu0 %v1672
  %v1674 = vpop.xlane.xlu0 %1673
  %v1675 = vsel %vm162, %v1629, 0.0
  %1676 = vadd.xlane.f32.xlu0 %v1675
  %v1677 = vpop.xlane.xlu0 %1676
  %v1678 = vmul.f32 %v1632, %v1581
  %v1679 = vmul.f32 %v1635, %v1581
  %v1680 = vmul.f32 %v1638, %v1581
  %v1681 = vmul.f32 %v1641, %v1581
  %v1682 = vmul.f32 %v1644, %v1581
  %v1683 = vmul.f32 %v1647, %v1581
  %v1684 = vmul.f32 %v1650, %v1581
  %v1685 = vmul.f32 %v1653, %v1581
  %v1686 = vmul.f32 %v1656, %v1581
  %v1687 = vmul.f32 %v1659, %v1581
  %v1688 = vmul.f32 %v1662, %v1581
  %v1689 = vmul.f32 %v1665, %v1581
  %v1690 = vmul.f32 %v1668, %v1581
  %v1691 = vmul.f32 %v1671, %v1581
  %v1692 = vmul.f32 %v1674, %v1581
  %v1693 = vmul.f32 %v1677, %v1581
  %v1694 = vadd.f32 %v1678, 1e-05
  %v1695 = vadd.f32 %v1679, 1e-05
  %v1696 = vadd.f32 %v1680, 1e-05
  %v1697 = vadd.f32 %v1681, 1e-05
  %v1698 = vadd.f32 %v1682, 1e-05
  %v1699 = vadd.f32 %v1683, 1e-05
  %v1700 = vadd.f32 %v1684, 1e-05
  %v1701 = vadd.f32 %v1685, 1e-05
  %v1702 = vadd.f32 %v1686, 1e-05
  %v1703 = vadd.f32 %v1687, 1e-05
  %v1704 = vadd.f32 %v1688, 1e-05
  %v1705 = vadd.f32 %v1689, 1e-05
  %v1706 = vadd.f32 %v1690, 1e-05
  %v1707 = vadd.f32 %v1691, 1e-05
  %v1708 = vadd.f32 %v1692, 1e-05
  %v1709 = vadd.f32 %v1693, 1e-05
  %v1710 = vrsqrt.pop %v1694
  %v1711 = vrsqrt.pop %v1695
  %v1712 = vrsqrt.pop %v1696
  %v1713 = vrsqrt.pop %v1697
  %v1714 = vrsqrt.pop %v1698
  %v1715 = vrsqrt.pop %v1699
  %v1716 = vrsqrt.pop %v1700
  %v1717 = vrsqrt.pop %v1701
  %v1718 = vrsqrt.pop %v1702
  %v1719 = vrsqrt.pop %v1703
  %v1720 = vrsqrt.pop %v1704
  %v1721 = vrsqrt.pop %v1705
  %v1722 = vrsqrt.pop %v1706
  %v1723 = vrsqrt.pop %v1707
  %v1724 = vrsqrt.pop %v1708
  %v1725 = vrsqrt.pop %v1709
  %v1726 = vmul.f32 %v1598, %v1710
  %v1727 = vmul.f32 %v1599, %v1711
  %v1728 = vmul.f32 %v1600, %v1712
  %v1729 = vmul.f32 %v1601, %v1713
  %v1730 = vmul.f32 %v1602, %v1714
  %v1731 = vmul.f32 %v1603, %v1715
  %v1732 = vmul.f32 %v1604, %v1716
  %v1733 = vmul.f32 %v1605, %v1717
  %v1734 = vmul.f32 %v1606, %v1718
  %v1735 = vmul.f32 %v1607, %v1719
  %v1736 = vmul.f32 %v1608, %v1720
  %v1737 = vmul.f32 %v1609, %v1721
  %v1738 = vmul.f32 %v1610, %v1722
  %v1739 = vmul.f32 %v1611, %v1723
  %v1740 = vmul.f32 %v1612, %v1724
  %v1741 = vmul.f32 %v1613, %v1725
  %v1742 = vlaneseq
  %v1743 = vshrl.u32 %v1742, 7
  %v1744 = vsub.s32 0, %v1743
  %v1745 = vrot.slane %v139, %v1744
  %v1746 = vmul.f32 %v1726, %v1745
  %v1747 = vmul.f32 %v1727, %v1745
  %v1748 = vmul.f32 %v1728, %v1745
  %v1749 = vmul.f32 %v1729, %v1745
  %v1750 = vmul.f32 %v1730, %v1745
  %v1751 = vmul.f32 %v1731, %v1745
  %v1752 = vmul.f32 %v1732, %v1745
  %v1753 = vmul.f32 %v1733, %v1745
  %v1754 = vmul.f32 %v1734, %v1745
  %v1755 = vmul.f32 %v1735, %v1745
  %v1756 = vmul.f32 %v1736, %v1745
  %v1757 = vmul.f32 %v1737, %v1745
  %v1758 = vmul.f32 %v1738, %v1745
  %v1759 = vmul.f32 %v1739, %v1745
  %v1760 = vmul.f32 %v1740, %v1745
  %v1761 = vmul.f32 %v1741, %v1745
  %v1762 = vlaneseq
  %v1763 = vshrl.u32 %v1762, 7
  %v1764 = vsub.s32 1, %v1763
  %v1765 = vrot.slane %v139, %v1764
  %v1766 = vadd.f32 %v1746, %v1765
  %v1767 = vadd.f32 %v1747, %v1765
  %v1768 = vadd.f32 %v1748, %v1765
  %v1769 = vadd.f32 %v1749, %v1765
  %v1770 = vadd.f32 %v1750, %v1765
  %v1771 = vadd.f32 %v1751, %v1765
  %v1772 = vadd.f32 %v1752, %v1765
  %v1773 = vadd.f32 %v1753, %v1765
  %v1774 = vadd.f32 %v1754, %v1765
  %v1775 = vadd.f32 %v1755, %v1765
  %v1776 = vadd.f32 %v1756, %v1765
  %v1777 = vadd.f32 %v1757, %v1765
  %v1778 = vadd.f32 %v1758, %v1765
  %v1779 = vadd.f32 %v1759, %v1765
  %v1780 = vadd.f32 %v1760, %v1765
  %v1781 = vadd.f32 %v1761, %v1765
  %v1783 = vlaneseq
  %v1784 = vshrl.u32 %v1783, 7
  %v1785 = vsub.s32 0, %v1784
  %v1786 = vrot.slane %v129, %v1785
  %v1789 = vsel %vm162, %v1766, 0
  %v1792 = vsel %vm162, %v1767, 0
  %v1795 = vsel %vm162, %v1768, 0
  %v1798 = vsel %vm162, %v1769, 0
  %v1801 = vsel %vm162, %v1770, 0
  %v1804 = vsel %vm162, %v1771, 0
  %v1807 = vsel %vm162, %v1772, 0
  %v1810 = vsel %vm162, %v1773, 0
  %v1813 = vsel %vm162, %v1774, 0
  %v1816 = vsel %vm162, %v1775, 0
  %v1819 = vsel %vm162, %v1776, 0
  %v1822 = vsel %vm162, %v1777, 0
  %v1825 = vsel %vm162, %v1778, 0
  %v1828 = vsel %vm162, %v1779, 0
  %v1831 = vsel %vm162, %v1780, 0
  %v1834 = vsel %vm162, %v1781, 0
  %1836 = vmatprep.subr.mxu0 0.0
  %1837 = vmatpush1.msra.mxu0 0.0
  %1838 = vmatprep.subr.mxu0 0.0
  %1839 = vmatpush1.msra.mxu0 0.0
  %1840 = vmatprep.subr.mxu0 0.0
  %1841 = vmatpush1.msra.mxu0 0.0
  %1842 = vmatprep.subr.mxu0 0.0
  %1843 = vmatpush1.msra.mxu0 0.0
  %1844 = vmatprep.subr.mxu0 0.0
  %1845 = vmatpush1.msra.mxu0 0.0
  %1846 = vmatprep.subr.mxu0 0.0
  %1847 = vmatpush1.msra.mxu0 0.0
  %1848 = vmatprep.subr.mxu0 0.0
  %1849 = vmatpush1.msra.mxu0 0.0
  %1850 = vmatprep.subr.mxu0 0.0
  %1851 = vmatpush1.msra.mxu0 0.0
  %1852 = vmatprep.subr.mxu0 0.0
  %1853 = vmatpush1.msra.mxu0 0.0
  %1854 = vmatprep.subr.mxu0 0.0
  %1855 = vmatpush1.msra.mxu0 0.0
  %1856 = vmatprep.subr.mxu0 0.0
  %1857 = vmatpush1.msra.mxu0 0.0
  %1858 = vmatprep.subr.mxu0 0.0
  %1859 = vmatpush1.msra.mxu0 0.0
  %1860 = vmatprep.subr.mxu0 0.0
  %1861 = vmatpush1.msra.mxu0 %v128
  %1862 = vmatprep.subr.mxu0 0.0
  %1863 = vmatpush1.msra.mxu0 %v127
  %1864 = vmatprep.subr.mxu0 0.0
  %1865 = vmatpush1.msra.mxu0 %v126
  %1866 = vmatprep.subr.mxu0 0.0
  %1867 = vmatpush1.msra.mxu0 %v125
  %1868 = vmatprep.subr.mxu0 0.0
  %1869 = vmatpush2.msra.mxu0 0.0
  %1870 = vmatprep.subr.mxu0 0.0
  %1871 = vmatpush2.msra.mxu0 0.0
  %1872 = vmatprep.subr.mxu0 0.0
  %1873 = vmatpush2.msra.mxu0 0.0
  %1874 = vmatprep.subr.mxu0 0.0
  %1875 = vmatpush2.msra.mxu0 0.0
  %1876 = vmatprep.subr.mxu0 0.0
  %1877 = vmatpush2.msra.mxu0 0.0
  %1878 = vmatprep.subr.mxu0 0.0
  %1879 = vmatpush2.msra.mxu0 0.0
  %1880 = vmatprep.subr.mxu0 0.0
  %1881 = vmatpush2.msra.mxu0 0.0
  %1882 = vmatprep.subr.mxu0 0.0
  %1883 = vmatpush2.msra.mxu0 0.0
  %1884 = vmatprep.subr.mxu0 0.0
  %1885 = vmatpush2.msra.mxu0 0.0
  %1886 = vmatprep.subr.mxu0 0.0
  %1887 = vmatpush2.msra.mxu0 0.0
  %1888 = vmatprep.subr.mxu0 0.0
  %1889 = vmatpush2.msra.mxu0 0.0
  %1890 = vmatprep.subr.mxu0 0.0
  %1891 = vmatpush2.msra.mxu0 0.0
  %1892 = vmatprep.subr.mxu0 0.0
  %1893 = vmatpush2.msra.mxu0 0.0
  %1894 = vmatprep.subr.mxu0 0.0
  %1895 = vmatpush2.msra.mxu0 0.0
  %1896 = vmatprep.subr.mxu0 0.0
  %1897 = vmatpush2.msra.mxu0 0.0
  %1898 = vmatprep.subr.mxu0 0.0
  %1899 = vmatpush2.msra.mxu0 0.0
  %1900 = vmatprep.mubr.f32.mxu0 0.0
  %1901 = vmatmul.mubr.f32.gmra.mxu0 %v1789
  %v1902 = vpop.f32.mrf.mxu0
  %v1903 = vadd.f32 %v1786, %v1902
  %v1904 = vpop.f32.mrf.mxu0
  %1905 = vmatprep.mubr.f32.mxu0 0.0
  %1906 = vmatmul.mubr.f32.gmra.mxu0 %v1792
  %v1907 = vpop.f32.mrf.mxu0
  %v1908 = vadd.f32 %v1786, %v1907
  %v1909 = vpop.f32.mrf.mxu0
  %1910 = vmatprep.mubr.f32.mxu0 0.0
  %1911 = vmatmul.mubr.f32.gmra.mxu0 %v1795
  %v1912 = vpop.f32.mrf.mxu0
  %v1913 = vadd.f32 %v1786, %v1912
  %v1914 = vpop.f32.mrf.mxu0
  %1915 = vmatprep.mubr.f32.mxu0 0.0
  %1916 = vmatmul.mubr.f32.gmra.mxu0 %v1798
  %v1917 = vpop.f32.mrf.mxu0
  %v1918 = vadd.f32 %v1786, %v1917
  %v1919 = vpop.f32.mrf.mxu0
  %1920 = vmatprep.mubr.f32.mxu0 0.0
  %1921 = vmatmul.mubr.f32.gmra.mxu0 %v1801
  %v1922 = vpop.f32.mrf.mxu0
  %v1923 = vadd.f32 %v1786, %v1922
  %v1924 = vpop.f32.mrf.mxu0
  %1925 = vmatprep.mubr.f32.mxu0 0.0
  %1926 = vmatmul.mubr.f32.gmra.mxu0 %v1804
  %v1927 = vpop.f32.mrf.mxu0
  %v1928 = vadd.f32 %v1786, %v1927
  %v1929 = vpop.f32.mrf.mxu0
  %1930 = vmatprep.mubr.f32.mxu0 0.0
  %1931 = vmatmul.mubr.f32.gmra.mxu0 %v1807
  %v1932 = vpop.f32.mrf.mxu0
  %v1933 = vadd.f32 %v1786, %v1932
  %v1934 = vpop.f32.mrf.mxu0
  %1935 = vmatprep.mubr.f32.mxu0 0.0
  %1936 = vmatmul.mubr.f32.gmra.mxu0 %v1810
  %v1937 = vpop.f32.mrf.mxu0
  %v1938 = vadd.f32 %v1786, %v1937
  %v1939 = vpop.f32.mrf.mxu0
  %1940 = vmatprep.mubr.f32.mxu0 0.0
  %1941 = vmatmul.mubr.f32.gmra.mxu0 %v1813
  %v1942 = vpop.f32.mrf.mxu0
  %v1943 = vadd.f32 %v1786, %v1942
  %v1944 = vpop.f32.mrf.mxu0
  %1945 = vmatprep.mubr.f32.mxu0 0.0
  %1946 = vmatmul.mubr.f32.gmra.mxu0 %v1816
  %v1947 = vpop.f32.mrf.mxu0
  %v1948 = vadd.f32 %v1786, %v1947
  %v1949 = vpop.f32.mrf.mxu0
  %1950 = vmatprep.mubr.f32.mxu0 0.0
  %1951 = vmatmul.mubr.f32.gmra.mxu0 %v1819
  %v1952 = vpop.f32.mrf.mxu0
  %v1953 = vadd.f32 %v1786, %v1952
  %v1954 = vpop.f32.mrf.mxu0
  %1955 = vmatprep.mubr.f32.mxu0 0.0
  %1956 = vmatmul.mubr.f32.gmra.mxu0 %v1822
  %v1957 = vpop.f32.mrf.mxu0
  %v1958 = vadd.f32 %v1786, %v1957
  %v1959 = vpop.f32.mrf.mxu0
  %1960 = vmatprep.mubr.f32.mxu0 0.0
  %1961 = vmatmul.mubr.f32.gmra.mxu0 %v1825
  %v1962 = vpop.f32.mrf.mxu0
  %v1963 = vadd.f32 %v1786, %v1962
  %v1964 = vpop.f32.mrf.mxu0
  %1965 = vmatprep.mubr.f32.mxu0 0.0
  %1966 = vmatmul.mubr.f32.gmra.mxu0 %v1828
  %v1967 = vpop.f32.mrf.mxu0
  %v1968 = vadd.f32 %v1786, %v1967
  %v1969 = vpop.f32.mrf.mxu0
  %1970 = vmatprep.mubr.f32.mxu0 0.0
  %1971 = vmatmul.mubr.f32.gmra.mxu0 %v1831
  %v1972 = vpop.f32.mrf.mxu0
  %v1973 = vadd.f32 %v1786, %v1972
  %v1974 = vpop.f32.mrf.mxu0
  %1975 = vmatprep.mubr.f32.mxu0 0.0
  %1976 = vmatmul.mubr.f32.gmra.mxu0 %v1834
  %v1977 = vpop.f32.mrf.mxu0
  %v1978 = vadd.f32 %v1786, %v1977
  %v1979 = vpop.f32.mrf.mxu0
  %1980 = vdwg.mxu0
  %v1981 = vmax.f32 %v1903, 0.0
  %v1982 = vmax.f32 %v1908, 0.0
  %v1983 = vmax.f32 %v1913, 0.0
  %v1984 = vmax.f32 %v1918, 0.0
  %v1985 = vmax.f32 %v1923, 0.0
  %v1986 = vmax.f32 %v1928, 0.0
  %v1987 = vmax.f32 %v1933, 0.0
  %v1988 = vmax.f32 %v1938, 0.0
  %v1989 = vmax.f32 %v1943, 0.0
  %v1990 = vmax.f32 %v1948, 0.0
  %v1991 = vmax.f32 %v1953, 0.0
  %v1992 = vmax.f32 %v1958, 0.0
  %v1993 = vmax.f32 %v1963, 0.0
  %v1994 = vmax.f32 %v1968, 0.0
  %v1995 = vmax.f32 %v1973, 0.0
  %v1996 = vmax.f32 %v1978, 0.0
  %v1998 = vlaneseq
  %v1999 = vshrl.u32 %v1998, 7
  %v2000 = vsub.s32 0, %v1999
  %v2001 = vrot.slane %v138, %v2000
  %vm2003 = vcmask 523264
  %v2005 = vsel %vm2003, %v1981, 0
  %v2008 = vsel %vm2003, %v1982, 0
  %v2011 = vsel %vm2003, %v1983, 0
  %v2014 = vsel %vm2003, %v1984, 0
  %v2017 = vsel %vm2003, %v1985, 0
  %v2020 = vsel %vm2003, %v1986, 0
  %v2023 = vsel %vm2003, %v1987, 0
  %v2026 = vsel %vm2003, %v1988, 0
  %v2029 = vsel %vm2003, %v1989, 0
  %v2032 = vsel %vm2003, %v1990, 0
  %v2035 = vsel %vm2003, %v1991, 0
  %v2038 = vsel %vm2003, %v1992, 0
  %v2041 = vsel %vm2003, %v1993, 0
  %v2044 = vsel %vm2003, %v1994, 0
  %v2047 = vsel %vm2003, %v1995, 0
  %v2050 = vsel %vm2003, %v1996, 0
  %2052 = vmatprep.subr.mxu0 0.0
  %2053 = vmatpush1.msra.mxu0 0.0
  %2054 = vmatprep.subr.mxu0 0.0
  %2055 = vmatpush1.msra.mxu0 0.0
  %2056 = vmatprep.subr.mxu0 0.0
  %2057 = vmatpush1.msra.mxu0 0.0
  %2058 = vmatprep.subr.mxu0 0.0
  %2059 = vmatpush1.msra.mxu0 0.0
  %2060 = vmatprep.subr.mxu0 0.0
  %2061 = vmatpush1.msra.mxu0 0.0
  %2062 = vmatprep.subr.mxu0 0.0
  %2063 = vmatpush1.msra.mxu0 0.0
  %2064 = vmatprep.subr.mxu0 0.0
  %2065 = vmatpush1.msra.mxu0 0.0
  %2066 = vmatprep.subr.mxu0 0.0
  %2067 = vmatpush1.msra.mxu0 0.0
  %2068 = vmatprep.subr.mxu0 0.0
  %2069 = vmatpush1.msra.mxu0 %v137
  %2070 = vmatprep.subr.mxu0 0.0
  %2071 = vmatpush1.msra.mxu0 %v136
  %2072 = vmatprep.subr.mxu0 0.0
  %2073 = vmatpush1.msra.mxu0 %v135
  %2074 = vmatprep.subr.mxu0 0.0
  %2075 = vmatpush1.msra.mxu0 %v134
  %2076 = vmatprep.subr.mxu0 0.0
  %2077 = vmatpush1.msra.mxu0 %v133
  %2078 = vmatprep.subr.mxu0 0.0
  %2079 = vmatpush1.msra.mxu0 %v132
  %2080 = vmatprep.subr.mxu0 0.0
  %2081 = vmatpush1.msra.mxu0 %v131
  %2082 = vmatprep.subr.mxu0 0.0
  %2083 = vmatpush1.msra.mxu0 %v130
  %2084 = vmatprep.subr.mxu0 0.0
  %2085 = vmatpush2.msra.mxu0 0.0
  %2086 = vmatprep.subr.mxu0 0.0
  %2087 = vmatpush2.msra.mxu0 0.0
  %2088 = vmatprep.subr.mxu0 0.0
  %2089 = vmatpush2.msra.mxu0 0.0
  %2090 = vmatprep.subr.mxu0 0.0
  %2091 = vmatpush2.msra.mxu0 0.0
  %2092 = vmatprep.subr.mxu0 0.0
  %2093 = vmatpush2.msra.mxu0 0.0
  %2094 = vmatprep.subr.mxu0 0.0
  %2095 = vmatpush2.msra.mxu0 0.0
  %2096 = vmatprep.subr.mxu0 0.0
  %2097 = vmatpush2.msra.mxu0 0.0
  %2098 = vmatprep.subr.mxu0 0.0
  %2099 = vmatpush2.msra.mxu0 0.0
  %2100 = vmatprep.subr.mxu0 0.0
  %2101 = vmatpush2.msra.mxu0 0.0
  %2102 = vmatprep.subr.mxu0 0.0
  %2103 = vmatpush2.msra.mxu0 0.0
  %2104 = vmatprep.subr.mxu0 0.0
  %2105 = vmatpush2.msra.mxu0 0.0
  %2106 = vmatprep.subr.mxu0 0.0
  %2107 = vmatpush2.msra.mxu0 0.0
  %2108 = vmatprep.subr.mxu0 0.0
  %2109 = vmatpush2.msra.mxu0 0.0
  %2110 = vmatprep.subr.mxu0 0.0
  %2111 = vmatpush2.msra.mxu0 0.0
  %2112 = vmatprep.subr.mxu0 0.0
  %2113 = vmatpush2.msra.mxu0 0.0
  %2114 = vmatprep.subr.mxu0 0.0
  %2115 = vmatpush2.msra.mxu0 0.0
  %2116 = vmatprep.mubr.f32.mxu0 0.0
  %2117 = vmatmul.mubr.f32.gmra.mxu0 %v2005
  %v2118 = vpop.f32.mrf.mxu0
  %v2119 = vadd.f32 %v2001, %v2118
  %v2120 = vpop.f32.mrf.mxu0
  %2121 = vmatprep.mubr.f32.mxu0 0.0
  %2122 = vmatmul.mubr.f32.gmra.mxu0 %v2008
  %v2123 = vpop.f32.mrf.mxu0
  %v2124 = vadd.f32 %v2001, %v2123
  %v2125 = vpop.f32.mrf.mxu0
  %2126 = vmatprep.mubr.f32.mxu0 0.0
  %2127 = vmatmul.mubr.f32.gmra.mxu0 %v2011
  %v2128 = vpop.f32.mrf.mxu0
  %v2129 = vadd.f32 %v2001, %v2128
  %v2130 = vpop.f32.mrf.mxu0
  %2131 = vmatprep.mubr.f32.mxu0 0.0
  %2132 = vmatmul.mubr.f32.gmra.mxu0 %v2014
  %v2133 = vpop.f32.mrf.mxu0
  %v2134 = vadd.f32 %v2001, %v2133
  %v2135 = vpop.f32.mrf.mxu0
  %2136 = vmatprep.mubr.f32.mxu0 0.0
  %2137 = vmatmul.mubr.f32.gmra.mxu0 %v2017
  %v2138 = vpop.f32.mrf.mxu0
  %v2139 = vadd.f32 %v2001, %v2138
  %v2140 = vpop.f32.mrf.mxu0
  %2141 = vmatprep.mubr.f32.mxu0 0.0
  %2142 = vmatmul.mubr.f32.gmra.mxu0 %v2020
  %v2143 = vpop.f32.mrf.mxu0
  %v2144 = vadd.f32 %v2001, %v2143
  %v2145 = vpop.f32.mrf.mxu0
  %2146 = vmatprep.mubr.f32.mxu0 0.0
  %2147 = vmatmul.mubr.f32.gmra.mxu0 %v2023
  %v2148 = vpop.f32.mrf.mxu0
  %v2149 = vadd.f32 %v2001, %v2148
  %v2150 = vpop.f32.mrf.mxu0
  %2151 = vmatprep.mubr.f32.mxu0 0.0
  %2152 = vmatmul.mubr.f32.gmra.mxu0 %v2026
  %v2153 = vpop.f32.mrf.mxu0
  %v2154 = vadd.f32 %v2001, %v2153
  %v2155 = vpop.f32.mrf.mxu0
  %2156 = vmatprep.mubr.f32.mxu0 0.0
  %2157 = vmatmul.mubr.f32.gmra.mxu0 %v2029
  %v2158 = vpop.f32.mrf.mxu0
  %v2159 = vadd.f32 %v2001, %v2158
  %v2160 = vpop.f32.mrf.mxu0
  %2161 = vmatprep.mubr.f32.mxu0 0.0
  %2162 = vmatmul.mubr.f32.gmra.mxu0 %v2032
  %v2163 = vpop.f32.mrf.mxu0
  %v2164 = vadd.f32 %v2001, %v2163
  %v2165 = vpop.f32.mrf.mxu0
  %2166 = vmatprep.mubr.f32.mxu0 0.0
  %2167 = vmatmul.mubr.f32.gmra.mxu0 %v2035
  %v2168 = vpop.f32.mrf.mxu0
  %v2169 = vadd.f32 %v2001, %v2168
  %v2170 = vpop.f32.mrf.mxu0
  %2171 = vmatprep.mubr.f32.mxu0 0.0
  %2172 = vmatmul.mubr.f32.gmra.mxu0 %v2038
  %v2173 = vpop.f32.mrf.mxu0
  %v2174 = vadd.f32 %v2001, %v2173
  %v2175 = vpop.f32.mrf.mxu0
  %2176 = vmatprep.mubr.f32.mxu0 0.0
  %2177 = vmatmul.mubr.f32.gmra.mxu0 %v2041
  %v2178 = vpop.f32.mrf.mxu0
  %v2179 = vadd.f32 %v2001, %v2178
  %v2180 = vpop.f32.mrf.mxu0
  %2181 = vmatprep.mubr.f32.mxu0 0.0
  %2182 = vmatmul.mubr.f32.gmra.mxu0 %v2044
  %v2183 = vpop.f32.mrf.mxu0
  %v2184 = vadd.f32 %v2001, %v2183
  %v2185 = vpop.f32.mrf.mxu0
  %2186 = vmatprep.mubr.f32.mxu0 0.0
  %2187 = vmatmul.mubr.f32.gmra.mxu0 %v2047
  %v2188 = vpop.f32.mrf.mxu0
  %v2189 = vadd.f32 %v2001, %v2188
  %v2190 = vpop.f32.mrf.mxu0
  %2191 = vmatprep.mubr.f32.mxu0 0.0
  %2192 = vmatmul.mubr.f32.gmra.mxu0 %v2050
  %v2193 = vpop.f32.mrf.mxu0
  %v2194 = vadd.f32 %v2001, %v2193
  %v2195 = vpop.f32.mrf.mxu0
  %2196 = vdwg.mxu0
  %v2197 = vadd.f32 %v1766, %v2119
  %v2198 = vadd.f32 %v1767, %v2124
  %v2199 = vadd.f32 %v1768, %v2129
  %v2200 = vadd.f32 %v1769, %v2134
  %v2201 = vadd.f32 %v1770, %v2139
  %v2202 = vadd.f32 %v1771, %v2144
  %v2203 = vadd.f32 %v1772, %v2149
  %v2204 = vadd.f32 %v1773, %v2154
  %v2205 = vadd.f32 %v1774, %v2159
  %v2206 = vadd.f32 %v1775, %v2164
  %v2207 = vadd.f32 %v1776, %v2169
  %v2208 = vadd.f32 %v1777, %v2174
  %v2209 = vadd.f32 %v1778, %v2179
  %v2210 = vadd.f32 %v1779, %v2184
  %v2211 = vadd.f32 %v1780, %v2189
  %v2212 = vadd.f32 %v1781, %v2194
  %v2213 = vsel %vm162, %v2197, 0.0
  %2214 = vadd.xlane.f32.xlu0 %v2213
  %v2215 = vpop.xlane.xlu0 %2214
  %v2216 = vsel %vm162, %v2198, 0.0
  %2217 = vadd.xlane.f32.xlu0 %v2216
  %v2218 = vpop.xlane.xlu0 %2217
  %v2219 = vsel %vm162, %v2199, 0.0
  %2220 = vadd.xlane.f32.xlu0 %v2219
  %v2221 = vpop.xlane.xlu0 %2220
  %v2222 = vsel %vm162, %v2200, 0.0
  %2223 = vadd.xlane.f32.xlu0 %v2222
  %v2224 = vpop.xlane.xlu0 %2223
  %v2225 = vsel %vm162, %v2201, 0.0
  %2226 = vadd.xlane.f32.xlu0 %v2225
  %v2227 = vpop.xlane.xlu0 %2226
  %v2228 = vsel %vm162, %v2202, 0.0
  %2229 = vadd.xlane.f32.xlu0 %v2228
  %v2230 = vpop.xlane.xlu0 %2229
  %v2231 = vsel %vm162, %v2203, 0.0
  %2232 = vadd.xlane.f32.xlu0 %v2231
  %v2233 = vpop.xlane.xlu0 %2232
  %v2234 = vsel %vm162, %v2204, 0.0
  %2235 = vadd.xlane.f32.xlu0 %v2234
  %v2236 = vpop.xlane.xlu0 %2235
  %v2237 = vsel %vm162, %v2205, 0.0
  %2238 = vadd.xlane.f32.xlu0 %v2237
  %v2239 = vpop.xlane.xlu0 %2238
  %v2240 = vsel %vm162, %v2206, 0.0
  %2241 = vadd.xlane.f32.xlu0 %v2240
  %v2242 = vpop.xlane.xlu0 %2241
  %v2243 = vsel %vm162, %v2207, 0.0
  %2244 = vadd.xlane.f32.xlu0 %v2243
  %v2245 = vpop.xlane.xlu0 %2244
  %v2246 = vsel %vm162, %v2208, 0.0
  %2247 = vadd.xlane.f32.xlu0 %v2246
  %v2248 = vpop.xlane.xlu0 %2247
  %v2249 = vsel %vm162, %v2209, 0.0
  %2250 = vadd.xlane.f32.xlu0 %v2249
  %v2251 = vpop.xlane.xlu0 %2250
  %v2252 = vsel %vm162, %v2210, 0.0
  %2253 = vadd.xlane.f32.xlu0 %v2252
  %v2254 = vpop.xlane.xlu0 %2253
  %v2255 = vsel %vm162, %v2211, 0.0
  %2256 = vadd.xlane.f32.xlu0 %v2255
  %v2257 = vpop.xlane.xlu0 %2256
  %v2258 = vsel %vm162, %v2212, 0.0
  %2259 = vadd.xlane.f32.xlu0 %v2258
  %v2260 = vpop.xlane.xlu0 %2259
  %v2261 = vmul.f32 %v2215, %v1581
  %v2262 = vmul.f32 %v2218, %v1581
  %v2263 = vmul.f32 %v2221, %v1581
  %v2264 = vmul.f32 %v2224, %v1581
  %v2265 = vmul.f32 %v2227, %v1581
  %v2266 = vmul.f32 %v2230, %v1581
  %v2267 = vmul.f32 %v2233, %v1581
  %v2268 = vmul.f32 %v2236, %v1581
  %v2269 = vmul.f32 %v2239, %v1581
  %v2270 = vmul.f32 %v2242, %v1581
  %v2271 = vmul.f32 %v2245, %v1581
  %v2272 = vmul.f32 %v2248, %v1581
  %v2273 = vmul.f32 %v2251, %v1581
  %v2274 = vmul.f32 %v2254, %v1581
  %v2275 = vmul.f32 %v2257, %v1581
  %v2276 = vmul.f32 %v2260, %v1581
  %v2277 = vsub.f32 %v2197, %v2261
  %v2278 = vsub.f32 %v2198, %v2262
  %v2279 = vsub.f32 %v2199, %v2263
  %v2280 = vsub.f32 %v2200, %v2264
  %v2281 = vsub.f32 %v2201, %v2265
  %v2282 = vsub.f32 %v2202, %v2266
  %v2283 = vsub.f32 %v2203, %v2267
  %v2284 = vsub.f32 %v2204, %v2268
  %v2285 = vsub.f32 %v2205, %v2269
  %v2286 = vsub.f32 %v2206, %v2270
  %v2287 = vsub.f32 %v2207, %v2271
  %v2288 = vsub.f32 %v2208, %v2272
  %v2289 = vsub.f32 %v2209, %v2273
  %v2290 = vsub.f32 %v2210, %v2274
  %v2291 = vsub.f32 %v2211, %v2275
  %v2292 = vsub.f32 %v2212, %v2276
  %v2293 = vmul.f32 %v2277, %v2277
  %v2294 = vmul.f32 %v2278, %v2278
  %v2295 = vmul.f32 %v2279, %v2279
  %v2296 = vmul.f32 %v2280, %v2280
  %v2297 = vmul.f32 %v2281, %v2281
  %v2298 = vmul.f32 %v2282, %v2282
  %v2299 = vmul.f32 %v2283, %v2283
  %v2300 = vmul.f32 %v2284, %v2284
  %v2301 = vmul.f32 %v2285, %v2285
  %v2302 = vmul.f32 %v2286, %v2286
  %v2303 = vmul.f32 %v2287, %v2287
  %v2304 = vmul.f32 %v2288, %v2288
  %v2305 = vmul.f32 %v2289, %v2289
  %v2306 = vmul.f32 %v2290, %v2290
  %v2307 = vmul.f32 %v2291, %v2291
  %v2308 = vmul.f32 %v2292, %v2292
  %v2309 = vsel %vm162, %v2293, 0.0
  %2310 = vadd.xlane.f32.xlu0 %v2309
  %v2311 = vpop.xlane.xlu0 %2310
  %v2312 = vsel %vm162, %v2294, 0.0
  %2313 = vadd.xlane.f32.xlu0 %v2312
  %v2314 = vpop.xlane.xlu0 %2313
  %v2315 = vsel %vm162, %v2295, 0.0
  %2316 = vadd.xlane.f32.xlu0 %v2315
  %v2317 = vpop.xlane.xlu0 %2316
  %v2318 = vsel %vm162, %v2296, 0.0
  %2319 = vadd.xlane.f32.xlu0 %v2318
  %v2320 = vpop.xlane.xlu0 %2319
  %v2321 = vsel %vm162, %v2297, 0.0
  %2322 = vadd.xlane.f32.xlu0 %v2321
  %v2323 = vpop.xlane.xlu0 %2322
  %v2324 = vsel %vm162, %v2298, 0.0
  %2325 = vadd.xlane.f32.xlu0 %v2324
  %v2326 = vpop.xlane.xlu0 %2325
  %v2327 = vsel %vm162, %v2299, 0.0
  %2328 = vadd.xlane.f32.xlu0 %v2327
  %v2329 = vpop.xlane.xlu0 %2328
  %v2330 = vsel %vm162, %v2300, 0.0
  %2331 = vadd.xlane.f32.xlu0 %v2330
  %v2332 = vpop.xlane.xlu0 %2331
  %v2333 = vsel %vm162, %v2301, 0.0
  %2334 = vadd.xlane.f32.xlu0 %v2333
  %v2335 = vpop.xlane.xlu0 %2334
  %v2336 = vsel %vm162, %v2302, 0.0
  %2337 = vadd.xlane.f32.xlu0 %v2336
  %v2338 = vpop.xlane.xlu0 %2337
  %v2339 = vsel %vm162, %v2303, 0.0
  %2340 = vadd.xlane.f32.xlu0 %v2339
  %v2341 = vpop.xlane.xlu0 %2340
  %v2342 = vsel %vm162, %v2304, 0.0
  %2343 = vadd.xlane.f32.xlu0 %v2342
  %v2344 = vpop.xlane.xlu0 %2343
  %v2345 = vsel %vm162, %v2305, 0.0
  %2346 = vadd.xlane.f32.xlu0 %v2345
  %v2347 = vpop.xlane.xlu0 %2346
  %v2348 = vsel %vm162, %v2306, 0.0
  %2349 = vadd.xlane.f32.xlu0 %v2348
  %v2350 = vpop.xlane.xlu0 %2349
  %v2351 = vsel %vm162, %v2307, 0.0
  %2352 = vadd.xlane.f32.xlu0 %v2351
  %v2353 = vpop.xlane.xlu0 %2352
  %v2354 = vsel %vm162, %v2308, 0.0
  %2355 = vadd.xlane.f32.xlu0 %v2354
  %v2356 = vpop.xlane.xlu0 %2355
  %v2357 = vmul.f32 %v2311, %v1581
  %v2358 = vmul.f32 %v2314, %v1581
  %v2359 = vmul.f32 %v2317, %v1581
  %v2360 = vmul.f32 %v2320, %v1581
  %v2361 = vmul.f32 %v2323, %v1581
  %v2362 = vmul.f32 %v2326, %v1581
  %v2363 = vmul.f32 %v2329, %v1581
  %v2364 = vmul.f32 %v2332, %v1581
  %v2365 = vmul.f32 %v2335, %v1581
  %v2366 = vmul.f32 %v2338, %v1581
  %v2367 = vmul.f32 %v2341, %v1581
  %v2368 = vmul.f32 %v2344, %v1581
  %v2369 = vmul.f32 %v2347, %v1581
  %v2370 = vmul.f32 %v2350, %v1581
  %v2371 = vmul.f32 %v2353, %v1581
  %v2372 = vmul.f32 %v2356, %v1581
  %v2373 = vadd.f32 %v2357, 1e-05
  %v2374 = vadd.f32 %v2358, 1e-05
  %v2375 = vadd.f32 %v2359, 1e-05
  %v2376 = vadd.f32 %v2360, 1e-05
  %v2377 = vadd.f32 %v2361, 1e-05
  %v2378 = vadd.f32 %v2362, 1e-05
  %v2379 = vadd.f32 %v2363, 1e-05
  %v2380 = vadd.f32 %v2364, 1e-05
  %v2381 = vadd.f32 %v2365, 1e-05
  %v2382 = vadd.f32 %v2366, 1e-05
  %v2383 = vadd.f32 %v2367, 1e-05
  %v2384 = vadd.f32 %v2368, 1e-05
  %v2385 = vadd.f32 %v2369, 1e-05
  %v2386 = vadd.f32 %v2370, 1e-05
  %v2387 = vadd.f32 %v2371, 1e-05
  %v2388 = vadd.f32 %v2372, 1e-05
  %v2389 = vrsqrt.pop %v2373
  %v2390 = vrsqrt.pop %v2374
  %v2391 = vrsqrt.pop %v2375
  %v2392 = vrsqrt.pop %v2376
  %v2393 = vrsqrt.pop %v2377
  %v2394 = vrsqrt.pop %v2378
  %v2395 = vrsqrt.pop %v2379
  %v2396 = vrsqrt.pop %v2380
  %v2397 = vrsqrt.pop %v2381
  %v2398 = vrsqrt.pop %v2382
  %v2399 = vrsqrt.pop %v2383
  %v2400 = vrsqrt.pop %v2384
  %v2401 = vrsqrt.pop %v2385
  %v2402 = vrsqrt.pop %v2386
  %v2403 = vrsqrt.pop %v2387
  %v2404 = vrsqrt.pop %v2388
  %v2405 = vmul.f32 %v2277, %v2389
  %v2406 = vmul.f32 %v2278, %v2390
  %v2407 = vmul.f32 %v2279, %v2391
  %v2408 = vmul.f32 %v2280, %v2392
  %v2409 = vmul.f32 %v2281, %v2393
  %v2410 = vmul.f32 %v2282, %v2394
  %v2411 = vmul.f32 %v2283, %v2395
  %v2412 = vmul.f32 %v2284, %v2396
  %v2413 = vmul.f32 %v2285, %v2397
  %v2414 = vmul.f32 %v2286, %v2398
  %v2415 = vmul.f32 %v2287, %v2399
  %v2416 = vmul.f32 %v2288, %v2400
  %v2417 = vmul.f32 %v2289, %v2401
  %v2418 = vmul.f32 %v2290, %v2402
  %v2419 = vmul.f32 %v2291, %v2403
  %v2420 = vmul.f32 %v2292, %v2404
  %v2421 = vlaneseq
  %v2422 = vshrl.u32 %v2421, 7
  %v2423 = vsub.s32 2, %v2422
  %v2424 = vrot.slane %v139, %v2423
  %v2425 = vmul.f32 %v2405, %v2424
  %v2426 = vmul.f32 %v2406, %v2424
  %v2427 = vmul.f32 %v2407, %v2424
  %v2428 = vmul.f32 %v2408, %v2424
  %v2429 = vmul.f32 %v2409, %v2424
  %v2430 = vmul.f32 %v2410, %v2424
  %v2431 = vmul.f32 %v2411, %v2424
  %v2432 = vmul.f32 %v2412, %v2424
  %v2433 = vmul.f32 %v2413, %v2424
  %v2434 = vmul.f32 %v2414, %v2424
  %v2435 = vmul.f32 %v2415, %v2424
  %v2436 = vmul.f32 %v2416, %v2424
  %v2437 = vmul.f32 %v2417, %v2424
  %v2438 = vmul.f32 %v2418, %v2424
  %v2439 = vmul.f32 %v2419, %v2424
  %v2440 = vmul.f32 %v2420, %v2424
  %v2441 = vlaneseq
  %v2442 = vshrl.u32 %v2441, 7
  %v2443 = vsub.s32 3, %v2442
  %v2444 = vrot.slane %v139, %v2443
  %v2445 = vadd.f32 %v2425, %v2444
  %v2446 = vadd.f32 %v2426, %v2444
  %v2447 = vadd.f32 %v2427, %v2444
  %v2448 = vadd.f32 %v2428, %v2444
  %v2449 = vadd.f32 %v2429, %v2444
  %v2450 = vadd.f32 %v2430, %v2444
  %v2451 = vadd.f32 %v2431, %v2444
  %v2452 = vadd.f32 %v2432, %v2444
  %v2453 = vadd.f32 %v2433, %v2444
  %v2454 = vadd.f32 %v2434, %v2444
  %v2455 = vadd.f32 %v2435, %v2444
  %v2456 = vadd.f32 %v2436, %v2444
  %v2457 = vadd.f32 %v2437, %v2444
  %v2458 = vadd.f32 %v2438, %v2444
  %v2459 = vadd.f32 %v2439, %v2444
  %v2460 = vadd.f32 %v2440, %v2444
  %v2461 = vld [vmem:[%s11] sm:$0xff]
  %v2462 = vld [vmem:[%s11 + $0x8] sm:$0xff]
  %v2463 = vld [vmem:[%s12] sm:$0x1]
  %v2464 = vld [vmem:[%s13] sm:$0xff]
  %v2465 = vld [vmem:[%s13 + $0x8] sm:$0xff]
  %v2466 = vld [vmem:[%s14] sm:$0x1]
  %v2467 = vld [vmem:[%s15] sm:$0xff]
  %v2468 = vld [vmem:[%s15 + $0x8] sm:$0xff]
  %v2469 = vld [vmem:[%s15 + $0x10] sm:$0xff]
  %v2470 = vld [vmem:[%s15 + $0x18] sm:$0xff]
  %v2471 = vld [vmem:[%s15 + $0x20] sm:$0xff]
  %v2472 = vld [vmem:[%s15 + $0x28] sm:$0xff]
  %v2473 = vld [vmem:[%s15 + $0x30] sm:$0xff]
  %v2474 = vld [vmem:[%s15 + $0x38] sm:$0xff]
  %v2475 = vld [vmem:[%s16] sm:$0x1]
  %v2476 = vld [vmem:[%s17] sm:$0xf]
  %v2478 = vlaneseq
  %v2479 = vshrl.u32 %v2478, 7
  %v2480 = vsub.s32 0, %v2479
  %v2481 = vrot.slane %v2463, %v2480
  %2483 = vrot.lane.b32.xlu0 %v140, 96
  %v2484 = vpop.permute.xlu0 %2483
  %2485 = vrot.lane.b32.xlu0 %v141, 96
  %v2486 = vpop.permute.xlu0 %2485
  %2487 = vrot.lane.b32.xlu0 %v142, 96
  %v2488 = vpop.permute.xlu0 %2487
  %2489 = vrot.lane.b32.xlu0 %v143, 96
  %v2490 = vpop.permute.xlu0 %2489
  %2491 = vrot.lane.b32.xlu0 %v144, 96
  %v2492 = vpop.permute.xlu0 %2491
  %2493 = vrot.lane.b32.xlu0 %v145, 96
  %v2494 = vpop.permute.xlu0 %2493
  %2495 = vrot.lane.b32.xlu0 %v146, 96
  %v2496 = vpop.permute.xlu0 %2495
  %2497 = vrot.lane.b32.xlu0 %v147, 96
  %v2498 = vpop.permute.xlu0 %2497
  %2499 = vrot.lane.b32.xlu0 %v148, 96
  %v2500 = vpop.permute.xlu0 %2499
  %2501 = vrot.lane.b32.xlu0 %v149, 96
  %v2502 = vpop.permute.xlu0 %2501
  %2503 = vrot.lane.b32.xlu0 %v150, 96
  %v2504 = vpop.permute.xlu0 %2503
  %2505 = vrot.lane.b32.xlu0 %v151, 96
  %v2506 = vpop.permute.xlu0 %2505
  %2507 = vrot.lane.b32.xlu0 %v152, 96
  %v2508 = vpop.permute.xlu0 %2507
  %2509 = vrot.lane.b32.xlu0 %v153, 96
  %v2510 = vpop.permute.xlu0 %2509
  %2511 = vrot.lane.b32.xlu0 %v154, 96
  %v2512 = vpop.permute.xlu0 %2511
  %2513 = vrot.lane.b32.xlu0 %v155, 96
  %v2514 = vpop.permute.xlu0 %2513
  %v2515 = vsel %vm731, %v2484, 0
  %v2517 = vsel %vm731, %v2486, 0
  %v2519 = vsel %vm731, %v2488, 0
  %v2521 = vsel %vm731, %v2490, 0
  %v2523 = vsel %vm731, %v2492, 0
  %v2525 = vsel %vm731, %v2494, 0
  %v2527 = vsel %vm731, %v2496, 0
  %v2529 = vsel %vm731, %v2498, 0
  %v2531 = vsel %vm731, %v2500, 0
  %v2533 = vsel %vm731, %v2502, 0
  %v2535 = vsel %vm731, %v2504, 0
  %v2537 = vsel %vm731, %v2506, 0
  %v2539 = vsel %vm731, %v2508, 0
  %v2541 = vsel %vm731, %v2510, 0
  %v2543 = vsel %vm731, %v2512, 0
  %v2545 = vsel %vm731, %v2514, 0
  %2547 = vmatprep.subr.mxu0 0.0
  %2548 = vmatpush1.msra.mxu0 0.0
  %2549 = vmatprep.subr.mxu0 0.0
  %2550 = vmatpush1.msra.mxu0 0.0
  %2551 = vmatprep.subr.mxu0 0.0
  %2552 = vmatpush1.msra.mxu0 0.0
  %2553 = vmatprep.subr.mxu0 0.0
  %2554 = vmatpush1.msra.mxu0 0.0
  %2555 = vmatprep.subr.mxu0 0.0
  %2556 = vmatpush1.msra.mxu0 0.0
  %2557 = vmatprep.subr.mxu0 0.0
  %2558 = vmatpush1.msra.mxu0 0.0
  %2559 = vmatprep.subr.mxu0 0.0
  %2560 = vmatpush1.msra.mxu0 0.0
  %2561 = vmatprep.subr.mxu0 0.0
  %2562 = vmatpush1.msra.mxu0 0.0
  %2563 = vmatprep.subr.mxu0 0.0
  %2564 = vmatpush1.msra.mxu0 0.0
  %2565 = vmatprep.subr.mxu0 0.0
  %2566 = vmatpush1.msra.mxu0 0.0
  %2567 = vmatprep.subr.mxu0 0.0
  %2568 = vmatpush1.msra.mxu0 0.0
  %2569 = vmatprep.subr.mxu0 0.0
  %2570 = vmatpush1.msra.mxu0 0.0
  %2571 = vmatprep.subr.mxu0 0.0
  %2572 = vmatpush1.msra.mxu0 0.0
  %2573 = vmatprep.subr.mxu0 0.0
  %2574 = vmatpush1.msra.mxu0 0.0
  %2575 = vmatprep.subr.mxu0 0.0
  %2576 = vmatpush1.msra.mxu0 %v2462
  %2577 = vmatprep.subr.mxu0 0.0
  %2578 = vmatpush1.msra.mxu0 %v2461
  %2579 = vmatprep.subr.mxu0 0.0
  %2580 = vmatpush2.msra.mxu0 0.0
  %2581 = vmatprep.subr.mxu0 0.0
  %2582 = vmatpush2.msra.mxu0 0.0
  %2583 = vmatprep.subr.mxu0 0.0
  %2584 = vmatpush2.msra.mxu0 0.0
  %2585 = vmatprep.subr.mxu0 0.0
  %2586 = vmatpush2.msra.mxu0 0.0
  %2587 = vmatprep.subr.mxu0 0.0
  %2588 = vmatpush2.msra.mxu0 0.0
  %2589 = vmatprep.subr.mxu0 0.0
  %2590 = vmatpush2.msra.mxu0 0.0
  %2591 = vmatprep.subr.mxu0 0.0
  %2592 = vmatpush2.msra.mxu0 0.0
  %2593 = vmatprep.subr.mxu0 0.0
  %2594 = vmatpush2.msra.mxu0 0.0
  %2595 = vmatprep.subr.mxu0 0.0
  %2596 = vmatpush2.msra.mxu0 0.0
  %2597 = vmatprep.subr.mxu0 0.0
  %2598 = vmatpush2.msra.mxu0 0.0
  %2599 = vmatprep.subr.mxu0 0.0
  %2600 = vmatpush2.msra.mxu0 0.0
  %2601 = vmatprep.subr.mxu0 0.0
  %2602 = vmatpush2.msra.mxu0 0.0
  %2603 = vmatprep.subr.mxu0 0.0
  %2604 = vmatpush2.msra.mxu0 0.0
  %2605 = vmatprep.subr.mxu0 0.0
  %2606 = vmatpush2.msra.mxu0 0.0
  %2607 = vmatprep.subr.mxu0 0.0
  %2608 = vmatpush2.msra.mxu0 0.0
  %2609 = vmatprep.subr.mxu0 0.0
  %2610 = vmatpush2.msra.mxu0 0.0
  %2611 = vmatprep.mubr.f32.mxu0 0.0
  %2612 = vmatmul.mubr.f32.gmra.mxu0 %v2515
  %v2613 = vpop.f32.mrf.mxu0
  %v2614 = vadd.f32 %v2481, %v2613
  %v2615 = vpop.f32.mrf.mxu0
  %2616 = vmatprep.mubr.f32.mxu0 0.0
  %2617 = vmatmul.mubr.f32.gmra.mxu0 %v2517
  %v2618 = vpop.f32.mrf.mxu0
  %v2619 = vadd.f32 %v2481, %v2618
  %v2620 = vpop.f32.mrf.mxu0
  %2621 = vmatprep.mubr.f32.mxu0 0.0
  %2622 = vmatmul.mubr.f32.gmra.mxu0 %v2519
  %v2623 = vpop.f32.mrf.mxu0
  %v2624 = vadd.f32 %v2481, %v2623
  %v2625 = vpop.f32.mrf.mxu0
  %2626 = vmatprep.mubr.f32.mxu0 0.0
  %2627 = vmatmul.mubr.f32.gmra.mxu0 %v2521
  %v2628 = vpop.f32.mrf.mxu0
  %v2629 = vadd.f32 %v2481, %v2628
  %v2630 = vpop.f32.mrf.mxu0
  %2631 = vmatprep.mubr.f32.mxu0 0.0
  %2632 = vmatmul.mubr.f32.gmra.mxu0 %v2523
  %v2633 = vpop.f32.mrf.mxu0
  %v2634 = vadd.f32 %v2481, %v2633
  %v2635 = vpop.f32.mrf.mxu0
  %2636 = vmatprep.mubr.f32.mxu0 0.0
  %2637 = vmatmul.mubr.f32.gmra.mxu0 %v2525
  %v2638 = vpop.f32.mrf.mxu0
  %v2639 = vadd.f32 %v2481, %v2638
  %v2640 = vpop.f32.mrf.mxu0
  %2641 = vmatprep.mubr.f32.mxu0 0.0
  %2642 = vmatmul.mubr.f32.gmra.mxu0 %v2527
  %v2643 = vpop.f32.mrf.mxu0
  %v2644 = vadd.f32 %v2481, %v2643
  %v2645 = vpop.f32.mrf.mxu0
  %2646 = vmatprep.mubr.f32.mxu0 0.0
  %2647 = vmatmul.mubr.f32.gmra.mxu0 %v2529
  %v2648 = vpop.f32.mrf.mxu0
  %v2649 = vadd.f32 %v2481, %v2648
  %v2650 = vpop.f32.mrf.mxu0
  %2651 = vmatprep.mubr.f32.mxu0 0.0
  %2652 = vmatmul.mubr.f32.gmra.mxu0 %v2531
  %v2653 = vpop.f32.mrf.mxu0
  %v2654 = vadd.f32 %v2481, %v2653
  %v2655 = vpop.f32.mrf.mxu0
  %2656 = vmatprep.mubr.f32.mxu0 0.0
  %2657 = vmatmul.mubr.f32.gmra.mxu0 %v2533
  %v2658 = vpop.f32.mrf.mxu0
  %v2659 = vadd.f32 %v2481, %v2658
  %v2660 = vpop.f32.mrf.mxu0
  %2661 = vmatprep.mubr.f32.mxu0 0.0
  %2662 = vmatmul.mubr.f32.gmra.mxu0 %v2535
  %v2663 = vpop.f32.mrf.mxu0
  %v2664 = vadd.f32 %v2481, %v2663
  %v2665 = vpop.f32.mrf.mxu0
  %2666 = vmatprep.mubr.f32.mxu0 0.0
  %2667 = vmatmul.mubr.f32.gmra.mxu0 %v2537
  %v2668 = vpop.f32.mrf.mxu0
  %v2669 = vadd.f32 %v2481, %v2668
  %v2670 = vpop.f32.mrf.mxu0
  %2671 = vmatprep.mubr.f32.mxu0 0.0
  %2672 = vmatmul.mubr.f32.gmra.mxu0 %v2539
  %v2673 = vpop.f32.mrf.mxu0
  %v2674 = vadd.f32 %v2481, %v2673
  %v2675 = vpop.f32.mrf.mxu0
  %2676 = vmatprep.mubr.f32.mxu0 0.0
  %2677 = vmatmul.mubr.f32.gmra.mxu0 %v2541
  %v2678 = vpop.f32.mrf.mxu0
  %v2679 = vadd.f32 %v2481, %v2678
  %v2680 = vpop.f32.mrf.mxu0
  %2681 = vmatprep.mubr.f32.mxu0 0.0
  %2682 = vmatmul.mubr.f32.gmra.mxu0 %v2543
  %v2683 = vpop.f32.mrf.mxu0
  %v2684 = vadd.f32 %v2481, %v2683
  %v2685 = vpop.f32.mrf.mxu0
  %2686 = vmatprep.mubr.f32.mxu0 0.0
  %2687 = vmatmul.mubr.f32.gmra.mxu0 %v2545
  %v2688 = vpop.f32.mrf.mxu0
  %v2689 = vadd.f32 %v2481, %v2688
  %v2690 = vpop.f32.mrf.mxu0
  %2691 = vdwg.mxu0
  %2692 = vrot.lane.b32.xlu0 %v356, 96
  %v2693 = vpop.permute.xlu0 %2692
  %2694 = vrot.lane.b32.xlu0 %v357, 96
  %v2695 = vpop.permute.xlu0 %2694
  %2696 = vrot.lane.b32.xlu0 %v358, 96
  %v2697 = vpop.permute.xlu0 %2696
  %2698 = vrot.lane.b32.xlu0 %v359, 96
  %v2699 = vpop.permute.xlu0 %2698
  %2702 = vrot.lane.b32.xlu0 %v2461, 112
  %v2703 = vpop.permute.xlu0 %2702
  %2704 = vrot.lane.b32.xlu0 %v2462, 112
  %v2705 = vpop.permute.xlu0 %2704
  %2708 = vrot.lane.b32.xlu0 %v2481, 112
  %v2709 = vpop.permute.xlu0 %2708
  %v2711 = vsel %vm731, %v2693, 0
  %v2713 = vsel %vm731, %v2695, 0
  %v2715 = vsel %vm731, %v2697, 0
  %v2717 = vsel %vm731, %v2699, 0
  %2719 = vmatprep.subr.mxu0 0.0
  %2720 = vmatpush1.msra.mxu0 0.0
  %2721 = vmatprep.subr.mxu0 0.0
  %2722 = vmatpush1.msra.mxu0 0.0
  %2723 = vmatprep.subr.mxu0 0.0
  %2724 = vmatpush1.msra.mxu0 0.0
  %2725 = vmatprep.subr.mxu0 0.0
  %2726 = vmatpush1.msra.mxu0 0.0
  %2727 = vmatprep.subr.mxu0 0.0
  %2728 = vmatpush1.msra.mxu0 0.0
  %2729 = vmatprep.subr.mxu0 0.0
  %2730 = vmatpush1.msra.mxu0 0.0
  %2731 = vmatprep.subr.mxu0 0.0
  %2732 = vmatpush1.msra.mxu0 0.0
  %2733 = vmatprep.subr.mxu0 0.0
  %2734 = vmatpush1.msra.mxu0 0.0
  %2735 = vmatprep.subr.mxu0 0.0
  %2736 = vmatpush1.msra.mxu0 0.0
  %2737 = vmatprep.subr.mxu0 0.0
  %2738 = vmatpush1.msra.mxu0 0.0
  %2739 = vmatprep.subr.mxu0 0.0
  %2740 = vmatpush1.msra.mxu0 0.0
  %2741 = vmatprep.subr.mxu0 0.0
  %2742 = vmatpush1.msra.mxu0 0.0
  %2743 = vmatprep.subr.mxu0 0.0
  %2744 = vmatpush1.msra.mxu0 0.0
  %2745 = vmatprep.subr.mxu0 0.0
  %2746 = vmatpush1.msra.mxu0 0.0
  %2747 = vmatprep.subr.mxu0 0.0
  %2748 = vmatpush1.msra.mxu0 %v2705
  %2749 = vmatprep.subr.mxu0 0.0
  %2750 = vmatpush1.msra.mxu0 %v2703
  %2751 = vmatprep.subr.mxu0 0.0
  %2752 = vmatpush2.msra.mxu0 0.0
  %2753 = vmatprep.subr.mxu0 0.0
  %2754 = vmatpush2.msra.mxu0 0.0
  %2755 = vmatprep.subr.mxu0 0.0
  %2756 = vmatpush2.msra.mxu0 0.0
  %2757 = vmatprep.subr.mxu0 0.0
  %2758 = vmatpush2.msra.mxu0 0.0
  %2759 = vmatprep.subr.mxu0 0.0
  %2760 = vmatpush2.msra.mxu0 0.0
  %2761 = vmatprep.subr.mxu0 0.0
  %2762 = vmatpush2.msra.mxu0 0.0
  %2763 = vmatprep.subr.mxu0 0.0
  %2764 = vmatpush2.msra.mxu0 0.0
  %2765 = vmatprep.subr.mxu0 0.0
  %2766 = vmatpush2.msra.mxu0 0.0
  %2767 = vmatprep.subr.mxu0 0.0
  %2768 = vmatpush2.msra.mxu0 0.0
  %2769 = vmatprep.subr.mxu0 0.0
  %2770 = vmatpush2.msra.mxu0 0.0
  %2771 = vmatprep.subr.mxu0 0.0
  %2772 = vmatpush2.msra.mxu0 0.0
  %2773 = vmatprep.subr.mxu0 0.0
  %2774 = vmatpush2.msra.mxu0 0.0
  %2775 = vmatprep.subr.mxu0 0.0
  %2776 = vmatpush2.msra.mxu0 0.0
  %2777 = vmatprep.subr.mxu0 0.0
  %2778 = vmatpush2.msra.mxu0 0.0
  %2779 = vmatprep.subr.mxu0 0.0
  %2780 = vmatpush2.msra.mxu0 0.0
  %2781 = vmatprep.subr.mxu0 0.0
  %2782 = vmatpush2.msra.mxu0 0.0
  %2783 = vmatprep.mubr.f32.mxu0 0.0
  %2784 = vmatmul.mubr.f32.gmra.mxu0 %v2711
  %v2785 = vpop.f32.mrf.mxu0
  %v2786 = vadd.f32 %v2709, %v2785
  %v2787 = vpop.f32.mrf.mxu0
  %2788 = vmatprep.mubr.f32.mxu0 0.0
  %2789 = vmatmul.mubr.f32.gmra.mxu0 %v2713
  %v2790 = vpop.f32.mrf.mxu0
  %v2791 = vadd.f32 %v2709, %v2790
  %v2792 = vpop.f32.mrf.mxu0
  %2793 = vmatprep.mubr.f32.mxu0 0.0
  %2794 = vmatmul.mubr.f32.gmra.mxu0 %v2715
  %v2795 = vpop.f32.mrf.mxu0
  %v2796 = vadd.f32 %v2709, %v2795
  %v2797 = vpop.f32.mrf.mxu0
  %2798 = vmatprep.mubr.f32.mxu0 0.0
  %2799 = vmatmul.mubr.f32.gmra.mxu0 %v2717
  %v2800 = vpop.f32.mrf.mxu0
  %v2801 = vadd.f32 %v2709, %v2800
  %v2802 = vpop.f32.mrf.mxu0
  %2803 = vdwg.mxu0
  %2804 = vrot.lane.b32.xlu0 %v80, 96
  %v2805 = vpop.permute.xlu0 %2804
  %2806 = vrot.lane.b32.xlu0 %v81, 96
  %v2807 = vpop.permute.xlu0 %2806
  %2808 = vrot.lane.b32.xlu0 %v82, 96
  %v2809 = vpop.permute.xlu0 %2808
  %2810 = vrot.lane.b32.xlu0 %v83, 96
  %v2811 = vpop.permute.xlu0 %2810
  %2812 = vrot.lane.b32.xlu0 %v2461, 96
  %v2813 = vpop.permute.xlu0 %2812
  %2814 = vrot.lane.b32.xlu0 %v2462, 96
  %v2815 = vpop.permute.xlu0 %2814
  %2818 = vrot.lane.b32.xlu0 %v2481, 96
  %v2819 = vpop.permute.xlu0 %2818
  %v2821 = vsel %vm731, %v2805, 0
  %v2823 = vsel %vm731, %v2807, 0
  %v2825 = vsel %vm731, %v2809, 0
  %v2827 = vsel %vm731, %v2811, 0
  %2829 = vmatprep.subr.mxu0 0.0
  %2830 = vmatpush1.msra.mxu0 0.0
  %2831 = vmatprep.subr.mxu0 0.0
  %2832 = vmatpush1.msra.mxu0 0.0
  %2833 = vmatprep.subr.mxu0 0.0
  %2834 = vmatpush1.msra.mxu0 0.0
  %2835 = vmatprep.subr.mxu0 0.0
  %2836 = vmatpush1.msra.mxu0 0.0
  %2837 = vmatprep.subr.mxu0 0.0
  %2838 = vmatpush1.msra.mxu0 0.0
  %2839 = vmatprep.subr.mxu0 0.0
  %2840 = vmatpush1.msra.mxu0 0.0
  %2841 = vmatprep.subr.mxu0 0.0
  %2842 = vmatpush1.msra.mxu0 0.0
  %2843 = vmatprep.subr.mxu0 0.0
  %2844 = vmatpush1.msra.mxu0 0.0
  %2845 = vmatprep.subr.mxu0 0.0
  %2846 = vmatpush1.msra.mxu0 0.0
  %2847 = vmatprep.subr.mxu0 0.0
  %2848 = vmatpush1.msra.mxu0 0.0
  %2849 = vmatprep.subr.mxu0 0.0
  %2850 = vmatpush1.msra.mxu0 0.0
  %2851 = vmatprep.subr.mxu0 0.0
  %2852 = vmatpush1.msra.mxu0 0.0
  %2853 = vmatprep.subr.mxu0 0.0
  %2854 = vmatpush1.msra.mxu0 0.0
  %2855 = vmatprep.subr.mxu0 0.0
  %2856 = vmatpush1.msra.mxu0 0.0
  %2857 = vmatprep.subr.mxu0 0.0
  %2858 = vmatpush1.msra.mxu0 %v2815
  %2859 = vmatprep.subr.mxu0 0.0
  %2860 = vmatpush1.msra.mxu0 %v2813
  %2861 = vmatprep.subr.mxu0 0.0
  %2862 = vmatpush2.msra.mxu0 0.0
  %2863 = vmatprep.subr.mxu0 0.0
  %2864 = vmatpush2.msra.mxu0 0.0
  %2865 = vmatprep.subr.mxu0 0.0
  %2866 = vmatpush2.msra.mxu0 0.0
  %2867 = vmatprep.subr.mxu0 0.0
  %2868 = vmatpush2.msra.mxu0 0.0
  %2869 = vmatprep.subr.mxu0 0.0
  %2870 = vmatpush2.msra.mxu0 0.0
  %2871 = vmatprep.subr.mxu0 0.0
  %2872 = vmatpush2.msra.mxu0 0.0
  %2873 = vmatprep.subr.mxu0 0.0
  %2874 = vmatpush2.msra.mxu0 0.0
  %2875 = vmatprep.subr.mxu0 0.0
  %2876 = vmatpush2.msra.mxu0 0.0
  %2877 = vmatprep.subr.mxu0 0.0
  %2878 = vmatpush2.msra.mxu0 0.0
  %2879 = vmatprep.subr.mxu0 0.0
  %2880 = vmatpush2.msra.mxu0 0.0
  %2881 = vmatprep.subr.mxu0 0.0
  %2882 = vmatpush2.msra.mxu0 0.0
  %2883 = vmatprep.subr.mxu0 0.0
  %2884 = vmatpush2.msra.mxu0 0.0
  %2885 = vmatprep.subr.mxu0 0.0
  %2886 = vmatpush2.msra.mxu0 0.0
  %2887 = vmatprep.subr.mxu0 0.0
  %2888 = vmatpush2.msra.mxu0 0.0
  %2889 = vmatprep.subr.mxu0 0.0
  %2890 = vmatpush2.msra.mxu0 0.0
  %2891 = vmatprep.subr.mxu0 0.0
  %2892 = vmatpush2.msra.mxu0 0.0
  %2893 = vmatprep.mubr.f32.mxu0 0.0
  %2894 = vmatmul.mubr.f32.gmra.mxu0 %v2821
  %v2895 = vpop.f32.mrf.mxu0
  %v2896 = vadd.f32 %v2819, %v2895
  %v2897 = vpop.f32.mrf.mxu0
  %2898 = vmatprep.mubr.f32.mxu0 0.0
  %2899 = vmatmul.mubr.f32.gmra.mxu0 %v2823
  %v2900 = vpop.f32.mrf.mxu0
  %v2901 = vadd.f32 %v2819, %v2900
  %v2902 = vpop.f32.mrf.mxu0
  %2903 = vmatprep.mubr.f32.mxu0 0.0
  %2904 = vmatmul.mubr.f32.gmra.mxu0 %v2825
  %v2905 = vpop.f32.mrf.mxu0
  %v2906 = vadd.f32 %v2819, %v2905
  %v2907 = vpop.f32.mrf.mxu0
  %2908 = vmatprep.mubr.f32.mxu0 0.0
  %2909 = vmatmul.mubr.f32.gmra.mxu0 %v2827
  %v2910 = vpop.f32.mrf.mxu0
  %v2911 = vadd.f32 %v2819, %v2910
  %v2912 = vpop.f32.mrf.mxu0
  %2913 = vdwg.mxu0
  %v2915 = vsel %vm731, %v2614, 0
  %v2918 = vsel %vm731, %v2619, 0
  %v2921 = vsel %vm731, %v2624, 0
  %v2924 = vsel %vm731, %v2629, 0
  %v2927 = vsel %vm731, %v2634, 0
  %v2930 = vsel %vm731, %v2639, 0
  %v2933 = vsel %vm731, %v2644, 0
  %v2936 = vsel %vm731, %v2649, 0
  %v2939 = vsel %vm731, %v2786, 0
  %v2942 = vsel %vm731, %v2791, 0
  %2944 = vmatprep.subr.mxu0 0.0
  %2945 = vmatpush1.xpose.msra.mxu0 0.0
  %2946 = vmatprep.subr.mxu0 0.0
  %2947 = vmatpush1.xpose.msra.mxu0 0.0
  %2948 = vmatprep.subr.mxu0 0.0
  %2949 = vmatpush1.xpose.msra.mxu0 0.0
  %2950 = vmatprep.subr.mxu0 0.0
  %2951 = vmatpush1.xpose.msra.mxu0 0.0
  %2952 = vmatprep.subr.mxu0 0.0
  %2953 = vmatpush1.xpose.msra.mxu0 0.0
  %2954 = vmatprep.subr.mxu0 0.0
  %2955 = vmatpush1.xpose.msra.mxu0 0.0
  %2956 = vmatprep.subr.mxu0 0.0
  %2957 = vmatpush1.xpose.msra.mxu0 0.0
  %2958 = vmatprep.subr.mxu0 0.0
  %2959 = vmatpush1.xpose.msra.mxu0 0.0
  %2960 = vmatprep.subr.mxu0 0.0
  %2961 = vmatpush1.xpose.msra.mxu0 0.0
  %2962 = vmatprep.subr.mxu0 0.0
  %2963 = vmatpush1.xpose.msra.mxu0 0.0
  %2964 = vmatprep.subr.mxu0 0.0
  %2965 = vmatpush1.xpose.msra.mxu0 0.0
  %2966 = vmatprep.subr.mxu0 0.0
  %2967 = vmatpush1.xpose.msra.mxu0 0.0
  %2968 = vmatprep.subr.mxu0 0.0
  %2969 = vmatpush1.xpose.msra.mxu0 0.0
  %2970 = vmatprep.subr.mxu0 0.0
  %2971 = vmatpush1.xpose.msra.mxu0 0.0
  %2972 = vmatprep.subr.mxu0 0.0
  %2973 = vmatpush1.xpose.msra.mxu0 %v2942
  %2974 = vmatprep.subr.mxu0 0.0
  %2975 = vmatpush1.xpose.msra.mxu0 %v2939
  %2976 = vmatprep.subr.mxu0 0.0
  %2977 = vmatpush2.xpose.msra.mxu0 0.0
  %2978 = vmatprep.subr.mxu0 0.0
  %2979 = vmatpush2.xpose.msra.mxu0 0.0
  %2980 = vmatprep.subr.mxu0 0.0
  %2981 = vmatpush2.xpose.msra.mxu0 0.0
  %2982 = vmatprep.subr.mxu0 0.0
  %2983 = vmatpush2.xpose.msra.mxu0 0.0
  %2984 = vmatprep.subr.mxu0 0.0
  %2985 = vmatpush2.xpose.msra.mxu0 0.0
  %2986 = vmatprep.subr.mxu0 0.0
  %2987 = vmatpush2.xpose.msra.mxu0 0.0
  %2988 = vmatprep.subr.mxu0 0.0
  %2989 = vmatpush2.xpose.msra.mxu0 0.0
  %2990 = vmatprep.subr.mxu0 0.0
  %2991 = vmatpush2.xpose.msra.mxu0 0.0
  %2992 = vmatprep.subr.mxu0 0.0
  %2993 = vmatpush2.xpose.msra.mxu0 0.0
  %2994 = vmatprep.subr.mxu0 0.0
  %2995 = vmatpush2.xpose.msra.mxu0 0.0
  %2996 = vmatprep.subr.mxu0 0.0
  %2997 = vmatpush2.xpose.msra.mxu0 0.0
  %2998 = vmatprep.subr.mxu0 0.0
  %2999 = vmatpush2.xpose.msra.mxu0 0.0
  %3000 = vmatprep.subr.mxu0 0.0
  %3001 = vmatpush2.xpose.msra.mxu0 0.0
  %3002 = vmatprep.subr.mxu0 0.0
  %3003 = vmatpush2.xpose.msra.mxu0 0.0
  %3004 = vmatprep.subr.mxu0 0.0
  %3005 = vmatpush2.xpose.msra.mxu0 0.0
  %3006 = vmatprep.subr.mxu0 0.0
  %3007 = vmatpush2.xpose.msra.mxu0 0.0
  %3008 = vmatprep.mubr.f32.mxu0 0.0
  %3009 = vmatmul.mubr.f32.gmra.mxu0 %v2915
  %v3010 = vpop.f32.mrf.mxu0
  %v3011 = vadd.f32 0.0, %v3010
  %v3012 = vpop.f32.mrf.mxu0
  %3013 = vmatprep.mubr.f32.mxu0 0.0
  %3014 = vmatmul.mubr.f32.gmra.mxu0 %v2918
  %v3015 = vpop.f32.mrf.mxu0
  %v3016 = vadd.f32 0.0, %v3015
  %v3017 = vpop.f32.mrf.mxu0
  %3018 = vmatprep.mubr.f32.mxu0 0.0
  %3019 = vmatmul.mubr.f32.gmra.mxu0 %v2921
  %v3020 = vpop.f32.mrf.mxu0
  %v3021 = vadd.f32 0.0, %v3020
  %v3022 = vpop.f32.mrf.mxu0
  %3023 = vmatprep.mubr.f32.mxu0 0.0
  %3024 = vmatmul.mubr.f32.gmra.mxu0 %v2924
  %v3025 = vpop.f32.mrf.mxu0
  %v3026 = vadd.f32 0.0, %v3025
  %v3027 = vpop.f32.mrf.mxu0
  %3028 = vmatprep.mubr.f32.mxu0 0.0
  %3029 = vmatmul.mubr.f32.gmra.mxu0 %v2927
  %v3030 = vpop.f32.mrf.mxu0
  %v3031 = vadd.f32 0.0, %v3030
  %v3032 = vpop.f32.mrf.mxu0
  %3033 = vmatprep.mubr.f32.mxu0 0.0
  %3034 = vmatmul.mubr.f32.gmra.mxu0 %v2930
  %v3035 = vpop.f32.mrf.mxu0
  %v3036 = vadd.f32 0.0, %v3035
  %v3037 = vpop.f32.mrf.mxu0
  %3038 = vmatprep.mubr.f32.mxu0 0.0
  %3039 = vmatmul.mubr.f32.gmra.mxu0 %v2933
  %v3040 = vpop.f32.mrf.mxu0
  %v3041 = vadd.f32 0.0, %v3040
  %v3042 = vpop.f32.mrf.mxu0
  %3043 = vmatprep.mubr.f32.mxu0 0.0
  %3044 = vmatmul.mubr.f32.gmra.mxu0 %v2936
  %v3045 = vpop.f32.mrf.mxu0
  %v3046 = vadd.f32 0.0, %v3045
  %v3047 = vpop.f32.mrf.mxu0
  %3048 = vdwg.mxu0
  %v3049 = vmul.f32 %v3011, 0.25
  %v3050 = vmul.f32 %v3016, 0.25
  %v3051 = vmul.f32 %v3021, 0.25
  %v3052 = vmul.f32 %v3026, 0.25
  %v3053 = vmul.f32 %v3031, 0.25
  %v3054 = vmul.f32 %v3036, 0.25
  %v3055 = vmul.f32 %v3041, 0.25
  %v3056 = vmul.f32 %v3046, 0.25
  %v3057 = vsel %vm731, %v3049, -inf
  %3058 = vmax.xlane.f32.xlu0 %v3057
  %v3059 = vpop.xlane.xlu0 %3058
  %v3060 = vsel %vm731, %v3050, -inf
  %3061 = vmax.xlane.f32.xlu0 %v3060
  %v3062 = vpop.xlane.xlu0 %3061
  %v3063 = vsel %vm731, %v3051, -inf
  %3064 = vmax.xlane.f32.xlu0 %v3063
  %v3065 = vpop.xlane.xlu0 %3064
  %v3066 = vsel %vm731, %v3052, -inf
  %3067 = vmax.xlane.f32.xlu0 %v3066
  %v3068 = vpop.xlane.xlu0 %3067
  %v3069 = vsel %vm731, %v3053, -inf
  %3070 = vmax.xlane.f32.xlu0 %v3069
  %v3071 = vpop.xlane.xlu0 %3070
  %v3072 = vsel %vm731, %v3054, -inf
  %3073 = vmax.xlane.f32.xlu0 %v3072
  %v3074 = vpop.xlane.xlu0 %3073
  %v3075 = vsel %vm731, %v3055, -inf
  %3076 = vmax.xlane.f32.xlu0 %v3075
  %v3077 = vpop.xlane.xlu0 %3076
  %v3078 = vsel %vm731, %v3056, -inf
  %3079 = vmax.xlane.f32.xlu0 %v3078
  %v3080 = vpop.xlane.xlu0 %3079
  %v3081 = vsub.f32 %v3049, %v3059
  %v3082 = vsub.f32 %v3050, %v3062
  %v3083 = vsub.f32 %v3051, %v3065
  %v3084 = vsub.f32 %v3052, %v3068
  %v3085 = vsub.f32 %v3053, %v3071
  %v3086 = vsub.f32 %v3054, %v3074
  %v3087 = vsub.f32 %v3055, %v3077
  %v3088 = vsub.f32 %v3056, %v3080
  %v3089 = vmul.f32 %v3081, 1.442695
  %v3090 = vpow.pop %v3089
  %v3091 = vmul.f32 %v3082, 1.442695
  %v3092 = vpow.pop %v3091
  %v3093 = vmul.f32 %v3083, 1.442695
  %v3094 = vpow.pop %v3093
  %v3095 = vmul.f32 %v3084, 1.442695
  %v3096 = vpow.pop %v3095
  %v3097 = vmul.f32 %v3085, 1.442695
  %v3098 = vpow.pop %v3097
  %v3099 = vmul.f32 %v3086, 1.442695
  %v3100 = vpow.pop %v3099
  %v3101 = vmul.f32 %v3087, 1.442695
  %v3102 = vpow.pop %v3101
  %v3103 = vmul.f32 %v3088, 1.442695
  %v3104 = vpow.pop %v3103
  %v3105 = vsel %vm731, %v3090, 0.0
  %3106 = vadd.xlane.f32.xlu0 %v3105
  %v3107 = vpop.xlane.xlu0 %3106
  %v3108 = vsel %vm731, %v3092, 0.0
  %3109 = vadd.xlane.f32.xlu0 %v3108
  %v3110 = vpop.xlane.xlu0 %3109
  %v3111 = vsel %vm731, %v3094, 0.0
  %3112 = vadd.xlane.f32.xlu0 %v3111
  %v3113 = vpop.xlane.xlu0 %3112
  %v3114 = vsel %vm731, %v3096, 0.0
  %3115 = vadd.xlane.f32.xlu0 %v3114
  %v3116 = vpop.xlane.xlu0 %3115
  %v3117 = vsel %vm731, %v3098, 0.0
  %3118 = vadd.xlane.f32.xlu0 %v3117
  %v3119 = vpop.xlane.xlu0 %3118
  %v3120 = vsel %vm731, %v3100, 0.0
  %3121 = vadd.xlane.f32.xlu0 %v3120
  %v3122 = vpop.xlane.xlu0 %3121
  %v3123 = vsel %vm731, %v3102, 0.0
  %3124 = vadd.xlane.f32.xlu0 %v3123
  %v3125 = vpop.xlane.xlu0 %3124
  %v3126 = vsel %vm731, %v3104, 0.0
  %3127 = vadd.xlane.f32.xlu0 %v3126
  %v3128 = vpop.xlane.xlu0 %3127
  %v3129 = vrcp.pop %v3107
  %v3130 = vrcp.pop %v3110
  %v3131 = vrcp.pop %v3113
  %v3132 = vrcp.pop %v3116
  %v3133 = vrcp.pop %v3119
  %v3134 = vrcp.pop %v3122
  %v3135 = vrcp.pop %v3125
  %v3136 = vrcp.pop %v3128
  %v3137 = vmul.f32 %v3090, %v3129
  %v3138 = vmul.f32 %v3092, %v3130
  %v3139 = vmul.f32 %v3094, %v3131
  %v3140 = vmul.f32 %v3096, %v3132
  %v3141 = vmul.f32 %v3098, %v3133
  %v3142 = vmul.f32 %v3100, %v3134
  %v3143 = vmul.f32 %v3102, %v3135
  %v3144 = vmul.f32 %v3104, %v3136
  %v3146 = vsel %vm731, %v3137, 0
  %v3149 = vsel %vm731, %v3138, 0
  %v3152 = vsel %vm731, %v3139, 0
  %v3155 = vsel %vm731, %v3140, 0
  %v3158 = vsel %vm731, %v3141, 0
  %v3161 = vsel %vm731, %v3142, 0
  %v3164 = vsel %vm731, %v3143, 0
  %v3167 = vsel %vm731, %v3144, 0
  %3169 = vmatprep.subr.mxu0 0.0
  %3170 = vmatpush1.msra.mxu0 0.0
  %3171 = vmatprep.subr.mxu0 0.0
  %3172 = vmatpush1.msra.mxu0 0.0
  %3173 = vmatprep.subr.mxu0 0.0
  %3174 = vmatpush1.msra.mxu0 0.0
  %3175 = vmatprep.subr.mxu0 0.0
  %3176 = vmatpush1.msra.mxu0 0.0
  %3177 = vmatprep.subr.mxu0 0.0
  %3178 = vmatpush1.msra.mxu0 0.0
  %3179 = vmatprep.subr.mxu0 0.0
  %3180 = vmatpush1.msra.mxu0 0.0
  %3181 = vmatprep.subr.mxu0 0.0
  %3182 = vmatpush1.msra.mxu0 0.0
  %3183 = vmatprep.subr.mxu0 0.0
  %3184 = vmatpush1.msra.mxu0 0.0
  %3185 = vmatprep.subr.mxu0 0.0
  %3186 = vmatpush1.msra.mxu0 0.0
  %3187 = vmatprep.subr.mxu0 0.0
  %3188 = vmatpush1.msra.mxu0 0.0
  %3189 = vmatprep.subr.mxu0 0.0
  %3190 = vmatpush1.msra.mxu0 0.0
  %3191 = vmatprep.subr.mxu0 0.0
  %3192 = vmatpush1.msra.mxu0 0.0
  %3193 = vmatprep.subr.mxu0 0.0
  %3194 = vmatpush1.msra.mxu0 0.0
  %3195 = vmatprep.subr.mxu0 0.0
  %3196 = vmatpush1.msra.mxu0 0.0
  %3197 = vmatprep.subr.mxu0 0.0
  %3198 = vmatpush1.msra.mxu0 %v2901
  %3199 = vmatprep.subr.mxu0 0.0
  %3200 = vmatpush1.msra.mxu0 %v2896
  %3201 = vmatprep.subr.mxu0 0.0
  %3202 = vmatpush2.msra.mxu0 0.0
  %3203 = vmatprep.subr.mxu0 0.0
  %3204 = vmatpush2.msra.mxu0 0.0
  %3205 = vmatprep.subr.mxu0 0.0
  %3206 = vmatpush2.msra.mxu0 0.0
  %3207 = vmatprep.subr.mxu0 0.0
  %3208 = vmatpush2.msra.mxu0 0.0
  %3209 = vmatprep.subr.mxu0 0.0
  %3210 = vmatpush2.msra.mxu0 0.0
  %3211 = vmatprep.subr.mxu0 0.0
  %3212 = vmatpush2.msra.mxu0 0.0
  %3213 = vmatprep.subr.mxu0 0.0
  %3214 = vmatpush2.msra.mxu0 0.0
  %3215 = vmatprep.subr.mxu0 0.0
  %3216 = vmatpush2.msra.mxu0 0.0
  %3217 = vmatprep.subr.mxu0 0.0
  %3218 = vmatpush2.msra.mxu0 0.0
  %3219 = vmatprep.subr.mxu0 0.0
  %3220 = vmatpush2.msra.mxu0 0.0
  %3221 = vmatprep.subr.mxu0 0.0
  %3222 = vmatpush2.msra.mxu0 0.0
  %3223 = vmatprep.subr.mxu0 0.0
  %3224 = vmatpush2.msra.mxu0 0.0
  %3225 = vmatprep.subr.mxu0 0.0
  %3226 = vmatpush2.msra.mxu0 0.0
  %3227 = vmatprep.subr.mxu0 0.0
  %3228 = vmatpush2.msra.mxu0 0.0
  %3229 = vmatprep.subr.mxu0 0.0
  %3230 = vmatpush2.msra.mxu0 0.0
  %3231 = vmatprep.subr.mxu0 0.0
  %3232 = vmatpush2.msra.mxu0 0.0
  %3233 = vmatprep.mubr.f32.mxu0 0.0
  %3234 = vmatmul.mubr.f32.gmra.mxu0 %v3146
  %v3235 = vpop.f32.mrf.mxu0
  %v3236 = vadd.f32 0.0, %v3235
  %v3237 = vpop.f32.mrf.mxu0
  %3238 = vmatprep.mubr.f32.mxu0 0.0
  %3239 = vmatmul.mubr.f32.gmra.mxu0 %v3149
  %v3240 = vpop.f32.mrf.mxu0
  %v3241 = vadd.f32 0.0, %v3240
  %v3242 = vpop.f32.mrf.mxu0
  %3243 = vmatprep.mubr.f32.mxu0 0.0
  %3244 = vmatmul.mubr.f32.gmra.mxu0 %v3152
  %v3245 = vpop.f32.mrf.mxu0
  %v3246 = vadd.f32 0.0, %v3245
  %v3247 = vpop.f32.mrf.mxu0
  %3248 = vmatprep.mubr.f32.mxu0 0.0
  %3249 = vmatmul.mubr.f32.gmra.mxu0 %v3155
  %v3250 = vpop.f32.mrf.mxu0
  %v3251 = vadd.f32 0.0, %v3250
  %v3252 = vpop.f32.mrf.mxu0
  %3253 = vmatprep.mubr.f32.mxu0 0.0
  %3254 = vmatmul.mubr.f32.gmra.mxu0 %v3158
  %v3255 = vpop.f32.mrf.mxu0
  %v3256 = vadd.f32 0.0, %v3255
  %v3257 = vpop.f32.mrf.mxu0
  %3258 = vmatprep.mubr.f32.mxu0 0.0
  %3259 = vmatmul.mubr.f32.gmra.mxu0 %v3161
  %v3260 = vpop.f32.mrf.mxu0
  %v3261 = vadd.f32 0.0, %v3260
  %v3262 = vpop.f32.mrf.mxu0
  %3263 = vmatprep.mubr.f32.mxu0 0.0
  %3264 = vmatmul.mubr.f32.gmra.mxu0 %v3164
  %v3265 = vpop.f32.mrf.mxu0
  %v3266 = vadd.f32 0.0, %v3265
  %v3267 = vpop.f32.mrf.mxu0
  %3268 = vmatprep.mubr.f32.mxu0 0.0
  %3269 = vmatmul.mubr.f32.gmra.mxu0 %v3167
  %v3270 = vpop.f32.mrf.mxu0
  %v3271 = vadd.f32 0.0, %v3270
  %v3272 = vpop.f32.mrf.mxu0
  %3273 = vdwg.mxu0
  %v3275 = vsel %vm731, %v2654, 0
  %v3278 = vsel %vm731, %v2659, 0
  %v3281 = vsel %vm731, %v2664, 0
  %v3284 = vsel %vm731, %v2669, 0
  %v3287 = vsel %vm731, %v2674, 0
  %v3290 = vsel %vm731, %v2679, 0
  %v3293 = vsel %vm731, %v2684, 0
  %v3296 = vsel %vm731, %v2689, 0
  %v3299 = vsel %vm731, %v2796, 0
  %v3302 = vsel %vm731, %v2801, 0
  %3304 = vmatprep.subr.mxu0 0.0
  %3305 = vmatpush1.xpose.msra.mxu0 0.0
  %3306 = vmatprep.subr.mxu0 0.0
  %3307 = vmatpush1.xpose.msra.mxu0 0.0
  %3308 = vmatprep.subr.mxu0 0.0
  %3309 = vmatpush1.xpose.msra.mxu0 0.0
  %3310 = vmatprep.subr.mxu0 0.0
  %3311 = vmatpush1.xpose.msra.mxu0 0.0
  %3312 = vmatprep.subr.mxu0 0.0
  %3313 = vmatpush1.xpose.msra.mxu0 0.0
  %3314 = vmatprep.subr.mxu0 0.0
  %3315 = vmatpush1.xpose.msra.mxu0 0.0
  %3316 = vmatprep.subr.mxu0 0.0
  %3317 = vmatpush1.xpose.msra.mxu0 0.0
  %3318 = vmatprep.subr.mxu0 0.0
  %3319 = vmatpush1.xpose.msra.mxu0 0.0
  %3320 = vmatprep.subr.mxu0 0.0
  %3321 = vmatpush1.xpose.msra.mxu0 0.0
  %3322 = vmatprep.subr.mxu0 0.0
  %3323 = vmatpush1.xpose.msra.mxu0 0.0
  %3324 = vmatprep.subr.mxu0 0.0
  %3325 = vmatpush1.xpose.msra.mxu0 0.0
  %3326 = vmatprep.subr.mxu0 0.0
  %3327 = vmatpush1.xpose.msra.mxu0 0.0
  %3328 = vmatprep.subr.mxu0 0.0
  %3329 = vmatpush1.xpose.msra.mxu0 0.0
  %3330 = vmatprep.subr.mxu0 0.0
  %3331 = vmatpush1.xpose.msra.mxu0 0.0
  %3332 = vmatprep.subr.mxu0 0.0
  %3333 = vmatpush1.xpose.msra.mxu0 %v3302
  %3334 = vmatprep.subr.mxu0 0.0
  %3335 = vmatpush1.xpose.msra.mxu0 %v3299
  %3336 = vmatprep.subr.mxu0 0.0
  %3337 = vmatpush2.xpose.msra.mxu0 0.0
  %3338 = vmatprep.subr.mxu0 0.0
  %3339 = vmatpush2.xpose.msra.mxu0 0.0
  %3340 = vmatprep.subr.mxu0 0.0
  %3341 = vmatpush2.xpose.msra.mxu0 0.0
  %3342 = vmatprep.subr.mxu0 0.0
  %3343 = vmatpush2.xpose.msra.mxu0 0.0
  %3344 = vmatprep.subr.mxu0 0.0
  %3345 = vmatpush2.xpose.msra.mxu0 0.0
  %3346 = vmatprep.subr.mxu0 0.0
  %3347 = vmatpush2.xpose.msra.mxu0 0.0
  %3348 = vmatprep.subr.mxu0 0.0
  %3349 = vmatpush2.xpose.msra.mxu0 0.0
  %3350 = vmatprep.subr.mxu0 0.0
  %3351 = vmatpush2.xpose.msra.mxu0 0.0
  %3352 = vmatprep.subr.mxu0 0.0
  %3353 = vmatpush2.xpose.msra.mxu0 0.0
  %3354 = vmatprep.subr.mxu0 0.0
  %3355 = vmatpush2.xpose.msra.mxu0 0.0
  %3356 = vmatprep.subr.mxu0 0.0
  %3357 = vmatpush2.xpose.msra.mxu0 0.0
  %3358 = vmatprep.subr.mxu0 0.0
  %3359 = vmatpush2.xpose.msra.mxu0 0.0
  %3360 = vmatprep.subr.mxu0 0.0
  %3361 = vmatpush2.xpose.msra.mxu0 0.0
  %3362 = vmatprep.subr.mxu0 0.0
  %3363 = vmatpush2.xpose.msra.mxu0 0.0
  %3364 = vmatprep.subr.mxu0 0.0
  %3365 = vmatpush2.xpose.msra.mxu0 0.0
  %3366 = vmatprep.subr.mxu0 0.0
  %3367 = vmatpush2.xpose.msra.mxu0 0.0
  %3368 = vmatprep.mubr.f32.mxu0 0.0
  %3369 = vmatmul.mubr.f32.gmra.mxu0 %v3275
  %v3370 = vpop.f32.mrf.mxu0
  %v3371 = vadd.f32 0.0, %v3370
  %v3372 = vpop.f32.mrf.mxu0
  %3373 = vmatprep.mubr.f32.mxu0 0.0
  %3374 = vmatmul.mubr.f32.gmra.mxu0 %v3278
  %v3375 = vpop.f32.mrf.mxu0
  %v3376 = vadd.f32 0.0, %v3375
  %v3377 = vpop.f32.mrf.mxu0
  %3378 = vmatprep.mubr.f32.mxu0 0.0
  %3379 = vmatmul.mubr.f32.gmra.mxu0 %v3281
  %v3380 = vpop.f32.mrf.mxu0
  %v3381 = vadd.f32 0.0, %v3380
  %v3382 = vpop.f32.mrf.mxu0
  %3383 = vmatprep.mubr.f32.mxu0 0.0
  %3384 = vmatmul.mubr.f32.gmra.mxu0 %v3284
  %v3385 = vpop.f32.mrf.mxu0
  %v3386 = vadd.f32 0.0, %v3385
  %v3387 = vpop.f32.mrf.mxu0
  %3388 = vmatprep.mubr.f32.mxu0 0.0
  %3389 = vmatmul.mubr.f32.gmra.mxu0 %v3287
  %v3390 = vpop.f32.mrf.mxu0
  %v3391 = vadd.f32 0.0, %v3390
  %v3392 = vpop.f32.mrf.mxu0
  %3393 = vmatprep.mubr.f32.mxu0 0.0
  %3394 = vmatmul.mubr.f32.gmra.mxu0 %v3290
  %v3395 = vpop.f32.mrf.mxu0
  %v3396 = vadd.f32 0.0, %v3395
  %v3397 = vpop.f32.mrf.mxu0
  %3398 = vmatprep.mubr.f32.mxu0 0.0
  %3399 = vmatmul.mubr.f32.gmra.mxu0 %v3293
  %v3400 = vpop.f32.mrf.mxu0
  %v3401 = vadd.f32 0.0, %v3400
  %v3402 = vpop.f32.mrf.mxu0
  %3403 = vmatprep.mubr.f32.mxu0 0.0
  %3404 = vmatmul.mubr.f32.gmra.mxu0 %v3296
  %v3405 = vpop.f32.mrf.mxu0
  %v3406 = vadd.f32 0.0, %v3405
  %v3407 = vpop.f32.mrf.mxu0
  %3408 = vdwg.mxu0
  %v3409 = vmul.f32 %v3371, 0.25
  %v3410 = vmul.f32 %v3376, 0.25
  %v3411 = vmul.f32 %v3381, 0.25
  %v3412 = vmul.f32 %v3386, 0.25
  %v3413 = vmul.f32 %v3391, 0.25
  %v3414 = vmul.f32 %v3396, 0.25
  %v3415 = vmul.f32 %v3401, 0.25
  %v3416 = vmul.f32 %v3406, 0.25
  %v3417 = vsel %vm731, %v3409, -inf
  %3418 = vmax.xlane.f32.xlu0 %v3417
  %v3419 = vpop.xlane.xlu0 %3418
  %v3420 = vsel %vm731, %v3410, -inf
  %3421 = vmax.xlane.f32.xlu0 %v3420
  %v3422 = vpop.xlane.xlu0 %3421
  %v3423 = vsel %vm731, %v3411, -inf
  %3424 = vmax.xlane.f32.xlu0 %v3423
  %v3425 = vpop.xlane.xlu0 %3424
  %v3426 = vsel %vm731, %v3412, -inf
  %3427 = vmax.xlane.f32.xlu0 %v3426
  %v3428 = vpop.xlane.xlu0 %3427
  %v3429 = vsel %vm731, %v3413, -inf
  %3430 = vmax.xlane.f32.xlu0 %v3429
  %v3431 = vpop.xlane.xlu0 %3430
  %v3432 = vsel %vm731, %v3414, -inf
  %3433 = vmax.xlane.f32.xlu0 %v3432
  %v3434 = vpop.xlane.xlu0 %3433
  %v3435 = vsel %vm731, %v3415, -inf
  %3436 = vmax.xlane.f32.xlu0 %v3435
  %v3437 = vpop.xlane.xlu0 %3436
  %v3438 = vsel %vm731, %v3416, -inf
  %3439 = vmax.xlane.f32.xlu0 %v3438
  %v3440 = vpop.xlane.xlu0 %3439
  %v3441 = vsub.f32 %v3409, %v3419
  %v3442 = vsub.f32 %v3410, %v3422
  %v3443 = vsub.f32 %v3411, %v3425
  %v3444 = vsub.f32 %v3412, %v3428
  %v3445 = vsub.f32 %v3413, %v3431
  %v3446 = vsub.f32 %v3414, %v3434
  %v3447 = vsub.f32 %v3415, %v3437
  %v3448 = vsub.f32 %v3416, %v3440
  %v3449 = vmul.f32 %v3441, 1.442695
  %v3450 = vpow.pop %v3449
  %v3451 = vmul.f32 %v3442, 1.442695
  %v3452 = vpow.pop %v3451
  %v3453 = vmul.f32 %v3443, 1.442695
  %v3454 = vpow.pop %v3453
  %v3455 = vmul.f32 %v3444, 1.442695
  %v3456 = vpow.pop %v3455
  %v3457 = vmul.f32 %v3445, 1.442695
  %v3458 = vpow.pop %v3457
  %v3459 = vmul.f32 %v3446, 1.442695
  %v3460 = vpow.pop %v3459
  %v3461 = vmul.f32 %v3447, 1.442695
  %v3462 = vpow.pop %v3461
  %v3463 = vmul.f32 %v3448, 1.442695
  %v3464 = vpow.pop %v3463
  %v3465 = vsel %vm731, %v3450, 0.0
  %3466 = vadd.xlane.f32.xlu0 %v3465
  %v3467 = vpop.xlane.xlu0 %3466
  %v3468 = vsel %vm731, %v3452, 0.0
  %3469 = vadd.xlane.f32.xlu0 %v3468
  %v3470 = vpop.xlane.xlu0 %3469
  %v3471 = vsel %vm731, %v3454, 0.0
  %3472 = vadd.xlane.f32.xlu0 %v3471
  %v3473 = vpop.xlane.xlu0 %3472
  %v3474 = vsel %vm731, %v3456, 0.0
  %3475 = vadd.xlane.f32.xlu0 %v3474
  %v3476 = vpop.xlane.xlu0 %3475
  %v3477 = vsel %vm731, %v3458, 0.0
  %3478 = vadd.xlane.f32.xlu0 %v3477
  %v3479 = vpop.xlane.xlu0 %3478
  %v3480 = vsel %vm731, %v3460, 0.0
  %3481 = vadd.xlane.f32.xlu0 %v3480
  %v3482 = vpop.xlane.xlu0 %3481
  %v3483 = vsel %vm731, %v3462, 0.0
  %3484 = vadd.xlane.f32.xlu0 %v3483
  %v3485 = vpop.xlane.xlu0 %3484
  %v3486 = vsel %vm731, %v3464, 0.0
  %3487 = vadd.xlane.f32.xlu0 %v3486
  %v3488 = vpop.xlane.xlu0 %3487
  %v3489 = vrcp.pop %v3467
  %v3490 = vrcp.pop %v3470
  %v3491 = vrcp.pop %v3473
  %v3492 = vrcp.pop %v3476
  %v3493 = vrcp.pop %v3479
  %v3494 = vrcp.pop %v3482
  %v3495 = vrcp.pop %v3485
  %v3496 = vrcp.pop %v3488
  %v3497 = vmul.f32 %v3450, %v3489
  %v3498 = vmul.f32 %v3452, %v3490
  %v3499 = vmul.f32 %v3454, %v3491
  %v3500 = vmul.f32 %v3456, %v3492
  %v3501 = vmul.f32 %v3458, %v3493
  %v3502 = vmul.f32 %v3460, %v3494
  %v3503 = vmul.f32 %v3462, %v3495
  %v3504 = vmul.f32 %v3464, %v3496
  %v3506 = vsel %vm731, %v3497, 0
  %v3509 = vsel %vm731, %v3498, 0
  %v3512 = vsel %vm731, %v3499, 0
  %v3515 = vsel %vm731, %v3500, 0
  %v3518 = vsel %vm731, %v3501, 0
  %v3521 = vsel %vm731, %v3502, 0
  %v3524 = vsel %vm731, %v3503, 0
  %v3527 = vsel %vm731, %v3504, 0
  %3529 = vmatprep.subr.mxu0 0.0
  %3530 = vmatpush1.msra.mxu0 0.0
  %3531 = vmatprep.subr.mxu0 0.0
  %3532 = vmatpush1.msra.mxu0 0.0
  %3533 = vmatprep.subr.mxu0 0.0
  %3534 = vmatpush1.msra.mxu0 0.0
  %3535 = vmatprep.subr.mxu0 0.0
  %3536 = vmatpush1.msra.mxu0 0.0
  %3537 = vmatprep.subr.mxu0 0.0
  %3538 = vmatpush1.msra.mxu0 0.0
  %3539 = vmatprep.subr.mxu0 0.0
  %3540 = vmatpush1.msra.mxu0 0.0
  %3541 = vmatprep.subr.mxu0 0.0
  %3542 = vmatpush1.msra.mxu0 0.0
  %3543 = vmatprep.subr.mxu0 0.0
  %3544 = vmatpush1.msra.mxu0 0.0
  %3545 = vmatprep.subr.mxu0 0.0
  %3546 = vmatpush1.msra.mxu0 0.0
  %3547 = vmatprep.subr.mxu0 0.0
  %3548 = vmatpush1.msra.mxu0 0.0
  %3549 = vmatprep.subr.mxu0 0.0
  %3550 = vmatpush1.msra.mxu0 0.0
  %3551 = vmatprep.subr.mxu0 0.0
  %3552 = vmatpush1.msra.mxu0 0.0
  %3553 = vmatprep.subr.mxu0 0.0
  %3554 = vmatpush1.msra.mxu0 0.0
  %3555 = vmatprep.subr.mxu0 0.0
  %3556 = vmatpush1.msra.mxu0 0.0
  %3557 = vmatprep.subr.mxu0 0.0
  %3558 = vmatpush1.msra.mxu0 %v2911
  %3559 = vmatprep.subr.mxu0 0.0
  %3560 = vmatpush1.msra.mxu0 %v2906
  %3561 = vmatprep.subr.mxu0 0.0
  %3562 = vmatpush2.msra.mxu0 0.0
  %3563 = vmatprep.subr.mxu0 0.0
  %3564 = vmatpush2.msra.mxu0 0.0
  %3565 = vmatprep.subr.mxu0 0.0
  %3566 = vmatpush2.msra.mxu0 0.0
  %3567 = vmatprep.subr.mxu0 0.0
  %3568 = vmatpush2.msra.mxu0 0.0
  %3569 = vmatprep.subr.mxu0 0.0
  %3570 = vmatpush2.msra.mxu0 0.0
  %3571 = vmatprep.subr.mxu0 0.0
  %3572 = vmatpush2.msra.mxu0 0.0
  %3573 = vmatprep.subr.mxu0 0.0
  %3574 = vmatpush2.msra.mxu0 0.0
  %3575 = vmatprep.subr.mxu0 0.0
  %3576 = vmatpush2.msra.mxu0 0.0
  %3577 = vmatprep.subr.mxu0 0.0
  %3578 = vmatpush2.msra.mxu0 0.0
  %3579 = vmatprep.subr.mxu0 0.0
  %3580 = vmatpush2.msra.mxu0 0.0
  %3581 = vmatprep.subr.mxu0 0.0
  %3582 = vmatpush2.msra.mxu0 0.0
  %3583 = vmatprep.subr.mxu0 0.0
  %3584 = vmatpush2.msra.mxu0 0.0
  %3585 = vmatprep.subr.mxu0 0.0
  %3586 = vmatpush2.msra.mxu0 0.0
  %3587 = vmatprep.subr.mxu0 0.0
  %3588 = vmatpush2.msra.mxu0 0.0
  %3589 = vmatprep.subr.mxu0 0.0
  %3590 = vmatpush2.msra.mxu0 0.0
  %3591 = vmatprep.subr.mxu0 0.0
  %3592 = vmatpush2.msra.mxu0 0.0
  %3593 = vmatprep.mubr.f32.mxu0 0.0
  %3594 = vmatmul.mubr.f32.gmra.mxu0 %v3506
  %v3595 = vpop.f32.mrf.mxu0
  %v3596 = vadd.f32 0.0, %v3595
  %v3597 = vpop.f32.mrf.mxu0
  %3598 = vmatprep.mubr.f32.mxu0 0.0
  %3599 = vmatmul.mubr.f32.gmra.mxu0 %v3509
  %v3600 = vpop.f32.mrf.mxu0
  %v3601 = vadd.f32 0.0, %v3600
  %v3602 = vpop.f32.mrf.mxu0
  %3603 = vmatprep.mubr.f32.mxu0 0.0
  %3604 = vmatmul.mubr.f32.gmra.mxu0 %v3512
  %v3605 = vpop.f32.mrf.mxu0
  %v3606 = vadd.f32 0.0, %v3605
  %v3607 = vpop.f32.mrf.mxu0
  %3608 = vmatprep.mubr.f32.mxu0 0.0
  %3609 = vmatmul.mubr.f32.gmra.mxu0 %v3515
  %v3610 = vpop.f32.mrf.mxu0
  %v3611 = vadd.f32 0.0, %v3610
  %v3612 = vpop.f32.mrf.mxu0
  %3613 = vmatprep.mubr.f32.mxu0 0.0
  %3614 = vmatmul.mubr.f32.gmra.mxu0 %v3518
  %v3615 = vpop.f32.mrf.mxu0
  %v3616 = vadd.f32 0.0, %v3615
  %v3617 = vpop.f32.mrf.mxu0
  %3618 = vmatprep.mubr.f32.mxu0 0.0
  %3619 = vmatmul.mubr.f32.gmra.mxu0 %v3521
  %v3620 = vpop.f32.mrf.mxu0
  %v3621 = vadd.f32 0.0, %v3620
  %v3622 = vpop.f32.mrf.mxu0
  %3623 = vmatprep.mubr.f32.mxu0 0.0
  %3624 = vmatmul.mubr.f32.gmra.mxu0 %v3524
  %v3625 = vpop.f32.mrf.mxu0
  %v3626 = vadd.f32 0.0, %v3625
  %v3627 = vpop.f32.mrf.mxu0
  %3628 = vmatprep.mubr.f32.mxu0 0.0
  %3629 = vmatmul.mubr.f32.gmra.mxu0 %v3527
  %v3630 = vpop.f32.mrf.mxu0
  %v3631 = vadd.f32 0.0, %v3630
  %v3632 = vpop.f32.mrf.mxu0
  %3633 = vdwg.mxu0
  %3634 = vrot.lane.b32.xlu0 %v2461, 80
  %v3635 = vpop.permute.xlu0 %3634
  %3636 = vrot.lane.b32.xlu0 %v2462, 80
  %v3637 = vpop.permute.xlu0 %3636
  %3640 = vrot.lane.b32.xlu0 %v2481, 80
  %v3641 = vpop.permute.xlu0 %3640
  %v3644 = vsel %vm731, %v3236, 0
  %v3647 = vsel %vm731, %v3241, 0
  %v3650 = vsel %vm731, %v3246, 0
  %v3653 = vsel %vm731, %v3251, 0
  %v3656 = vsel %vm731, %v3256, 0
  %v3659 = vsel %vm731, %v3261, 0
  %v3662 = vsel %vm731, %v3266, 0
  %v3665 = vsel %vm731, %v3271, 0
  %v3668 = vsel %vm731, %v3596, 0
  %v3671 = vsel %vm731, %v3601, 0
  %v3674 = vsel %vm731, %v3606, 0
  %v3677 = vsel %vm731, %v3611, 0
  %v3680 = vsel %vm731, %v3616, 0
  %v3683 = vsel %vm731, %v3621, 0
  %v3686 = vsel %vm731, %v3626, 0
  %v3689 = vsel %vm731, %v3631, 0
  %3691 = vmatprep.subr.mxu0 0.0
  %3692 = vmatpush1.msra.mxu0 0.0
  %3693 = vmatprep.subr.mxu0 0.0
  %3694 = vmatpush1.msra.mxu0 0.0
  %3695 = vmatprep.subr.mxu0 0.0
  %3696 = vmatpush1.msra.mxu0 0.0
  %3697 = vmatprep.subr.mxu0 0.0
  %3698 = vmatpush1.msra.mxu0 0.0
  %3699 = vmatprep.subr.mxu0 0.0
  %3700 = vmatpush1.msra.mxu0 0.0
  %3701 = vmatprep.subr.mxu0 0.0
  %3702 = vmatpush1.msra.mxu0 0.0
  %3703 = vmatprep.subr.mxu0 0.0
  %3704 = vmatpush1.msra.mxu0 0.0
  %3705 = vmatprep.subr.mxu0 0.0
  %3706 = vmatpush1.msra.mxu0 0.0
  %3707 = vmatprep.subr.mxu0 0.0
  %3708 = vmatpush1.msra.mxu0 0.0
  %3709 = vmatprep.subr.mxu0 0.0
  %3710 = vmatpush1.msra.mxu0 0.0
  %3711 = vmatprep.subr.mxu0 0.0
  %3712 = vmatpush1.msra.mxu0 0.0
  %3713 = vmatprep.subr.mxu0 0.0
  %3714 = vmatpush1.msra.mxu0 0.0
  %3715 = vmatprep.subr.mxu0 0.0
  %3716 = vmatpush1.msra.mxu0 0.0
  %3717 = vmatprep.subr.mxu0 0.0
  %3718 = vmatpush1.msra.mxu0 0.0
  %3719 = vmatprep.subr.mxu0 0.0
  %3720 = vmatpush1.msra.mxu0 %v3637
  %3721 = vmatprep.subr.mxu0 0.0
  %3722 = vmatpush1.msra.mxu0 %v3635
  %3723 = vmatprep.subr.mxu0 0.0
  %3724 = vmatpush2.msra.mxu0 0.0
  %3725 = vmatprep.subr.mxu0 0.0
  %3726 = vmatpush2.msra.mxu0 0.0
  %3727 = vmatprep.subr.mxu0 0.0
  %3728 = vmatpush2.msra.mxu0 0.0
  %3729 = vmatprep.subr.mxu0 0.0
  %3730 = vmatpush2.msra.mxu0 0.0
  %3731 = vmatprep.subr.mxu0 0.0
  %3732 = vmatpush2.msra.mxu0 0.0
  %3733 = vmatprep.subr.mxu0 0.0
  %3734 = vmatpush2.msra.mxu0 0.0
  %3735 = vmatprep.subr.mxu0 0.0
  %3736 = vmatpush2.msra.mxu0 0.0
  %3737 = vmatprep.subr.mxu0 0.0
  %3738 = vmatpush2.msra.mxu0 0.0
  %3739 = vmatprep.subr.mxu0 0.0
  %3740 = vmatpush2.msra.mxu0 0.0
  %3741 = vmatprep.subr.mxu0 0.0
  %3742 = vmatpush2.msra.mxu0 0.0
  %3743 = vmatprep.subr.mxu0 0.0
  %3744 = vmatpush2.msra.mxu0 0.0
  %3745 = vmatprep.subr.mxu0 0.0
  %3746 = vmatpush2.msra.mxu0 0.0
  %3747 = vmatprep.subr.mxu0 0.0
  %3748 = vmatpush2.msra.mxu0 0.0
  %3749 = vmatprep.subr.mxu0 0.0
  %3750 = vmatpush2.msra.mxu0 0.0
  %3751 = vmatprep.subr.mxu0 0.0
  %3752 = vmatpush2.msra.mxu0 0.0
  %3753 = vmatprep.subr.mxu0 0.0
  %3754 = vmatpush2.msra.mxu0 0.0
  %3755 = vmatprep.mubr.f32.mxu0 0.0
  %3756 = vmatmul.mubr.f32.gmra.mxu0 %v3644
  %v3757 = vpop.f32.mrf.mxu0
  %v3758 = vadd.f32 %v3641, %v3757
  %v3759 = vpop.f32.mrf.mxu0
  %3760 = vmatprep.mubr.f32.mxu0 0.0
  %3761 = vmatmul.mubr.f32.gmra.mxu0 %v3647
  %v3762 = vpop.f32.mrf.mxu0
  %v3763 = vadd.f32 %v3641, %v3762
  %v3764 = vpop.f32.mrf.mxu0
  %3765 = vmatprep.mubr.f32.mxu0 0.0
  %3766 = vmatmul.mubr.f32.gmra.mxu0 %v3650
  %v3767 = vpop.f32.mrf.mxu0
  %v3768 = vadd.f32 %v3641, %v3767
  %v3769 = vpop.f32.mrf.mxu0
  %3770 = vmatprep.mubr.f32.mxu0 0.0
  %3771 = vmatmul.mubr.f32.gmra.mxu0 %v3653
  %v3772 = vpop.f32.mrf.mxu0
  %v3773 = vadd.f32 %v3641, %v3772
  %v3774 = vpop.f32.mrf.mxu0
  %3775 = vmatprep.mubr.f32.mxu0 0.0
  %3776 = vmatmul.mubr.f32.gmra.mxu0 %v3656
  %v3777 = vpop.f32.mrf.mxu0
  %v3778 = vadd.f32 %v3641, %v3777
  %v3779 = vpop.f32.mrf.mxu0
  %3780 = vmatprep.mubr.f32.mxu0 0.0
  %3781 = vmatmul.mubr.f32.gmra.mxu0 %v3659
  %v3782 = vpop.f32.mrf.mxu0
  %v3783 = vadd.f32 %v3641, %v3782
  %v3784 = vpop.f32.mrf.mxu0
  %3785 = vmatprep.mubr.f32.mxu0 0.0
  %3786 = vmatmul.mubr.f32.gmra.mxu0 %v3662
  %v3787 = vpop.f32.mrf.mxu0
  %v3788 = vadd.f32 %v3641, %v3787
  %v3789 = vpop.f32.mrf.mxu0
  %3790 = vmatprep.mubr.f32.mxu0 0.0
  %3791 = vmatmul.mubr.f32.gmra.mxu0 %v3665
  %v3792 = vpop.f32.mrf.mxu0
  %v3793 = vadd.f32 %v3641, %v3792
  %v3794 = vpop.f32.mrf.mxu0
  %3795 = vmatprep.mubr.f32.mxu0 0.0
  %3796 = vmatmul.mubr.f32.gmra.mxu0 %v3668
  %v3797 = vpop.f32.mrf.mxu0
  %v3798 = vadd.f32 %v3641, %v3797
  %v3799 = vpop.f32.mrf.mxu0
  %3800 = vmatprep.mubr.f32.mxu0 0.0
  %3801 = vmatmul.mubr.f32.gmra.mxu0 %v3671
  %v3802 = vpop.f32.mrf.mxu0
  %v3803 = vadd.f32 %v3641, %v3802
  %v3804 = vpop.f32.mrf.mxu0
  %3805 = vmatprep.mubr.f32.mxu0 0.0
  %3806 = vmatmul.mubr.f32.gmra.mxu0 %v3674
  %v3807 = vpop.f32.mrf.mxu0
  %v3808 = vadd.f32 %v3641, %v3807
  %v3809 = vpop.f32.mrf.mxu0
  %3810 = vmatprep.mubr.f32.mxu0 0.0
  %3811 = vmatmul.mubr.f32.gmra.mxu0 %v3677
  %v3812 = vpop.f32.mrf.mxu0
  %v3813 = vadd.f32 %v3641, %v3812
  %v3814 = vpop.f32.mrf.mxu0
  %3815 = vmatprep.mubr.f32.mxu0 0.0
  %3816 = vmatmul.mubr.f32.gmra.mxu0 %v3680
  %v3817 = vpop.f32.mrf.mxu0
  %v3818 = vadd.f32 %v3641, %v3817
  %v3819 = vpop.f32.mrf.mxu0
  %3820 = vmatprep.mubr.f32.mxu0 0.0
  %3821 = vmatmul.mubr.f32.gmra.mxu0 %v3683
  %v3822 = vpop.f32.mrf.mxu0
  %v3823 = vadd.f32 %v3641, %v3822
  %v3824 = vpop.f32.mrf.mxu0
  %3825 = vmatprep.mubr.f32.mxu0 0.0
  %3826 = vmatmul.mubr.f32.gmra.mxu0 %v3686
  %v3827 = vpop.f32.mrf.mxu0
  %v3828 = vadd.f32 %v3641, %v3827
  %v3829 = vpop.f32.mrf.mxu0
  %3830 = vmatprep.mubr.f32.mxu0 0.0
  %3831 = vmatmul.mubr.f32.gmra.mxu0 %v3689
  %v3832 = vpop.f32.mrf.mxu0
  %v3833 = vadd.f32 %v3641, %v3832
  %v3834 = vpop.f32.mrf.mxu0
  %3835 = vdwg.mxu0
  %3852 = vrot.lane.b32.xlu0 %v3758, 32
  %v3853 = vpop.permute.xlu0 %3852
  %3854 = vrot.lane.b32.xlu0 %v3763, 32
  %v3855 = vpop.permute.xlu0 %3854
  %3856 = vrot.lane.b32.xlu0 %v3768, 32
  %v3857 = vpop.permute.xlu0 %3856
  %3858 = vrot.lane.b32.xlu0 %v3773, 32
  %v3859 = vpop.permute.xlu0 %3858
  %3860 = vrot.lane.b32.xlu0 %v3778, 32
  %v3861 = vpop.permute.xlu0 %3860
  %3862 = vrot.lane.b32.xlu0 %v3783, 32
  %v3863 = vpop.permute.xlu0 %3862
  %3864 = vrot.lane.b32.xlu0 %v3788, 32
  %v3865 = vpop.permute.xlu0 %3864
  %3866 = vrot.lane.b32.xlu0 %v3793, 32
  %v3867 = vpop.permute.xlu0 %3866
  %3868 = vrot.lane.b32.xlu0 %v3798, 32
  %v3869 = vpop.permute.xlu0 %3868
  %3870 = vrot.lane.b32.xlu0 %v3803, 32
  %v3871 = vpop.permute.xlu0 %3870
  %3872 = vrot.lane.b32.xlu0 %v3808, 32
  %v3873 = vpop.permute.xlu0 %3872
  %3874 = vrot.lane.b32.xlu0 %v3813, 32
  %v3875 = vpop.permute.xlu0 %3874
  %3876 = vrot.lane.b32.xlu0 %v3818, 32
  %v3877 = vpop.permute.xlu0 %3876
  %3878 = vrot.lane.b32.xlu0 %v3823, 32
  %v3879 = vpop.permute.xlu0 %3878
  %3880 = vrot.lane.b32.xlu0 %v3828, 32
  %v3881 = vpop.permute.xlu0 %3880
  %3882 = vrot.lane.b32.xlu0 %v3833, 32
  %v3883 = vpop.permute.xlu0 %3882
  %v3900 = vadd.f32 %v84, %v3853
  %v3901 = vadd.f32 %v85, %v3855
  %v3902 = vadd.f32 %v86, %v3857
  %v3903 = vadd.f32 %v87, %v3859
  %v3904 = vadd.f32 %v88, %v3861
  %v3905 = vadd.f32 %v89, %v3863
  %v3906 = vadd.f32 %v90, %v3865
  %v3907 = vadd.f32 %v91, %v3867
  %v3908 = vadd.f32 %v92, %v3869
  %v3909 = vadd.f32 %v93, %v3871
  %v3910 = vadd.f32 %v94, %v3873
  %v3911 = vadd.f32 %v95, %v3875
  %v3912 = vadd.f32 %v96, %v3877
  %v3913 = vadd.f32 %v97, %v3879
  %v3914 = vadd.f32 %v98, %v3881
  %v3915 = vadd.f32 %v99, %v3883
  %3932 = vrot.lane.b32.xlu0 %v3900, 96
  %v3933 = vpop.permute.xlu0 %3932
  %3934 = vrot.lane.b32.xlu0 %v3901, 96
  %v3935 = vpop.permute.xlu0 %3934
  %3936 = vrot.lane.b32.xlu0 %v3902, 96
  %v3937 = vpop.permute.xlu0 %3936
  %3938 = vrot.lane.b32.xlu0 %v3903, 96
  %v3939 = vpop.permute.xlu0 %3938
  %3940 = vrot.lane.b32.xlu0 %v3904, 96
  %v3941 = vpop.permute.xlu0 %3940
  %3942 = vrot.lane.b32.xlu0 %v3905, 96
  %v3943 = vpop.permute.xlu0 %3942
  %3944 = vrot.lane.b32.xlu0 %v3906, 96
  %v3945 = vpop.permute.xlu0 %3944
  %3946 = vrot.lane.b32.xlu0 %v3907, 96
  %v3947 = vpop.permute.xlu0 %3946
  %3948 = vrot.lane.b32.xlu0 %v3908, 96
  %v3949 = vpop.permute.xlu0 %3948
  %3950 = vrot.lane.b32.xlu0 %v3909, 96
  %v3951 = vpop.permute.xlu0 %3950
  %3952 = vrot.lane.b32.xlu0 %v3910, 96
  %v3953 = vpop.permute.xlu0 %3952
  %3954 = vrot.lane.b32.xlu0 %v3911, 96
  %v3955 = vpop.permute.xlu0 %3954
  %3956 = vrot.lane.b32.xlu0 %v3912, 96
  %v3957 = vpop.permute.xlu0 %3956
  %3958 = vrot.lane.b32.xlu0 %v3913, 96
  %v3959 = vpop.permute.xlu0 %3958
  %3960 = vrot.lane.b32.xlu0 %v3914, 96
  %v3961 = vpop.permute.xlu0 %3960
  %3962 = vrot.lane.b32.xlu0 %v3915, 96
  %v3963 = vpop.permute.xlu0 %3962
  %v3980 = vsel %vm731, %v3933, 0.0
  %3981 = vadd.xlane.f32.xlu0 %v3980
  %v3982 = vpop.xlane.xlu0 %3981
  %v3983 = vsel %vm731, %v3935, 0.0
  %3984 = vadd.xlane.f32.xlu0 %v3983
  %v3985 = vpop.xlane.xlu0 %3984
  %v3986 = vsel %vm731, %v3937, 0.0
  %3987 = vadd.xlane.f32.xlu0 %v3986
  %v3988 = vpop.xlane.xlu0 %3987
  %v3989 = vsel %vm731, %v3939, 0.0
  %3990 = vadd.xlane.f32.xlu0 %v3989
  %v3991 = vpop.xlane.xlu0 %3990
  %v3992 = vsel %vm731, %v3941, 0.0
  %3993 = vadd.xlane.f32.xlu0 %v3992
  %v3994 = vpop.xlane.xlu0 %3993
  %v3995 = vsel %vm731, %v3943, 0.0
  %3996 = vadd.xlane.f32.xlu0 %v3995
  %v3997 = vpop.xlane.xlu0 %3996
  %v3998 = vsel %vm731, %v3945, 0.0
  %3999 = vadd.xlane.f32.xlu0 %v3998
  %v4000 = vpop.xlane.xlu0 %3999
  %v4001 = vsel %vm731, %v3947, 0.0
  %4002 = vadd.xlane.f32.xlu0 %v4001
  %v4003 = vpop.xlane.xlu0 %4002
  %v4004 = vsel %vm731, %v3949, 0.0
  %4005 = vadd.xlane.f32.xlu0 %v4004
  %v4006 = vpop.xlane.xlu0 %4005
  %v4007 = vsel %vm731, %v3951, 0.0
  %4008 = vadd.xlane.f32.xlu0 %v4007
  %v4009 = vpop.xlane.xlu0 %4008
  %v4010 = vsel %vm731, %v3953, 0.0
  %4011 = vadd.xlane.f32.xlu0 %v4010
  %v4012 = vpop.xlane.xlu0 %4011
  %v4013 = vsel %vm731, %v3955, 0.0
  %4014 = vadd.xlane.f32.xlu0 %v4013
  %v4015 = vpop.xlane.xlu0 %4014
  %v4016 = vsel %vm731, %v3957, 0.0
  %4017 = vadd.xlane.f32.xlu0 %v4016
  %v4018 = vpop.xlane.xlu0 %4017
  %v4019 = vsel %vm731, %v3959, 0.0
  %4020 = vadd.xlane.f32.xlu0 %v4019
  %v4021 = vpop.xlane.xlu0 %4020
  %v4022 = vsel %vm731, %v3961, 0.0
  %4023 = vadd.xlane.f32.xlu0 %v4022
  %v4024 = vpop.xlane.xlu0 %4023
  %v4025 = vsel %vm731, %v3963, 0.0
  %4026 = vadd.xlane.f32.xlu0 %v4025
  %v4027 = vpop.xlane.xlu0 %4026
  %v4028 = vrcp.pop 16.0
  %v4029 = vmul.f32 %v3982, %v4028
  %v4030 = vmul.f32 %v3985, %v4028
  %v4031 = vmul.f32 %v3988, %v4028
  %v4032 = vmul.f32 %v3991, %v4028
  %v4033 = vmul.f32 %v3994, %v4028
  %v4034 = vmul.f32 %v3997, %v4028
  %v4035 = vmul.f32 %v4000, %v4028
  %v4036 = vmul.f32 %v4003, %v4028
  %v4037 = vmul.f32 %v4006, %v4028
  %v4038 = vmul.f32 %v4009, %v4028
  %v4039 = vmul.f32 %v4012, %v4028
  %v4040 = vmul.f32 %v4015, %v4028
  %v4041 = vmul.f32 %v4018, %v4028
  %v4042 = vmul.f32 %v4021, %v4028
  %v4043 = vmul.f32 %v4024, %v4028
  %v4044 = vmul.f32 %v4027, %v4028
  %v4045 = vsub.f32 %v3900, %v4029
  %v4046 = vsub.f32 %v3901, %v4030
  %v4047 = vsub.f32 %v3902, %v4031
  %v4048 = vsub.f32 %v3903, %v4032
  %v4049 = vsub.f32 %v3904, %v4033
  %v4050 = vsub.f32 %v3905, %v4034
  %v4051 = vsub.f32 %v3906, %v4035
  %v4052 = vsub.f32 %v3907, %v4036
  %v4053 = vsub.f32 %v3908, %v4037
  %v4054 = vsub.f32 %v3909, %v4038
  %v4055 = vsub.f32 %v3910, %v4039
  %v4056 = vsub.f32 %v3911, %v4040
  %v4057 = vsub.f32 %v3912, %v4041
  %v4058 = vsub.f32 %v3913, %v4042
  %v4059 = vsub.f32 %v3914, %v4043
  %v4060 = vsub.f32 %v3915, %v4044
  %v4061 = vmul.f32 %v4045, %v4045
  %v4062 = vmul.f32 %v4046, %v4046
  %v4063 = vmul.f32 %v4047, %v4047
  %v4064 = vmul.f32 %v4048, %v4048
  %v4065 = vmul.f32 %v4049, %v4049
  %v4066 = vmul.f32 %v4050, %v4050
  %v4067 = vmul.f32 %v4051, %v4051
  %v4068 = vmul.f32 %v4052, %v4052
  %v4069 = vmul.f32 %v4053, %v4053
  %v4070 = vmul.f32 %v4054, %v4054
  %v4071 = vmul.f32 %v4055, %v4055
  %v4072 = vmul.f32 %v4056, %v4056
  %v4073 = vmul.f32 %v4057, %v4057
  %v4074 = vmul.f32 %v4058, %v4058
  %v4075 = vmul.f32 %v4059, %v4059
  %v4076 = vmul.f32 %v4060, %v4060
  %4093 = vrot.lane.b32.xlu0 %v4061, 96
  %v4094 = vpop.permute.xlu0 %4093
  %4095 = vrot.lane.b32.xlu0 %v4062, 96
  %v4096 = vpop.permute.xlu0 %4095
  %4097 = vrot.lane.b32.xlu0 %v4063, 96
  %v4098 = vpop.permute.xlu0 %4097
  %4099 = vrot.lane.b32.xlu0 %v4064, 96
  %v4100 = vpop.permute.xlu0 %4099
  %4101 = vrot.lane.b32.xlu0 %v4065, 96
  %v4102 = vpop.permute.xlu0 %4101
  %4103 = vrot.lane.b32.xlu0 %v4066, 96
  %v4104 = vpop.permute.xlu0 %4103
  %4105 = vrot.lane.b32.xlu0 %v4067, 96
  %v4106 = vpop.permute.xlu0 %4105
  %4107 = vrot.lane.b32.xlu0 %v4068, 96
  %v4108 = vpop.permute.xlu0 %4107
  %4109 = vrot.lane.b32.xlu0 %v4069, 96
  %v4110 = vpop.permute.xlu0 %4109
  %4111 = vrot.lane.b32.xlu0 %v4070, 96
  %v4112 = vpop.permute.xlu0 %4111
  %4113 = vrot.lane.b32.xlu0 %v4071, 96
  %v4114 = vpop.permute.xlu0 %4113
  %4115 = vrot.lane.b32.xlu0 %v4072, 96
  %v4116 = vpop.permute.xlu0 %4115
  %4117 = vrot.lane.b32.xlu0 %v4073, 96
  %v4118 = vpop.permute.xlu0 %4117
  %4119 = vrot.lane.b32.xlu0 %v4074, 96
  %v4120 = vpop.permute.xlu0 %4119
  %4121 = vrot.lane.b32.xlu0 %v4075, 96
  %v4122 = vpop.permute.xlu0 %4121
  %4123 = vrot.lane.b32.xlu0 %v4076, 96
  %v4124 = vpop.permute.xlu0 %4123
  %v4141 = vsel %vm731, %v4094, 0.0
  %4142 = vadd.xlane.f32.xlu0 %v4141
  %v4143 = vpop.xlane.xlu0 %4142
  %v4144 = vsel %vm731, %v4096, 0.0
  %4145 = vadd.xlane.f32.xlu0 %v4144
  %v4146 = vpop.xlane.xlu0 %4145
  %v4147 = vsel %vm731, %v4098, 0.0
  %4148 = vadd.xlane.f32.xlu0 %v4147
  %v4149 = vpop.xlane.xlu0 %4148
  %v4150 = vsel %vm731, %v4100, 0.0
  %4151 = vadd.xlane.f32.xlu0 %v4150
  %v4152 = vpop.xlane.xlu0 %4151
  %v4153 = vsel %vm731, %v4102, 0.0
  %4154 = vadd.xlane.f32.xlu0 %v4153
  %v4155 = vpop.xlane.xlu0 %4154
  %v4156 = vsel %vm731, %v4104, 0.0
  %4157 = vadd.xlane.f32.xlu0 %v4156
  %v4158 = vpop.xlane.xlu0 %4157
  %v4159 = vsel %vm731, %v4106, 0.0
  %4160 = vadd.xlane.f32.xlu0 %v4159
  %v4161 = vpop.xlane.xlu0 %4160
  %v4162 = vsel %vm731, %v4108, 0.0
  %4163 = vadd.xlane.f32.xlu0 %v4162
  %v4164 = vpop.xlane.xlu0 %4163
  %v4165 = vsel %vm731, %v4110, 0.0
  %4166 = vadd.xlane.f32.xlu0 %v4165
  %v4167 = vpop.xlane.xlu0 %4166
  %v4168 = vsel %vm731, %v4112, 0.0
  %4169 = vadd.xlane.f32.xlu0 %v4168
  %v4170 = vpop.xlane.xlu0 %4169
  %v4171 = vsel %vm731, %v4114, 0.0
  %4172 = vadd.xlane.f32.xlu0 %v4171
  %v4173 = vpop.xlane.xlu0 %4172
  %v4174 = vsel %vm731, %v4116, 0.0
  %4175 = vadd.xlane.f32.xlu0 %v4174
  %v4176 = vpop.xlane.xlu0 %4175
  %v4177 = vsel %vm731, %v4118, 0.0
  %4178 = vadd.xlane.f32.xlu0 %v4177
  %v4179 = vpop.xlane.xlu0 %4178
  %v4180 = vsel %vm731, %v4120, 0.0
  %4181 = vadd.xlane.f32.xlu0 %v4180
  %v4182 = vpop.xlane.xlu0 %4181
  %v4183 = vsel %vm731, %v4122, 0.0
  %4184 = vadd.xlane.f32.xlu0 %v4183
  %v4185 = vpop.xlane.xlu0 %4184
  %v4186 = vsel %vm731, %v4124, 0.0
  %4187 = vadd.xlane.f32.xlu0 %v4186
  %v4188 = vpop.xlane.xlu0 %4187
  %v4189 = vmul.f32 %v4143, %v4028
  %v4190 = vmul.f32 %v4146, %v4028
  %v4191 = vmul.f32 %v4149, %v4028
  %v4192 = vmul.f32 %v4152, %v4028
  %v4193 = vmul.f32 %v4155, %v4028
  %v4194 = vmul.f32 %v4158, %v4028
  %v4195 = vmul.f32 %v4161, %v4028
  %v4196 = vmul.f32 %v4164, %v4028
  %v4197 = vmul.f32 %v4167, %v4028
  %v4198 = vmul.f32 %v4170, %v4028
  %v4199 = vmul.f32 %v4173, %v4028
  %v4200 = vmul.f32 %v4176, %v4028
  %v4201 = vmul.f32 %v4179, %v4028
  %v4202 = vmul.f32 %v4182, %v4028
  %v4203 = vmul.f32 %v4185, %v4028
  %v4204 = vmul.f32 %v4188, %v4028
  %v4205 = vadd.f32 %v4189, 1e-05
  %v4206 = vadd.f32 %v4190, 1e-05
  %v4207 = vadd.f32 %v4191, 1e-05
  %v4208 = vadd.f32 %v4192, 1e-05
  %v4209 = vadd.f32 %v4193, 1e-05
  %v4210 = vadd.f32 %v4194, 1e-05
  %v4211 = vadd.f32 %v4195, 1e-05
  %v4212 = vadd.f32 %v4196, 1e-05
  %v4213 = vadd.f32 %v4197, 1e-05
  %v4214 = vadd.f32 %v4198, 1e-05
  %v4215 = vadd.f32 %v4199, 1e-05
  %v4216 = vadd.f32 %v4200, 1e-05
  %v4217 = vadd.f32 %v4201, 1e-05
  %v4218 = vadd.f32 %v4202, 1e-05
  %v4219 = vadd.f32 %v4203, 1e-05
  %v4220 = vadd.f32 %v4204, 1e-05
  %v4221 = vrsqrt.pop %v4205
  %v4222 = vrsqrt.pop %v4206
  %v4223 = vrsqrt.pop %v4207
  %v4224 = vrsqrt.pop %v4208
  %v4225 = vrsqrt.pop %v4209
  %v4226 = vrsqrt.pop %v4210
  %v4227 = vrsqrt.pop %v4211
  %v4228 = vrsqrt.pop %v4212
  %v4229 = vrsqrt.pop %v4213
  %v4230 = vrsqrt.pop %v4214
  %v4231 = vrsqrt.pop %v4215
  %v4232 = vrsqrt.pop %v4216
  %v4233 = vrsqrt.pop %v4217
  %v4234 = vrsqrt.pop %v4218
  %v4235 = vrsqrt.pop %v4219
  %v4236 = vrsqrt.pop %v4220
  %v4237 = vmul.f32 %v4045, %v4221
  %v4238 = vmul.f32 %v4046, %v4222
  %v4239 = vmul.f32 %v4047, %v4223
  %v4240 = vmul.f32 %v4048, %v4224
  %v4241 = vmul.f32 %v4049, %v4225
  %v4242 = vmul.f32 %v4050, %v4226
  %v4243 = vmul.f32 %v4051, %v4227
  %v4244 = vmul.f32 %v4052, %v4228
  %v4245 = vmul.f32 %v4053, %v4229
  %v4246 = vmul.f32 %v4054, %v4230
  %v4247 = vmul.f32 %v4055, %v4231
  %v4248 = vmul.f32 %v4056, %v4232
  %v4249 = vmul.f32 %v4057, %v4233
  %v4250 = vmul.f32 %v4058, %v4234
  %v4251 = vmul.f32 %v4059, %v4235
  %v4252 = vmul.f32 %v4060, %v4236
  %v4253 = vlaneseq
  %v4254 = vshrl.u32 %v4253, 7
  %v4255 = vsub.s32 0, %v4254
  %v4256 = vrot.slane %v2476, %v4255
  %4258 = vrot.lane.b32.xlu0 %v4256, 32
  %v4259 = vpop.permute.xlu0 %4258
  %v4261 = vmul.f32 %v4237, %v4259
  %v4262 = vmul.f32 %v4238, %v4259
  %v4263 = vmul.f32 %v4239, %v4259
  %v4264 = vmul.f32 %v4240, %v4259
  %v4265 = vmul.f32 %v4241, %v4259
  %v4266 = vmul.f32 %v4242, %v4259
  %v4267 = vmul.f32 %v4243, %v4259
  %v4268 = vmul.f32 %v4244, %v4259
  %v4269 = vmul.f32 %v4245, %v4259
  %v4270 = vmul.f32 %v4246, %v4259
  %v4271 = vmul.f32 %v4247, %v4259
  %v4272 = vmul.f32 %v4248, %v4259
  %v4273 = vmul.f32 %v4249, %v4259
  %v4274 = vmul.f32 %v4250, %v4259
  %v4275 = vmul.f32 %v4251, %v4259
  %v4276 = vmul.f32 %v4252, %v4259
  %v4277 = vlaneseq
  %v4278 = vshrl.u32 %v4277, 7
  %v4279 = vsub.s32 1, %v4278
  %v4280 = vrot.slane %v2476, %v4279
  %4282 = vrot.lane.b32.xlu0 %v4280, 32
  %v4283 = vpop.permute.xlu0 %4282
  %v4285 = vadd.f32 %v4261, %v4283
  %v4286 = vadd.f32 %v4262, %v4283
  %v4287 = vadd.f32 %v4263, %v4283
  %v4288 = vadd.f32 %v4264, %v4283
  %v4289 = vadd.f32 %v4265, %v4283
  %v4290 = vadd.f32 %v4266, %v4283
  %v4291 = vadd.f32 %v4267, %v4283
  %v4292 = vadd.f32 %v4268, %v4283
  %v4293 = vadd.f32 %v4269, %v4283
  %v4294 = vadd.f32 %v4270, %v4283
  %v4295 = vadd.f32 %v4271, %v4283
  %v4296 = vadd.f32 %v4272, %v4283
  %v4297 = vadd.f32 %v4273, %v4283
  %v4298 = vadd.f32 %v4274, %v4283
  %v4299 = vadd.f32 %v4275, %v4283
  %v4300 = vadd.f32 %v4276, %v4283
  %v4302 = vlaneseq
  %v4303 = vshrl.u32 %v4302, 7
  %v4304 = vsub.s32 0, %v4303
  %v4305 = vrot.slane %v2466, %v4304
  %4323 = vrot.lane.b32.xlu0 %v4285, 96
  %v4324 = vpop.permute.xlu0 %4323
  %4325 = vrot.lane.b32.xlu0 %v4286, 96
  %v4326 = vpop.permute.xlu0 %4325
  %4327 = vrot.lane.b32.xlu0 %v4287, 96
  %v4328 = vpop.permute.xlu0 %4327
  %4329 = vrot.lane.b32.xlu0 %v4288, 96
  %v4330 = vpop.permute.xlu0 %4329
  %4331 = vrot.lane.b32.xlu0 %v4289, 96
  %v4332 = vpop.permute.xlu0 %4331
  %4333 = vrot.lane.b32.xlu0 %v4290, 96
  %v4334 = vpop.permute.xlu0 %4333
  %4335 = vrot.lane.b32.xlu0 %v4291, 96
  %v4336 = vpop.permute.xlu0 %4335
  %4337 = vrot.lane.b32.xlu0 %v4292, 96
  %v4338 = vpop.permute.xlu0 %4337
  %4339 = vrot.lane.b32.xlu0 %v4293, 96
  %v4340 = vpop.permute.xlu0 %4339
  %4341 = vrot.lane.b32.xlu0 %v4294, 96
  %v4342 = vpop.permute.xlu0 %4341
  %4343 = vrot.lane.b32.xlu0 %v4295, 96
  %v4344 = vpop.permute.xlu0 %4343
  %4345 = vrot.lane.b32.xlu0 %v4296, 96
  %v4346 = vpop.permute.xlu0 %4345
  %4347 = vrot.lane.b32.xlu0 %v4297, 96
  %v4348 = vpop.permute.xlu0 %4347
  %4349 = vrot.lane.b32.xlu0 %v4298, 96
  %v4350 = vpop.permute.xlu0 %4349
  %4351 = vrot.lane.b32.xlu0 %v4299, 96
  %v4352 = vpop.permute.xlu0 %4351
  %4353 = vrot.lane.b32.xlu0 %v4300, 96
  %v4354 = vpop.permute.xlu0 %4353
  %v4355 = vsel %vm731, %v4324, 0
  %v4357 = vsel %vm731, %v4326, 0
  %v4359 = vsel %vm731, %v4328, 0
  %v4361 = vsel %vm731, %v4330, 0
  %v4363 = vsel %vm731, %v4332, 0
  %v4365 = vsel %vm731, %v4334, 0
  %v4367 = vsel %vm731, %v4336, 0
  %v4369 = vsel %vm731, %v4338, 0
  %v4371 = vsel %vm731, %v4340, 0
  %v4373 = vsel %vm731, %v4342, 0
  %v4375 = vsel %vm731, %v4344, 0
  %v4377 = vsel %vm731, %v4346, 0
  %v4379 = vsel %vm731, %v4348, 0
  %v4381 = vsel %vm731, %v4350, 0
  %v4383 = vsel %vm731, %v4352, 0
  %v4385 = vsel %vm731, %v4354, 0
  %4387 = vmatprep.subr.mxu0 0.0
  %4388 = vmatpush1.msra.mxu0 0.0
  %4389 = vmatprep.subr.mxu0 0.0
  %4390 = vmatpush1.msra.mxu0 0.0
  %4391 = vmatprep.subr.mxu0 0.0
  %4392 = vmatpush1.msra.mxu0 0.0
  %4393 = vmatprep.subr.mxu0 0.0
  %4394 = vmatpush1.msra.mxu0 0.0
  %4395 = vmatprep.subr.mxu0 0.0
  %4396 = vmatpush1.msra.mxu0 0.0
  %4397 = vmatprep.subr.mxu0 0.0
  %4398 = vmatpush1.msra.mxu0 0.0
  %4399 = vmatprep.subr.mxu0 0.0
  %4400 = vmatpush1.msra.mxu0 0.0
  %4401 = vmatprep.subr.mxu0 0.0
  %4402 = vmatpush1.msra.mxu0 0.0
  %4403 = vmatprep.subr.mxu0 0.0
  %4404 = vmatpush1.msra.mxu0 0.0
  %4405 = vmatprep.subr.mxu0 0.0
  %4406 = vmatpush1.msra.mxu0 0.0
  %4407 = vmatprep.subr.mxu0 0.0
  %4408 = vmatpush1.msra.mxu0 0.0
  %4409 = vmatprep.subr.mxu0 0.0
  %4410 = vmatpush1.msra.mxu0 0.0
  %4411 = vmatprep.subr.mxu0 0.0
  %4412 = vmatpush1.msra.mxu0 0.0
  %4413 = vmatprep.subr.mxu0 0.0
  %4414 = vmatpush1.msra.mxu0 0.0
  %4415 = vmatprep.subr.mxu0 0.0
  %4416 = vmatpush1.msra.mxu0 %v2465
  %4417 = vmatprep.subr.mxu0 0.0
  %4418 = vmatpush1.msra.mxu0 %v2464
  %4419 = vmatprep.subr.mxu0 0.0
  %4420 = vmatpush2.msra.mxu0 0.0
  %4421 = vmatprep.subr.mxu0 0.0
  %4422 = vmatpush2.msra.mxu0 0.0
  %4423 = vmatprep.subr.mxu0 0.0
  %4424 = vmatpush2.msra.mxu0 0.0
  %4425 = vmatprep.subr.mxu0 0.0
  %4426 = vmatpush2.msra.mxu0 0.0
  %4427 = vmatprep.subr.mxu0 0.0
  %4428 = vmatpush2.msra.mxu0 0.0
  %4429 = vmatprep.subr.mxu0 0.0
  %4430 = vmatpush2.msra.mxu0 0.0
  %4431 = vmatprep.subr.mxu0 0.0
  %4432 = vmatpush2.msra.mxu0 0.0
  %4433 = vmatprep.subr.mxu0 0.0
  %4434 = vmatpush2.msra.mxu0 0.0
  %4435 = vmatprep.subr.mxu0 0.0
  %4436 = vmatpush2.msra.mxu0 0.0
  %4437 = vmatprep.subr.mxu0 0.0
  %4438 = vmatpush2.msra.mxu0 0.0
  %4439 = vmatprep.subr.mxu0 0.0
  %4440 = vmatpush2.msra.mxu0 0.0
  %4441 = vmatprep.subr.mxu0 0.0
  %4442 = vmatpush2.msra.mxu0 0.0
  %4443 = vmatprep.subr.mxu0 0.0
  %4444 = vmatpush2.msra.mxu0 0.0
  %4445 = vmatprep.subr.mxu0 0.0
  %4446 = vmatpush2.msra.mxu0 0.0
  %4447 = vmatprep.subr.mxu0 0.0
  %4448 = vmatpush2.msra.mxu0 0.0
  %4449 = vmatprep.subr.mxu0 0.0
  %4450 = vmatpush2.msra.mxu0 0.0
  %4451 = vmatprep.mubr.f32.mxu0 0.0
  %4452 = vmatmul.mubr.f32.gmra.mxu0 %v4355
  %v4453 = vpop.f32.mrf.mxu0
  %v4454 = vadd.f32 %v4305, %v4453
  %v4455 = vpop.f32.mrf.mxu0
  %4456 = vmatprep.mubr.f32.mxu0 0.0
  %4457 = vmatmul.mubr.f32.gmra.mxu0 %v4357
  %v4458 = vpop.f32.mrf.mxu0
  %v4459 = vadd.f32 %v4305, %v4458
  %v4460 = vpop.f32.mrf.mxu0
  %4461 = vmatprep.mubr.f32.mxu0 0.0
  %4462 = vmatmul.mubr.f32.gmra.mxu0 %v4359
  %v4463 = vpop.f32.mrf.mxu0
  %v4464 = vadd.f32 %v4305, %v4463
  %v4465 = vpop.f32.mrf.mxu0
  %4466 = vmatprep.mubr.f32.mxu0 0.0
  %4467 = vmatmul.mubr.f32.gmra.mxu0 %v4361
  %v4468 = vpop.f32.mrf.mxu0
  %v4469 = vadd.f32 %v4305, %v4468
  %v4470 = vpop.f32.mrf.mxu0
  %4471 = vmatprep.mubr.f32.mxu0 0.0
  %4472 = vmatmul.mubr.f32.gmra.mxu0 %v4363
  %v4473 = vpop.f32.mrf.mxu0
  %v4474 = vadd.f32 %v4305, %v4473
  %v4475 = vpop.f32.mrf.mxu0
  %4476 = vmatprep.mubr.f32.mxu0 0.0
  %4477 = vmatmul.mubr.f32.gmra.mxu0 %v4365
  %v4478 = vpop.f32.mrf.mxu0
  %v4479 = vadd.f32 %v4305, %v4478
  %v4480 = vpop.f32.mrf.mxu0
  %4481 = vmatprep.mubr.f32.mxu0 0.0
  %4482 = vmatmul.mubr.f32.gmra.mxu0 %v4367
  %v4483 = vpop.f32.mrf.mxu0
  %v4484 = vadd.f32 %v4305, %v4483
  %v4485 = vpop.f32.mrf.mxu0
  %4486 = vmatprep.mubr.f32.mxu0 0.0
  %4487 = vmatmul.mubr.f32.gmra.mxu0 %v4369
  %v4488 = vpop.f32.mrf.mxu0
  %v4489 = vadd.f32 %v4305, %v4488
  %v4490 = vpop.f32.mrf.mxu0
  %4491 = vmatprep.mubr.f32.mxu0 0.0
  %4492 = vmatmul.mubr.f32.gmra.mxu0 %v4371
  %v4493 = vpop.f32.mrf.mxu0
  %v4494 = vadd.f32 %v4305, %v4493
  %v4495 = vpop.f32.mrf.mxu0
  %4496 = vmatprep.mubr.f32.mxu0 0.0
  %4497 = vmatmul.mubr.f32.gmra.mxu0 %v4373
  %v4498 = vpop.f32.mrf.mxu0
  %v4499 = vadd.f32 %v4305, %v4498
  %v4500 = vpop.f32.mrf.mxu0
  %4501 = vmatprep.mubr.f32.mxu0 0.0
  %4502 = vmatmul.mubr.f32.gmra.mxu0 %v4375
  %v4503 = vpop.f32.mrf.mxu0
  %v4504 = vadd.f32 %v4305, %v4503
  %v4505 = vpop.f32.mrf.mxu0
  %4506 = vmatprep.mubr.f32.mxu0 0.0
  %4507 = vmatmul.mubr.f32.gmra.mxu0 %v4377
  %v4508 = vpop.f32.mrf.mxu0
  %v4509 = vadd.f32 %v4305, %v4508
  %v4510 = vpop.f32.mrf.mxu0
  %4511 = vmatprep.mubr.f32.mxu0 0.0
  %4512 = vmatmul.mubr.f32.gmra.mxu0 %v4379
  %v4513 = vpop.f32.mrf.mxu0
  %v4514 = vadd.f32 %v4305, %v4513
  %v4515 = vpop.f32.mrf.mxu0
  %4516 = vmatprep.mubr.f32.mxu0 0.0
  %4517 = vmatmul.mubr.f32.gmra.mxu0 %v4381
  %v4518 = vpop.f32.mrf.mxu0
  %v4519 = vadd.f32 %v4305, %v4518
  %v4520 = vpop.f32.mrf.mxu0
  %4521 = vmatprep.mubr.f32.mxu0 0.0
  %4522 = vmatmul.mubr.f32.gmra.mxu0 %v4383
  %v4523 = vpop.f32.mrf.mxu0
  %v4524 = vadd.f32 %v4305, %v4523
  %v4525 = vpop.f32.mrf.mxu0
  %4526 = vmatprep.mubr.f32.mxu0 0.0
  %4527 = vmatmul.mubr.f32.gmra.mxu0 %v4385
  %v4528 = vpop.f32.mrf.mxu0
  %v4529 = vadd.f32 %v4305, %v4528
  %v4530 = vpop.f32.mrf.mxu0
  %4531 = vdwg.mxu0
  %v4532 = vmax.f32 %v4454, 0.0
  %v4533 = vmax.f32 %v4459, 0.0
  %v4534 = vmax.f32 %v4464, 0.0
  %v4535 = vmax.f32 %v4469, 0.0
  %v4536 = vmax.f32 %v4474, 0.0
  %v4537 = vmax.f32 %v4479, 0.0
  %v4538 = vmax.f32 %v4484, 0.0
  %v4539 = vmax.f32 %v4489, 0.0
  %v4540 = vmax.f32 %v4494, 0.0
  %v4541 = vmax.f32 %v4499, 0.0
  %v4542 = vmax.f32 %v4504, 0.0
  %v4543 = vmax.f32 %v4509, 0.0
  %v4544 = vmax.f32 %v4514, 0.0
  %v4545 = vmax.f32 %v4519, 0.0
  %v4546 = vmax.f32 %v4524, 0.0
  %v4547 = vmax.f32 %v4529, 0.0
  %v4549 = vlaneseq
  %v4550 = vshrl.u32 %v4549, 7
  %v4551 = vsub.s32 0, %v4550
  %v4552 = vrot.slane %v2475, %v4551
  %v4555 = vsel %vm2003, %v4532, 0
  %v4558 = vsel %vm2003, %v4533, 0
  %v4561 = vsel %vm2003, %v4534, 0
  %v4564 = vsel %vm2003, %v4535, 0
  %v4567 = vsel %vm2003, %v4536, 0
  %v4570 = vsel %vm2003, %v4537, 0
  %v4573 = vsel %vm2003, %v4538, 0
  %v4576 = vsel %vm2003, %v4539, 0
  %v4579 = vsel %vm2003, %v4540, 0
  %v4582 = vsel %vm2003, %v4541, 0
  %v4585 = vsel %vm2003, %v4542, 0
  %v4588 = vsel %vm2003, %v4543, 0
  %v4591 = vsel %vm2003, %v4544, 0
  %v4594 = vsel %vm2003, %v4545, 0
  %v4597 = vsel %vm2003, %v4546, 0
  %v4600 = vsel %vm2003, %v4547, 0
  %4602 = vmatprep.subr.mxu0 0.0
  %4603 = vmatpush1.msra.mxu0 0.0
  %4604 = vmatprep.subr.mxu0 0.0
  %4605 = vmatpush1.msra.mxu0 0.0
  %4606 = vmatprep.subr.mxu0 0.0
  %4607 = vmatpush1.msra.mxu0 0.0
  %4608 = vmatprep.subr.mxu0 0.0
  %4609 = vmatpush1.msra.mxu0 0.0
  %4610 = vmatprep.subr.mxu0 0.0
  %4611 = vmatpush1.msra.mxu0 0.0
  %4612 = vmatprep.subr.mxu0 0.0
  %4613 = vmatpush1.msra.mxu0 0.0
  %4614 = vmatprep.subr.mxu0 0.0
  %4615 = vmatpush1.msra.mxu0 0.0
  %4616 = vmatprep.subr.mxu0 0.0
  %4617 = vmatpush1.msra.mxu0 0.0
  %4618 = vmatprep.subr.mxu0 0.0
  %4619 = vmatpush1.msra.mxu0 %v2474
  %4620 = vmatprep.subr.mxu0 0.0
  %4621 = vmatpush1.msra.mxu0 %v2473
  %4622 = vmatprep.subr.mxu0 0.0
  %4623 = vmatpush1.msra.mxu0 %v2472
  %4624 = vmatprep.subr.mxu0 0.0
  %4625 = vmatpush1.msra.mxu0 %v2471
  %4626 = vmatprep.subr.mxu0 0.0
  %4627 = vmatpush1.msra.mxu0 %v2470
  %4628 = vmatprep.subr.mxu0 0.0
  %4629 = vmatpush1.msra.mxu0 %v2469
  %4630 = vmatprep.subr.mxu0 0.0
  %4631 = vmatpush1.msra.mxu0 %v2468
  %4632 = vmatprep.subr.mxu0 0.0
  %4633 = vmatpush1.msra.mxu0 %v2467
  %4634 = vmatprep.subr.mxu0 0.0
  %4635 = vmatpush2.msra.mxu0 0.0
  %4636 = vmatprep.subr.mxu0 0.0
  %4637 = vmatpush2.msra.mxu0 0.0
  %4638 = vmatprep.subr.mxu0 0.0
  %4639 = vmatpush2.msra.mxu0 0.0
  %4640 = vmatprep.subr.mxu0 0.0
  %4641 = vmatpush2.msra.mxu0 0.0
  %4642 = vmatprep.subr.mxu0 0.0
  %4643 = vmatpush2.msra.mxu0 0.0
  %4644 = vmatprep.subr.mxu0 0.0
  %4645 = vmatpush2.msra.mxu0 0.0
  %4646 = vmatprep.subr.mxu0 0.0
  %4647 = vmatpush2.msra.mxu0 0.0
  %4648 = vmatprep.subr.mxu0 0.0
  %4649 = vmatpush2.msra.mxu0 0.0
  %4650 = vmatprep.subr.mxu0 0.0
  %4651 = vmatpush2.msra.mxu0 0.0
  %4652 = vmatprep.subr.mxu0 0.0
  %4653 = vmatpush2.msra.mxu0 0.0
  %4654 = vmatprep.subr.mxu0 0.0
  %4655 = vmatpush2.msra.mxu0 0.0
  %4656 = vmatprep.subr.mxu0 0.0
  %4657 = vmatpush2.msra.mxu0 0.0
  %4658 = vmatprep.subr.mxu0 0.0
  %4659 = vmatpush2.msra.mxu0 0.0
  %4660 = vmatprep.subr.mxu0 0.0
  %4661 = vmatpush2.msra.mxu0 0.0
  %4662 = vmatprep.subr.mxu0 0.0
  %4663 = vmatpush2.msra.mxu0 0.0
  %4664 = vmatprep.subr.mxu0 0.0
  %4665 = vmatpush2.msra.mxu0 0.0
  %4666 = vmatprep.mubr.f32.mxu0 0.0
  %4667 = vmatmul.mubr.f32.gmra.mxu0 %v4555
  %v4668 = vpop.f32.mrf.mxu0
  %v4669 = vadd.f32 %v4552, %v4668
  %v4670 = vpop.f32.mrf.mxu0
  %4671 = vmatprep.mubr.f32.mxu0 0.0
  %4672 = vmatmul.mubr.f32.gmra.mxu0 %v4558
  %v4673 = vpop.f32.mrf.mxu0
  %v4674 = vadd.f32 %v4552, %v4673
  %v4675 = vpop.f32.mrf.mxu0
  %4676 = vmatprep.mubr.f32.mxu0 0.0
  %4677 = vmatmul.mubr.f32.gmra.mxu0 %v4561
  %v4678 = vpop.f32.mrf.mxu0
  %v4679 = vadd.f32 %v4552, %v4678
  %v4680 = vpop.f32.mrf.mxu0
  %4681 = vmatprep.mubr.f32.mxu0 0.0
  %4682 = vmatmul.mubr.f32.gmra.mxu0 %v4564
  %v4683 = vpop.f32.mrf.mxu0
  %v4684 = vadd.f32 %v4552, %v4683
  %v4685 = vpop.f32.mrf.mxu0
  %4686 = vmatprep.mubr.f32.mxu0 0.0
  %4687 = vmatmul.mubr.f32.gmra.mxu0 %v4567
  %v4688 = vpop.f32.mrf.mxu0
  %v4689 = vadd.f32 %v4552, %v4688
  %v4690 = vpop.f32.mrf.mxu0
  %4691 = vmatprep.mubr.f32.mxu0 0.0
  %4692 = vmatmul.mubr.f32.gmra.mxu0 %v4570
  %v4693 = vpop.f32.mrf.mxu0
  %v4694 = vadd.f32 %v4552, %v4693
  %v4695 = vpop.f32.mrf.mxu0
  %4696 = vmatprep.mubr.f32.mxu0 0.0
  %4697 = vmatmul.mubr.f32.gmra.mxu0 %v4573
  %v4698 = vpop.f32.mrf.mxu0
  %v4699 = vadd.f32 %v4552, %v4698
  %v4700 = vpop.f32.mrf.mxu0
  %4701 = vmatprep.mubr.f32.mxu0 0.0
  %4702 = vmatmul.mubr.f32.gmra.mxu0 %v4576
  %v4703 = vpop.f32.mrf.mxu0
  %v4704 = vadd.f32 %v4552, %v4703
  %v4705 = vpop.f32.mrf.mxu0
  %4706 = vmatprep.mubr.f32.mxu0 0.0
  %4707 = vmatmul.mubr.f32.gmra.mxu0 %v4579
  %v4708 = vpop.f32.mrf.mxu0
  %v4709 = vadd.f32 %v4552, %v4708
  %v4710 = vpop.f32.mrf.mxu0
  %4711 = vmatprep.mubr.f32.mxu0 0.0
  %4712 = vmatmul.mubr.f32.gmra.mxu0 %v4582
  %v4713 = vpop.f32.mrf.mxu0
  %v4714 = vadd.f32 %v4552, %v4713
  %v4715 = vpop.f32.mrf.mxu0
  %4716 = vmatprep.mubr.f32.mxu0 0.0
  %4717 = vmatmul.mubr.f32.gmra.mxu0 %v4585
  %v4718 = vpop.f32.mrf.mxu0
  %v4719 = vadd.f32 %v4552, %v4718
  %v4720 = vpop.f32.mrf.mxu0
  %4721 = vmatprep.mubr.f32.mxu0 0.0
  %4722 = vmatmul.mubr.f32.gmra.mxu0 %v4588
  %v4723 = vpop.f32.mrf.mxu0
  %v4724 = vadd.f32 %v4552, %v4723
  %v4725 = vpop.f32.mrf.mxu0
  %4726 = vmatprep.mubr.f32.mxu0 0.0
  %4727 = vmatmul.mubr.f32.gmra.mxu0 %v4591
  %v4728 = vpop.f32.mrf.mxu0
  %v4729 = vadd.f32 %v4552, %v4728
  %v4730 = vpop.f32.mrf.mxu0
  %4731 = vmatprep.mubr.f32.mxu0 0.0
  %4732 = vmatmul.mubr.f32.gmra.mxu0 %v4594
  %v4733 = vpop.f32.mrf.mxu0
  %v4734 = vadd.f32 %v4552, %v4733
  %v4735 = vpop.f32.mrf.mxu0
  %4736 = vmatprep.mubr.f32.mxu0 0.0
  %4737 = vmatmul.mubr.f32.gmra.mxu0 %v4597
  %v4738 = vpop.f32.mrf.mxu0
  %v4739 = vadd.f32 %v4552, %v4738
  %v4740 = vpop.f32.mrf.mxu0
  %4741 = vmatprep.mubr.f32.mxu0 0.0
  %4742 = vmatmul.mubr.f32.gmra.mxu0 %v4600
  %v4743 = vpop.f32.mrf.mxu0
  %v4744 = vadd.f32 %v4552, %v4743
  %v4745 = vpop.f32.mrf.mxu0
  %4746 = vdwg.mxu0
  %4763 = vrot.lane.b32.xlu0 %v4669, 32
  %v4764 = vpop.permute.xlu0 %4763
  %4765 = vrot.lane.b32.xlu0 %v4674, 32
  %v4766 = vpop.permute.xlu0 %4765
  %4767 = vrot.lane.b32.xlu0 %v4679, 32
  %v4768 = vpop.permute.xlu0 %4767
  %4769 = vrot.lane.b32.xlu0 %v4684, 32
  %v4770 = vpop.permute.xlu0 %4769
  %4771 = vrot.lane.b32.xlu0 %v4689, 32
  %v4772 = vpop.permute.xlu0 %4771
  %4773 = vrot.lane.b32.xlu0 %v4694, 32
  %v4774 = vpop.permute.xlu0 %4773
  %4775 = vrot.lane.b32.xlu0 %v4699, 32
  %v4776 = vpop.permute.xlu0 %4775
  %4777 = vrot.lane.b32.xlu0 %v4704, 32
  %v4778 = vpop.permute.xlu0 %4777
  %4779 = vrot.lane.b32.xlu0 %v4709, 32
  %v4780 = vpop.permute.xlu0 %4779
  %4781 = vrot.lane.b32.xlu0 %v4714, 32
  %v4782 = vpop.permute.xlu0 %4781
  %4783 = vrot.lane.b32.xlu0 %v4719, 32
  %v4784 = vpop.permute.xlu0 %4783
  %4785 = vrot.lane.b32.xlu0 %v4724, 32
  %v4786 = vpop.permute.xlu0 %4785
  %4787 = vrot.lane.b32.xlu0 %v4729, 32
  %v4788 = vpop.permute.xlu0 %4787
  %4789 = vrot.lane.b32.xlu0 %v4734, 32
  %v4790 = vpop.permute.xlu0 %4789
  %4791 = vrot.lane.b32.xlu0 %v4739, 32
  %v4792 = vpop.permute.xlu0 %4791
  %4793 = vrot.lane.b32.xlu0 %v4744, 32
  %v4794 = vpop.permute.xlu0 %4793
  %v4811 = vadd.f32 %v4285, %v4764
  %v4812 = vadd.f32 %v4286, %v4766
  %v4813 = vadd.f32 %v4287, %v4768
  %v4814 = vadd.f32 %v4288, %v4770
  %v4815 = vadd.f32 %v4289, %v4772
  %v4816 = vadd.f32 %v4290, %v4774
  %v4817 = vadd.f32 %v4291, %v4776
  %v4818 = vadd.f32 %v4292, %v4778
  %v4819 = vadd.f32 %v4293, %v4780
  %v4820 = vadd.f32 %v4294, %v4782
  %v4821 = vadd.f32 %v4295, %v4784
  %v4822 = vadd.f32 %v4296, %v4786
  %v4823 = vadd.f32 %v4297, %v4788
  %v4824 = vadd.f32 %v4298, %v4790
  %v4825 = vadd.f32 %v4299, %v4792
  %v4826 = vadd.f32 %v4300, %v4794
  %4843 = vrot.lane.b32.xlu0 %v4811, 96
  %v4844 = vpop.permute.xlu0 %4843
  %4845 = vrot.lane.b32.xlu0 %v4812, 96
  %v4846 = vpop.permute.xlu0 %4845
  %4847 = vrot.lane.b32.xlu0 %v4813, 96
  %v4848 = vpop.permute.xlu0 %4847
  %4849 = vrot.lane.b32.xlu0 %v4814, 96
  %v4850 = vpop.permute.xlu0 %4849
  %4851 = vrot.lane.b32.xlu0 %v4815, 96
  %v4852 = vpop.permute.xlu0 %4851
  %4853 = vrot.lane.b32.xlu0 %v4816, 96
  %v4854 = vpop.permute.xlu0 %4853
  %4855 = vrot.lane.b32.xlu0 %v4817, 96
  %v4856 = vpop.permute.xlu0 %4855
  %4857 = vrot.lane.b32.xlu0 %v4818, 96
  %v4858 = vpop.permute.xlu0 %4857
  %4859 = vrot.lane.b32.xlu0 %v4819, 96
  %v4860 = vpop.permute.xlu0 %4859
  %4861 = vrot.lane.b32.xlu0 %v4820, 96
  %v4862 = vpop.permute.xlu0 %4861
  %4863 = vrot.lane.b32.xlu0 %v4821, 96
  %v4864 = vpop.permute.xlu0 %4863
  %4865 = vrot.lane.b32.xlu0 %v4822, 96
  %v4866 = vpop.permute.xlu0 %4865
  %4867 = vrot.lane.b32.xlu0 %v4823, 96
  %v4868 = vpop.permute.xlu0 %4867
  %4869 = vrot.lane.b32.xlu0 %v4824, 96
  %v4870 = vpop.permute.xlu0 %4869
  %4871 = vrot.lane.b32.xlu0 %v4825, 96
  %v4872 = vpop.permute.xlu0 %4871
  %4873 = vrot.lane.b32.xlu0 %v4826, 96
  %v4874 = vpop.permute.xlu0 %4873
  %v4891 = vsel %vm731, %v4844, 0.0
  %4892 = vadd.xlane.f32.xlu0 %v4891
  %v4893 = vpop.xlane.xlu0 %4892
  %v4894 = vsel %vm731, %v4846, 0.0
  %4895 = vadd.xlane.f32.xlu0 %v4894
  %v4896 = vpop.xlane.xlu0 %4895
  %v4897 = vsel %vm731, %v4848, 0.0
  %4898 = vadd.xlane.f32.xlu0 %v4897
  %v4899 = vpop.xlane.xlu0 %4898
  %v4900 = vsel %vm731, %v4850, 0.0
  %4901 = vadd.xlane.f32.xlu0 %v4900
  %v4902 = vpop.xlane.xlu0 %4901
  %v4903 = vsel %vm731, %v4852, 0.0
  %4904 = vadd.xlane.f32.xlu0 %v4903
  %v4905 = vpop.xlane.xlu0 %4904
  %v4906 = vsel %vm731, %v4854, 0.0
  %4907 = vadd.xlane.f32.xlu0 %v4906
  %v4908 = vpop.xlane.xlu0 %4907
  %v4909 = vsel %vm731, %v4856, 0.0
  %4910 = vadd.xlane.f32.xlu0 %v4909
  %v4911 = vpop.xlane.xlu0 %4910
  %v4912 = vsel %vm731, %v4858, 0.0
  %4913 = vadd.xlane.f32.xlu0 %v4912
  %v4914 = vpop.xlane.xlu0 %4913
  %v4915 = vsel %vm731, %v4860, 0.0
  %4916 = vadd.xlane.f32.xlu0 %v4915
  %v4917 = vpop.xlane.xlu0 %4916
  %v4918 = vsel %vm731, %v4862, 0.0
  %4919 = vadd.xlane.f32.xlu0 %v4918
  %v4920 = vpop.xlane.xlu0 %4919
  %v4921 = vsel %vm731, %v4864, 0.0
  %4922 = vadd.xlane.f32.xlu0 %v4921
  %v4923 = vpop.xlane.xlu0 %4922
  %v4924 = vsel %vm731, %v4866, 0.0
  %4925 = vadd.xlane.f32.xlu0 %v4924
  %v4926 = vpop.xlane.xlu0 %4925
  %v4927 = vsel %vm731, %v4868, 0.0
  %4928 = vadd.xlane.f32.xlu0 %v4927
  %v4929 = vpop.xlane.xlu0 %4928
  %v4930 = vsel %vm731, %v4870, 0.0
  %4931 = vadd.xlane.f32.xlu0 %v4930
  %v4932 = vpop.xlane.xlu0 %4931
  %v4933 = vsel %vm731, %v4872, 0.0
  %4934 = vadd.xlane.f32.xlu0 %v4933
  %v4935 = vpop.xlane.xlu0 %4934
  %v4936 = vsel %vm731, %v4874, 0.0
  %4937 = vadd.xlane.f32.xlu0 %v4936
  %v4938 = vpop.xlane.xlu0 %4937
  %v4939 = vmul.f32 %v4893, %v4028
  %v4940 = vmul.f32 %v4896, %v4028
  %v4941 = vmul.f32 %v4899, %v4028
  %v4942 = vmul.f32 %v4902, %v4028
  %v4943 = vmul.f32 %v4905, %v4028
  %v4944 = vmul.f32 %v4908, %v4028
  %v4945 = vmul.f32 %v4911, %v4028
  %v4946 = vmul.f32 %v4914, %v4028
  %v4947 = vmul.f32 %v4917, %v4028
  %v4948 = vmul.f32 %v4920, %v4028
  %v4949 = vmul.f32 %v4923, %v4028
  %v4950 = vmul.f32 %v4926, %v4028
  %v4951 = vmul.f32 %v4929, %v4028
  %v4952 = vmul.f32 %v4932, %v4028
  %v4953 = vmul.f32 %v4935, %v4028
  %v4954 = vmul.f32 %v4938, %v4028
  %v4955 = vsub.f32 %v4811, %v4939
  %v4956 = vsub.f32 %v4812, %v4940
  %v4957 = vsub.f32 %v4813, %v4941
  %v4958 = vsub.f32 %v4814, %v4942
  %v4959 = vsub.f32 %v4815, %v4943
  %v4960 = vsub.f32 %v4816, %v4944
  %v4961 = vsub.f32 %v4817, %v4945
  %v4962 = vsub.f32 %v4818, %v4946
  %v4963 = vsub.f32 %v4819, %v4947
  %v4964 = vsub.f32 %v4820, %v4948
  %v4965 = vsub.f32 %v4821, %v4949
  %v4966 = vsub.f32 %v4822, %v4950
  %v4967 = vsub.f32 %v4823, %v4951
  %v4968 = vsub.f32 %v4824, %v4952
  %v4969 = vsub.f32 %v4825, %v4953
  %v4970 = vsub.f32 %v4826, %v4954
  %v4971 = vmul.f32 %v4955, %v4955
  %v4972 = vmul.f32 %v4956, %v4956
  %v4973 = vmul.f32 %v4957, %v4957
  %v4974 = vmul.f32 %v4958, %v4958
  %v4975 = vmul.f32 %v4959, %v4959
  %v4976 = vmul.f32 %v4960, %v4960
  %v4977 = vmul.f32 %v4961, %v4961
  %v4978 = vmul.f32 %v4962, %v4962
  %v4979 = vmul.f32 %v4963, %v4963
  %v4980 = vmul.f32 %v4964, %v4964
  %v4981 = vmul.f32 %v4965, %v4965
  %v4982 = vmul.f32 %v4966, %v4966
  %v4983 = vmul.f32 %v4967, %v4967
  %v4984 = vmul.f32 %v4968, %v4968
  %v4985 = vmul.f32 %v4969, %v4969
  %v4986 = vmul.f32 %v4970, %v4970
  %5003 = vrot.lane.b32.xlu0 %v4971, 96
  %v5004 = vpop.permute.xlu0 %5003
  %5005 = vrot.lane.b32.xlu0 %v4972, 96
  %v5006 = vpop.permute.xlu0 %5005
  %5007 = vrot.lane.b32.xlu0 %v4973, 96
  %v5008 = vpop.permute.xlu0 %5007
  %5009 = vrot.lane.b32.xlu0 %v4974, 96
  %v5010 = vpop.permute.xlu0 %5009
  %5011 = vrot.lane.b32.xlu0 %v4975, 96
  %v5012 = vpop.permute.xlu0 %5011
  %5013 = vrot.lane.b32.xlu0 %v4976, 96
  %v5014 = vpop.permute.xlu0 %5013
  %5015 = vrot.lane.b32.xlu0 %v4977, 96
  %v5016 = vpop.permute.xlu0 %5015
  %5017 = vrot.lane.b32.xlu0 %v4978, 96
  %v5018 = vpop.permute.xlu0 %5017
  %5019 = vrot.lane.b32.xlu0 %v4979, 96
  %v5020 = vpop.permute.xlu0 %5019
  %5021 = vrot.lane.b32.xlu0 %v4980, 96
  %v5022 = vpop.permute.xlu0 %5021
  %5023 = vrot.lane.b32.xlu0 %v4981, 96
  %v5024 = vpop.permute.xlu0 %5023
  %5025 = vrot.lane.b32.xlu0 %v4982, 96
  %v5026 = vpop.permute.xlu0 %5025
  %5027 = vrot.lane.b32.xlu0 %v4983, 96
  %v5028 = vpop.permute.xlu0 %5027
  %5029 = vrot.lane.b32.xlu0 %v4984, 96
  %v5030 = vpop.permute.xlu0 %5029
  %5031 = vrot.lane.b32.xlu0 %v4985, 96
  %v5032 = vpop.permute.xlu0 %5031
  %5033 = vrot.lane.b32.xlu0 %v4986, 96
  %v5034 = vpop.permute.xlu0 %5033
  %v5051 = vsel %vm731, %v5004, 0.0
  %5052 = vadd.xlane.f32.xlu0 %v5051
  %v5053 = vpop.xlane.xlu0 %5052
  %v5054 = vsel %vm731, %v5006, 0.0
  %5055 = vadd.xlane.f32.xlu0 %v5054
  %v5056 = vpop.xlane.xlu0 %5055
  %v5057 = vsel %vm731, %v5008, 0.0
  %5058 = vadd.xlane.f32.xlu0 %v5057
  %v5059 = vpop.xlane.xlu0 %5058
  %v5060 = vsel %vm731, %v5010, 0.0
  %5061 = vadd.xlane.f32.xlu0 %v5060
  %v5062 = vpop.xlane.xlu0 %5061
  %v5063 = vsel %vm731, %v5012, 0.0
  %5064 = vadd.xlane.f32.xlu0 %v5063
  %v5065 = vpop.xlane.xlu0 %5064
  %v5066 = vsel %vm731, %v5014, 0.0
  %5067 = vadd.xlane.f32.xlu0 %v5066
  %v5068 = vpop.xlane.xlu0 %5067
  %v5069 = vsel %vm731, %v5016, 0.0
  %5070 = vadd.xlane.f32.xlu0 %v5069
  %v5071 = vpop.xlane.xlu0 %5070
  %v5072 = vsel %vm731, %v5018, 0.0
  %5073 = vadd.xlane.f32.xlu0 %v5072
  %v5074 = vpop.xlane.xlu0 %5073
  %v5075 = vsel %vm731, %v5020, 0.0
  %5076 = vadd.xlane.f32.xlu0 %v5075
  %v5077 = vpop.xlane.xlu0 %5076
  %v5078 = vsel %vm731, %v5022, 0.0
  %5079 = vadd.xlane.f32.xlu0 %v5078
  %v5080 = vpop.xlane.xlu0 %5079
  %v5081 = vsel %vm731, %v5024, 0.0
  %5082 = vadd.xlane.f32.xlu0 %v5081
  %v5083 = vpop.xlane.xlu0 %5082
  %v5084 = vsel %vm731, %v5026, 0.0
  %5085 = vadd.xlane.f32.xlu0 %v5084
  %v5086 = vpop.xlane.xlu0 %5085
  %v5087 = vsel %vm731, %v5028, 0.0
  %5088 = vadd.xlane.f32.xlu0 %v5087
  %v5089 = vpop.xlane.xlu0 %5088
  %v5090 = vsel %vm731, %v5030, 0.0
  %5091 = vadd.xlane.f32.xlu0 %v5090
  %v5092 = vpop.xlane.xlu0 %5091
  %v5093 = vsel %vm731, %v5032, 0.0
  %5094 = vadd.xlane.f32.xlu0 %v5093
  %v5095 = vpop.xlane.xlu0 %5094
  %v5096 = vsel %vm731, %v5034, 0.0
  %5097 = vadd.xlane.f32.xlu0 %v5096
  %v5098 = vpop.xlane.xlu0 %5097
  %v5099 = vmul.f32 %v5053, %v4028
  %v5100 = vmul.f32 %v5056, %v4028
  %v5101 = vmul.f32 %v5059, %v4028
  %v5102 = vmul.f32 %v5062, %v4028
  %v5103 = vmul.f32 %v5065, %v4028
  %v5104 = vmul.f32 %v5068, %v4028
  %v5105 = vmul.f32 %v5071, %v4028
  %v5106 = vmul.f32 %v5074, %v4028
  %v5107 = vmul.f32 %v5077, %v4028
  %v5108 = vmul.f32 %v5080, %v4028
  %v5109 = vmul.f32 %v5083, %v4028
  %v5110 = vmul.f32 %v5086, %v4028
  %v5111 = vmul.f32 %v5089, %v4028
  %v5112 = vmul.f32 %v5092, %v4028
  %v5113 = vmul.f32 %v5095, %v4028
  %v5114 = vmul.f32 %v5098, %v4028
  %v5115 = vadd.f32 %v5099, 1e-05
  %v5116 = vadd.f32 %v5100, 1e-05
  %v5117 = vadd.f32 %v5101, 1e-05
  %v5118 = vadd.f32 %v5102, 1e-05
  %v5119 = vadd.f32 %v5103, 1e-05
  %v5120 = vadd.f32 %v5104, 1e-05
  %v5121 = vadd.f32 %v5105, 1e-05
  %v5122 = vadd.f32 %v5106, 1e-05
  %v5123 = vadd.f32 %v5107, 1e-05
  %v5124 = vadd.f32 %v5108, 1e-05
  %v5125 = vadd.f32 %v5109, 1e-05
  %v5126 = vadd.f32 %v5110, 1e-05
  %v5127 = vadd.f32 %v5111, 1e-05
  %v5128 = vadd.f32 %v5112, 1e-05
  %v5129 = vadd.f32 %v5113, 1e-05
  %v5130 = vadd.f32 %v5114, 1e-05
  %v5131 = vrsqrt.pop %v5115
  %v5132 = vrsqrt.pop %v5116
  %v5133 = vrsqrt.pop %v5117
  %v5134 = vrsqrt.pop %v5118
  %v5135 = vrsqrt.pop %v5119
  %v5136 = vrsqrt.pop %v5120
  %v5137 = vrsqrt.pop %v5121
  %v5138 = vrsqrt.pop %v5122
  %v5139 = vrsqrt.pop %v5123
  %v5140 = vrsqrt.pop %v5124
  %v5141 = vrsqrt.pop %v5125
  %v5142 = vrsqrt.pop %v5126
  %v5143 = vrsqrt.pop %v5127
  %v5144 = vrsqrt.pop %v5128
  %v5145 = vrsqrt.pop %v5129
  %v5146 = vrsqrt.pop %v5130
  %v5147 = vmul.f32 %v4955, %v5131
  %v5148 = vmul.f32 %v4956, %v5132
  %v5149 = vmul.f32 %v4957, %v5133
  %v5150 = vmul.f32 %v4958, %v5134
  %v5151 = vmul.f32 %v4959, %v5135
  %v5152 = vmul.f32 %v4960, %v5136
  %v5153 = vmul.f32 %v4961, %v5137
  %v5154 = vmul.f32 %v4962, %v5138
  %v5155 = vmul.f32 %v4963, %v5139
  %v5156 = vmul.f32 %v4964, %v5140
  %v5157 = vmul.f32 %v4965, %v5141
  %v5158 = vmul.f32 %v4966, %v5142
  %v5159 = vmul.f32 %v4967, %v5143
  %v5160 = vmul.f32 %v4968, %v5144
  %v5161 = vmul.f32 %v4969, %v5145
  %v5162 = vmul.f32 %v4970, %v5146
  %v5163 = vlaneseq
  %v5164 = vshrl.u32 %v5163, 7
  %v5165 = vsub.s32 2, %v5164
  %v5166 = vrot.slane %v2476, %v5165
  %5168 = vrot.lane.b32.xlu0 %v5166, 32
  %v5169 = vpop.permute.xlu0 %5168
  %v5171 = vmul.f32 %v5147, %v5169
  %v5172 = vmul.f32 %v5148, %v5169
  %v5173 = vmul.f32 %v5149, %v5169
  %v5174 = vmul.f32 %v5150, %v5169
  %v5175 = vmul.f32 %v5151, %v5169
  %v5176 = vmul.f32 %v5152, %v5169
  %v5177 = vmul.f32 %v5153, %v5169
  %v5178 = vmul.f32 %v5154, %v5169
  %v5179 = vmul.f32 %v5155, %v5169
  %v5180 = vmul.f32 %v5156, %v5169
  %v5181 = vmul.f32 %v5157, %v5169
  %v5182 = vmul.f32 %v5158, %v5169
  %v5183 = vmul.f32 %v5159, %v5169
  %v5184 = vmul.f32 %v5160, %v5169
  %v5185 = vmul.f32 %v5161, %v5169
  %v5186 = vmul.f32 %v5162, %v5169
  %v5187 = vlaneseq
  %v5188 = vshrl.u32 %v5187, 7
  %v5189 = vsub.s32 3, %v5188
  %v5190 = vrot.slane %v2476, %v5189
  %5192 = vrot.lane.b32.xlu0 %v5190, 32
  %v5193 = vpop.permute.xlu0 %5192
  %v5195 = vadd.f32 %v5171, %v5193
  %v5196 = vadd.f32 %v5172, %v5193
  %v5197 = vadd.f32 %v5173, %v5193
  %v5198 = vadd.f32 %v5174, %v5193
  %v5199 = vadd.f32 %v5175, %v5193
  %v5200 = vadd.f32 %v5176, %v5193
  %v5201 = vadd.f32 %v5177, %v5193
  %v5202 = vadd.f32 %v5178, %v5193
  %v5203 = vadd.f32 %v5179, %v5193
  %v5204 = vadd.f32 %v5180, %v5193
  %v5205 = vadd.f32 %v5181, %v5193
  %v5206 = vadd.f32 %v5182, %v5193
  %v5207 = vadd.f32 %v5183, %v5193
  %v5208 = vadd.f32 %v5184, %v5193
  %v5209 = vadd.f32 %v5185, %v5193
  %v5210 = vadd.f32 %v5186, %v5193
  %v5211 = vld [vmem:[%s18] sm:$0xff]
  %v5212 = vld [vmem:[%s18 + $0x8] sm:$0xff]
  %v5213 = vld [vmem:[%s19] sm:$0x1]
  %v5214 = vld [vmem:[%s20] sm:$0xff]
  %v5215 = vld [vmem:[%s20 + $0x8] sm:$0xff]
  %v5216 = vld [vmem:[%s21] sm:$0x1]
  %v5217 = vld [vmem:[%s22] sm:$0xff]
  %v5218 = vld [vmem:[%s22 + $0x8] sm:$0xff]
  %v5219 = vld [vmem:[%s22 + $0x10] sm:$0xff]
  %v5220 = vld [vmem:[%s22 + $0x18] sm:$0xff]
  %v5221 = vld [vmem:[%s22 + $0x20] sm:$0xff]
  %v5222 = vld [vmem:[%s22 + $0x28] sm:$0xff]
  %v5223 = vld [vmem:[%s22 + $0x30] sm:$0xff]
  %v5224 = vld [vmem:[%s22 + $0x38] sm:$0xff]
  %v5225 = vld [vmem:[%s23] sm:$0x1]
  %v5226 = vld [vmem:[%s24] sm:$0xf]
  %v5228 = vlaneseq
  %v5229 = vshrl.u32 %v5228, 7
  %v5230 = vsub.s32 0, %v5229
  %v5231 = vrot.slane %v5213, %v5230
  %5233 = vrot.lane.b32.xlu0 %v140, 80
  %v5234 = vpop.permute.xlu0 %5233
  %5235 = vrot.lane.b32.xlu0 %v141, 80
  %v5236 = vpop.permute.xlu0 %5235
  %5237 = vrot.lane.b32.xlu0 %v142, 80
  %v5238 = vpop.permute.xlu0 %5237
  %5239 = vrot.lane.b32.xlu0 %v143, 80
  %v5240 = vpop.permute.xlu0 %5239
  %5241 = vrot.lane.b32.xlu0 %v144, 80
  %v5242 = vpop.permute.xlu0 %5241
  %5243 = vrot.lane.b32.xlu0 %v145, 80
  %v5244 = vpop.permute.xlu0 %5243
  %5245 = vrot.lane.b32.xlu0 %v146, 80
  %v5246 = vpop.permute.xlu0 %5245
  %5247 = vrot.lane.b32.xlu0 %v147, 80
  %v5248 = vpop.permute.xlu0 %5247
  %5249 = vrot.lane.b32.xlu0 %v148, 80
  %v5250 = vpop.permute.xlu0 %5249
  %5251 = vrot.lane.b32.xlu0 %v149, 80
  %v5252 = vpop.permute.xlu0 %5251
  %5253 = vrot.lane.b32.xlu0 %v150, 80
  %v5254 = vpop.permute.xlu0 %5253
  %5255 = vrot.lane.b32.xlu0 %v151, 80
  %v5256 = vpop.permute.xlu0 %5255
  %5257 = vrot.lane.b32.xlu0 %v152, 80
  %v5258 = vpop.permute.xlu0 %5257
  %5259 = vrot.lane.b32.xlu0 %v153, 80
  %v5260 = vpop.permute.xlu0 %5259
  %5261 = vrot.lane.b32.xlu0 %v154, 80
  %v5262 = vpop.permute.xlu0 %5261
  %5263 = vrot.lane.b32.xlu0 %v155, 80
  %v5264 = vpop.permute.xlu0 %5263
  %v5265 = vsel %vm731, %v5234, 0
  %v5267 = vsel %vm731, %v5236, 0
  %v5269 = vsel %vm731, %v5238, 0
  %v5271 = vsel %vm731, %v5240, 0
  %v5273 = vsel %vm731, %v5242, 0
  %v5275 = vsel %vm731, %v5244, 0
  %v5277 = vsel %vm731, %v5246, 0
  %v5279 = vsel %vm731, %v5248, 0
  %v5281 = vsel %vm731, %v5250, 0
  %v5283 = vsel %vm731, %v5252, 0
  %v5285 = vsel %vm731, %v5254, 0
  %v5287 = vsel %vm731, %v5256, 0
  %v5289 = vsel %vm731, %v5258, 0
  %v5291 = vsel %vm731, %v5260, 0
  %v5293 = vsel %vm731, %v5262, 0
  %v5295 = vsel %vm731, %v5264, 0
  %5297 = vmatprep.subr.mxu0 0.0
  %5298 = vmatpush1.msra.mxu0 0.0
  %5299 = vmatprep.subr.mxu0 0.0
  %5300 = vmatpush1.msra.mxu0 0.0
  %5301 = vmatprep.subr.mxu0 0.0
  %5302 = vmatpush1.msra.mxu0 0.0
  %5303 = vmatprep.subr.mxu0 0.0
  %5304 = vmatpush1.msra.mxu0 0.0
  %5305 = vmatprep.subr.mxu0 0.0
  %5306 = vmatpush1.msra.mxu0 0.0
  %5307 = vmatprep.subr.mxu0 0.0
  %5308 = vmatpush1.msra.mxu0 0.0
  %5309 = vmatprep.subr.mxu0 0.0
  %5310 = vmatpush1.msra.mxu0 0.0
  %5311 = vmatprep.subr.mxu0 0.0
  %5312 = vmatpush1.msra.mxu0 0.0
  %5313 = vmatprep.subr.mxu0 0.0
  %5314 = vmatpush1.msra.mxu0 0.0
  %5315 = vmatprep.subr.mxu0 0.0
  %5316 = vmatpush1.msra.mxu0 0.0
  %5317 = vmatprep.subr.mxu0 0.0
  %5318 = vmatpush1.msra.mxu0 0.0
  %5319 = vmatprep.subr.mxu0 0.0
  %5320 = vmatpush1.msra.mxu0 0.0
  %5321 = vmatprep.subr.mxu0 0.0
  %5322 = vmatpush1.msra.mxu0 0.0
  %5323 = vmatprep.subr.mxu0 0.0
  %5324 = vmatpush1.msra.mxu0 0.0
  %5325 = vmatprep.subr.mxu0 0.0
  %5326 = vmatpush1.msra.mxu0 %v5212
  %5327 = vmatprep.subr.mxu0 0.0
  %5328 = vmatpush1.msra.mxu0 %v5211
  %5329 = vmatprep.subr.mxu0 0.0
  %5330 = vmatpush2.msra.mxu0 0.0
  %5331 = vmatprep.subr.mxu0 0.0
  %5332 = vmatpush2.msra.mxu0 0.0
  %5333 = vmatprep.subr.mxu0 0.0
  %5334 = vmatpush2.msra.mxu0 0.0
  %5335 = vmatprep.subr.mxu0 0.0
  %5336 = vmatpush2.msra.mxu0 0.0
  %5337 = vmatprep.subr.mxu0 0.0
  %5338 = vmatpush2.msra.mxu0 0.0
  %5339 = vmatprep.subr.mxu0 0.0
  %5340 = vmatpush2.msra.mxu0 0.0
  %5341 = vmatprep.subr.mxu0 0.0
  %5342 = vmatpush2.msra.mxu0 0.0
  %5343 = vmatprep.subr.mxu0 0.0
  %5344 = vmatpush2.msra.mxu0 0.0
  %5345 = vmatprep.subr.mxu0 0.0
  %5346 = vmatpush2.msra.mxu0 0.0
  %5347 = vmatprep.subr.mxu0 0.0
  %5348 = vmatpush2.msra.mxu0 0.0
  %5349 = vmatprep.subr.mxu0 0.0
  %5350 = vmatpush2.msra.mxu0 0.0
  %5351 = vmatprep.subr.mxu0 0.0
  %5352 = vmatpush2.msra.mxu0 0.0
  %5353 = vmatprep.subr.mxu0 0.0
  %5354 = vmatpush2.msra.mxu0 0.0
  %5355 = vmatprep.subr.mxu0 0.0
  %5356 = vmatpush2.msra.mxu0 0.0
  %5357 = vmatprep.subr.mxu0 0.0
  %5358 = vmatpush2.msra.mxu0 0.0
  %5359 = vmatprep.subr.mxu0 0.0
  %5360 = vmatpush2.msra.mxu0 0.0
  %5361 = vmatprep.mubr.f32.mxu0 0.0
  %5362 = vmatmul.mubr.f32.gmra.mxu0 %v5265
  %v5363 = vpop.f32.mrf.mxu0
  %v5364 = vadd.f32 %v5231, %v5363
  %v5365 = vpop.f32.mrf.mxu0
  %5366 = vmatprep.mubr.f32.mxu0 0.0
  %5367 = vmatmul.mubr.f32.gmra.mxu0 %v5267
  %v5368 = vpop.f32.mrf.mxu0
  %v5369 = vadd.f32 %v5231, %v5368
  %v5370 = vpop.f32.mrf.mxu0
  %5371 = vmatprep.mubr.f32.mxu0 0.0
  %5372 = vmatmul.mubr.f32.gmra.mxu0 %v5269
  %v5373 = vpop.f32.mrf.mxu0
  %v5374 = vadd.f32 %v5231, %v5373
  %v5375 = vpop.f32.mrf.mxu0
  %5376 = vmatprep.mubr.f32.mxu0 0.0
  %5377 = vmatmul.mubr.f32.gmra.mxu0 %v5271
  %v5378 = vpop.f32.mrf.mxu0
  %v5379 = vadd.f32 %v5231, %v5378
  %v5380 = vpop.f32.mrf.mxu0
  %5381 = vmatprep.mubr.f32.mxu0 0.0
  %5382 = vmatmul.mubr.f32.gmra.mxu0 %v5273
  %v5383 = vpop.f32.mrf.mxu0
  %v5384 = vadd.f32 %v5231, %v5383
  %v5385 = vpop.f32.mrf.mxu0
  %5386 = vmatprep.mubr.f32.mxu0 0.0
  %5387 = vmatmul.mubr.f32.gmra.mxu0 %v5275
  %v5388 = vpop.f32.mrf.mxu0
  %v5389 = vadd.f32 %v5231, %v5388
  %v5390 = vpop.f32.mrf.mxu0
  %5391 = vmatprep.mubr.f32.mxu0 0.0
  %5392 = vmatmul.mubr.f32.gmra.mxu0 %v5277
  %v5393 = vpop.f32.mrf.mxu0
  %v5394 = vadd.f32 %v5231, %v5393
  %v5395 = vpop.f32.mrf.mxu0
  %5396 = vmatprep.mubr.f32.mxu0 0.0
  %5397 = vmatmul.mubr.f32.gmra.mxu0 %v5279
  %v5398 = vpop.f32.mrf.mxu0
  %v5399 = vadd.f32 %v5231, %v5398
  %v5400 = vpop.f32.mrf.mxu0
  %5401 = vmatprep.mubr.f32.mxu0 0.0
  %5402 = vmatmul.mubr.f32.gmra.mxu0 %v5281
  %v5403 = vpop.f32.mrf.mxu0
  %v5404 = vadd.f32 %v5231, %v5403
  %v5405 = vpop.f32.mrf.mxu0
  %5406 = vmatprep.mubr.f32.mxu0 0.0
  %5407 = vmatmul.mubr.f32.gmra.mxu0 %v5283
  %v5408 = vpop.f32.mrf.mxu0
  %v5409 = vadd.f32 %v5231, %v5408
  %v5410 = vpop.f32.mrf.mxu0
  %5411 = vmatprep.mubr.f32.mxu0 0.0
  %5412 = vmatmul.mubr.f32.gmra.mxu0 %v5285
  %v5413 = vpop.f32.mrf.mxu0
  %v5414 = vadd.f32 %v5231, %v5413
  %v5415 = vpop.f32.mrf.mxu0
  %5416 = vmatprep.mubr.f32.mxu0 0.0
  %5417 = vmatmul.mubr.f32.gmra.mxu0 %v5287
  %v5418 = vpop.f32.mrf.mxu0
  %v5419 = vadd.f32 %v5231, %v5418
  %v5420 = vpop.f32.mrf.mxu0
  %5421 = vmatprep.mubr.f32.mxu0 0.0
  %5422 = vmatmul.mubr.f32.gmra.mxu0 %v5289
  %v5423 = vpop.f32.mrf.mxu0
  %v5424 = vadd.f32 %v5231, %v5423
  %v5425 = vpop.f32.mrf.mxu0
  %5426 = vmatprep.mubr.f32.mxu0 0.0
  %5427 = vmatmul.mubr.f32.gmra.mxu0 %v5291
  %v5428 = vpop.f32.mrf.mxu0
  %v5429 = vadd.f32 %v5231, %v5428
  %v5430 = vpop.f32.mrf.mxu0
  %5431 = vmatprep.mubr.f32.mxu0 0.0
  %5432 = vmatmul.mubr.f32.gmra.mxu0 %v5293
  %v5433 = vpop.f32.mrf.mxu0
  %v5434 = vadd.f32 %v5231, %v5433
  %v5435 = vpop.f32.mrf.mxu0
  %5436 = vmatprep.mubr.f32.mxu0 0.0
  %5437 = vmatmul.mubr.f32.gmra.mxu0 %v5295
  %v5438 = vpop.f32.mrf.mxu0
  %v5439 = vadd.f32 %v5231, %v5438
  %v5440 = vpop.f32.mrf.mxu0
  %5441 = vdwg.mxu0
  %5442 = vrot.lane.b32.xlu0 %v356, 80
  %v5443 = vpop.permute.xlu0 %5442
  %5444 = vrot.lane.b32.xlu0 %v357, 80
  %v5445 = vpop.permute.xlu0 %5444
  %5446 = vrot.lane.b32.xlu0 %v358, 80
  %v5447 = vpop.permute.xlu0 %5446
  %5448 = vrot.lane.b32.xlu0 %v359, 80
  %v5449 = vpop.permute.xlu0 %5448
  %5452 = vrot.lane.b32.xlu0 %v5211, 112
  %v5453 = vpop.permute.xlu0 %5452
  %5454 = vrot.lane.b32.xlu0 %v5212, 112
  %v5455 = vpop.permute.xlu0 %5454
  %5458 = vrot.lane.b32.xlu0 %v5231, 112
  %v5459 = vpop.permute.xlu0 %5458
  %v5461 = vsel %vm731, %v5443, 0
  %v5463 = vsel %vm731, %v5445, 0
  %v5465 = vsel %vm731, %v5447, 0
  %v5467 = vsel %vm731, %v5449, 0
  %5469 = vmatprep.subr.mxu0 0.0
  %5470 = vmatpush1.msra.mxu0 0.0
  %5471 = vmatprep.subr.mxu0 0.0
  %5472 = vmatpush1.msra.mxu0 0.0
  %5473 = vmatprep.subr.mxu0 0.0
  %5474 = vmatpush1.msra.mxu0 0.0
  %5475 = vmatprep.subr.mxu0 0.0
  %5476 = vmatpush1.msra.mxu0 0.0
  %5477 = vmatprep.subr.mxu0 0.0
  %5478 = vmatpush1.msra.mxu0 0.0
  %5479 = vmatprep.subr.mxu0 0.0
  %5480 = vmatpush1.msra.mxu0 0.0
  %5481 = vmatprep.subr.mxu0 0.0
  %5482 = vmatpush1.msra.mxu0 0.0
  %5483 = vmatprep.subr.mxu0 0.0
  %5484 = vmatpush1.msra.mxu0 0.0
  %5485 = vmatprep.subr.mxu0 0.0
  %5486 = vmatpush1.msra.mxu0 0.0
  %5487 = vmatprep.subr.mxu0 0.0
  %5488 = vmatpush1.msra.mxu0 0.0
  %5489 = vmatprep.subr.mxu0 0.0
  %5490 = vmatpush1.msra.mxu0 0.0
  %5491 = vmatprep.subr.mxu0 0.0
  %5492 = vmatpush1.msra.mxu0 0.0
  %5493 = vmatprep.subr.mxu0 0.0
  %5494 = vmatpush1.msra.mxu0 0.0
  %5495 = vmatprep.subr.mxu0 0.0
  %5496 = vmatpush1.msra.mxu0 0.0
  %5497 = vmatprep.subr.mxu0 0.0
  %5498 = vmatpush1.msra.mxu0 %v5455
  %5499 = vmatprep.subr.mxu0 0.0
  %5500 = vmatpush1.msra.mxu0 %v5453
  %5501 = vmatprep.subr.mxu0 0.0
  %5502 = vmatpush2.msra.mxu0 0.0
  %5503 = vmatprep.subr.mxu0 0.0
  %5504 = vmatpush2.msra.mxu0 0.0
  %5505 = vmatprep.subr.mxu0 0.0
  %5506 = vmatpush2.msra.mxu0 0.0
  %5507 = vmatprep.subr.mxu0 0.0
  %5508 = vmatpush2.msra.mxu0 0.0
  %5509 = vmatprep.subr.mxu0 0.0
  %5510 = vmatpush2.msra.mxu0 0.0
  %5511 = vmatprep.subr.mxu0 0.0
  %5512 = vmatpush2.msra.mxu0 0.0
  %5513 = vmatprep.subr.mxu0 0.0
  %5514 = vmatpush2.msra.mxu0 0.0
  %5515 = vmatprep.subr.mxu0 0.0
  %5516 = vmatpush2.msra.mxu0 0.0
  %5517 = vmatprep.subr.mxu0 0.0
  %5518 = vmatpush2.msra.mxu0 0.0
  %5519 = vmatprep.subr.mxu0 0.0
  %5520 = vmatpush2.msra.mxu0 0.0
  %5521 = vmatprep.subr.mxu0 0.0
  %5522 = vmatpush2.msra.mxu0 0.0
  %5523 = vmatprep.subr.mxu0 0.0
  %5524 = vmatpush2.msra.mxu0 0.0
  %5525 = vmatprep.subr.mxu0 0.0
  %5526 = vmatpush2.msra.mxu0 0.0
  %5527 = vmatprep.subr.mxu0 0.0
  %5528 = vmatpush2.msra.mxu0 0.0
  %5529 = vmatprep.subr.mxu0 0.0
  %5530 = vmatpush2.msra.mxu0 0.0
  %5531 = vmatprep.subr.mxu0 0.0
  %5532 = vmatpush2.msra.mxu0 0.0
  %5533 = vmatprep.mubr.f32.mxu0 0.0
  %5534 = vmatmul.mubr.f32.gmra.mxu0 %v5461
  %v5535 = vpop.f32.mrf.mxu0
  %v5536 = vadd.f32 %v5459, %v5535
  %v5537 = vpop.f32.mrf.mxu0
  %5538 = vmatprep.mubr.f32.mxu0 0.0
  %5539 = vmatmul.mubr.f32.gmra.mxu0 %v5463
  %v5540 = vpop.f32.mrf.mxu0
  %v5541 = vadd.f32 %v5459, %v5540
  %v5542 = vpop.f32.mrf.mxu0
  %5543 = vmatprep.mubr.f32.mxu0 0.0
  %5544 = vmatmul.mubr.f32.gmra.mxu0 %v5465
  %v5545 = vpop.f32.mrf.mxu0
  %v5546 = vadd.f32 %v5459, %v5545
  %v5547 = vpop.f32.mrf.mxu0
  %5548 = vmatprep.mubr.f32.mxu0 0.0
  %5549 = vmatmul.mubr.f32.gmra.mxu0 %v5467
  %v5550 = vpop.f32.mrf.mxu0
  %v5551 = vadd.f32 %v5459, %v5550
  %v5552 = vpop.f32.mrf.mxu0
  %5553 = vdwg.mxu0
  %5554 = vrot.lane.b32.xlu0 %v80, 80
  %v5555 = vpop.permute.xlu0 %5554
  %5556 = vrot.lane.b32.xlu0 %v81, 80
  %v5557 = vpop.permute.xlu0 %5556
  %5558 = vrot.lane.b32.xlu0 %v82, 80
  %v5559 = vpop.permute.xlu0 %5558
  %5560 = vrot.lane.b32.xlu0 %v83, 80
  %v5561 = vpop.permute.xlu0 %5560
  %5562 = vrot.lane.b32.xlu0 %v5211, 96
  %v5563 = vpop.permute.xlu0 %5562
  %5564 = vrot.lane.b32.xlu0 %v5212, 96
  %v5565 = vpop.permute.xlu0 %5564
  %5568 = vrot.lane.b32.xlu0 %v5231, 96
  %v5569 = vpop.permute.xlu0 %5568
  %v5571 = vsel %vm731, %v5555, 0
  %v5573 = vsel %vm731, %v5557, 0
  %v5575 = vsel %vm731, %v5559, 0
  %v5577 = vsel %vm731, %v5561, 0
  %5579 = vmatprep.subr.mxu0 0.0
  %5580 = vmatpush1.msra.mxu0 0.0
  %5581 = vmatprep.subr.mxu0 0.0
  %5582 = vmatpush1.msra.mxu0 0.0
  %5583 = vmatprep.subr.mxu0 0.0
  %5584 = vmatpush1.msra.mxu0 0.0
  %5585 = vmatprep.subr.mxu0 0.0
  %5586 = vmatpush1.msra.mxu0 0.0
  %5587 = vmatprep.subr.mxu0 0.0
  %5588 = vmatpush1.msra.mxu0 0.0
  %5589 = vmatprep.subr.mxu0 0.0
  %5590 = vmatpush1.msra.mxu0 0.0
  %5591 = vmatprep.subr.mxu0 0.0
  %5592 = vmatpush1.msra.mxu0 0.0
  %5593 = vmatprep.subr.mxu0 0.0
  %5594 = vmatpush1.msra.mxu0 0.0
  %5595 = vmatprep.subr.mxu0 0.0
  %5596 = vmatpush1.msra.mxu0 0.0
  %5597 = vmatprep.subr.mxu0 0.0
  %5598 = vmatpush1.msra.mxu0 0.0
  %5599 = vmatprep.subr.mxu0 0.0
  %5600 = vmatpush1.msra.mxu0 0.0
  %5601 = vmatprep.subr.mxu0 0.0
  %5602 = vmatpush1.msra.mxu0 0.0
  %5603 = vmatprep.subr.mxu0 0.0
  %5604 = vmatpush1.msra.mxu0 0.0
  %5605 = vmatprep.subr.mxu0 0.0
  %5606 = vmatpush1.msra.mxu0 0.0
  %5607 = vmatprep.subr.mxu0 0.0
  %5608 = vmatpush1.msra.mxu0 %v5565
  %5609 = vmatprep.subr.mxu0 0.0
  %5610 = vmatpush1.msra.mxu0 %v5563
  %5611 = vmatprep.subr.mxu0 0.0
  %5612 = vmatpush2.msra.mxu0 0.0
  %5613 = vmatprep.subr.mxu0 0.0
  %5614 = vmatpush2.msra.mxu0 0.0
  %5615 = vmatprep.subr.mxu0 0.0
  %5616 = vmatpush2.msra.mxu0 0.0
  %5617 = vmatprep.subr.mxu0 0.0
  %5618 = vmatpush2.msra.mxu0 0.0
  %5619 = vmatprep.subr.mxu0 0.0
  %5620 = vmatpush2.msra.mxu0 0.0
  %5621 = vmatprep.subr.mxu0 0.0
  %5622 = vmatpush2.msra.mxu0 0.0
  %5623 = vmatprep.subr.mxu0 0.0
  %5624 = vmatpush2.msra.mxu0 0.0
  %5625 = vmatprep.subr.mxu0 0.0
  %5626 = vmatpush2.msra.mxu0 0.0
  %5627 = vmatprep.subr.mxu0 0.0
  %5628 = vmatpush2.msra.mxu0 0.0
  %5629 = vmatprep.subr.mxu0 0.0
  %5630 = vmatpush2.msra.mxu0 0.0
  %5631 = vmatprep.subr.mxu0 0.0
  %5632 = vmatpush2.msra.mxu0 0.0
  %5633 = vmatprep.subr.mxu0 0.0
  %5634 = vmatpush2.msra.mxu0 0.0
  %5635 = vmatprep.subr.mxu0 0.0
  %5636 = vmatpush2.msra.mxu0 0.0
  %5637 = vmatprep.subr.mxu0 0.0
  %5638 = vmatpush2.msra.mxu0 0.0
  %5639 = vmatprep.subr.mxu0 0.0
  %5640 = vmatpush2.msra.mxu0 0.0
  %5641 = vmatprep.subr.mxu0 0.0
  %5642 = vmatpush2.msra.mxu0 0.0
  %5643 = vmatprep.mubr.f32.mxu0 0.0
  %5644 = vmatmul.mubr.f32.gmra.mxu0 %v5571
  %v5645 = vpop.f32.mrf.mxu0
  %v5646 = vadd.f32 %v5569, %v5645
  %v5647 = vpop.f32.mrf.mxu0
  %5648 = vmatprep.mubr.f32.mxu0 0.0
  %5649 = vmatmul.mubr.f32.gmra.mxu0 %v5573
  %v5650 = vpop.f32.mrf.mxu0
  %v5651 = vadd.f32 %v5569, %v5650
  %v5652 = vpop.f32.mrf.mxu0
  %5653 = vmatprep.mubr.f32.mxu0 0.0
  %5654 = vmatmul.mubr.f32.gmra.mxu0 %v5575
  %v5655 = vpop.f32.mrf.mxu0
  %v5656 = vadd.f32 %v5569, %v5655
  %v5657 = vpop.f32.mrf.mxu0
  %5658 = vmatprep.mubr.f32.mxu0 0.0
  %5659 = vmatmul.mubr.f32.gmra.mxu0 %v5577
  %v5660 = vpop.f32.mrf.mxu0
  %v5661 = vadd.f32 %v5569, %v5660
  %v5662 = vpop.f32.mrf.mxu0
  %5663 = vdwg.mxu0
  %v5665 = vsel %vm731, %v5364, 0
  %v5668 = vsel %vm731, %v5369, 0
  %v5671 = vsel %vm731, %v5374, 0
  %v5674 = vsel %vm731, %v5379, 0
  %v5677 = vsel %vm731, %v5384, 0
  %v5680 = vsel %vm731, %v5389, 0
  %v5683 = vsel %vm731, %v5394, 0
  %v5686 = vsel %vm731, %v5399, 0
  %v5689 = vsel %vm731, %v5536, 0
  %v5692 = vsel %vm731, %v5541, 0
  %5694 = vmatprep.subr.mxu0 0.0
  %5695 = vmatpush1.xpose.msra.mxu0 0.0
  %5696 = vmatprep.subr.mxu0 0.0
  %5697 = vmatpush1.xpose.msra.mxu0 0.0
  %5698 = vmatprep.subr.mxu0 0.0
  %5699 = vmatpush1.xpose.msra.mxu0 0.0
  %5700 = vmatprep.subr.mxu0 0.0
  %5701 = vmatpush1.xpose.msra.mxu0 0.0
  %5702 = vmatprep.subr.mxu0 0.0
  %5703 = vmatpush1.xpose.msra.mxu0 0.0
  %5704 = vmatprep.subr.mxu0 0.0
  %5705 = vmatpush1.xpose.msra.mxu0 0.0
  %5706 = vmatprep.subr.mxu0 0.0
  %5707 = vmatpush1.xpose.msra.mxu0 0.0
  %5708 = vmatprep.subr.mxu0 0.0
  %5709 = vmatpush1.xpose.msra.mxu0 0.0
  %5710 = vmatprep.subr.mxu0 0.0
  %5711 = vmatpush1.xpose.msra.mxu0 0.0
  %5712 = vmatprep.subr.mxu0 0.0
  %5713 = vmatpush1.xpose.msra.mxu0 0.0
  %5714 = vmatprep.subr.mxu0 0.0
  %5715 = vmatpush1.xpose.msra.mxu0 0.0
  %5716 = vmatprep.subr.mxu0 0.0
  %5717 = vmatpush1.xpose.msra.mxu0 0.0
  %5718 = vmatprep.subr.mxu0 0.0
  %5719 = vmatpush1.xpose.msra.mxu0 0.0
  %5720 = vmatprep.subr.mxu0 0.0
  %5721 = vmatpush1.xpose.msra.mxu0 0.0
  %5722 = vmatprep.subr.mxu0 0.0
  %5723 = vmatpush1.xpose.msra.mxu0 %v5692
  %5724 = vmatprep.subr.mxu0 0.0
  %5725 = vmatpush1.xpose.msra.mxu0 %v5689
  %5726 = vmatprep.subr.mxu0 0.0
  %5727 = vmatpush2.xpose.msra.mxu0 0.0
  %5728 = vmatprep.subr.mxu0 0.0
  %5729 = vmatpush2.xpose.msra.mxu0 0.0
  %5730 = vmatprep.subr.mxu0 0.0
  %5731 = vmatpush2.xpose.msra.mxu0 0.0
  %5732 = vmatprep.subr.mxu0 0.0
  %5733 = vmatpush2.xpose.msra.mxu0 0.0
  %5734 = vmatprep.subr.mxu0 0.0
  %5735 = vmatpush2.xpose.msra.mxu0 0.0
  %5736 = vmatprep.subr.mxu0 0.0
  %5737 = vmatpush2.xpose.msra.mxu0 0.0
  %5738 = vmatprep.subr.mxu0 0.0
  %5739 = vmatpush2.xpose.msra.mxu0 0.0
  %5740 = vmatprep.subr.mxu0 0.0
  %5741 = vmatpush2.xpose.msra.mxu0 0.0
  %5742 = vmatprep.subr.mxu0 0.0
  %5743 = vmatpush2.xpose.msra.mxu0 0.0
  %5744 = vmatprep.subr.mxu0 0.0
  %5745 = vmatpush2.xpose.msra.mxu0 0.0
  %5746 = vmatprep.subr.mxu0 0.0
  %5747 = vmatpush2.xpose.msra.mxu0 0.0
  %5748 = vmatprep.subr.mxu0 0.0
  %5749 = vmatpush2.xpose.msra.mxu0 0.0
  %5750 = vmatprep.subr.mxu0 0.0
  %5751 = vmatpush2.xpose.msra.mxu0 0.0
  %5752 = vmatprep.subr.mxu0 0.0
  %5753 = vmatpush2.xpose.msra.mxu0 0.0
  %5754 = vmatprep.subr.mxu0 0.0
  %5755 = vmatpush2.xpose.msra.mxu0 0.0
  %5756 = vmatprep.subr.mxu0 0.0
  %5757 = vmatpush2.xpose.msra.mxu0 0.0
  %5758 = vmatprep.mubr.f32.mxu0 0.0
  %5759 = vmatmul.mubr.f32.gmra.mxu0 %v5665
  %v5760 = vpop.f32.mrf.mxu0
  %v5761 = vadd.f32 0.0, %v5760
  %v5762 = vpop.f32.mrf.mxu0
  %5763 = vmatprep.mubr.f32.mxu0 0.0
  %5764 = vmatmul.mubr.f32.gmra.mxu0 %v5668
  %v5765 = vpop.f32.mrf.mxu0
  %v5766 = vadd.f32 0.0, %v5765
  %v5767 = vpop.f32.mrf.mxu0
  %5768 = vmatprep.mubr.f32.mxu0 0.0
  %5769 = vmatmul.mubr.f32.gmra.mxu0 %v5671
  %v5770 = vpop.f32.mrf.mxu0
  %v5771 = vadd.f32 0.0, %v5770
  %v5772 = vpop.f32.mrf.mxu0
  %5773 = vmatprep.mubr.f32.mxu0 0.0
  %5774 = vmatmul.mubr.f32.gmra.mxu0 %v5674
  %v5775 = vpop.f32.mrf.mxu0
  %v5776 = vadd.f32 0.0, %v5775
  %v5777 = vpop.f32.mrf.mxu0
  %5778 = vmatprep.mubr.f32.mxu0 0.0
  %5779 = vmatmul.mubr.f32.gmra.mxu0 %v5677
  %v5780 = vpop.f32.mrf.mxu0
  %v5781 = vadd.f32 0.0, %v5780
  %v5782 = vpop.f32.mrf.mxu0
  %5783 = vmatprep.mubr.f32.mxu0 0.0
  %5784 = vmatmul.mubr.f32.gmra.mxu0 %v5680
  %v5785 = vpop.f32.mrf.mxu0
  %v5786 = vadd.f32 0.0, %v5785
  %v5787 = vpop.f32.mrf.mxu0
  %5788 = vmatprep.mubr.f32.mxu0 0.0
  %5789 = vmatmul.mubr.f32.gmra.mxu0 %v5683
  %v5790 = vpop.f32.mrf.mxu0
  %v5791 = vadd.f32 0.0, %v5790
  %v5792 = vpop.f32.mrf.mxu0
  %5793 = vmatprep.mubr.f32.mxu0 0.0
  %5794 = vmatmul.mubr.f32.gmra.mxu0 %v5686
  %v5795 = vpop.f32.mrf.mxu0
  %v5796 = vadd.f32 0.0, %v5795
  %v5797 = vpop.f32.mrf.mxu0
  %5798 = vdwg.mxu0
  %v5799 = vmul.f32 %v5761, 0.25
  %v5800 = vmul.f32 %v5766, 0.25
  %v5801 = vmul.f32 %v5771, 0.25
  %v5802 = vmul.f32 %v5776, 0.25
  %v5803 = vmul.f32 %v5781, 0.25
  %v5804 = vmul.f32 %v5786, 0.25
  %v5805 = vmul.f32 %v5791, 0.25
  %v5806 = vmul.f32 %v5796, 0.25
  %v5807 = vsel %vm731, %v5799, -inf
  %5808 = vmax.xlane.f32.xlu0 %v5807
  %v5809 = vpop.xlane.xlu0 %5808
  %v5810 = vsel %vm731, %v5800, -inf
  %5811 = vmax.xlane.f32.xlu0 %v5810
  %v5812 = vpop.xlane.xlu0 %5811
  %v5813 = vsel %vm731, %v5801, -inf
  %5814 = vmax.xlane.f32.xlu0 %v5813
  %v5815 = vpop.xlane.xlu0 %5814
  %v5816 = vsel %vm731, %v5802, -inf
  %5817 = vmax.xlane.f32.xlu0 %v5816
  %v5818 = vpop.xlane.xlu0 %5817
  %v5819 = vsel %vm731, %v5803, -inf
  %5820 = vmax.xlane.f32.xlu0 %v5819
  %v5821 = vpop.xlane.xlu0 %5820
  %v5822 = vsel %vm731, %v5804, -inf
  %5823 = vmax.xlane.f32.xlu0 %v5822
  %v5824 = vpop.xlane.xlu0 %5823
  %v5825 = vsel %vm731, %v5805, -inf
  %5826 = vmax.xlane.f32.xlu0 %v5825
  %v5827 = vpop.xlane.xlu0 %5826
  %v5828 = vsel %vm731, %v5806, -inf
  %5829 = vmax.xlane.f32.xlu0 %v5828
  %v5830 = vpop.xlane.xlu0 %5829
  %v5831 = vsub.f32 %v5799, %v5809
  %v5832 = vsub.f32 %v5800, %v5812
  %v5833 = vsub.f32 %v5801, %v5815
  %v5834 = vsub.f32 %v5802, %v5818
  %v5835 = vsub.f32 %v5803, %v5821
  %v5836 = vsub.f32 %v5804, %v5824
  %v5837 = vsub.f32 %v5805, %v5827
  %v5838 = vsub.f32 %v5806, %v5830
  %v5839 = vmul.f32 %v5831, 1.442695
  %v5840 = vpow.pop %v5839
  %v5841 = vmul.f32 %v5832, 1.442695
  %v5842 = vpow.pop %v5841
  %v5843 = vmul.f32 %v5833, 1.442695
  %v5844 = vpow.pop %v5843
  %v5845 = vmul.f32 %v5834, 1.442695
  %v5846 = vpow.pop %v5845
  %v5847 = vmul.f32 %v5835, 1.442695
  %v5848 = vpow.pop %v5847
  %v5849 = vmul.f32 %v5836, 1.442695
  %v5850 = vpow.pop %v5849
  %v5851 = vmul.f32 %v5837, 1.442695
  %v5852 = vpow.pop %v5851
  %v5853 = vmul.f32 %v5838, 1.442695
  %v5854 = vpow.pop %v5853
  %v5855 = vsel %vm731, %v5840, 0.0
  %5856 = vadd.xlane.f32.xlu0 %v5855
  %v5857 = vpop.xlane.xlu0 %5856
  %v5858 = vsel %vm731, %v5842, 0.0
  %5859 = vadd.xlane.f32.xlu0 %v5858
  %v5860 = vpop.xlane.xlu0 %5859
  %v5861 = vsel %vm731, %v5844, 0.0
  %5862 = vadd.xlane.f32.xlu0 %v5861
  %v5863 = vpop.xlane.xlu0 %5862
  %v5864 = vsel %vm731, %v5846, 0.0
  %5865 = vadd.xlane.f32.xlu0 %v5864
  %v5866 = vpop.xlane.xlu0 %5865
  %v5867 = vsel %vm731, %v5848, 0.0
  %5868 = vadd.xlane.f32.xlu0 %v5867
  %v5869 = vpop.xlane.xlu0 %5868
  %v5870 = vsel %vm731, %v5850, 0.0
  %5871 = vadd.xlane.f32.xlu0 %v5870
  %v5872 = vpop.xlane.xlu0 %5871
  %v5873 = vsel %vm731, %v5852, 0.0
  %5874 = vadd.xlane.f32.xlu0 %v5873
  %v5875 = vpop.xlane.xlu0 %5874
  %v5876 = vsel %vm731, %v5854, 0.0
  %5877 = vadd.xlane.f32.xlu0 %v5876
  %v5878 = vpop.xlane.xlu0 %5877
  %v5879 = vrcp.pop %v5857
  %v5880 = vrcp.pop %v5860
  %v5881 = vrcp.pop %v5863
  %v5882 = vrcp.pop %v5866
  %v5883 = vrcp.pop %v5869
  %v5884 = vrcp.pop %v5872
  %v5885 = vrcp.pop %v5875
  %v5886 = vrcp.pop %v5878
  %v5887 = vmul.f32 %v5840, %v5879
  %v5888 = vmul.f32 %v5842, %v5880
  %v5889 = vmul.f32 %v5844, %v5881
  %v5890 = vmul.f32 %v5846, %v5882
  %v5891 = vmul.f32 %v5848, %v5883
  %v5892 = vmul.f32 %v5850, %v5884
  %v5893 = vmul.f32 %v5852, %v5885
  %v5894 = vmul.f32 %v5854, %v5886
  %v5896 = vsel %vm731, %v5887, 0
  %v5899 = vsel %vm731, %v5888, 0
  %v5902 = vsel %vm731, %v5889, 0
  %v5905 = vsel %vm731, %v5890, 0
  %v5908 = vsel %vm731, %v5891, 0
  %v5911 = vsel %vm731, %v5892, 0
  %v5914 = vsel %vm731, %v5893, 0
  %v5917 = vsel %vm731, %v5894, 0
  %5919 = vmatprep.subr.mxu0 0.0
  %5920 = vmatpush1.msra.mxu0 0.0
  %5921 = vmatprep.subr.mxu0 0.0
  %5922 = vmatpush1.msra.mxu0 0.0
  %5923 = vmatprep.subr.mxu0 0.0
  %5924 = vmatpush1.msra.mxu0 0.0
  %5925 = vmatprep.subr.mxu0 0.0
  %5926 = vmatpush1.msra.mxu0 0.0
  %5927 = vmatprep.subr.mxu0 0.0
  %5928 = vmatpush1.msra.mxu0 0.0
  %5929 = vmatprep.subr.mxu0 0.0
  %5930 = vmatpush1.msra.mxu0 0.0
  %5931 = vmatprep.subr.mxu0 0.0
  %5932 = vmatpush1.msra.mxu0 0.0
  %5933 = vmatprep.subr.mxu0 0.0
  %5934 = vmatpush1.msra.mxu0 0.0
  %5935 = vmatprep.subr.mxu0 0.0
  %5936 = vmatpush1.msra.mxu0 0.0
  %5937 = vmatprep.subr.mxu0 0.0
  %5938 = vmatpush1.msra.mxu0 0.0
  %5939 = vmatprep.subr.mxu0 0.0
  %5940 = vmatpush1.msra.mxu0 0.0
  %5941 = vmatprep.subr.mxu0 0.0
  %5942 = vmatpush1.msra.mxu0 0.0
  %5943 = vmatprep.subr.mxu0 0.0
  %5944 = vmatpush1.msra.mxu0 0.0
  %5945 = vmatprep.subr.mxu0 0.0
  %5946 = vmatpush1.msra.mxu0 0.0
  %5947 = vmatprep.subr.mxu0 0.0
  %5948 = vmatpush1.msra.mxu0 %v5651
  %5949 = vmatprep.subr.mxu0 0.0
  %5950 = vmatpush1.msra.mxu0 %v5646
  %5951 = vmatprep.subr.mxu0 0.0
  %5952 = vmatpush2.msra.mxu0 0.0
  %5953 = vmatprep.subr.mxu0 0.0
  %5954 = vmatpush2.msra.mxu0 0.0
  %5955 = vmatprep.subr.mxu0 0.0
  %5956 = vmatpush2.msra.mxu0 0.0
  %5957 = vmatprep.subr.mxu0 0.0
  %5958 = vmatpush2.msra.mxu0 0.0
  %5959 = vmatprep.subr.mxu0 0.0
  %5960 = vmatpush2.msra.mxu0 0.0
  %5961 = vmatprep.subr.mxu0 0.0
  %5962 = vmatpush2.msra.mxu0 0.0
  %5963 = vmatprep.subr.mxu0 0.0
  %5964 = vmatpush2.msra.mxu0 0.0
  %5965 = vmatprep.subr.mxu0 0.0
  %5966 = vmatpush2.msra.mxu0 0.0
  %5967 = vmatprep.subr.mxu0 0.0
  %5968 = vmatpush2.msra.mxu0 0.0
  %5969 = vmatprep.subr.mxu0 0.0
  %5970 = vmatpush2.msra.mxu0 0.0
  %5971 = vmatprep.subr.mxu0 0.0
  %5972 = vmatpush2.msra.mxu0 0.0
  %5973 = vmatprep.subr.mxu0 0.0
  %5974 = vmatpush2.msra.mxu0 0.0
  %5975 = vmatprep.subr.mxu0 0.0
  %5976 = vmatpush2.msra.mxu0 0.0
  %5977 = vmatprep.subr.mxu0 0.0
  %5978 = vmatpush2.msra.mxu0 0.0
  %5979 = vmatprep.subr.mxu0 0.0
  %5980 = vmatpush2.msra.mxu0 0.0
  %5981 = vmatprep.subr.mxu0 0.0
  %5982 = vmatpush2.msra.mxu0 0.0
  %5983 = vmatprep.mubr.f32.mxu0 0.0
  %5984 = vmatmul.mubr.f32.gmra.mxu0 %v5896
  %v5985 = vpop.f32.mrf.mxu0
  %v5986 = vadd.f32 0.0, %v5985
  %v5987 = vpop.f32.mrf.mxu0
  %5988 = vmatprep.mubr.f32.mxu0 0.0
  %5989 = vmatmul.mubr.f32.gmra.mxu0 %v5899
  %v5990 = vpop.f32.mrf.mxu0
  %v5991 = vadd.f32 0.0, %v5990
  %v5992 = vpop.f32.mrf.mxu0
  %5993 = vmatprep.mubr.f32.mxu0 0.0
  %5994 = vmatmul.mubr.f32.gmra.mxu0 %v5902
  %v5995 = vpop.f32.mrf.mxu0
  %v5996 = vadd.f32 0.0, %v5995
  %v5997 = vpop.f32.mrf.mxu0
  %5998 = vmatprep.mubr.f32.mxu0 0.0
  %5999 = vmatmul.mubr.f32.gmra.mxu0 %v5905
  %v6000 = vpop.f32.mrf.mxu0
  %v6001 = vadd.f32 0.0, %v6000
  %v6002 = vpop.f32.mrf.mxu0
  %6003 = vmatprep.mubr.f32.mxu0 0.0
  %6004 = vmatmul.mubr.f32.gmra.mxu0 %v5908
  %v6005 = vpop.f32.mrf.mxu0
  %v6006 = vadd.f32 0.0, %v6005
  %v6007 = vpop.f32.mrf.mxu0
  %6008 = vmatprep.mubr.f32.mxu0 0.0
  %6009 = vmatmul.mubr.f32.gmra.mxu0 %v5911
  %v6010 = vpop.f32.mrf.mxu0
  %v6011 = vadd.f32 0.0, %v6010
  %v6012 = vpop.f32.mrf.mxu0
  %6013 = vmatprep.mubr.f32.mxu0 0.0
  %6014 = vmatmul.mubr.f32.gmra.mxu0 %v5914
  %v6015 = vpop.f32.mrf.mxu0
  %v6016 = vadd.f32 0.0, %v6015
  %v6017 = vpop.f32.mrf.mxu0
  %6018 = vmatprep.mubr.f32.mxu0 0.0
  %6019 = vmatmul.mubr.f32.gmra.mxu0 %v5917
  %v6020 = vpop.f32.mrf.mxu0
  %v6021 = vadd.f32 0.0, %v6020
  %v6022 = vpop.f32.mrf.mxu0
  %6023 = vdwg.mxu0
  %v6025 = vsel %vm731, %v5404, 0
  %v6028 = vsel %vm731, %v5409, 0
  %v6031 = vsel %vm731, %v5414, 0
  %v6034 = vsel %vm731, %v5419, 0
  %v6037 = vsel %vm731, %v5424, 0
  %v6040 = vsel %vm731, %v5429, 0
  %v6043 = vsel %vm731, %v5434, 0
  %v6046 = vsel %vm731, %v5439, 0
  %v6049 = vsel %vm731, %v5546, 0
  %v6052 = vsel %vm731, %v5551, 0
  %6054 = vmatprep.subr.mxu0 0.0
  %6055 = vmatpush1.xpose.msra.mxu0 0.0
  %6056 = vmatprep.subr.mxu0 0.0
  %6057 = vmatpush1.xpose.msra.mxu0 0.0
  %6058 = vmatprep.subr.mxu0 0.0
  %6059 = vmatpush1.xpose.msra.mxu0 0.0
  %6060 = vmatprep.subr.mxu0 0.0
  %6061 = vmatpush1.xpose.msra.mxu0 0.0
  %6062 = vmatprep.subr.mxu0 0.0
  %6063 = vmatpush1.xpose.msra.mxu0 0.0
  %6064 = vmatprep.subr.mxu0 0.0
  %6065 = vmatpush1.xpose.msra.mxu0 0.0
  %6066 = vmatprep.subr.mxu0 0.0
  %6067 = vmatpush1.xpose.msra.mxu0 0.0
  %6068 = vmatprep.subr.mxu0 0.0
  %6069 = vmatpush1.xpose.msra.mxu0 0.0
  %6070 = vmatprep.subr.mxu0 0.0
  %6071 = vmatpush1.xpose.msra.mxu0 0.0
  %6072 = vmatprep.subr.mxu0 0.0
  %6073 = vmatpush1.xpose.msra.mxu0 0.0
  %6074 = vmatprep.subr.mxu0 0.0
  %6075 = vmatpush1.xpose.msra.mxu0 0.0
  %6076 = vmatprep.subr.mxu0 0.0
  %6077 = vmatpush1.xpose.msra.mxu0 0.0
  %6078 = vmatprep.subr.mxu0 0.0
  %6079 = vmatpush1.xpose.msra.mxu0 0.0
  %6080 = vmatprep.subr.mxu0 0.0
  %6081 = vmatpush1.xpose.msra.mxu0 0.0
  %6082 = vmatprep.subr.mxu0 0.0
  %6083 = vmatpush1.xpose.msra.mxu0 %v6052
  %6084 = vmatprep.subr.mxu0 0.0
  %6085 = vmatpush1.xpose.msra.mxu0 %v6049
  %6086 = vmatprep.subr.mxu0 0.0
  %6087 = vmatpush2.xpose.msra.mxu0 0.0
  %6088 = vmatprep.subr.mxu0 0.0
  %6089 = vmatpush2.xpose.msra.mxu0 0.0
  %6090 = vmatprep.subr.mxu0 0.0
  %6091 = vmatpush2.xpose.msra.mxu0 0.0
  %6092 = vmatprep.subr.mxu0 0.0
  %6093 = vmatpush2.xpose.msra.mxu0 0.0
  %6094 = vmatprep.subr.mxu0 0.0
  %6095 = vmatpush2.xpose.msra.mxu0 0.0
  %6096 = vmatprep.subr.mxu0 0.0
  %6097 = vmatpush2.xpose.msra.mxu0 0.0
  %6098 = vmatprep.subr.mxu0 0.0
  %6099 = vmatpush2.xpose.msra.mxu0 0.0
  %6100 = vmatprep.subr.mxu0 0.0
  %6101 = vmatpush2.xpose.msra.mxu0 0.0
  %6102 = vmatprep.subr.mxu0 0.0
  %6103 = vmatpush2.xpose.msra.mxu0 0.0
  %6104 = vmatprep.subr.mxu0 0.0
  %6105 = vmatpush2.xpose.msra.mxu0 0.0
  %6106 = vmatprep.subr.mxu0 0.0
  %6107 = vmatpush2.xpose.msra.mxu0 0.0
  %6108 = vmatprep.subr.mxu0 0.0
  %6109 = vmatpush2.xpose.msra.mxu0 0.0
  %6110 = vmatprep.subr.mxu0 0.0
  %6111 = vmatpush2.xpose.msra.mxu0 0.0
  %6112 = vmatprep.subr.mxu0 0.0
  %6113 = vmatpush2.xpose.msra.mxu0 0.0
  %6114 = vmatprep.subr.mxu0 0.0
  %6115 = vmatpush2.xpose.msra.mxu0 0.0
  %6116 = vmatprep.subr.mxu0 0.0
  %6117 = vmatpush2.xpose.msra.mxu0 0.0
  %6118 = vmatprep.mubr.f32.mxu0 0.0
  %6119 = vmatmul.mubr.f32.gmra.mxu0 %v6025
  %v6120 = vpop.f32.mrf.mxu0
  %v6121 = vadd.f32 0.0, %v6120
  %v6122 = vpop.f32.mrf.mxu0
  %6123 = vmatprep.mubr.f32.mxu0 0.0
  %6124 = vmatmul.mubr.f32.gmra.mxu0 %v6028
  %v6125 = vpop.f32.mrf.mxu0
  %v6126 = vadd.f32 0.0, %v6125
  %v6127 = vpop.f32.mrf.mxu0
  %6128 = vmatprep.mubr.f32.mxu0 0.0
  %6129 = vmatmul.mubr.f32.gmra.mxu0 %v6031
  %v6130 = vpop.f32.mrf.mxu0
  %v6131 = vadd.f32 0.0, %v6130
  %v6132 = vpop.f32.mrf.mxu0
  %6133 = vmatprep.mubr.f32.mxu0 0.0
  %6134 = vmatmul.mubr.f32.gmra.mxu0 %v6034
  %v6135 = vpop.f32.mrf.mxu0
  %v6136 = vadd.f32 0.0, %v6135
  %v6137 = vpop.f32.mrf.mxu0
  %6138 = vmatprep.mubr.f32.mxu0 0.0
  %6139 = vmatmul.mubr.f32.gmra.mxu0 %v6037
  %v6140 = vpop.f32.mrf.mxu0
  %v6141 = vadd.f32 0.0, %v6140
  %v6142 = vpop.f32.mrf.mxu0
  %6143 = vmatprep.mubr.f32.mxu0 0.0
  %6144 = vmatmul.mubr.f32.gmra.mxu0 %v6040
  %v6145 = vpop.f32.mrf.mxu0
  %v6146 = vadd.f32 0.0, %v6145
  %v6147 = vpop.f32.mrf.mxu0
  %6148 = vmatprep.mubr.f32.mxu0 0.0
  %6149 = vmatmul.mubr.f32.gmra.mxu0 %v6043
  %v6150 = vpop.f32.mrf.mxu0
  %v6151 = vadd.f32 0.0, %v6150
  %v6152 = vpop.f32.mrf.mxu0
  %6153 = vmatprep.mubr.f32.mxu0 0.0
  %6154 = vmatmul.mubr.f32.gmra.mxu0 %v6046
  %v6155 = vpop.f32.mrf.mxu0
  %v6156 = vadd.f32 0.0, %v6155
  %v6157 = vpop.f32.mrf.mxu0
  %6158 = vdwg.mxu0
  %v6159 = vmul.f32 %v6121, 0.25
  %v6160 = vmul.f32 %v6126, 0.25
  %v6161 = vmul.f32 %v6131, 0.25
  %v6162 = vmul.f32 %v6136, 0.25
  %v6163 = vmul.f32 %v6141, 0.25
  %v6164 = vmul.f32 %v6146, 0.25
  %v6165 = vmul.f32 %v6151, 0.25
  %v6166 = vmul.f32 %v6156, 0.25
  %v6167 = vsel %vm731, %v6159, -inf
  %6168 = vmax.xlane.f32.xlu0 %v6167
  %v6169 = vpop.xlane.xlu0 %6168
  %v6170 = vsel %vm731, %v6160, -inf
  %6171 = vmax.xlane.f32.xlu0 %v6170
  %v6172 = vpop.xlane.xlu0 %6171
  %v6173 = vsel %vm731, %v6161, -inf
  %6174 = vmax.xlane.f32.xlu0 %v6173
  %v6175 = vpop.xlane.xlu0 %6174
  %v6176 = vsel %vm731, %v6162, -inf
  %6177 = vmax.xlane.f32.xlu0 %v6176
  %v6178 = vpop.xlane.xlu0 %6177
  %v6179 = vsel %vm731, %v6163, -inf
  %6180 = vmax.xlane.f32.xlu0 %v6179
  %v6181 = vpop.xlane.xlu0 %6180
  %v6182 = vsel %vm731, %v6164, -inf
  %6183 = vmax.xlane.f32.xlu0 %v6182
  %v6184 = vpop.xlane.xlu0 %6183
  %v6185 = vsel %vm731, %v6165, -inf
  %6186 = vmax.xlane.f32.xlu0 %v6185
  %v6187 = vpop.xlane.xlu0 %6186
  %v6188 = vsel %vm731, %v6166, -inf
  %6189 = vmax.xlane.f32.xlu0 %v6188
  %v6190 = vpop.xlane.xlu0 %6189
  %v6191 = vsub.f32 %v6159, %v6169
  %v6192 = vsub.f32 %v6160, %v6172
  %v6193 = vsub.f32 %v6161, %v6175
  %v6194 = vsub.f32 %v6162, %v6178
  %v6195 = vsub.f32 %v6163, %v6181
  %v6196 = vsub.f32 %v6164, %v6184
  %v6197 = vsub.f32 %v6165, %v6187
  %v6198 = vsub.f32 %v6166, %v6190
  %v6199 = vmul.f32 %v6191, 1.442695
  %v6200 = vpow.pop %v6199
  %v6201 = vmul.f32 %v6192, 1.442695
  %v6202 = vpow.pop %v6201
  %v6203 = vmul.f32 %v6193, 1.442695
  %v6204 = vpow.pop %v6203
  %v6205 = vmul.f32 %v6194, 1.442695
  %v6206 = vpow.pop %v6205
  %v6207 = vmul.f32 %v6195, 1.442695
  %v6208 = vpow.pop %v6207
  %v6209 = vmul.f32 %v6196, 1.442695
  %v6210 = vpow.pop %v6209
  %v6211 = vmul.f32 %v6197, 1.442695
  %v6212 = vpow.pop %v6211
  %v6213 = vmul.f32 %v6198, 1.442695
  %v6214 = vpow.pop %v6213
  %v6215 = vsel %vm731, %v6200, 0.0
  %6216 = vadd.xlane.f32.xlu0 %v6215
  %v6217 = vpop.xlane.xlu0 %6216
  %v6218 = vsel %vm731, %v6202, 0.0
  %6219 = vadd.xlane.f32.xlu0 %v6218
  %v6220 = vpop.xlane.xlu0 %6219
  %v6221 = vsel %vm731, %v6204, 0.0
  %6222 = vadd.xlane.f32.xlu0 %v6221
  %v6223 = vpop.xlane.xlu0 %6222
  %v6224 = vsel %vm731, %v6206, 0.0
  %6225 = vadd.xlane.f32.xlu0 %v6224
  %v6226 = vpop.xlane.xlu0 %6225
  %v6227 = vsel %vm731, %v6208, 0.0
  %6228 = vadd.xlane.f32.xlu0 %v6227
  %v6229 = vpop.xlane.xlu0 %6228
  %v6230 = vsel %vm731, %v6210, 0.0
  %6231 = vadd.xlane.f32.xlu0 %v6230
  %v6232 = vpop.xlane.xlu0 %6231
  %v6233 = vsel %vm731, %v6212, 0.0
  %6234 = vadd.xlane.f32.xlu0 %v6233
  %v6235 = vpop.xlane.xlu0 %6234
  %v6236 = vsel %vm731, %v6214, 0.0
  %6237 = vadd.xlane.f32.xlu0 %v6236
  %v6238 = vpop.xlane.xlu0 %6237
  %v6239 = vrcp.pop %v6217
  %v6240 = vrcp.pop %v6220
  %v6241 = vrcp.pop %v6223
  %v6242 = vrcp.pop %v6226
  %v6243 = vrcp.pop %v6229
  %v6244 = vrcp.pop %v6232
  %v6245 = vrcp.pop %v6235
  %v6246 = vrcp.pop %v6238
  %v6247 = vmul.f32 %v6200, %v6239
  %v6248 = vmul.f32 %v6202, %v6240
  %v6249 = vmul.f32 %v6204, %v6241
  %v6250 = vmul.f32 %v6206, %v6242
  %v6251 = vmul.f32 %v6208, %v6243
  %v6252 = vmul.f32 %v6210, %v6244
  %v6253 = vmul.f32 %v6212, %v6245
  %v6254 = vmul.f32 %v6214, %v6246
  %v6256 = vsel %vm731, %v6247, 0
  %v6259 = vsel %vm731, %v6248, 0
  %v6262 = vsel %vm731, %v6249, 0
  %v6265 = vsel %vm731, %v6250, 0
  %v6268 = vsel %vm731, %v6251, 0
  %v6271 = vsel %vm731, %v6252, 0
  %v6274 = vsel %vm731, %v6253, 0
  %v6277 = vsel %vm731, %v6254, 0
  %6279 = vmatprep.subr.mxu0 0.0
  %6280 = vmatpush1.msra.mxu0 0.0
  %6281 = vmatprep.subr.mxu0 0.0
  %6282 = vmatpush1.msra.mxu0 0.0
  %6283 = vmatprep.subr.mxu0 0.0
  %6284 = vmatpush1.msra.mxu0 0.0
  %6285 = vmatprep.subr.mxu0 0.0
  %6286 = vmatpush1.msra.mxu0 0.0
  %6287 = vmatprep.subr.mxu0 0.0
  %6288 = vmatpush1.msra.mxu0 0.0
  %6289 = vmatprep.subr.mxu0 0.0
  %6290 = vmatpush1.msra.mxu0 0.0
  %6291 = vmatprep.subr.mxu0 0.0
  %6292 = vmatpush1.msra.mxu0 0.0
  %6293 = vmatprep.subr.mxu0 0.0
  %6294 = vmatpush1.msra.mxu0 0.0
  %6295 = vmatprep.subr.mxu0 0.0
  %6296 = vmatpush1.msra.mxu0 0.0
  %6297 = vmatprep.subr.mxu0 0.0
  %6298 = vmatpush1.msra.mxu0 0.0
  %6299 = vmatprep.subr.mxu0 0.0
  %6300 = vmatpush1.msra.mxu0 0.0
  %6301 = vmatprep.subr.mxu0 0.0
  %6302 = vmatpush1.msra.mxu0 0.0
  %6303 = vmatprep.subr.mxu0 0.0
  %6304 = vmatpush1.msra.mxu0 0.0
  %6305 = vmatprep.subr.mxu0 0.0
  %6306 = vmatpush1.msra.mxu0 0.0
  %6307 = vmatprep.subr.mxu0 0.0
  %6308 = vmatpush1.msra.mxu0 %v5661
  %6309 = vmatprep.subr.mxu0 0.0
  %6310 = vmatpush1.msra.mxu0 %v5656
  %6311 = vmatprep.subr.mxu0 0.0
  %6312 = vmatpush2.msra.mxu0 0.0
  %6313 = vmatprep.subr.mxu0 0.0
  %6314 = vmatpush2.msra.mxu0 0.0
  %6315 = vmatprep.subr.mxu0 0.0
  %6316 = vmatpush2.msra.mxu0 0.0
  %6317 = vmatprep.subr.mxu0 0.0
  %6318 = vmatpush2.msra.mxu0 0.0
  %6319 = vmatprep.subr.mxu0 0.0
  %6320 = vmatpush2.msra.mxu0 0.0
  %6321 = vmatprep.subr.mxu0 0.0
  %6322 = vmatpush2.msra.mxu0 0.0
  %6323 = vmatprep.subr.mxu0 0.0
  %6324 = vmatpush2.msra.mxu0 0.0
  %6325 = vmatprep.subr.mxu0 0.0
  %6326 = vmatpush2.msra.mxu0 0.0
  %6327 = vmatprep.subr.mxu0 0.0
  %6328 = vmatpush2.msra.mxu0 0.0
  %6329 = vmatprep.subr.mxu0 0.0
  %6330 = vmatpush2.msra.mxu0 0.0
  %6331 = vmatprep.subr.mxu0 0.0
  %6332 = vmatpush2.msra.mxu0 0.0
  %6333 = vmatprep.subr.mxu0 0.0
  %6334 = vmatpush2.msra.mxu0 0.0
  %6335 = vmatprep.subr.mxu0 0.0
  %6336 = vmatpush2.msra.mxu0 0.0
  %6337 = vmatprep.subr.mxu0 0.0
  %6338 = vmatpush2.msra.mxu0 0.0
  %6339 = vmatprep.subr.mxu0 0.0
  %6340 = vmatpush2.msra.mxu0 0.0
  %6341 = vmatprep.subr.mxu0 0.0
  %6342 = vmatpush2.msra.mxu0 0.0
  %6343 = vmatprep.mubr.f32.mxu0 0.0
  %6344 = vmatmul.mubr.f32.gmra.mxu0 %v6256
  %v6345 = vpop.f32.mrf.mxu0
  %v6346 = vadd.f32 0.0, %v6345
  %v6347 = vpop.f32.mrf.mxu0
  %6348 = vmatprep.mubr.f32.mxu0 0.0
  %6349 = vmatmul.mubr.f32.gmra.mxu0 %v6259
  %v6350 = vpop.f32.mrf.mxu0
  %v6351 = vadd.f32 0.0, %v6350
  %v6352 = vpop.f32.mrf.mxu0
  %6353 = vmatprep.mubr.f32.mxu0 0.0
  %6354 = vmatmul.mubr.f32.gmra.mxu0 %v6262
  %v6355 = vpop.f32.mrf.mxu0
  %v6356 = vadd.f32 0.0, %v6355
  %v6357 = vpop.f32.mrf.mxu0
  %6358 = vmatprep.mubr.f32.mxu0 0.0
  %6359 = vmatmul.mubr.f32.gmra.mxu0 %v6265
  %v6360 = vpop.f32.mrf.mxu0
  %v6361 = vadd.f32 0.0, %v6360
  %v6362 = vpop.f32.mrf.mxu0
  %6363 = vmatprep.mubr.f32.mxu0 0.0
  %6364 = vmatmul.mubr.f32.gmra.mxu0 %v6268
  %v6365 = vpop.f32.mrf.mxu0
  %v6366 = vadd.f32 0.0, %v6365
  %v6367 = vpop.f32.mrf.mxu0
  %6368 = vmatprep.mubr.f32.mxu0 0.0
  %6369 = vmatmul.mubr.f32.gmra.mxu0 %v6271
  %v6370 = vpop.f32.mrf.mxu0
  %v6371 = vadd.f32 0.0, %v6370
  %v6372 = vpop.f32.mrf.mxu0
  %6373 = vmatprep.mubr.f32.mxu0 0.0
  %6374 = vmatmul.mubr.f32.gmra.mxu0 %v6274
  %v6375 = vpop.f32.mrf.mxu0
  %v6376 = vadd.f32 0.0, %v6375
  %v6377 = vpop.f32.mrf.mxu0
  %6378 = vmatprep.mubr.f32.mxu0 0.0
  %6379 = vmatmul.mubr.f32.gmra.mxu0 %v6277
  %v6380 = vpop.f32.mrf.mxu0
  %v6381 = vadd.f32 0.0, %v6380
  %v6382 = vpop.f32.mrf.mxu0
  %6383 = vdwg.mxu0
  %6384 = vrot.lane.b32.xlu0 %v5211, 80
  %v6385 = vpop.permute.xlu0 %6384
  %6386 = vrot.lane.b32.xlu0 %v5212, 80
  %v6387 = vpop.permute.xlu0 %6386
  %6390 = vrot.lane.b32.xlu0 %v5231, 80
  %v6391 = vpop.permute.xlu0 %6390
  %v6394 = vsel %vm731, %v5986, 0
  %v6397 = vsel %vm731, %v5991, 0
  %v6400 = vsel %vm731, %v5996, 0
  %v6403 = vsel %vm731, %v6001, 0
  %v6406 = vsel %vm731, %v6006, 0
  %v6409 = vsel %vm731, %v6011, 0
  %v6412 = vsel %vm731, %v6016, 0
  %v6415 = vsel %vm731, %v6021, 0
  %v6418 = vsel %vm731, %v6346, 0
  %v6421 = vsel %vm731, %v6351, 0
  %v6424 = vsel %vm731, %v6356, 0
  %v6427 = vsel %vm731, %v6361, 0
  %v6430 = vsel %vm731, %v6366, 0
  %v6433 = vsel %vm731, %v6371, 0
  %v6436 = vsel %vm731, %v6376, 0
  %v6439 = vsel %vm731, %v6381, 0
  %6441 = vmatprep.subr.mxu0 0.0
  %6442 = vmatpush1.msra.mxu0 0.0
  %6443 = vmatprep.subr.mxu0 0.0
  %6444 = vmatpush1.msra.mxu0 0.0
  %6445 = vmatprep.subr.mxu0 0.0
  %6446 = vmatpush1.msra.mxu0 0.0
  %6447 = vmatprep.subr.mxu0 0.0
  %6448 = vmatpush1.msra.mxu0 0.0
  %6449 = vmatprep.subr.mxu0 0.0
  %6450 = vmatpush1.msra.mxu0 0.0
  %6451 = vmatprep.subr.mxu0 0.0
  %6452 = vmatpush1.msra.mxu0 0.0
  %6453 = vmatprep.subr.mxu0 0.0
  %6454 = vmatpush1.msra.mxu0 0.0
  %6455 = vmatprep.subr.mxu0 0.0
  %6456 = vmatpush1.msra.mxu0 0.0
  %6457 = vmatprep.subr.mxu0 0.0
  %6458 = vmatpush1.msra.mxu0 0.0
  %6459 = vmatprep.subr.mxu0 0.0
  %6460 = vmatpush1.msra.mxu0 0.0
  %6461 = vmatprep.subr.mxu0 0.0
  %6462 = vmatpush1.msra.mxu0 0.0
  %6463 = vmatprep.subr.mxu0 0.0
  %6464 = vmatpush1.msra.mxu0 0.0
  %6465 = vmatprep.subr.mxu0 0.0
  %6466 = vmatpush1.msra.mxu0 0.0
  %6467 = vmatprep.subr.mxu0 0.0
  %6468 = vmatpush1.msra.mxu0 0.0
  %6469 = vmatprep.subr.mxu0 0.0
  %6470 = vmatpush1.msra.mxu0 %v6387
  %6471 = vmatprep.subr.mxu0 0.0
  %6472 = vmatpush1.msra.mxu0 %v6385
  %6473 = vmatprep.subr.mxu0 0.0
  %6474 = vmatpush2.msra.mxu0 0.0
  %6475 = vmatprep.subr.mxu0 0.0
  %6476 = vmatpush2.msra.mxu0 0.0
  %6477 = vmatprep.subr.mxu0 0.0
  %6478 = vmatpush2.msra.mxu0 0.0
  %6479 = vmatprep.subr.mxu0 0.0
  %6480 = vmatpush2.msra.mxu0 0.0
  %6481 = vmatprep.subr.mxu0 0.0
  %6482 = vmatpush2.msra.mxu0 0.0
  %6483 = vmatprep.subr.mxu0 0.0
  %6484 = vmatpush2.msra.mxu0 0.0
  %6485 = vmatprep.subr.mxu0 0.0
  %6486 = vmatpush2.msra.mxu0 0.0
  %6487 = vmatprep.subr.mxu0 0.0
  %6488 = vmatpush2.msra.mxu0 0.0
  %6489 = vmatprep.subr.mxu0 0.0
  %6490 = vmatpush2.msra.mxu0 0.0
  %6491 = vmatprep.subr.mxu0 0.0
  %6492 = vmatpush2.msra.mxu0 0.0
  %6493 = vmatprep.subr.mxu0 0.0
  %6494 = vmatpush2.msra.mxu0 0.0
  %6495 = vmatprep.subr.mxu0 0.0
  %6496 = vmatpush2.msra.mxu0 0.0
  %6497 = vmatprep.subr.mxu0 0.0
  %6498 = vmatpush2.msra.mxu0 0.0
  %6499 = vmatprep.subr.mxu0 0.0
  %6500 = vmatpush2.msra.mxu0 0.0
  %6501 = vmatprep.subr.mxu0 0.0
  %6502 = vmatpush2.msra.mxu0 0.0
  %6503 = vmatprep.subr.mxu0 0.0
  %6504 = vmatpush2.msra.mxu0 0.0
  %6505 = vmatprep.mubr.f32.mxu0 0.0
  %6506 = vmatmul.mubr.f32.gmra.mxu0 %v6394
  %v6507 = vpop.f32.mrf.mxu0
  %v6508 = vadd.f32 %v6391, %v6507
  %v6509 = vpop.f32.mrf.mxu0
  %6510 = vmatprep.mubr.f32.mxu0 0.0
  %6511 = vmatmul.mubr.f32.gmra.mxu0 %v6397
  %v6512 = vpop.f32.mrf.mxu0
  %v6513 = vadd.f32 %v6391, %v6512
  %v6514 = vpop.f32.mrf.mxu0
  %6515 = vmatprep.mubr.f32.mxu0 0.0
  %6516 = vmatmul.mubr.f32.gmra.mxu0 %v6400
  %v6517 = vpop.f32.mrf.mxu0
  %v6518 = vadd.f32 %v6391, %v6517
  %v6519 = vpop.f32.mrf.mxu0
  %6520 = vmatprep.mubr.f32.mxu0 0.0
  %6521 = vmatmul.mubr.f32.gmra.mxu0 %v6403
  %v6522 = vpop.f32.mrf.mxu0
  %v6523 = vadd.f32 %v6391, %v6522
  %v6524 = vpop.f32.mrf.mxu0
  %6525 = vmatprep.mubr.f32.mxu0 0.0
  %6526 = vmatmul.mubr.f32.gmra.mxu0 %v6406
  %v6527 = vpop.f32.mrf.mxu0
  %v6528 = vadd.f32 %v6391, %v6527
  %v6529 = vpop.f32.mrf.mxu0
  %6530 = vmatprep.mubr.f32.mxu0 0.0
  %6531 = vmatmul.mubr.f32.gmra.mxu0 %v6409
  %v6532 = vpop.f32.mrf.mxu0
  %v6533 = vadd.f32 %v6391, %v6532
  %v6534 = vpop.f32.mrf.mxu0
  %6535 = vmatprep.mubr.f32.mxu0 0.0
  %6536 = vmatmul.mubr.f32.gmra.mxu0 %v6412
  %v6537 = vpop.f32.mrf.mxu0
  %v6538 = vadd.f32 %v6391, %v6537
  %v6539 = vpop.f32.mrf.mxu0
  %6540 = vmatprep.mubr.f32.mxu0 0.0
  %6541 = vmatmul.mubr.f32.gmra.mxu0 %v6415
  %v6542 = vpop.f32.mrf.mxu0
  %v6543 = vadd.f32 %v6391, %v6542
  %v6544 = vpop.f32.mrf.mxu0
  %6545 = vmatprep.mubr.f32.mxu0 0.0
  %6546 = vmatmul.mubr.f32.gmra.mxu0 %v6418
  %v6547 = vpop.f32.mrf.mxu0
  %v6548 = vadd.f32 %v6391, %v6547
  %v6549 = vpop.f32.mrf.mxu0
  %6550 = vmatprep.mubr.f32.mxu0 0.0
  %6551 = vmatmul.mubr.f32.gmra.mxu0 %v6421
  %v6552 = vpop.f32.mrf.mxu0
  %v6553 = vadd.f32 %v6391, %v6552
  %v6554 = vpop.f32.mrf.mxu0
  %6555 = vmatprep.mubr.f32.mxu0 0.0
  %6556 = vmatmul.mubr.f32.gmra.mxu0 %v6424
  %v6557 = vpop.f32.mrf.mxu0
  %v6558 = vadd.f32 %v6391, %v6557
  %v6559 = vpop.f32.mrf.mxu0
  %6560 = vmatprep.mubr.f32.mxu0 0.0
  %6561 = vmatmul.mubr.f32.gmra.mxu0 %v6427
  %v6562 = vpop.f32.mrf.mxu0
  %v6563 = vadd.f32 %v6391, %v6562
  %v6564 = vpop.f32.mrf.mxu0
  %6565 = vmatprep.mubr.f32.mxu0 0.0
  %6566 = vmatmul.mubr.f32.gmra.mxu0 %v6430
  %v6567 = vpop.f32.mrf.mxu0
  %v6568 = vadd.f32 %v6391, %v6567
  %v6569 = vpop.f32.mrf.mxu0
  %6570 = vmatprep.mubr.f32.mxu0 0.0
  %6571 = vmatmul.mubr.f32.gmra.mxu0 %v6433
  %v6572 = vpop.f32.mrf.mxu0
  %v6573 = vadd.f32 %v6391, %v6572
  %v6574 = vpop.f32.mrf.mxu0
  %6575 = vmatprep.mubr.f32.mxu0 0.0
  %6576 = vmatmul.mubr.f32.gmra.mxu0 %v6436
  %v6577 = vpop.f32.mrf.mxu0
  %v6578 = vadd.f32 %v6391, %v6577
  %v6579 = vpop.f32.mrf.mxu0
  %6580 = vmatprep.mubr.f32.mxu0 0.0
  %6581 = vmatmul.mubr.f32.gmra.mxu0 %v6439
  %v6582 = vpop.f32.mrf.mxu0
  %v6583 = vadd.f32 %v6391, %v6582
  %v6584 = vpop.f32.mrf.mxu0
  %6585 = vdwg.mxu0
  %6602 = vrot.lane.b32.xlu0 %v6508, 48
  %v6603 = vpop.permute.xlu0 %6602
  %6604 = vrot.lane.b32.xlu0 %v6513, 48
  %v6605 = vpop.permute.xlu0 %6604
  %6606 = vrot.lane.b32.xlu0 %v6518, 48
  %v6607 = vpop.permute.xlu0 %6606
  %6608 = vrot.lane.b32.xlu0 %v6523, 48
  %v6609 = vpop.permute.xlu0 %6608
  %6610 = vrot.lane.b32.xlu0 %v6528, 48
  %v6611 = vpop.permute.xlu0 %6610
  %6612 = vrot.lane.b32.xlu0 %v6533, 48
  %v6613 = vpop.permute.xlu0 %6612
  %6614 = vrot.lane.b32.xlu0 %v6538, 48
  %v6615 = vpop.permute.xlu0 %6614
  %6616 = vrot.lane.b32.xlu0 %v6543, 48
  %v6617 = vpop.permute.xlu0 %6616
  %6618 = vrot.lane.b32.xlu0 %v6548, 48
  %v6619 = vpop.permute.xlu0 %6618
  %6620 = vrot.lane.b32.xlu0 %v6553, 48
  %v6621 = vpop.permute.xlu0 %6620
  %6622 = vrot.lane.b32.xlu0 %v6558, 48
  %v6623 = vpop.permute.xlu0 %6622
  %6624 = vrot.lane.b32.xlu0 %v6563, 48
  %v6625 = vpop.permute.xlu0 %6624
  %6626 = vrot.lane.b32.xlu0 %v6568, 48
  %v6627 = vpop.permute.xlu0 %6626
  %6628 = vrot.lane.b32.xlu0 %v6573, 48
  %v6629 = vpop.permute.xlu0 %6628
  %6630 = vrot.lane.b32.xlu0 %v6578, 48
  %v6631 = vpop.permute.xlu0 %6630
  %6632 = vrot.lane.b32.xlu0 %v6583, 48
  %v6633 = vpop.permute.xlu0 %6632
  %v6650 = vadd.f32 %v84, %v6603
  %v6651 = vadd.f32 %v85, %v6605
  %v6652 = vadd.f32 %v86, %v6607
  %v6653 = vadd.f32 %v87, %v6609
  %v6654 = vadd.f32 %v88, %v6611
  %v6655 = vadd.f32 %v89, %v6613
  %v6656 = vadd.f32 %v90, %v6615
  %v6657 = vadd.f32 %v91, %v6617
  %v6658 = vadd.f32 %v92, %v6619
  %v6659 = vadd.f32 %v93, %v6621
  %v6660 = vadd.f32 %v94, %v6623
  %v6661 = vadd.f32 %v95, %v6625
  %v6662 = vadd.f32 %v96, %v6627
  %v6663 = vadd.f32 %v97, %v6629
  %v6664 = vadd.f32 %v98, %v6631
  %v6665 = vadd.f32 %v99, %v6633
  %6682 = vrot.lane.b32.xlu0 %v6650, 80
  %v6683 = vpop.permute.xlu0 %6682
  %6684 = vrot.lane.b32.xlu0 %v6651, 80
  %v6685 = vpop.permute.xlu0 %6684
  %6686 = vrot.lane.b32.xlu0 %v6652, 80
  %v6687 = vpop.permute.xlu0 %6686
  %6688 = vrot.lane.b32.xlu0 %v6653, 80
  %v6689 = vpop.permute.xlu0 %6688
  %6690 = vrot.lane.b32.xlu0 %v6654, 80
  %v6691 = vpop.permute.xlu0 %6690
  %6692 = vrot.lane.b32.xlu0 %v6655, 80
  %v6693 = vpop.permute.xlu0 %6692
  %6694 = vrot.lane.b32.xlu0 %v6656, 80
  %v6695 = vpop.permute.xlu0 %6694
  %6696 = vrot.lane.b32.xlu0 %v6657, 80
  %v6697 = vpop.permute.xlu0 %6696
  %6698 = vrot.lane.b32.xlu0 %v6658, 80
  %v6699 = vpop.permute.xlu0 %6698
  %6700 = vrot.lane.b32.xlu0 %v6659, 80
  %v6701 = vpop.permute.xlu0 %6700
  %6702 = vrot.lane.b32.xlu0 %v6660, 80
  %v6703 = vpop.permute.xlu0 %6702
  %6704 = vrot.lane.b32.xlu0 %v6661, 80
  %v6705 = vpop.permute.xlu0 %6704
  %6706 = vrot.lane.b32.xlu0 %v6662, 80
  %v6707 = vpop.permute.xlu0 %6706
  %6708 = vrot.lane.b32.xlu0 %v6663, 80
  %v6709 = vpop.permute.xlu0 %6708
  %6710 = vrot.lane.b32.xlu0 %v6664, 80
  %v6711 = vpop.permute.xlu0 %6710
  %6712 = vrot.lane.b32.xlu0 %v6665, 80
  %v6713 = vpop.permute.xlu0 %6712
  %v6730 = vsel %vm731, %v6683, 0.0
  %6731 = vadd.xlane.f32.xlu0 %v6730
  %v6732 = vpop.xlane.xlu0 %6731
  %v6733 = vsel %vm731, %v6685, 0.0
  %6734 = vadd.xlane.f32.xlu0 %v6733
  %v6735 = vpop.xlane.xlu0 %6734
  %v6736 = vsel %vm731, %v6687, 0.0
  %6737 = vadd.xlane.f32.xlu0 %v6736
  %v6738 = vpop.xlane.xlu0 %6737
  %v6739 = vsel %vm731, %v6689, 0.0
  %6740 = vadd.xlane.f32.xlu0 %v6739
  %v6741 = vpop.xlane.xlu0 %6740
  %v6742 = vsel %vm731, %v6691, 0.0
  %6743 = vadd.xlane.f32.xlu0 %v6742
  %v6744 = vpop.xlane.xlu0 %6743
  %v6745 = vsel %vm731, %v6693, 0.0
  %6746 = vadd.xlane.f32.xlu0 %v6745
  %v6747 = vpop.xlane.xlu0 %6746
  %v6748 = vsel %vm731, %v6695, 0.0
  %6749 = vadd.xlane.f32.xlu0 %v6748
  %v6750 = vpop.xlane.xlu0 %6749
  %v6751 = vsel %vm731, %v6697, 0.0
  %6752 = vadd.xlane.f32.xlu0 %v6751
  %v6753 = vpop.xlane.xlu0 %6752
  %v6754 = vsel %vm731, %v6699, 0.0
  %6755 = vadd.xlane.f32.xlu0 %v6754
  %v6756 = vpop.xlane.xlu0 %6755
  %v6757 = vsel %vm731, %v6701, 0.0
  %6758 = vadd.xlane.f32.xlu0 %v6757
  %v6759 = vpop.xlane.xlu0 %6758
  %v6760 = vsel %vm731, %v6703, 0.0
  %6761 = vadd.xlane.f32.xlu0 %v6760
  %v6762 = vpop.xlane.xlu0 %6761
  %v6763 = vsel %vm731, %v6705, 0.0
  %6764 = vadd.xlane.f32.xlu0 %v6763
  %v6765 = vpop.xlane.xlu0 %6764
  %v6766 = vsel %vm731, %v6707, 0.0
  %6767 = vadd.xlane.f32.xlu0 %v6766
  %v6768 = vpop.xlane.xlu0 %6767
  %v6769 = vsel %vm731, %v6709, 0.0
  %6770 = vadd.xlane.f32.xlu0 %v6769
  %v6771 = vpop.xlane.xlu0 %6770
  %v6772 = vsel %vm731, %v6711, 0.0
  %6773 = vadd.xlane.f32.xlu0 %v6772
  %v6774 = vpop.xlane.xlu0 %6773
  %v6775 = vsel %vm731, %v6713, 0.0
  %6776 = vadd.xlane.f32.xlu0 %v6775
  %v6777 = vpop.xlane.xlu0 %6776
  %v6778 = vmul.f32 %v6732, %v4028
  %v6779 = vmul.f32 %v6735, %v4028
  %v6780 = vmul.f32 %v6738, %v4028
  %v6781 = vmul.f32 %v6741, %v4028
  %v6782 = vmul.f32 %v6744, %v4028
  %v6783 = vmul.f32 %v6747, %v4028
  %v6784 = vmul.f32 %v6750, %v4028
  %v6785 = vmul.f32 %v6753, %v4028
  %v6786 = vmul.f32 %v6756, %v4028
  %v6787 = vmul.f32 %v6759, %v4028
  %v6788 = vmul.f32 %v6762, %v4028
  %v6789 = vmul.f32 %v6765, %v4028
  %v6790 = vmul.f32 %v6768, %v4028
  %v6791 = vmul.f32 %v6771, %v4028
  %v6792 = vmul.f32 %v6774, %v4028
  %v6793 = vmul.f32 %v6777, %v4028
  %v6794 = vsub.f32 %v6650, %v6778
  %v6795 = vsub.f32 %v6651, %v6779
  %v6796 = vsub.f32 %v6652, %v6780
  %v6797 = vsub.f32 %v6653, %v6781
  %v6798 = vsub.f32 %v6654, %v6782
  %v6799 = vsub.f32 %v6655, %v6783
  %v6800 = vsub.f32 %v6656, %v6784
  %v6801 = vsub.f32 %v6657, %v6785
  %v6802 = vsub.f32 %v6658, %v6786
  %v6803 = vsub.f32 %v6659, %v6787
  %v6804 = vsub.f32 %v6660, %v6788
  %v6805 = vsub.f32 %v6661, %v6789
  %v6806 = vsub.f32 %v6662, %v6790
  %v6807 = vsub.f32 %v6663, %v6791
  %v6808 = vsub.f32 %v6664, %v6792
  %v6809 = vsub.f32 %v6665, %v6793
  %v6810 = vmul.f32 %v6794, %v6794
  %v6811 = vmul.f32 %v6795, %v6795
  %v6812 = vmul.f32 %v6796, %v6796
  %v6813 = vmul.f32 %v6797, %v6797
  %v6814 = vmul.f32 %v6798, %v6798
  %v6815 = vmul.f32 %v6799, %v6799
  %v6816 = vmul.f32 %v6800, %v6800
  %v6817 = vmul.f32 %v6801, %v6801
  %v6818 = vmul.f32 %v6802, %v6802
  %v6819 = vmul.f32 %v6803, %v6803
  %v6820 = vmul.f32 %v6804, %v6804
  %v6821 = vmul.f32 %v6805, %v6805
  %v6822 = vmul.f32 %v6806, %v6806
  %v6823 = vmul.f32 %v6807, %v6807
  %v6824 = vmul.f32 %v6808, %v6808
  %v6825 = vmul.f32 %v6809, %v6809
  %6842 = vrot.lane.b32.xlu0 %v6810, 80
  %v6843 = vpop.permute.xlu0 %6842
  %6844 = vrot.lane.b32.xlu0 %v6811, 80
  %v6845 = vpop.permute.xlu0 %6844
  %6846 = vrot.lane.b32.xlu0 %v6812, 80
  %v6847 = vpop.permute.xlu0 %6846
  %6848 = vrot.lane.b32.xlu0 %v6813, 80
  %v6849 = vpop.permute.xlu0 %6848
  %6850 = vrot.lane.b32.xlu0 %v6814, 80
  %v6851 = vpop.permute.xlu0 %6850
  %6852 = vrot.lane.b32.xlu0 %v6815, 80
  %v6853 = vpop.permute.xlu0 %6852
  %6854 = vrot.lane.b32.xlu0 %v6816, 80
  %v6855 = vpop.permute.xlu0 %6854
  %6856 = vrot.lane.b32.xlu0 %v6817, 80
  %v6857 = vpop.permute.xlu0 %6856
  %6858 = vrot.lane.b32.xlu0 %v6818, 80
  %v6859 = vpop.permute.xlu0 %6858
  %6860 = vrot.lane.b32.xlu0 %v6819, 80
  %v6861 = vpop.permute.xlu0 %6860
  %6862 = vrot.lane.b32.xlu0 %v6820, 80
  %v6863 = vpop.permute.xlu0 %6862
  %6864 = vrot.lane.b32.xlu0 %v6821, 80
  %v6865 = vpop.permute.xlu0 %6864
  %6866 = vrot.lane.b32.xlu0 %v6822, 80
  %v6867 = vpop.permute.xlu0 %6866
  %6868 = vrot.lane.b32.xlu0 %v6823, 80
  %v6869 = vpop.permute.xlu0 %6868
  %6870 = vrot.lane.b32.xlu0 %v6824, 80
  %v6871 = vpop.permute.xlu0 %6870
  %6872 = vrot.lane.b32.xlu0 %v6825, 80
  %v6873 = vpop.permute.xlu0 %6872
  %v6890 = vsel %vm731, %v6843, 0.0
  %6891 = vadd.xlane.f32.xlu0 %v6890
  %v6892 = vpop.xlane.xlu0 %6891
  %v6893 = vsel %vm731, %v6845, 0.0
  %6894 = vadd.xlane.f32.xlu0 %v6893
  %v6895 = vpop.xlane.xlu0 %6894
  %v6896 = vsel %vm731, %v6847, 0.0
  %6897 = vadd.xlane.f32.xlu0 %v6896
  %v6898 = vpop.xlane.xlu0 %6897
  %v6899 = vsel %vm731, %v6849, 0.0
  %6900 = vadd.xlane.f32.xlu0 %v6899
  %v6901 = vpop.xlane.xlu0 %6900
  %v6902 = vsel %vm731, %v6851, 0.0
  %6903 = vadd.xlane.f32.xlu0 %v6902
  %v6904 = vpop.xlane.xlu0 %6903
  %v6905 = vsel %vm731, %v6853, 0.0
  %6906 = vadd.xlane.f32.xlu0 %v6905
  %v6907 = vpop.xlane.xlu0 %6906
  %v6908 = vsel %vm731, %v6855, 0.0
  %6909 = vadd.xlane.f32.xlu0 %v6908
  %v6910 = vpop.xlane.xlu0 %6909
  %v6911 = vsel %vm731, %v6857, 0.0
  %6912 = vadd.xlane.f32.xlu0 %v6911
  %v6913 = vpop.xlane.xlu0 %6912
  %v6914 = vsel %vm731, %v6859, 0.0
  %6915 = vadd.xlane.f32.xlu0 %v6914
  %v6916 = vpop.xlane.xlu0 %6915
  %v6917 = vsel %vm731, %v6861, 0.0
  %6918 = vadd.xlane.f32.xlu0 %v6917
  %v6919 = vpop.xlane.xlu0 %6918
  %v6920 = vsel %vm731, %v6863, 0.0
  %6921 = vadd.xlane.f32.xlu0 %v6920
  %v6922 = vpop.xlane.xlu0 %6921
  %v6923 = vsel %vm731, %v6865, 0.0
  %6924 = vadd.xlane.f32.xlu0 %v6923
  %v6925 = vpop.xlane.xlu0 %6924
  %v6926 = vsel %vm731, %v6867, 0.0
  %6927 = vadd.xlane.f32.xlu0 %v6926
  %v6928 = vpop.xlane.xlu0 %6927
  %v6929 = vsel %vm731, %v6869, 0.0
  %6930 = vadd.xlane.f32.xlu0 %v6929
  %v6931 = vpop.xlane.xlu0 %6930
  %v6932 = vsel %vm731, %v6871, 0.0
  %6933 = vadd.xlane.f32.xlu0 %v6932
  %v6934 = vpop.xlane.xlu0 %6933
  %v6935 = vsel %vm731, %v6873, 0.0
  %6936 = vadd.xlane.f32.xlu0 %v6935
  %v6937 = vpop.xlane.xlu0 %6936
  %v6938 = vmul.f32 %v6892, %v4028
  %v6939 = vmul.f32 %v6895, %v4028
  %v6940 = vmul.f32 %v6898, %v4028
  %v6941 = vmul.f32 %v6901, %v4028
  %v6942 = vmul.f32 %v6904, %v4028
  %v6943 = vmul.f32 %v6907, %v4028
  %v6944 = vmul.f32 %v6910, %v4028
  %v6945 = vmul.f32 %v6913, %v4028
  %v6946 = vmul.f32 %v6916, %v4028
  %v6947 = vmul.f32 %v6919, %v4028
  %v6948 = vmul.f32 %v6922, %v4028
  %v6949 = vmul.f32 %v6925, %v4028
  %v6950 = vmul.f32 %v6928, %v4028
  %v6951 = vmul.f32 %v6931, %v4028
  %v6952 = vmul.f32 %v6934, %v4028
  %v6953 = vmul.f32 %v6937, %v4028
  %v6954 = vadd.f32 %v6938, 1e-05
  %v6955 = vadd.f32 %v6939, 1e-05
  %v6956 = vadd.f32 %v6940, 1e-05
  %v6957 = vadd.f32 %v6941, 1e-05
  %v6958 = vadd.f32 %v6942, 1e-05
  %v6959 = vadd.f32 %v6943, 1e-05
  %v6960 = vadd.f32 %v6944, 1e-05
  %v6961 = vadd.f32 %v6945, 1e-05
  %v6962 = vadd.f32 %v6946, 1e-05
  %v6963 = vadd.f32 %v6947, 1e-05
  %v6964 = vadd.f32 %v6948, 1e-05
  %v6965 = vadd.f32 %v6949, 1e-05
  %v6966 = vadd.f32 %v6950, 1e-05
  %v6967 = vadd.f32 %v6951, 1e-05
  %v6968 = vadd.f32 %v6952, 1e-05
  %v6969 = vadd.f32 %v6953, 1e-05
  %v6970 = vrsqrt.pop %v6954
  %v6971 = vrsqrt.pop %v6955
  %v6972 = vrsqrt.pop %v6956
  %v6973 = vrsqrt.pop %v6957
  %v6974 = vrsqrt.pop %v6958
  %v6975 = vrsqrt.pop %v6959
  %v6976 = vrsqrt.pop %v6960
  %v6977 = vrsqrt.pop %v6961
  %v6978 = vrsqrt.pop %v6962
  %v6979 = vrsqrt.pop %v6963
  %v6980 = vrsqrt.pop %v6964
  %v6981 = vrsqrt.pop %v6965
  %v6982 = vrsqrt.pop %v6966
  %v6983 = vrsqrt.pop %v6967
  %v6984 = vrsqrt.pop %v6968
  %v6985 = vrsqrt.pop %v6969
  %v6986 = vmul.f32 %v6794, %v6970
  %v6987 = vmul.f32 %v6795, %v6971
  %v6988 = vmul.f32 %v6796, %v6972
  %v6989 = vmul.f32 %v6797, %v6973
  %v6990 = vmul.f32 %v6798, %v6974
  %v6991 = vmul.f32 %v6799, %v6975
  %v6992 = vmul.f32 %v6800, %v6976
  %v6993 = vmul.f32 %v6801, %v6977
  %v6994 = vmul.f32 %v6802, %v6978
  %v6995 = vmul.f32 %v6803, %v6979
  %v6996 = vmul.f32 %v6804, %v6980
  %v6997 = vmul.f32 %v6805, %v6981
  %v6998 = vmul.f32 %v6806, %v6982
  %v6999 = vmul.f32 %v6807, %v6983
  %v7000 = vmul.f32 %v6808, %v6984
  %v7001 = vmul.f32 %v6809, %v6985
  %v7002 = vlaneseq
  %v7003 = vshrl.u32 %v7002, 7
  %v7004 = vsub.s32 0, %v7003
  %v7005 = vrot.slane %v5226, %v7004
  %7007 = vrot.lane.b32.xlu0 %v7005, 48
  %v7008 = vpop.permute.xlu0 %7007
  %v7010 = vmul.f32 %v6986, %v7008
  %v7011 = vmul.f32 %v6987, %v7008
  %v7012 = vmul.f32 %v6988, %v7008
  %v7013 = vmul.f32 %v6989, %v7008
  %v7014 = vmul.f32 %v6990, %v7008
  %v7015 = vmul.f32 %v6991, %v7008
  %v7016 = vmul.f32 %v6992, %v7008
  %v7017 = vmul.f32 %v6993, %v7008
  %v7018 = vmul.f32 %v6994, %v7008
  %v7019 = vmul.f32 %v6995, %v7008
  %v7020 = vmul.f32 %v6996, %v7008
  %v7021 = vmul.f32 %v6997, %v7008
  %v7022 = vmul.f32 %v6998, %v7008
  %v7023 = vmul.f32 %v6999, %v7008
  %v7024 = vmul.f32 %v7000, %v7008
  %v7025 = vmul.f32 %v7001, %v7008
  %v7026 = vlaneseq
  %v7027 = vshrl.u32 %v7026, 7
  %v7028 = vsub.s32 1, %v7027
  %v7029 = vrot.slane %v5226, %v7028
  %7031 = vrot.lane.b32.xlu0 %v7029, 48
  %v7032 = vpop.permute.xlu0 %7031
  %v7034 = vadd.f32 %v7010, %v7032
  %v7035 = vadd.f32 %v7011, %v7032
  %v7036 = vadd.f32 %v7012, %v7032
  %v7037 = vadd.f32 %v7013, %v7032
  %v7038 = vadd.f32 %v7014, %v7032
  %v7039 = vadd.f32 %v7015, %v7032
  %v7040 = vadd.f32 %v7016, %v7032
  %v7041 = vadd.f32 %v7017, %v7032
  %v7042 = vadd.f32 %v7018, %v7032
  %v7043 = vadd.f32 %v7019, %v7032
  %v7044 = vadd.f32 %v7020, %v7032
  %v7045 = vadd.f32 %v7021, %v7032
  %v7046 = vadd.f32 %v7022, %v7032
  %v7047 = vadd.f32 %v7023, %v7032
  %v7048 = vadd.f32 %v7024, %v7032
  %v7049 = vadd.f32 %v7025, %v7032
  %v7051 = vlaneseq
  %v7052 = vshrl.u32 %v7051, 7
  %v7053 = vsub.s32 0, %v7052
  %v7054 = vrot.slane %v5216, %v7053
  %7072 = vrot.lane.b32.xlu0 %v7034, 80
  %v7073 = vpop.permute.xlu0 %7072
  %7074 = vrot.lane.b32.xlu0 %v7035, 80
  %v7075 = vpop.permute.xlu0 %7074
  %7076 = vrot.lane.b32.xlu0 %v7036, 80
  %v7077 = vpop.permute.xlu0 %7076
  %7078 = vrot.lane.b32.xlu0 %v7037, 80
  %v7079 = vpop.permute.xlu0 %7078
  %7080 = vrot.lane.b32.xlu0 %v7038, 80
  %v7081 = vpop.permute.xlu0 %7080
  %7082 = vrot.lane.b32.xlu0 %v7039, 80
  %v7083 = vpop.permute.xlu0 %7082
  %7084 = vrot.lane.b32.xlu0 %v7040, 80
  %v7085 = vpop.permute.xlu0 %7084
  %7086 = vrot.lane.b32.xlu0 %v7041, 80
  %v7087 = vpop.permute.xlu0 %7086
  %7088 = vrot.lane.b32.xlu0 %v7042, 80
  %v7089 = vpop.permute.xlu0 %7088
  %7090 = vrot.lane.b32.xlu0 %v7043, 80
  %v7091 = vpop.permute.xlu0 %7090
  %7092 = vrot.lane.b32.xlu0 %v7044, 80
  %v7093 = vpop.permute.xlu0 %7092
  %7094 = vrot.lane.b32.xlu0 %v7045, 80
  %v7095 = vpop.permute.xlu0 %7094
  %7096 = vrot.lane.b32.xlu0 %v7046, 80
  %v7097 = vpop.permute.xlu0 %7096
  %7098 = vrot.lane.b32.xlu0 %v7047, 80
  %v7099 = vpop.permute.xlu0 %7098
  %7100 = vrot.lane.b32.xlu0 %v7048, 80
  %v7101 = vpop.permute.xlu0 %7100
  %7102 = vrot.lane.b32.xlu0 %v7049, 80
  %v7103 = vpop.permute.xlu0 %7102
  %v7104 = vsel %vm731, %v7073, 0
  %v7106 = vsel %vm731, %v7075, 0
  %v7108 = vsel %vm731, %v7077, 0
  %v7110 = vsel %vm731, %v7079, 0
  %v7112 = vsel %vm731, %v7081, 0
  %v7114 = vsel %vm731, %v7083, 0
  %v7116 = vsel %vm731, %v7085, 0
  %v7118 = vsel %vm731, %v7087, 0
  %v7120 = vsel %vm731, %v7089, 0
  %v7122 = vsel %vm731, %v7091, 0
  %v7124 = vsel %vm731, %v7093, 0
  %v7126 = vsel %vm731, %v7095, 0
  %v7128 = vsel %vm731, %v7097, 0
  %v7130 = vsel %vm731, %v7099, 0
  %v7132 = vsel %vm731, %v7101, 0
  %v7134 = vsel %vm731, %v7103, 0
  %7136 = vmatprep.subr.mxu0 0.0
  %7137 = vmatpush1.msra.mxu0 0.0
  %7138 = vmatprep.subr.mxu0 0.0
  %7139 = vmatpush1.msra.mxu0 0.0
  %7140 = vmatprep.subr.mxu0 0.0
  %7141 = vmatpush1.msra.mxu0 0.0
  %7142 = vmatprep.subr.mxu0 0.0
  %7143 = vmatpush1.msra.mxu0 0.0
  %7144 = vmatprep.subr.mxu0 0.0
  %7145 = vmatpush1.msra.mxu0 0.0
  %7146 = vmatprep.subr.mxu0 0.0
  %7147 = vmatpush1.msra.mxu0 0.0
  %7148 = vmatprep.subr.mxu0 0.0
  %7149 = vmatpush1.msra.mxu0 0.0
  %7150 = vmatprep.subr.mxu0 0.0
  %7151 = vmatpush1.msra.mxu0 0.0
  %7152 = vmatprep.subr.mxu0 0.0
  %7153 = vmatpush1.msra.mxu0 0.0
  %7154 = vmatprep.subr.mxu0 0.0
  %7155 = vmatpush1.msra.mxu0 0.0
  %7156 = vmatprep.subr.mxu0 0.0
  %7157 = vmatpush1.msra.mxu0 0.0
  %7158 = vmatprep.subr.mxu0 0.0
  %7159 = vmatpush1.msra.mxu0 0.0
  %7160 = vmatprep.subr.mxu0 0.0
  %7161 = vmatpush1.msra.mxu0 0.0
  %7162 = vmatprep.subr.mxu0 0.0
  %7163 = vmatpush1.msra.mxu0 0.0
  %7164 = vmatprep.subr.mxu0 0.0
  %7165 = vmatpush1.msra.mxu0 %v5215
  %7166 = vmatprep.subr.mxu0 0.0
  %7167 = vmatpush1.msra.mxu0 %v5214
  %7168 = vmatprep.subr.mxu0 0.0
  %7169 = vmatpush2.msra.mxu0 0.0
  %7170 = vmatprep.subr.mxu0 0.0
  %7171 = vmatpush2.msra.mxu0 0.0
  %7172 = vmatprep.subr.mxu0 0.0
  %7173 = vmatpush2.msra.mxu0 0.0
  %7174 = vmatprep.subr.mxu0 0.0
  %7175 = vmatpush2.msra.mxu0 0.0
  %7176 = vmatprep.subr.mxu0 0.0
  %7177 = vmatpush2.msra.mxu0 0.0
  %7178 = vmatprep.subr.mxu0 0.0
  %7179 = vmatpush2.msra.mxu0 0.0
  %7180 = vmatprep.subr.mxu0 0.0
  %7181 = vmatpush2.msra.mxu0 0.0
  %7182 = vmatprep.subr.mxu0 0.0
  %7183 = vmatpush2.msra.mxu0 0.0
  %7184 = vmatprep.subr.mxu0 0.0
  %7185 = vmatpush2.msra.mxu0 0.0
  %7186 = vmatprep.subr.mxu0 0.0
  %7187 = vmatpush2.msra.mxu0 0.0
  %7188 = vmatprep.subr.mxu0 0.0
  %7189 = vmatpush2.msra.mxu0 0.0
  %7190 = vmatprep.subr.mxu0 0.0
  %7191 = vmatpush2.msra.mxu0 0.0
  %7192 = vmatprep.subr.mxu0 0.0
  %7193 = vmatpush2.msra.mxu0 0.0
  %7194 = vmatprep.subr.mxu0 0.0
  %7195 = vmatpush2.msra.mxu0 0.0
  %7196 = vmatprep.subr.mxu0 0.0
  %7197 = vmatpush2.msra.mxu0 0.0
  %7198 = vmatprep.subr.mxu0 0.0
  %7199 = vmatpush2.msra.mxu0 0.0
  %7200 = vmatprep.mubr.f32.mxu0 0.0
  %7201 = vmatmul.mubr.f32.gmra.mxu0 %v7104
  %v7202 = vpop.f32.mrf.mxu0
  %v7203 = vadd.f32 %v7054, %v7202
  %v7204 = vpop.f32.mrf.mxu0
  %7205 = vmatprep.mubr.f32.mxu0 0.0
  %7206 = vmatmul.mubr.f32.gmra.mxu0 %v7106
  %v7207 = vpop.f32.mrf.mxu0
  %v7208 = vadd.f32 %v7054, %v7207
  %v7209 = vpop.f32.mrf.mxu0
  %7210 = vmatprep.mubr.f32.mxu0 0.0
  %7211 = vmatmul.mubr.f32.gmra.mxu0 %v7108
  %v7212 = vpop.f32.mrf.mxu0
  %v7213 = vadd.f32 %v7054, %v7212
  %v7214 = vpop.f32.mrf.mxu0
  %7215 = vmatprep.mubr.f32.mxu0 0.0
  %7216 = vmatmul.mubr.f32.gmra.mxu0 %v7110
  %v7217 = vpop.f32.mrf.mxu0
  %v7218 = vadd.f32 %v7054, %v7217
  %v7219 = vpop.f32.mrf.mxu0
  %7220 = vmatprep.mubr.f32.mxu0 0.0
  %7221 = vmatmul.mubr.f32.gmra.mxu0 %v7112
  %v7222 = vpop.f32.mrf.mxu0
  %v7223 = vadd.f32 %v7054, %v7222
  %v7224 = vpop.f32.mrf.mxu0
  %7225 = vmatprep.mubr.f32.mxu0 0.0
  %7226 = vmatmul.mubr.f32.gmra.mxu0 %v7114
  %v7227 = vpop.f32.mrf.mxu0
  %v7228 = vadd.f32 %v7054, %v7227
  %v7229 = vpop.f32.mrf.mxu0
  %7230 = vmatprep.mubr.f32.mxu0 0.0
  %7231 = vmatmul.mubr.f32.gmra.mxu0 %v7116
  %v7232 = vpop.f32.mrf.mxu0
  %v7233 = vadd.f32 %v7054, %v7232
  %v7234 = vpop.f32.mrf.mxu0
  %7235 = vmatprep.mubr.f32.mxu0 0.0
  %7236 = vmatmul.mubr.f32.gmra.mxu0 %v7118
  %v7237 = vpop.f32.mrf.mxu0
  %v7238 = vadd.f32 %v7054, %v7237
  %v7239 = vpop.f32.mrf.mxu0
  %7240 = vmatprep.mubr.f32.mxu0 0.0
  %7241 = vmatmul.mubr.f32.gmra.mxu0 %v7120
  %v7242 = vpop.f32.mrf.mxu0
  %v7243 = vadd.f32 %v7054, %v7242
  %v7244 = vpop.f32.mrf.mxu0
  %7245 = vmatprep.mubr.f32.mxu0 0.0
  %7246 = vmatmul.mubr.f32.gmra.mxu0 %v7122
  %v7247 = vpop.f32.mrf.mxu0
  %v7248 = vadd.f32 %v7054, %v7247
  %v7249 = vpop.f32.mrf.mxu0
  %7250 = vmatprep.mubr.f32.mxu0 0.0
  %7251 = vmatmul.mubr.f32.gmra.mxu0 %v7124
  %v7252 = vpop.f32.mrf.mxu0
  %v7253 = vadd.f32 %v7054, %v7252
  %v7254 = vpop.f32.mrf.mxu0
  %7255 = vmatprep.mubr.f32.mxu0 0.0
  %7256 = vmatmul.mubr.f32.gmra.mxu0 %v7126
  %v7257 = vpop.f32.mrf.mxu0
  %v7258 = vadd.f32 %v7054, %v7257
  %v7259 = vpop.f32.mrf.mxu0
  %7260 = vmatprep.mubr.f32.mxu0 0.0
  %7261 = vmatmul.mubr.f32.gmra.mxu0 %v7128
  %v7262 = vpop.f32.mrf.mxu0
  %v7263 = vadd.f32 %v7054, %v7262
  %v7264 = vpop.f32.mrf.mxu0
  %7265 = vmatprep.mubr.f32.mxu0 0.0
  %7266 = vmatmul.mubr.f32.gmra.mxu0 %v7130
  %v7267 = vpop.f32.mrf.mxu0
  %v7268 = vadd.f32 %v7054, %v7267
  %v7269 = vpop.f32.mrf.mxu0
  %7270 = vmatprep.mubr.f32.mxu0 0.0
  %7271 = vmatmul.mubr.f32.gmra.mxu0 %v7132
  %v7272 = vpop.f32.mrf.mxu0
  %v7273 = vadd.f32 %v7054, %v7272
  %v7274 = vpop.f32.mrf.mxu0
  %7275 = vmatprep.mubr.f32.mxu0 0.0
  %7276 = vmatmul.mubr.f32.gmra.mxu0 %v7134
  %v7277 = vpop.f32.mrf.mxu0
  %v7278 = vadd.f32 %v7054, %v7277
  %v7279 = vpop.f32.mrf.mxu0
  %7280 = vdwg.mxu0
  %v7281 = vmax.f32 %v7203, 0.0
  %v7282 = vmax.f32 %v7208, 0.0
  %v7283 = vmax.f32 %v7213, 0.0
  %v7284 = vmax.f32 %v7218, 0.0
  %v7285 = vmax.f32 %v7223, 0.0
  %v7286 = vmax.f32 %v7228, 0.0
  %v7287 = vmax.f32 %v7233, 0.0
  %v7288 = vmax.f32 %v7238, 0.0
  %v7289 = vmax.f32 %v7243, 0.0
  %v7290 = vmax.f32 %v7248, 0.0
  %v7291 = vmax.f32 %v7253, 0.0
  %v7292 = vmax.f32 %v7258, 0.0
  %v7293 = vmax.f32 %v7263, 0.0
  %v7294 = vmax.f32 %v7268, 0.0
  %v7295 = vmax.f32 %v7273, 0.0
  %v7296 = vmax.f32 %v7278, 0.0
  %v7298 = vlaneseq
  %v7299 = vshrl.u32 %v7298, 7
  %v7300 = vsub.s32 0, %v7299
  %v7301 = vrot.slane %v5225, %v7300
  %v7304 = vsel %vm2003, %v7281, 0
  %v7307 = vsel %vm2003, %v7282, 0
  %v7310 = vsel %vm2003, %v7283, 0
  %v7313 = vsel %vm2003, %v7284, 0
  %v7316 = vsel %vm2003, %v7285, 0
  %v7319 = vsel %vm2003, %v7286, 0
  %v7322 = vsel %vm2003, %v7287, 0
  %v7325 = vsel %vm2003, %v7288, 0
  %v7328 = vsel %vm2003, %v7289, 0
  %v7331 = vsel %vm2003, %v7290, 0
  %v7334 = vsel %vm2003, %v7291, 0
  %v7337 = vsel %vm2003, %v7292, 0
  %v7340 = vsel %vm2003, %v7293, 0
  %v7343 = vsel %vm2003, %v7294, 0
  %v7346 = vsel %vm2003, %v7295, 0
  %v7349 = vsel %vm2003, %v7296, 0
  %7351 = vmatprep.subr.mxu0 0.0
  %7352 = vmatpush1.msra.mxu0 0.0
  %7353 = vmatprep.subr.mxu0 0.0
  %7354 = vmatpush1.msra.mxu0 0.0
  %7355 = vmatprep.subr.mxu0 0.0
  %7356 = vmatpush1.msra.mxu0 0.0
  %7357 = vmatprep.subr.mxu0 0.0
  %7358 = vmatpush1.msra.mxu0 0.0
  %7359 = vmatprep.subr.mxu0 0.0
  %7360 = vmatpush1.msra.mxu0 0.0
  %7361 = vmatprep.subr.mxu0 0.0
  %7362 = vmatpush1.msra.mxu0 0.0
  %7363 = vmatprep.subr.mxu0 0.0
  %7364 = vmatpush1.msra.mxu0 0.0
  %7365 = vmatprep.subr.mxu0 0.0
  %7366 = vmatpush1.msra.mxu0 0.0
  %7367 = vmatprep.subr.mxu0 0.0
  %7368 = vmatpush1.msra.mxu0 %v5224
  %7369 = vmatprep.subr.mxu0 0.0
  %7370 = vmatpush1.msra.mxu0 %v5223
  %7371 = vmatprep.subr.mxu0 0.0
  %7372 = vmatpush1.msra.mxu0 %v5222
  %7373 = vmatprep.subr.mxu0 0.0
  %7374 = vmatpush1.msra.mxu0 %v5221
  %7375 = vmatprep.subr.mxu0 0.0
  %7376 = vmatpush1.msra.mxu0 %v5220
  %7377 = vmatprep.subr.mxu0 0.0
  %7378 = vmatpush1.msra.mxu0 %v5219
  %7379 = vmatprep.subr.mxu0 0.0
  %7380 = vmatpush1.msra.mxu0 %v5218
  %7381 = vmatprep.subr.mxu0 0.0
  %7382 = vmatpush1.msra.mxu0 %v5217
  %7383 = vmatprep.subr.mxu0 0.0
  %7384 = vmatpush2.msra.mxu0 0.0
  %7385 = vmatprep.subr.mxu0 0.0
  %7386 = vmatpush2.msra.mxu0 0.0
  %7387 = vmatprep.subr.mxu0 0.0
  %7388 = vmatpush2.msra.mxu0 0.0
  %7389 = vmatprep.subr.mxu0 0.0
  %7390 = vmatpush2.msra.mxu0 0.0
  %7391 = vmatprep.subr.mxu0 0.0
  %7392 = vmatpush2.msra.mxu0 0.0
  %7393 = vmatprep.subr.mxu0 0.0
  %7394 = vmatpush2.msra.mxu0 0.0
  %7395 = vmatprep.subr.mxu0 0.0
  %7396 = vmatpush2.msra.mxu0 0.0
  %7397 = vmatprep.subr.mxu0 0.0
  %7398 = vmatpush2.msra.mxu0 0.0
  %7399 = vmatprep.subr.mxu0 0.0
  %7400 = vmatpush2.msra.mxu0 0.0
  %7401 = vmatprep.subr.mxu0 0.0
  %7402 = vmatpush2.msra.mxu0 0.0
  %7403 = vmatprep.subr.mxu0 0.0
  %7404 = vmatpush2.msra.mxu0 0.0
  %7405 = vmatprep.subr.mxu0 0.0
  %7406 = vmatpush2.msra.mxu0 0.0
  %7407 = vmatprep.subr.mxu0 0.0
  %7408 = vmatpush2.msra.mxu0 0.0
  %7409 = vmatprep.subr.mxu0 0.0
  %7410 = vmatpush2.msra.mxu0 0.0
  %7411 = vmatprep.subr.mxu0 0.0
  %7412 = vmatpush2.msra.mxu0 0.0
  %7413 = vmatprep.subr.mxu0 0.0
  %7414 = vmatpush2.msra.mxu0 0.0
  %7415 = vmatprep.mubr.f32.mxu0 0.0
  %7416 = vmatmul.mubr.f32.gmra.mxu0 %v7304
  %v7417 = vpop.f32.mrf.mxu0
  %v7418 = vadd.f32 %v7301, %v7417
  %v7419 = vpop.f32.mrf.mxu0
  %7420 = vmatprep.mubr.f32.mxu0 0.0
  %7421 = vmatmul.mubr.f32.gmra.mxu0 %v7307
  %v7422 = vpop.f32.mrf.mxu0
  %v7423 = vadd.f32 %v7301, %v7422
  %v7424 = vpop.f32.mrf.mxu0
  %7425 = vmatprep.mubr.f32.mxu0 0.0
  %7426 = vmatmul.mubr.f32.gmra.mxu0 %v7310
  %v7427 = vpop.f32.mrf.mxu0
  %v7428 = vadd.f32 %v7301, %v7427
  %v7429 = vpop.f32.mrf.mxu0
  %7430 = vmatprep.mubr.f32.mxu0 0.0
  %7431 = vmatmul.mubr.f32.gmra.mxu0 %v7313
  %v7432 = vpop.f32.mrf.mxu0
  %v7433 = vadd.f32 %v7301, %v7432
  %v7434 = vpop.f32.mrf.mxu0
  %7435 = vmatprep.mubr.f32.mxu0 0.0
  %7436 = vmatmul.mubr.f32.gmra.mxu0 %v7316
  %v7437 = vpop.f32.mrf.mxu0
  %v7438 = vadd.f32 %v7301, %v7437
  %v7439 = vpop.f32.mrf.mxu0
  %7440 = vmatprep.mubr.f32.mxu0 0.0
  %7441 = vmatmul.mubr.f32.gmra.mxu0 %v7319
  %v7442 = vpop.f32.mrf.mxu0
  %v7443 = vadd.f32 %v7301, %v7442
  %v7444 = vpop.f32.mrf.mxu0
  %7445 = vmatprep.mubr.f32.mxu0 0.0
  %7446 = vmatmul.mubr.f32.gmra.mxu0 %v7322
  %v7447 = vpop.f32.mrf.mxu0
  %v7448 = vadd.f32 %v7301, %v7447
  %v7449 = vpop.f32.mrf.mxu0
  %7450 = vmatprep.mubr.f32.mxu0 0.0
  %7451 = vmatmul.mubr.f32.gmra.mxu0 %v7325
  %v7452 = vpop.f32.mrf.mxu0
  %v7453 = vadd.f32 %v7301, %v7452
  %v7454 = vpop.f32.mrf.mxu0
  %7455 = vmatprep.mubr.f32.mxu0 0.0
  %7456 = vmatmul.mubr.f32.gmra.mxu0 %v7328
  %v7457 = vpop.f32.mrf.mxu0
  %v7458 = vadd.f32 %v7301, %v7457
  %v7459 = vpop.f32.mrf.mxu0
  %7460 = vmatprep.mubr.f32.mxu0 0.0
  %7461 = vmatmul.mubr.f32.gmra.mxu0 %v7331
  %v7462 = vpop.f32.mrf.mxu0
  %v7463 = vadd.f32 %v7301, %v7462
  %v7464 = vpop.f32.mrf.mxu0
  %7465 = vmatprep.mubr.f32.mxu0 0.0
  %7466 = vmatmul.mubr.f32.gmra.mxu0 %v7334
  %v7467 = vpop.f32.mrf.mxu0
  %v7468 = vadd.f32 %v7301, %v7467
  %v7469 = vpop.f32.mrf.mxu0
  %7470 = vmatprep.mubr.f32.mxu0 0.0
  %7471 = vmatmul.mubr.f32.gmra.mxu0 %v7337
  %v7472 = vpop.f32.mrf.mxu0
  %v7473 = vadd.f32 %v7301, %v7472
  %v7474 = vpop.f32.mrf.mxu0
  %7475 = vmatprep.mubr.f32.mxu0 0.0
  %7476 = vmatmul.mubr.f32.gmra.mxu0 %v7340
  %v7477 = vpop.f32.mrf.mxu0
  %v7478 = vadd.f32 %v7301, %v7477
  %v7479 = vpop.f32.mrf.mxu0
  %7480 = vmatprep.mubr.f32.mxu0 0.0
  %7481 = vmatmul.mubr.f32.gmra.mxu0 %v7343
  %v7482 = vpop.f32.mrf.mxu0
  %v7483 = vadd.f32 %v7301, %v7482
  %v7484 = vpop.f32.mrf.mxu0
  %7485 = vmatprep.mubr.f32.mxu0 0.0
  %7486 = vmatmul.mubr.f32.gmra.mxu0 %v7346
  %v7487 = vpop.f32.mrf.mxu0
  %v7488 = vadd.f32 %v7301, %v7487
  %v7489 = vpop.f32.mrf.mxu0
  %7490 = vmatprep.mubr.f32.mxu0 0.0
  %7491 = vmatmul.mubr.f32.gmra.mxu0 %v7349
  %v7492 = vpop.f32.mrf.mxu0
  %v7493 = vadd.f32 %v7301, %v7492
  %v7494 = vpop.f32.mrf.mxu0
  %7495 = vdwg.mxu0
  %7512 = vrot.lane.b32.xlu0 %v7418, 48
  %v7513 = vpop.permute.xlu0 %7512
  %7514 = vrot.lane.b32.xlu0 %v7423, 48
  %v7515 = vpop.permute.xlu0 %7514
  %7516 = vrot.lane.b32.xlu0 %v7428, 48
  %v7517 = vpop.permute.xlu0 %7516
  %7518 = vrot.lane.b32.xlu0 %v7433, 48
  %v7519 = vpop.permute.xlu0 %7518
  %7520 = vrot.lane.b32.xlu0 %v7438, 48
  %v7521 = vpop.permute.xlu0 %7520
  %7522 = vrot.lane.b32.xlu0 %v7443, 48
  %v7523 = vpop.permute.xlu0 %7522
  %7524 = vrot.lane.b32.xlu0 %v7448, 48
  %v7525 = vpop.permute.xlu0 %7524
  %7526 = vrot.lane.b32.xlu0 %v7453, 48
  %v7527 = vpop.permute.xlu0 %7526
  %7528 = vrot.lane.b32.xlu0 %v7458, 48
  %v7529 = vpop.permute.xlu0 %7528
  %7530 = vrot.lane.b32.xlu0 %v7463, 48
  %v7531 = vpop.permute.xlu0 %7530
  %7532 = vrot.lane.b32.xlu0 %v7468, 48
  %v7533 = vpop.permute.xlu0 %7532
  %7534 = vrot.lane.b32.xlu0 %v7473, 48
  %v7535 = vpop.permute.xlu0 %7534
  %7536 = vrot.lane.b32.xlu0 %v7478, 48
  %v7537 = vpop.permute.xlu0 %7536
  %7538 = vrot.lane.b32.xlu0 %v7483, 48
  %v7539 = vpop.permute.xlu0 %7538
  %7540 = vrot.lane.b32.xlu0 %v7488, 48
  %v7541 = vpop.permute.xlu0 %7540
  %7542 = vrot.lane.b32.xlu0 %v7493, 48
  %v7543 = vpop.permute.xlu0 %7542
  %v7560 = vadd.f32 %v7034, %v7513
  %v7561 = vadd.f32 %v7035, %v7515
  %v7562 = vadd.f32 %v7036, %v7517
  %v7563 = vadd.f32 %v7037, %v7519
  %v7564 = vadd.f32 %v7038, %v7521
  %v7565 = vadd.f32 %v7039, %v7523
  %v7566 = vadd.f32 %v7040, %v7525
  %v7567 = vadd.f32 %v7041, %v7527
  %v7568 = vadd.f32 %v7042, %v7529
  %v7569 = vadd.f32 %v7043, %v7531
  %v7570 = vadd.f32 %v7044, %v7533
  %v7571 = vadd.f32 %v7045, %v7535
  %v7572 = vadd.f32 %v7046, %v7537
  %v7573 = vadd.f32 %v7047, %v7539
  %v7574 = vadd.f32 %v7048, %v7541
  %v7575 = vadd.f32 %v7049, %v7543
  %7592 = vrot.lane.b32.xlu0 %v7560, 80
  %v7593 = vpop.permute.xlu0 %7592
  %7594 = vrot.lane.b32.xlu0 %v7561, 80
  %v7595 = vpop.permute.xlu0 %7594
  %7596 = vrot.lane.b32.xlu0 %v7562, 80
  %v7597 = vpop.permute.xlu0 %7596
  %7598 = vrot.lane.b32.xlu0 %v7563, 80
  %v7599 = vpop.permute.xlu0 %7598
  %7600 = vrot.lane.b32.xlu0 %v7564, 80
  %v7601 = vpop.permute.xlu0 %7600
  %7602 = vrot.lane.b32.xlu0 %v7565, 80
  %v7603 = vpop.permute.xlu0 %7602
  %7604 = vrot.lane.b32.xlu0 %v7566, 80
  %v7605 = vpop.permute.xlu0 %7604
  %7606 = vrot.lane.b32.xlu0 %v7567, 80
  %v7607 = vpop.permute.xlu0 %7606
  %7608 = vrot.lane.b32.xlu0 %v7568, 80
  %v7609 = vpop.permute.xlu0 %7608
  %7610 = vrot.lane.b32.xlu0 %v7569, 80
  %v7611 = vpop.permute.xlu0 %7610
  %7612 = vrot.lane.b32.xlu0 %v7570, 80
  %v7613 = vpop.permute.xlu0 %7612
  %7614 = vrot.lane.b32.xlu0 %v7571, 80
  %v7615 = vpop.permute.xlu0 %7614
  %7616 = vrot.lane.b32.xlu0 %v7572, 80
  %v7617 = vpop.permute.xlu0 %7616
  %7618 = vrot.lane.b32.xlu0 %v7573, 80
  %v7619 = vpop.permute.xlu0 %7618
  %7620 = vrot.lane.b32.xlu0 %v7574, 80
  %v7621 = vpop.permute.xlu0 %7620
  %7622 = vrot.lane.b32.xlu0 %v7575, 80
  %v7623 = vpop.permute.xlu0 %7622
  %v7640 = vsel %vm731, %v7593, 0.0
  %7641 = vadd.xlane.f32.xlu0 %v7640
  %v7642 = vpop.xlane.xlu0 %7641
  %v7643 = vsel %vm731, %v7595, 0.0
  %7644 = vadd.xlane.f32.xlu0 %v7643
  %v7645 = vpop.xlane.xlu0 %7644
  %v7646 = vsel %vm731, %v7597, 0.0
  %7647 = vadd.xlane.f32.xlu0 %v7646
  %v7648 = vpop.xlane.xlu0 %7647
  %v7649 = vsel %vm731, %v7599, 0.0
  %7650 = vadd.xlane.f32.xlu0 %v7649
  %v7651 = vpop.xlane.xlu0 %7650
  %v7652 = vsel %vm731, %v7601, 0.0
  %7653 = vadd.xlane.f32.xlu0 %v7652
  %v7654 = vpop.xlane.xlu0 %7653
  %v7655 = vsel %vm731, %v7603, 0.0
  %7656 = vadd.xlane.f32.xlu0 %v7655
  %v7657 = vpop.xlane.xlu0 %7656
  %v7658 = vsel %vm731, %v7605, 0.0
  %7659 = vadd.xlane.f32.xlu0 %v7658
  %v7660 = vpop.xlane.xlu0 %7659
  %v7661 = vsel %vm731, %v7607, 0.0
  %7662 = vadd.xlane.f32.xlu0 %v7661
  %v7663 = vpop.xlane.xlu0 %7662
  %v7664 = vsel %vm731, %v7609, 0.0
  %7665 = vadd.xlane.f32.xlu0 %v7664
  %v7666 = vpop.xlane.xlu0 %7665
  %v7667 = vsel %vm731, %v7611, 0.0
  %7668 = vadd.xlane.f32.xlu0 %v7667
  %v7669 = vpop.xlane.xlu0 %7668
  %v7670 = vsel %vm731, %v7613, 0.0
  %7671 = vadd.xlane.f32.xlu0 %v7670
  %v7672 = vpop.xlane.xlu0 %7671
  %v7673 = vsel %vm731, %v7615, 0.0
  %7674 = vadd.xlane.f32.xlu0 %v7673
  %v7675 = vpop.xlane.xlu0 %7674
  %v7676 = vsel %vm731, %v7617, 0.0
  %7677 = vadd.xlane.f32.xlu0 %v7676
  %v7678 = vpop.xlane.xlu0 %7677
  %v7679 = vsel %vm731, %v7619, 0.0
  %7680 = vadd.xlane.f32.xlu0 %v7679
  %v7681 = vpop.xlane.xlu0 %7680
  %v7682 = vsel %vm731, %v7621, 0.0
  %7683 = vadd.xlane.f32.xlu0 %v7682
  %v7684 = vpop.xlane.xlu0 %7683
  %v7685 = vsel %vm731, %v7623, 0.0
  %7686 = vadd.xlane.f32.xlu0 %v7685
  %v7687 = vpop.xlane.xlu0 %7686
  %v7688 = vmul.f32 %v7642, %v4028
  %v7689 = vmul.f32 %v7645, %v4028
  %v7690 = vmul.f32 %v7648, %v4028
  %v7691 = vmul.f32 %v7651, %v4028
  %v7692 = vmul.f32 %v7654, %v4028
  %v7693 = vmul.f32 %v7657, %v4028
  %v7694 = vmul.f32 %v7660, %v4028
  %v7695 = vmul.f32 %v7663, %v4028
  %v7696 = vmul.f32 %v7666, %v4028
  %v7697 = vmul.f32 %v7669, %v4028
  %v7698 = vmul.f32 %v7672, %v4028
  %v7699 = vmul.f32 %v7675, %v4028
  %v7700 = vmul.f32 %v7678, %v4028
  %v7701 = vmul.f32 %v7681, %v4028
  %v7702 = vmul.f32 %v7684, %v4028
  %v7703 = vmul.f32 %v7687, %v4028
  %v7704 = vsub.f32 %v7560, %v7688
  %v7705 = vsub.f32 %v7561, %v7689
  %v7706 = vsub.f32 %v7562, %v7690
  %v7707 = vsub.f32 %v7563, %v7691
  %v7708 = vsub.f32 %v7564, %v7692
  %v7709 = vsub.f32 %v7565, %v7693
  %v7710 = vsub.f32 %v7566, %v7694
  %v7711 = vsub.f32 %v7567, %v7695
  %v7712 = vsub.f32 %v7568, %v7696
  %v7713 = vsub.f32 %v7569, %v7697
  %v7714 = vsub.f32 %v7570, %v7698
  %v7715 = vsub.f32 %v7571, %v7699
  %v7716 = vsub.f32 %v7572, %v7700
  %v7717 = vsub.f32 %v7573, %v7701
  %v7718 = vsub.f32 %v7574, %v7702
  %v7719 = vsub.f32 %v7575, %v7703
  %v7720 = vmul.f32 %v7704, %v7704
  %v7721 = vmul.f32 %v7705, %v7705
  %v7722 = vmul.f32 %v7706, %v7706
  %v7723 = vmul.f32 %v7707, %v7707
  %v7724 = vmul.f32 %v7708, %v7708
  %v7725 = vmul.f32 %v7709, %v7709
  %v7726 = vmul.f32 %v7710, %v7710
  %v7727 = vmul.f32 %v7711, %v7711
  %v7728 = vmul.f32 %v7712, %v7712
  %v7729 = vmul.f32 %v7713, %v7713
  %v7730 = vmul.f32 %v7714, %v7714
  %v7731 = vmul.f32 %v7715, %v7715
  %v7732 = vmul.f32 %v7716, %v7716
  %v7733 = vmul.f32 %v7717, %v7717
  %v7734 = vmul.f32 %v7718, %v7718
  %v7735 = vmul.f32 %v7719, %v7719
  %7752 = vrot.lane.b32.xlu0 %v7720, 80
  %v7753 = vpop.permute.xlu0 %7752
  %7754 = vrot.lane.b32.xlu0 %v7721, 80
  %v7755 = vpop.permute.xlu0 %7754
  %7756 = vrot.lane.b32.xlu0 %v7722, 80
  %v7757 = vpop.permute.xlu0 %7756
  %7758 = vrot.lane.b32.xlu0 %v7723, 80
  %v7759 = vpop.permute.xlu0 %7758
  %7760 = vrot.lane.b32.xlu0 %v7724, 80
  %v7761 = vpop.permute.xlu0 %7760
  %7762 = vrot.lane.b32.xlu0 %v7725, 80
  %v7763 = vpop.permute.xlu0 %7762
  %7764 = vrot.lane.b32.xlu0 %v7726, 80
  %v7765 = vpop.permute.xlu0 %7764
  %7766 = vrot.lane.b32.xlu0 %v7727, 80
  %v7767 = vpop.permute.xlu0 %7766
  %7768 = vrot.lane.b32.xlu0 %v7728, 80
  %v7769 = vpop.permute.xlu0 %7768
  %7770 = vrot.lane.b32.xlu0 %v7729, 80
  %v7771 = vpop.permute.xlu0 %7770
  %7772 = vrot.lane.b32.xlu0 %v7730, 80
  %v7773 = vpop.permute.xlu0 %7772
  %7774 = vrot.lane.b32.xlu0 %v7731, 80
  %v7775 = vpop.permute.xlu0 %7774
  %7776 = vrot.lane.b32.xlu0 %v7732, 80
  %v7777 = vpop.permute.xlu0 %7776
  %7778 = vrot.lane.b32.xlu0 %v7733, 80
  %v7779 = vpop.permute.xlu0 %7778
  %7780 = vrot.lane.b32.xlu0 %v7734, 80
  %v7781 = vpop.permute.xlu0 %7780
  %7782 = vrot.lane.b32.xlu0 %v7735, 80
  %v7783 = vpop.permute.xlu0 %7782
  %v7800 = vsel %vm731, %v7753, 0.0
  %7801 = vadd.xlane.f32.xlu0 %v7800
  %v7802 = vpop.xlane.xlu0 %7801
  %v7803 = vsel %vm731, %v7755, 0.0
  %7804 = vadd.xlane.f32.xlu0 %v7803
  %v7805 = vpop.xlane.xlu0 %7804
  %v7806 = vsel %vm731, %v7757, 0.0
  %7807 = vadd.xlane.f32.xlu0 %v7806
  %v7808 = vpop.xlane.xlu0 %7807
  %v7809 = vsel %vm731, %v7759, 0.0
  %7810 = vadd.xlane.f32.xlu0 %v7809
  %v7811 = vpop.xlane.xlu0 %7810
  %v7812 = vsel %vm731, %v7761, 0.0
  %7813 = vadd.xlane.f32.xlu0 %v7812
  %v7814 = vpop.xlane.xlu0 %7813
  %v7815 = vsel %vm731, %v7763, 0.0
  %7816 = vadd.xlane.f32.xlu0 %v7815
  %v7817 = vpop.xlane.xlu0 %7816
  %v7818 = vsel %vm731, %v7765, 0.0
  %7819 = vadd.xlane.f32.xlu0 %v7818
  %v7820 = vpop.xlane.xlu0 %7819
  %v7821 = vsel %vm731, %v7767, 0.0
  %7822 = vadd.xlane.f32.xlu0 %v7821
  %v7823 = vpop.xlane.xlu0 %7822
  %v7824 = vsel %vm731, %v7769, 0.0
  %7825 = vadd.xlane.f32.xlu0 %v7824
  %v7826 = vpop.xlane.xlu0 %7825
  %v7827 = vsel %vm731, %v7771, 0.0
  %7828 = vadd.xlane.f32.xlu0 %v7827
  %v7829 = vpop.xlane.xlu0 %7828
  %v7830 = vsel %vm731, %v7773, 0.0
  %7831 = vadd.xlane.f32.xlu0 %v7830
  %v7832 = vpop.xlane.xlu0 %7831
  %v7833 = vsel %vm731, %v7775, 0.0
  %7834 = vadd.xlane.f32.xlu0 %v7833
  %v7835 = vpop.xlane.xlu0 %7834
  %v7836 = vsel %vm731, %v7777, 0.0
  %7837 = vadd.xlane.f32.xlu0 %v7836
  %v7838 = vpop.xlane.xlu0 %7837
  %v7839 = vsel %vm731, %v7779, 0.0
  %7840 = vadd.xlane.f32.xlu0 %v7839
  %v7841 = vpop.xlane.xlu0 %7840
  %v7842 = vsel %vm731, %v7781, 0.0
  %7843 = vadd.xlane.f32.xlu0 %v7842
  %v7844 = vpop.xlane.xlu0 %7843
  %v7845 = vsel %vm731, %v7783, 0.0
  %7846 = vadd.xlane.f32.xlu0 %v7845
  %v7847 = vpop.xlane.xlu0 %7846
  %v7848 = vmul.f32 %v7802, %v4028
  %v7849 = vmul.f32 %v7805, %v4028
  %v7850 = vmul.f32 %v7808, %v4028
  %v7851 = vmul.f32 %v7811, %v4028
  %v7852 = vmul.f32 %v7814, %v4028
  %v7853 = vmul.f32 %v7817, %v4028
  %v7854 = vmul.f32 %v7820, %v4028
  %v7855 = vmul.f32 %v7823, %v4028
  %v7856 = vmul.f32 %v7826, %v4028
  %v7857 = vmul.f32 %v7829, %v4028
  %v7858 = vmul.f32 %v7832, %v4028
  %v7859 = vmul.f32 %v7835, %v4028
  %v7860 = vmul.f32 %v7838, %v4028
  %v7861 = vmul.f32 %v7841, %v4028
  %v7862 = vmul.f32 %v7844, %v4028
  %v7863 = vmul.f32 %v7847, %v4028
  %v7864 = vadd.f32 %v7848, 1e-05
  %v7865 = vadd.f32 %v7849, 1e-05
  %v7866 = vadd.f32 %v7850, 1e-05
  %v7867 = vadd.f32 %v7851, 1e-05
  %v7868 = vadd.f32 %v7852, 1e-05
  %v7869 = vadd.f32 %v7853, 1e-05
  %v7870 = vadd.f32 %v7854, 1e-05
  %v7871 = vadd.f32 %v7855, 1e-05
  %v7872 = vadd.f32 %v7856, 1e-05
  %v7873 = vadd.f32 %v7857, 1e-05
  %v7874 = vadd.f32 %v7858, 1e-05
  %v7875 = vadd.f32 %v7859, 1e-05
  %v7876 = vadd.f32 %v7860, 1e-05
  %v7877 = vadd.f32 %v7861, 1e-05
  %v7878 = vadd.f32 %v7862, 1e-05
  %v7879 = vadd.f32 %v7863, 1e-05
  %v7880 = vrsqrt.pop %v7864
  %v7881 = vrsqrt.pop %v7865
  %v7882 = vrsqrt.pop %v7866
  %v7883 = vrsqrt.pop %v7867
  %v7884 = vrsqrt.pop %v7868
  %v7885 = vrsqrt.pop %v7869
  %v7886 = vrsqrt.pop %v7870
  %v7887 = vrsqrt.pop %v7871
  %v7888 = vrsqrt.pop %v7872
  %v7889 = vrsqrt.pop %v7873
  %v7890 = vrsqrt.pop %v7874
  %v7891 = vrsqrt.pop %v7875
  %v7892 = vrsqrt.pop %v7876
  %v7893 = vrsqrt.pop %v7877
  %v7894 = vrsqrt.pop %v7878
  %v7895 = vrsqrt.pop %v7879
  %v7896 = vmul.f32 %v7704, %v7880
  %v7897 = vmul.f32 %v7705, %v7881
  %v7898 = vmul.f32 %v7706, %v7882
  %v7899 = vmul.f32 %v7707, %v7883
  %v7900 = vmul.f32 %v7708, %v7884
  %v7901 = vmul.f32 %v7709, %v7885
  %v7902 = vmul.f32 %v7710, %v7886
  %v7903 = vmul.f32 %v7711, %v7887
  %v7904 = vmul.f32 %v7712, %v7888
  %v7905 = vmul.f32 %v7713, %v7889
  %v7906 = vmul.f32 %v7714, %v7890
  %v7907 = vmul.f32 %v7715, %v7891
  %v7908 = vmul.f32 %v7716, %v7892
  %v7909 = vmul.f32 %v7717, %v7893
  %v7910 = vmul.f32 %v7718, %v7894
  %v7911 = vmul.f32 %v7719, %v7895
  %v7912 = vlaneseq
  %v7913 = vshrl.u32 %v7912, 7
  %v7914 = vsub.s32 2, %v7913
  %v7915 = vrot.slane %v5226, %v7914
  %7917 = vrot.lane.b32.xlu0 %v7915, 48
  %v7918 = vpop.permute.xlu0 %7917
  %v7920 = vmul.f32 %v7896, %v7918
  %v7921 = vmul.f32 %v7897, %v7918
  %v7922 = vmul.f32 %v7898, %v7918
  %v7923 = vmul.f32 %v7899, %v7918
  %v7924 = vmul.f32 %v7900, %v7918
  %v7925 = vmul.f32 %v7901, %v7918
  %v7926 = vmul.f32 %v7902, %v7918
  %v7927 = vmul.f32 %v7903, %v7918
  %v7928 = vmul.f32 %v7904, %v7918
  %v7929 = vmul.f32 %v7905, %v7918
  %v7930 = vmul.f32 %v7906, %v7918
  %v7931 = vmul.f32 %v7907, %v7918
  %v7932 = vmul.f32 %v7908, %v7918
  %v7933 = vmul.f32 %v7909, %v7918
  %v7934 = vmul.f32 %v7910, %v7918
  %v7935 = vmul.f32 %v7911, %v7918
  %v7936 = vlaneseq
  %v7937 = vshrl.u32 %v7936, 7
  %v7938 = vsub.s32 3, %v7937
  %v7939 = vrot.slane %v5226, %v7938
  %7941 = vrot.lane.b32.xlu0 %v7939, 48
  %v7942 = vpop.permute.xlu0 %7941
  %v7944 = vadd.f32 %v7920, %v7942
  %v7945 = vadd.f32 %v7921, %v7942
  %v7946 = vadd.f32 %v7922, %v7942
  %v7947 = vadd.f32 %v7923, %v7942
  %v7948 = vadd.f32 %v7924, %v7942
  %v7949 = vadd.f32 %v7925, %v7942
  %v7950 = vadd.f32 %v7926, %v7942
  %v7951 = vadd.f32 %v7927, %v7942
  %v7952 = vadd.f32 %v7928, %v7942
  %v7953 = vadd.f32 %v7929, %v7942
  %v7954 = vadd.f32 %v7930, %v7942
  %v7955 = vadd.f32 %v7931, %v7942
  %v7956 = vadd.f32 %v7932, %v7942
  %v7957 = vadd.f32 %v7933, %v7942
  %v7958 = vadd.f32 %v7934, %v7942
  %v7959 = vadd.f32 %v7935, %v7942
  %v7960 = vsel %vm162, %v2445, %v5195
  %v7961 = vsel %vm162, %v2446, %v5196
  %v7962 = vsel %vm162, %v2447, %v5197
  %v7963 = vsel %vm162, %v2448, %v5198
  %v7964 = vsel %vm162, %v2449, %v5199
  %v7965 = vsel %vm162, %v2450, %v5200
  %v7966 = vsel %vm162, %v2451, %v5201
  %v7967 = vsel %vm162, %v2452, %v5202
  %v7968 = vsel %vm162, %v2453, %v5203
  %v7969 = vsel %vm162, %v2454, %v5204
  %v7970 = vsel %vm162, %v2455, %v5205
  %v7971 = vsel %vm162, %v2456, %v5206
  %v7972 = vsel %vm162, %v2457, %v5207
  %v7973 = vsel %vm162, %v2458, %v5208
  %v7974 = vsel %vm162, %v2459, %v5209
  %v7975 = vsel %vm162, %v2460, %v5210
  %vm7976 = vcmask 392192
  %v7977 = vsel %vm7976, %v7960, %v7944
  %v7978 = vsel %vm7976, %v7961, %v7945
  %v7979 = vsel %vm7976, %v7962, %v7946
  %v7980 = vsel %vm7976, %v7963, %v7947
  %v7981 = vsel %vm7976, %v7964, %v7948
  %v7982 = vsel %vm7976, %v7965, %v7949
  %v7983 = vsel %vm7976, %v7966, %v7950
  %v7984 = vsel %vm7976, %v7967, %v7951
  %v7985 = vsel %vm7976, %v7968, %v7952
  %v7986 = vsel %vm7976, %v7969, %v7953
  %v7987 = vsel %vm7976, %v7970, %v7954
  %v7988 = vsel %vm7976, %v7971, %v7955
  %v7989 = vsel %vm7976, %v7972, %v7956
  %v7990 = vsel %vm7976, %v7973, %v7957
  %v7991 = vsel %vm7976, %v7974, %v7958
  %v7992 = vsel %vm7976, %v7975, %v7959
  %7993 = vst.msk [vmem:[%s25] sm:$0xff] %vm2003, %v7977
  %7994 = vst.msk [vmem:[%s25 + $0x8] sm:$0xff] %vm2003, %v7978
  %7995 = vst.msk [vmem:[%s25 + $0x10] sm:$0xff] %vm2003, %v7979
  %7996 = vst.msk [vmem:[%s25 + $0x18] sm:$0xff] %vm2003, %v7980
  %7997 = vst.msk [vmem:[%s25 + $0x20] sm:$0xff] %vm2003, %v7981
  %7998 = vst.msk [vmem:[%s25 + $0x28] sm:$0xff] %vm2003, %v7982
  %7999 = vst.msk [vmem:[%s25 + $0x30] sm:$0xff] %vm2003, %v7983
  %8000 = vst.msk [vmem:[%s25 + $0x38] sm:$0xff] %vm2003, %v7984
  %8001 = vst.msk [vmem:[%s25 + $0x40] sm:$0xff] %vm2003, %v7985
  %8002 = vst.msk [vmem:[%s25 + $0x48] sm:$0xff] %vm2003, %v7986
  %8003 = vst.msk [vmem:[%s25 + $0x50] sm:$0xff] %vm2003, %v7987
  %8004 = vst.msk [vmem:[%s25 + $0x58] sm:$0xff] %vm2003, %v7988
  %8005 = vst.msk [vmem:[%s25 + $0x60] sm:$0xff] %vm2003, %v7989
  %8006 = vst.msk [vmem:[%s25 + $0x68] sm:$0xff] %vm2003, %v7990
  %8007 = vst.msk [vmem:[%s25 + $0x70] sm:$0xff] %vm2003, %v7991
  %8008 = vst.msk [vmem:[%s25 + $0x78] sm:$0xff] %vm2003, %v7992
  // Predicated region
  $region102: #{transt_trask_highway_forward.4} parent=0 // pred_check
    _
  $region103: #{transt_trask_highway_forward.4} parent=0 // pred_check_branch
    %8010 = sbr.rel (0) target = $region105
  $region104: #{transt_trask_highway_forward.4} parent=0 // pred_region
    _
  $region105: #{transt_trask_highway_forward.4} parent=0 // pred_fallthru
    _
  // Predicated region
  $region106: #{transt_trask_highway_forward.4} parent=0 // pred_check
    _
  $region107: #{transt_trask_highway_forward.4} parent=0 // pred_check_branch
    %8012 = sbr.rel (0) target = $region109
  $region108: #{transt_trask_highway_forward.4} parent=0 // pred_region
    _
  $region109: #{transt_trask_highway_forward.4} parent=0 // pred_fallthru
    _

</llo_original>
